<compile_context>
chip_gen: v6e
topology: v6e:2x2x1
jax: 0.10.0
libtpu: 0.0.40
codegen_flags: <defaults>
</compile_context>

<pallas_src>
import functools

import numpy as np

import jax
import jax.numpy as jnp
from jax.experimental import pallas as pl
from jax.experimental.pallas import tpu as pltpu


# ----------------------------------------------------------------------------
# Flat-layout constants (32x32 input image, 5x5 convs, 2x2 pools)
# ----------------------------------------------------------------------------
IMG = 32                       # input spatial size
IMG2 = IMG * IMG               # 1024 flat pixels per image / channel
C1_LAST = 27 * IMG + 27 + 1    # 892: conv1 valid-output flat columns per image
P1 = 14                        # pooled-1 spatial size
P1SZ = P1 * P1                 # 196
SEL1_IN = 26 * IMG + 26 + 1    # 859: flat window feeding the pool-1 selection
C2_LAST = 9 * P1 + 9 + 1       # 136: conv2 valid-output flat columns per image
P2 = 5                         # pooled-2 spatial size
P2SZ = P2 * P2                 # 25
SEL2_IN = 8 * P1 + 8 + 1       # 121: flat window feeding the pool-2 selection

CIN_PAD = 4                    # input channels 3 -> 4 (aligned bf16 sublane stores)
C1_PAD = 8                     # conv1 out channels 6 -> 8
K1 = 25 * CIN_PAD              # 100: stacked-contraction size for conv1
K2 = 25 * C1_PAD               # 200: stacked-contraction size for conv2
FC_PAD = 128                   # FC lane padding (120/84/10 -> 128)
CHUNK = 1024                   # conv output columns per matmul chunk


def _round_up(n, m):
    return ((n + m - 1) // m) * m


def _make_sel(n_out, row_stride, n_in):
    """One-hot selection: column (i, j) picks flat source 2*i*row_stride + 2*j."""
    sel = np.zeros((n_in, n_out * n_out), np.float32)
    for i in range(n_out):
        for j in range(n_out):
            sel[2 * i * row_stride + 2 * j, i * n_out + j] = 1.0
    return sel


# ----------------------------------------------------------------------------
# The fused Pallas kernel (whole network for one batch tile)
# ----------------------------------------------------------------------------
def lenet_kernel(x_ref, w1_ref, b1_ref, w2_ref, b2_ref,
                 sel1_ref, sel2_ref, emask_ref,
                 fc1w_ref, fc1b_ref, fc2w_ref, fc2b_ref, fc3w_ref, fc3b_ref,
                 o_ref,
                 im1_scr, y1_scr, p1_scr, im2_scr, y2_scr, feat_scr,
                 *, tb):
    f32 = jnp.float32
    bf16 = jnp.bfloat16
    conv1_w = (tb - 1) * IMG2 + C1_LAST     # flat width of conv1 output
    conv2_w = (tb - 1) * P1SZ + C2_LAST     # flat width of conv2 output

    w1 = w1_ref[...]          # (8, 100) bf16
    b1 = b1_ref[...]          # (8, 1)   f32
    w2 = w2_ref[...]          # (16, 200) bf16
    b2 = b2_ref[...]          # (16, 1)  f32

    # ---- conv1 (3->6, 5x5 valid): stacked im2col matmul, chunked along lanes --
    for c0 in range(0, conv1_w, CHUNK):
        cw = min(CHUNK, conv1_w - c0)
        for t in range(25):
            kh, kw = divmod(t, 5)
            off = kh * IMG + kw
            im1_scr[CIN_PAD * t:CIN_PAD * (t + 1), 0:cw] = \
                x_ref[:, c0 + off:c0 + off + cw]
        y = jnp.dot(w1, im1_scr[:, 0:cw], preferred_element_type=f32)
        y1_scr[:, c0:c0 + cw] = jnp.maximum(y + b1, 0.0)       # bias + ReLU (f32)

    # ---- max-pool 2x2/2 #1: shifted maxes + bf16 one-hot selection matmul -----
    sel1 = sel1_ref[...]      # (859, 196) bf16 (host precomputed constant)
    for b in range(tb):
        o0 = b * IMG2
        m = jnp.maximum(
            jnp.maximum(y1_scr[:, o0:o0 + SEL1_IN],
                        y1_scr[:, o0 + 1:o0 + 1 + SEL1_IN]),
            jnp.maximum(y1_scr[:, o0 + IMG:o0 + IMG + SEL1_IN],
                        y1_scr[:, o0 + IMG + 1:o0 + IMG + 1 + SEL1_IN]))
        p1_scr[:, b * P1SZ:(b + 1) * P1SZ] = jnp.dot(
            m.astype(bf16), sel1, preferred_element_type=f32).astype(bf16)

    # ---- conv2 (6->16, 5x5 valid): stacked im2col matmul ----------------------
    for c0 in range(0, conv2_w, CHUNK):
        cw = min(CHUNK, conv2_w - c0)
        for t in range(25):
            kh, kw = divmod(t, 5)
            off = kh * P1 + kw
            im2_scr[C1_PAD * t:C1_PAD * (t + 1), 0:cw] = \
                p1_scr[:, c0 + off:c0 + off + cw]
        y = jnp.dot(w2, im2_scr[:, 0:cw], preferred_element_type=f32)
        y2_scr[:, c0:c0 + cw] = jnp.maximum(y + b2, 0.0)

    # ---- max-pool #2 fused with the torch flatten -----------------------------
    # sel2 is (121, 400) = pool selection tiled 16x along lanes, so the matmul
    # already produces torch-flatten lane order; emask (16, 400) keeps only the
    # matching channel per 25-lane block and the ones-matmul collapses sublanes.
    sel2 = sel2_ref[...]      # (121, 400) bf16
    emask = emask_ref[...]    # (16, 400)  f32
    ones_r = jnp.ones((1, 16), bf16)
    for b in range(tb):
        o0 = b * P1SZ
        m = jnp.maximum(
            jnp.maximum(y2_scr[:, o0:o0 + SEL2_IN],
                        y2_scr[:, o0 + 1:o0 + 1 + SEL2_IN]),
            jnp.maximum(y2_scr[:, o0 + P1:o0 + P1 + SEL2_IN],
                        y2_scr[:, o0 + P1 + 1:o0 + P1 + 1 + SEL2_IN]))
        t16 = jnp.dot(m.astype(bf16), sel2, preferred_element_type=f32)  # (16,400)
        row = jnp.dot(ones_r, (t16 * emask).astype(bf16),
                      preferred_element_type=f32)                        # (1, 400)
        feat_scr[b:b + 1, :] = row

    # ---- fc1 -> relu -> fc2 -> relu -> fc3 (bf16 operands, f32 accumulate) ----
    feat = feat_scr[...].astype(bf16)                                    # (tb, 400)
    h = jnp.dot(feat, fc1w_ref[...], preferred_element_type=f32) + fc1b_ref[...]
    h = jnp.maximum(h, 0.0).astype(bf16)
    h = jnp.dot(h, fc2w_ref[...], preferred_element_type=f32) + fc2b_ref[...]
    h = jnp.maximum(h, 0.0).astype(bf16)
    out = jnp.dot(h, fc3w_ref[...], preferred_element_type=f32) + fc3b_ref[...]
    o_ref[0, :, :] = out                                                 # (tb, 128)


# ----------------------------------------------------------------------------
# Parameter init (PyTorch-default-style uniform) and one-time weight packing
# ----------------------------------------------------------------------------
def init_params(key):
    def uniform(key, shape, fan_in):
        bound = 1.0 / jnp.sqrt(float(fan_in))
        return jax.random.uniform(key, shape, jnp.float32, -bound, bound)

    ks = jax.random.split(key, 10)
    return {
        "w1": uniform(ks[0], (6, 3, 5, 5), 3 * 5 * 5),
        "b1": uniform(ks[1], (6,), 3 * 5 * 5),
        "w2": uniform(ks[2], (16, 6, 5, 5), 6 * 5 * 5),
        "b2": uniform(ks[3], (16,), 6 * 5 * 5),
        "fc1_w": uniform(ks[4], (120, 400), 400),
        "fc1_b": uniform(ks[5], (120,), 400),
        "fc2_w": uniform(ks[6], (84, 120), 120),
        "fc2_b": uniform(ks[7], (84,), 120),
        "fc3_w": uniform(ks[8], (10, 84), 84),
        "fc3_b": uniform(ks[9], (10,), 84),
    }


def pack_params(p):
    """One-time packing (outside the jitted forward): stacked conv weights,
    host-built pool-selection constants, lane-padded bf16 FC weights."""
    # conv1: (6,3,5,5) -> (8, 100) with row order [tap, cin], zero padding
    w1 = np.zeros((C1_PAD, CIN_PAD, 5, 5), np.float32)
    w1[:6, :3] = np.asarray(p["w1"])
    w1p = jnp.asarray(w1.transpose(0, 2, 3, 1).reshape(C1_PAD, K1), jnp.bfloat16)
    b1 = np.zeros((C1_PAD, 1), np.float32)
    b1[:6, 0] = np.asarray(p["b1"])

    # conv2: (16,6,5,5) -> (16, 200)
    w2 = np.zeros((16, C1_PAD, 5, 5), np.float32)
    w2[:, :6] = np.asarray(p["w2"])
    w2p = jnp.asarray(w2.transpose(0, 2, 3, 1).reshape(16, K2), jnp.bfloat16)
    b2 = np.asarray(p["b2"]).reshape(16, 1).astype(np.float32)

    # pool-selection constants (compile-time, bf16)
    sel1 = jnp.asarray(_make_sel(P1, IMG, SEL1_IN), jnp.bfloat16)              # (859,196)
    sel2 = jnp.asarray(np.tile(_make_sel(P2, P1, SEL2_IN), (1, 16)),
                       jnp.bfloat16)                                           # (121,400)
    em = np.zeros((16, 16 * P2SZ), np.float32)
    for c in range(16):
        em[c, c * P2SZ:(c + 1) * P2SZ] = 1.0

    # FC weights: transposed, zero-padded to 128 lanes, bf16
    fc1w = np.zeros((400, FC_PAD), np.float32); fc1w[:, :120] = np.asarray(p["fc1_w"]).T
    fc1b = np.zeros((1, FC_PAD), np.float32);   fc1b[0, :120] = np.asarray(p["fc1_b"])
    fc2w = np.zeros((FC_PAD, FC_PAD), np.float32); fc2w[:120, :84] = np.asarray(p["fc2_w"]).T
    fc2b = np.zeros((1, FC_PAD), np.float32);   fc2b[0, :84] = np.asarray(p["fc2_b"])
    fc3w = np.zeros((FC_PAD, FC_PAD), np.float32); fc3w[:84, :10] = np.asarray(p["fc3_w"]).T
    fc3b = np.zeros((1, FC_PAD), np.float32);   fc3b[0, :10] = np.asarray(p["fc3_b"])

    return {
        "w1": w1p, "b1": jnp.asarray(b1), "w2": w2p, "b2": jnp.asarray(b2),
        "sel1": sel1, "sel2": sel2, "emask": jnp.asarray(em),
        "fc1w": jnp.asarray(fc1w, jnp.bfloat16), "fc1b": jnp.asarray(fc1b),
        "fc2w": jnp.asarray(fc2w, jnp.bfloat16), "fc2b": jnp.asarray(fc2b),
        "fc3w": jnp.asarray(fc3w, jnp.bfloat16), "fc3b": jnp.asarray(fc3b),
    }


def _batch_tile(batch, max_tile=8):
    """Largest divisor of `batch` that is <= max_tile (keeps VMEM modest)."""
    for tb in range(min(batch, max_tile), 0, -1):
        if batch % tb == 0:
            return tb
    return 1


# ----------------------------------------------------------------------------
# Forward pass: one pallas_call, gridded over batch tiles
# ----------------------------------------------------------------------------
@jax.jit
def net_forward(x_nchw, packed):
    B = x_nchw.shape[0]
    TB = _batch_tile(B)
    nt = B // TB
    conv1_w = (TB - 1) * IMG2 + C1_LAST
    conv2_w = (TB - 1) * P1SZ + C2_LAST
    im1_lanes = min(CHUNK, _round_up(conv1_w, 128))
    im2_lanes = min(CHUNK, _round_up(conv2_w, 128))

    # channels-leading flat layout x[c, b*1024 + h*32 + w]; channels padded 3->4
    x_flat = jnp.transpose(x_nchw, (1, 0, 2, 3)).reshape(3, B * IMG2)
    x_flat = jnp.concatenate(
        [x_flat, jnp.zeros((CIN_PAD - 3, B * IMG2), x_flat.dtype)], axis=0)
    x_flat = x_flat.astype(jnp.bfloat16)

    def const_spec(a):
        nd = a.ndim
        return pl.BlockSpec(a.shape, lambda i, _n=nd: (0,) * _n)

    weights = (packed["w1"], packed["b1"], packed["w2"], packed["b2"],
               packed["sel1"], packed["sel2"], packed["emask"],
               packed["fc1w"], packed["fc1b"], packed["fc2w"], packed["fc2b"],
               packed["fc3w"], packed["fc3b"])

    out = pl.pallas_call(
        functools.partial(lenet_kernel, tb=TB),
        out_shape=jax.ShapeDtypeStruct((nt, TB, FC_PAD), jnp.float32),
        grid=(nt,),
        in_specs=[pl.BlockSpec((CIN_PAD, TB * IMG2), lambda i: (0, i))]
                 + [const_spec(w) for w in weights],
        out_specs=pl.BlockSpec((1, TB, FC_PAD), lambda i: (i, 0, 0)),
        scratch_shapes=[
            pltpu.VMEM((K1, im1_lanes), jnp.bfloat16),      # conv1 im2col chunk
            pltpu.VMEM((C1_PAD, conv1_w), jnp.float32),     # conv1 + relu
            pltpu.VMEM((C1_PAD, TB * P1SZ), jnp.bfloat16),  # pooled-1
            pltpu.VMEM((K2, im2_lanes), jnp.bfloat16),      # conv2 im2col chunk
            pltpu.VMEM((16, conv2_w), jnp.float32),         # conv2 + relu
            pltpu.VMEM((TB, 16 * P2SZ), jnp.float32),       # flattened features
        ],
        compiler_params=pltpu.CompilerParams(
            dimension_semantics=("parallel",),
            # per-tile VMEM usage is ~2 MiB at TB=8; 32 MiB is safe on
            # v5e/v6e (128 MiB) and within v7x's 64 MiB.
            vmem_limit_bytes=32 * 1024 * 1024),
    )(x_flat, *weights)

    return out.reshape(B, FC_PAD)[:, :10]


# ----------------------------------------------------------------------------
# Pure-JAX reference (correctness sanity check)
# ----------------------------------------------------------------------------
def net_forward_ref(x, p):
    dn = ("NCHW", "OIHW", "NCHW")
    y = jax.lax.conv_general_dilated(x, p["w1"], (1, 1), "VALID", dimension_numbers=dn)
    y = jax.nn.relu(y + p["b1"].reshape(1, 6, 1, 1))
    y = jax.lax.reduce_window(y, -jnp.inf, jax.lax.max, (1, 1, 2, 2), (1, 1, 2, 2), "VALID")
    y = jax.lax.conv_general_dilated(y, p["w2"], (1, 1), "VALID", dimension_numbers=dn)
    y = jax.nn.relu(y + p["b2"].reshape(1, 16, 1, 1))
    y = jax.lax.reduce_window(y, -jnp.inf, jax.lax.max, (1, 1, 2, 2), (1, 1, 2, 2), "VALID")
    y = y.reshape(y.shape[0], 400)
    y = jax.nn.relu(y @ p["fc1_w"].T + p["fc1_b"])
    y = jax.nn.relu(y @ p["fc2_w"].T + p["fc2_b"])
    return y @ p["fc3_w"].T + p["fc3_b"]


if __name__ == "__main__":
    key = jax.random.PRNGKey(0)
    k_x, k_p = jax.random.split(key)
    # fc1 expects 16*5*5 = 400 features, which implies 3x32x32 input.
    x = jax.random.normal(k_x, (2, 3, 32, 32), jnp.float32)
    params = init_params(k_p)
    packed = pack_params(params)   # one-time packing, outside the jitted forward

    out = jax.block_until_ready(net_forward(x, packed))
    assert out.shape == (2, 10), out.shape
    assert bool(jnp.all(jnp.isfinite(out)))

    ref = np.asarray(net_forward_ref(x, params))
    np.testing.assert_allclose(np.asarray(out), ref, atol=5e-2, rtol=1e-2)

    print("KERNEL_OK")
</pallas_src>

<mosaic_0001>
module attributes {stable_mosaic.version = 11 : i64} {
  func.func @lenet_kernel(%arg0: i32, %arg1: memref<4x2048xbf16, #tpu.memory_space<vmem>>, %arg2: memref<8x100xbf16, #tpu.memory_space<vmem>>, %arg3: memref<8x1xf32, #tpu.memory_space<vmem>>, %arg4: memref<16x200xbf16, #tpu.memory_space<vmem>>, %arg5: memref<16x1xf32, #tpu.memory_space<vmem>>, %arg6: memref<859x196xbf16, #tpu.memory_space<vmem>>, %arg7: memref<121x400xbf16, #tpu.memory_space<vmem>>, %arg8: memref<16x400xf32, #tpu.memory_space<vmem>>, %arg9: memref<400x128xbf16, #tpu.memory_space<vmem>>, %arg10: memref<1x128xf32, #tpu.memory_space<vmem>>, %arg11: memref<128x128xbf16, #tpu.memory_space<vmem>>, %arg12: memref<1x128xf32, #tpu.memory_space<vmem>>, %arg13: memref<128x128xbf16, #tpu.memory_space<vmem>>, %arg14: memref<1x128xf32, #tpu.memory_space<vmem>>, %arg15: memref<1x2x128xf32, #tpu.memory_space<vmem>>, %arg16: memref<100x1024xbf16, #tpu.memory_space<vmem>>, %arg17: memref<8x1916xf32, #tpu.memory_space<vmem>>, %arg18: memref<8x392xbf16, #tpu.memory_space<vmem>>, %arg19: memref<200x384xbf16, #tpu.memory_space<vmem>>, %arg20: memref<16x332xf32, #tpu.memory_space<vmem>>, %arg21: memref<2x400xf32, #tpu.memory_space<vmem>>) attributes {dimension_semantics = [#tpu.dimension_semantics<parallel>], iteration_bounds = array<i64: 1>, scalar_prefetch = 0 : i64, scratch_operands = 6 : i64, tpu.core_type = #tpu.core_type<tc>, window_params = [{transform_indices = @transform_0, window_bounds = array<i64: 4, 2048>}, {pipeline_mode = #tpu.pipeline_mode<synchronous>, transform_indices = @transform_1, window_bounds = array<i64: 8, 100>}, {pipeline_mode = #tpu.pipeline_mode<synchronous>, transform_indices = @transform_2, window_bounds = array<i64: 8, 1>}, {pipeline_mode = #tpu.pipeline_mode<synchronous>, transform_indices = @transform_3, window_bounds = array<i64: 16, 200>}, {pipeline_mode = #tpu.pipeline_mode<synchronous>, transform_indices = @transform_4, window_bounds = array<i64: 16, 1>}, {pipeline_mode = #tpu.pipeline_mode<synchronous>, transform_indices = @transform_5, window_bounds = array<i64: 859, 196>}, {pipeline_mode = #tpu.pipeline_mode<synchronous>, transform_indices = @transform_6, window_bounds = array<i64: 121, 400>}, {pipeline_mode = #tpu.pipeline_mode<synchronous>, transform_indices = @transform_7, window_bounds = array<i64: 16, 400>}, {pipeline_mode = #tpu.pipeline_mode<synchronous>, transform_indices = @transform_8, window_bounds = array<i64: 400, 128>}, {pipeline_mode = #tpu.pipeline_mode<synchronous>, transform_indices = @transform_9, window_bounds = array<i64: 1, 128>}, {pipeline_mode = #tpu.pipeline_mode<synchronous>, transform_indices = @transform_10, window_bounds = array<i64: 128, 128>}, {pipeline_mode = #tpu.pipeline_mode<synchronous>, transform_indices = @transform_11, window_bounds = array<i64: 1, 128>}, {pipeline_mode = #tpu.pipeline_mode<synchronous>, transform_indices = @transform_12, window_bounds = array<i64: 128, 128>}, {pipeline_mode = #tpu.pipeline_mode<synchronous>, transform_indices = @transform_13, window_bounds = array<i64: 1, 128>}, {transform_indices = @transform_14, window_bounds = array<i64: 1, 2, 128>}]} {
    %c0 = arith.constant 0 : index
    %c0_0 = arith.constant 0 : index
    %0 = vector.load %arg2[%c0, %c0_0] : memref<8x100xbf16, #tpu.memory_space<vmem>>, vector<8x100xbf16>
    %c0_1 = arith.constant 0 : index
    %c0_2 = arith.constant 0 : index
    %1 = vector.load %arg3[%c0_1, %c0_2] : memref<8x1xf32, #tpu.memory_space<vmem>>, vector<8x1xf32>
    %c0_3 = arith.constant 0 : index
    %c0_4 = arith.constant 0 : index
    %2 = vector.load %arg4[%c0_3, %c0_4] : memref<16x200xbf16, #tpu.memory_space<vmem>>, vector<16x200xbf16>
    %c0_5 = arith.constant 0 : index
    %c0_6 = arith.constant 0 : index
    %3 = vector.load %arg5[%c0_5, %c0_6] : memref<16x1xf32, #tpu.memory_space<vmem>>, vector<16x1xf32>
    %c0_7 = arith.constant 0 : index
    %c0_8 = arith.constant 0 : index
    %4 = vector.load %arg1[%c0_7, %c0_8] : memref<4x2048xbf16, #tpu.memory_space<vmem>>, vector<4x1024xbf16>
    %c0_9 = arith.constant 0 : index
    %c0_10 = arith.constant 0 : index
    %5 = vector.load %arg16[%c0_9, %c0_10] : memref<100x1024xbf16, #tpu.memory_space<vmem>>, vector<4x1024xbf16>
    tpu.vector_store %arg16[%c0_9, %c0_10], %4 {strides = array<i32>} : memref<100x1024xbf16, #tpu.memory_space<vmem>>, vector<4x1024xbf16>,
    %c0_11 = arith.constant 0 : index
    %c1 = arith.constant 1 : index
    %6 = vector.load %arg1[%c0_11, %c1] : memref<4x2048xbf16, #tpu.memory_space<vmem>>, vector<4x1024xbf16>
    %c4 = arith.constant 4 : index
    %c0_12 = arith.constant 0 : index
    %7 = vector.load %arg16[%c4, %c0_12] : memref<100x1024xbf16, #tpu.memory_space<vmem>>, vector<4x1024xbf16>
    tpu.vector_store %arg16[%c4, %c0_12], %6 {strides = array<i32>} : memref<100x1024xbf16, #tpu.memory_space<vmem>>, vector<4x1024xbf16>,
    %c0_13 = arith.constant 0 : index
    %c2 = arith.constant 2 : index
    %8 = vector.load %arg1[%c0_13, %c2] : memref<4x2048xbf16, #tpu.memory_space<vmem>>, vector<4x1024xbf16>
    %c8 = arith.constant 8 : index
    %c0_14 = arith.constant 0 : index
    %9 = vector.load %arg16[%c8, %c0_14] : memref<100x1024xbf16, #tpu.memory_space<vmem>>, vector<4x1024xbf16>
    tpu.vector_store %arg16[%c8, %c0_14], %8 {strides = array<i32>} : memref<100x1024xbf16, #tpu.memory_space<vmem>>, vector<4x1024xbf16>,
    %c0_15 = arith.constant 0 : index
    %c3 = arith.constant 3 : index
    %10 = vector.load %arg1[%c0_15, %c3] : memref<4x2048xbf16, #tpu.memory_space<vmem>>, vector<4x1024xbf16>
    %c12 = arith.constant 12 : index
    %c0_16 = arith.constant 0 : index
    %11 = vector.load %arg16[%c12, %c0_16] : memref<100x1024xbf16, #tpu.memory_space<vmem>>, vector<4x1024xbf16>
    tpu.vector_store %arg16[%c12, %c0_16], %10 {strides = array<i32>} : memref<100x1024xbf16, #tpu.memory_space<vmem>>, vector<4x1024xbf16>,
    %c0_17 = arith.constant 0 : index
    %c4_18 = arith.constant 4 : index
    %12 = vector.load %arg1[%c0_17, %c4_18] : memref<4x2048xbf16, #tpu.memory_space<vmem>>, vector<4x1024xbf16>
    %c16 = arith.constant 16 : index
    %c0_19 = arith.constant 0 : index
    %13 = vector.load %arg16[%c16, %c0_19] : memref<100x1024xbf16, #tpu.memory_space<vmem>>, vector<4x1024xbf16>
    tpu.vector_store %arg16[%c16, %c0_19], %12 {strides = array<i32>} : memref<100x1024xbf16, #tpu.memory_space<vmem>>, vector<4x1024xbf16>,
    %c0_20 = arith.constant 0 : index
    %c32 = arith.constant 32 : index
    %14 = vector.load %arg1[%c0_20, %c32] : memref<4x2048xbf16, #tpu.memory_space<vmem>>, vector<4x1024xbf16>
    %c20 = arith.constant 20 : index
    %c0_21 = arith.constant 0 : index
    %15 = vector.load %arg16[%c20, %c0_21] : memref<100x1024xbf16, #tpu.memory_space<vmem>>, vector<4x1024xbf16>
    tpu.vector_store %arg16[%c20, %c0_21], %14 {strides = array<i32>} : memref<100x1024xbf16, #tpu.memory_space<vmem>>, vector<4x1024xbf16>,
    %c0_22 = arith.constant 0 : index
    %c33 = arith.constant 33 : index
    %16 = vector.load %arg1[%c0_22, %c33] : memref<4x2048xbf16, #tpu.memory_space<vmem>>, vector<4x1024xbf16>
    %c24 = arith.constant 24 : index
    %c0_23 = arith.constant 0 : index
    %17 = vector.load %arg16[%c24, %c0_23] : memref<100x1024xbf16, #tpu.memory_space<vmem>>, vector<4x1024xbf16>
    tpu.vector_store %arg16[%c24, %c0_23], %16 {strides = array<i32>} : memref<100x1024xbf16, #tpu.memory_space<vmem>>, vector<4x1024xbf16>,
    %c0_24 = arith.constant 0 : index
    %c34 = arith.constant 34 : index
    %18 = vector.load %arg1[%c0_24, %c34] : memref<4x2048xbf16, #tpu.memory_space<vmem>>, vector<4x1024xbf16>
    %c28 = arith.constant 28 : index
    %c0_25 = arith.constant 0 : index
    %19 = vector.load %arg16[%c28, %c0_25] : memref<100x1024xbf16, #tpu.memory_space<vmem>>, vector<4x1024xbf16>
    tpu.vector_store %arg16[%c28, %c0_25], %18 {strides = array<i32>} : memref<100x1024xbf16, #tpu.memory_space<vmem>>, vector<4x1024xbf16>,
    %c0_26 = arith.constant 0 : index
    %c35 = arith.constant 35 : index
    %20 = vector.load %arg1[%c0_26, %c35] : memref<4x2048xbf16, #tpu.memory_space<vmem>>, vector<4x1024xbf16>
    %c32_27 = arith.constant 32 : index
    %c0_28 = arith.constant 0 : index
    %21 = vector.load %arg16[%c32_27, %c0_28] : memref<100x1024xbf16, #tpu.memory_space<vmem>>, vector<4x1024xbf16>
    tpu.vector_store %arg16[%c32_27, %c0_28], %20 {strides = array<i32>} : memref<100x1024xbf16, #tpu.memory_space<vmem>>, vector<4x1024xbf16>,
    %c0_29 = arith.constant 0 : index
    %c36 = arith.constant 36 : index
    %22 = vector.load %arg1[%c0_29, %c36] : memref<4x2048xbf16, #tpu.memory_space<vmem>>, vector<4x1024xbf16>
    %c36_30 = arith.constant 36 : index
    %c0_31 = arith.constant 0 : index
    %23 = vector.load %arg16[%c36_30, %c0_31] : memref<100x1024xbf16, #tpu.memory_space<vmem>>, vector<4x1024xbf16>
    tpu.vector_store %arg16[%c36_30, %c0_31], %22 {strides = array<i32>} : memref<100x1024xbf16, #tpu.memory_space<vmem>>, vector<4x1024xbf16>,
    %c0_32 = arith.constant 0 : index
    %c64 = arith.constant 64 : index
    %24 = vector.load %arg1[%c0_32, %c64] : memref<4x2048xbf16, #tpu.memory_space<vmem>>, vector<4x1024xbf16>
    %c40 = arith.constant 40 : index
    %c0_33 = arith.constant 0 : index
    %25 = vector.load %arg16[%c40, %c0_33] : memref<100x1024xbf16, #tpu.memory_space<vmem>>, vector<4x1024xbf16>
    tpu.vector_store %arg16[%c40, %c0_33], %24 {strides = array<i32>} : memref<100x1024xbf16, #tpu.memory_space<vmem>>, vector<4x1024xbf16>,
    %c0_34 = arith.constant 0 : index
    %c65 = arith.constant 65 : index
    %26 = vector.load %arg1[%c0_34, %c65] : memref<4x2048xbf16, #tpu.memory_space<vmem>>, vector<4x1024xbf16>
    %c44 = arith.constant 44 : index
    %c0_35 = arith.constant 0 : index
    %27 = vector.load %arg16[%c44, %c0_35] : memref<100x1024xbf16, #tpu.memory_space<vmem>>, vector<4x1024xbf16>
    tpu.vector_store %arg16[%c44, %c0_35], %26 {strides = array<i32>} : memref<100x1024xbf16, #tpu.memory_space<vmem>>, vector<4x1024xbf16>,
    %c0_36 = arith.constant 0 : index
    %c66 = arith.constant 66 : index
    %28 = vector.load %arg1[%c0_36, %c66] : memref<4x2048xbf16, #tpu.memory_space<vmem>>, vector<4x1024xbf16>
    %c48 = arith.constant 48 : index
    %c0_37 = arith.constant 0 : index
    %29 = vector.load %arg16[%c48, %c0_37] : memref<100x1024xbf16, #tpu.memory_space<vmem>>, vector<4x1024xbf16>
    tpu.vector_store %arg16[%c48, %c0_37], %28 {strides = array<i32>} : memref<100x1024xbf16, #tpu.memory_space<vmem>>, vector<4x1024xbf16>,
    %c0_38 = arith.constant 0 : index
    %c67 = arith.constant 67 : index
    %30 = vector.load %arg1[%c0_38, %c67] : memref<4x2048xbf16, #tpu.memory_space<vmem>>, vector<4x1024xbf16>
    %c52 = arith.constant 52 : index
    %c0_39 = arith.constant 0 : index
    %31 = vector.load %arg16[%c52, %c0_39] : memref<100x1024xbf16, #tpu.memory_space<vmem>>, vector<4x1024xbf16>
    tpu.vector_store %arg16[%c52, %c0_39], %30 {strides = array<i32>} : memref<100x1024xbf16, #tpu.memory_space<vmem>>, vector<4x1024xbf16>,
    %c0_40 = arith.constant 0 : index
    %c68 = arith.constant 68 : index
    %32 = vector.load %arg1[%c0_40, %c68] : memref<4x2048xbf16, #tpu.memory_space<vmem>>, vector<4x1024xbf16>
    %c56 = arith.constant 56 : index
    %c0_41 = arith.constant 0 : index
    %33 = vector.load %arg16[%c56, %c0_41] : memref<100x1024xbf16, #tpu.memory_space<vmem>>, vector<4x1024xbf16>
    tpu.vector_store %arg16[%c56, %c0_41], %32 {strides = array<i32>} : memref<100x1024xbf16, #tpu.memory_space<vmem>>, vector<4x1024xbf16>,
    %c0_42 = arith.constant 0 : index
    %c96 = arith.constant 96 : index
    %34 = vector.load %arg1[%c0_42, %c96] : memref<4x2048xbf16, #tpu.memory_space<vmem>>, vector<4x1024xbf16>
    %c60 = arith.constant 60 : index
    %c0_43 = arith.constant 0 : index
    %35 = vector.load %arg16[%c60, %c0_43] : memref<100x1024xbf16, #tpu.memory_space<vmem>>, vector<4x1024xbf16>
    tpu.vector_store %arg16[%c60, %c0_43], %34 {strides = array<i32>} : memref<100x1024xbf16, #tpu.memory_space<vmem>>, vector<4x1024xbf16>,
    %c0_44 = arith.constant 0 : index
    %c97 = arith.constant 97 : index
    %36 = vector.load %arg1[%c0_44, %c97] : memref<4x2048xbf16, #tpu.memory_space<vmem>>, vector<4x1024xbf16>
    %c64_45 = arith.constant 64 : index
    %c0_46 = arith.constant 0 : index
    %37 = vector.load %arg16[%c64_45, %c0_46] : memref<100x1024xbf16, #tpu.memory_space<vmem>>, vector<4x1024xbf16>
    tpu.vector_store %arg16[%c64_45, %c0_46], %36 {strides = array<i32>} : memref<100x1024xbf16, #tpu.memory_space<vmem>>, vector<4x1024xbf16>,
    %c0_47 = arith.constant 0 : index
    %c98 = arith.constant 98 : index
    %38 = vector.load %arg1[%c0_47, %c98] : memref<4x2048xbf16, #tpu.memory_space<vmem>>, vector<4x1024xbf16>
    %c68_48 = arith.constant 68 : index
    %c0_49 = arith.constant 0 : index
    %39 = vector.load %arg16[%c68_48, %c0_49] : memref<100x1024xbf16, #tpu.memory_space<vmem>>, vector<4x1024xbf16>
    tpu.vector_store %arg16[%c68_48, %c0_49], %38 {strides = array<i32>} : memref<100x1024xbf16, #tpu.memory_space<vmem>>, vector<4x1024xbf16>,
    %c0_50 = arith.constant 0 : index
    %c99 = arith.constant 99 : index
    %40 = vector.load %arg1[%c0_50, %c99] : memref<4x2048xbf16, #tpu.memory_space<vmem>>, vector<4x1024xbf16>
    %c72 = arith.constant 72 : index
    %c0_51 = arith.constant 0 : index
    %41 = vector.load %arg16[%c72, %c0_51] : memref<100x1024xbf16, #tpu.memory_space<vmem>>, vector<4x1024xbf16>
    tpu.vector_store %arg16[%c72, %c0_51], %40 {strides = array<i32>} : memref<100x1024xbf16, #tpu.memory_space<vmem>>, vector<4x1024xbf16>,
    %c0_52 = arith.constant 0 : index
    %c100 = arith.constant 100 : index
    %42 = vector.load %arg1[%c0_52, %c100] : memref<4x2048xbf16, #tpu.memory_space<vmem>>, vector<4x1024xbf16>
    %c76 = arith.constant 76 : index
    %c0_53 = arith.constant 0 : index
    %43 = vector.load %arg16[%c76, %c0_53] : memref<100x1024xbf16, #tpu.memory_space<vmem>>, vector<4x1024xbf16>
    tpu.vector_store %arg16[%c76, %c0_53], %42 {strides = array<i32>} : memref<100x1024xbf16, #tpu.memory_space<vmem>>, vector<4x1024xbf16>,
    %c0_54 = arith.constant 0 : index
    %c128 = arith.constant 128 : index
    %44 = vector.load %arg1[%c0_54, %c128] : memref<4x2048xbf16, #tpu.memory_space<vmem>>, vector<4x1024xbf16>
    %c80 = arith.constant 80 : index
    %c0_55 = arith.constant 0 : index
    %45 = vector.load %arg16[%c80, %c0_55] : memref<100x1024xbf16, #tpu.memory_space<vmem>>, vector<4x1024xbf16>
    tpu.vector_store %arg16[%c80, %c0_55], %44 {strides = array<i32>} : memref<100x1024xbf16, #tpu.memory_space<vmem>>, vector<4x1024xbf16>,
    %c0_56 = arith.constant 0 : index
    %c129 = arith.constant 129 : index
    %46 = vector.load %arg1[%c0_56, %c129] : memref<4x2048xbf16, #tpu.memory_space<vmem>>, vector<4x1024xbf16>
    %c84 = arith.constant 84 : index
    %c0_57 = arith.constant 0 : index
    %47 = vector.load %arg16[%c84, %c0_57] : memref<100x1024xbf16, #tpu.memory_space<vmem>>, vector<4x1024xbf16>
    tpu.vector_store %arg16[%c84, %c0_57], %46 {strides = array<i32>} : memref<100x1024xbf16, #tpu.memory_space<vmem>>, vector<4x1024xbf16>,
    %c0_58 = arith.constant 0 : index
    %c130 = arith.constant 130 : index
    %48 = vector.load %arg1[%c0_58, %c130] : memref<4x2048xbf16, #tpu.memory_space<vmem>>, vector<4x1024xbf16>
    %c88 = arith.constant 88 : index
    %c0_59 = arith.constant 0 : index
    %49 = vector.load %arg16[%c88, %c0_59] : memref<100x1024xbf16, #tpu.memory_space<vmem>>, vector<4x1024xbf16>
    tpu.vector_store %arg16[%c88, %c0_59], %48 {strides = array<i32>} : memref<100x1024xbf16, #tpu.memory_space<vmem>>, vector<4x1024xbf16>,
    %c0_60 = arith.constant 0 : index
    %c131 = arith.constant 131 : index
    %50 = vector.load %arg1[%c0_60, %c131] : memref<4x2048xbf16, #tpu.memory_space<vmem>>, vector<4x1024xbf16>
    %c92 = arith.constant 92 : index
    %c0_61 = arith.constant 0 : index
    %51 = vector.load %arg16[%c92, %c0_61] : memref<100x1024xbf16, #tpu.memory_space<vmem>>, vector<4x1024xbf16>
    tpu.vector_store %arg16[%c92, %c0_61], %50 {strides = array<i32>} : memref<100x1024xbf16, #tpu.memory_space<vmem>>, vector<4x1024xbf16>,
    %c0_62 = arith.constant 0 : index
    %c132 = arith.constant 132 : index
    %52 = vector.load %arg1[%c0_62, %c132] : memref<4x2048xbf16, #tpu.memory_space<vmem>>, vector<4x1024xbf16>
    %c96_63 = arith.constant 96 : index
    %c0_64 = arith.constant 0 : index
    %53 = vector.load %arg16[%c96_63, %c0_64] : memref<100x1024xbf16, #tpu.memory_space<vmem>>, vector<4x1024xbf16>
    tpu.vector_store %arg16[%c96_63, %c0_64], %52 {strides = array<i32>} : memref<100x1024xbf16, #tpu.memory_space<vmem>>, vector<4x1024xbf16>,
    %c0_65 = arith.constant 0 : index
    %c0_66 = arith.constant 0 : index
    %54 = vector.load %arg16[%c0_65, %c0_66] : memref<100x1024xbf16, #tpu.memory_space<vmem>>, vector<100x1024xbf16>
    %cst = arith.constant dense<0.000000e+00> : vector<8x1024xf32>
    %55 = tpu.matmul %0, %54, %cst {dimension_numbers = #tpu.dot_dimension_numbers<[1], [0], [0], [1], [0, 0, 1, 1], [], []>} : vector<8x100xbf16>, vector<100x1024xbf16>, vector<8x1024xf32> -> vector<8x1024xf32>
    %56 = vector.broadcast %1 : vector<8x1xf32> to vector<8x1024xf32>
    %57 = arith.addf %55, %56 : vector<8x1024xf32>
    %cst_67 = arith.constant 0.000000e+00 : f32
    %58 = vector.broadcast %cst_67 : f32 to vector<8x1024xf32>
    %59 = arith.maximumf %57, %58 : vector<8x1024xf32>
    %c0_68 = arith.constant 0 : index
    %c0_69 = arith.constant 0 : index
    %60 = vector.load %arg17[%c0_68, %c0_69] : memref<8x1916xf32, #tpu.memory_space<vmem>>, vector<8x1024xf32>
    tpu.vector_store %arg17[%c0_68, %c0_69], %59 {strides = array<i32>} : memref<8x1916xf32, #tpu.memory_space<vmem>>, vector<8x1024xf32>,
    %c0_70 = arith.constant 0 : index
    %c1024 = arith.constant 1024 : index
    %61 = vector.load %arg1[%c0_70, %c1024] : memref<4x2048xbf16, #tpu.memory_space<vmem>>, vector<4x892xbf16>
    %c0_71 = arith.constant 0 : index
    %c0_72 = arith.constant 0 : index
    %62 = vector.load %arg16[%c0_71, %c0_72] : memref<100x1024xbf16, #tpu.memory_space<vmem>>, vector<4x892xbf16>
    tpu.vector_store %arg16[%c0_71, %c0_72], %61 {strides = array<i32>} : memref<100x1024xbf16, #tpu.memory_space<vmem>>, vector<4x892xbf16>,
    %c0_73 = arith.constant 0 : index
    %c1025 = arith.constant 1025 : index
    %63 = vector.load %arg1[%c0_73, %c1025] : memref<4x2048xbf16, #tpu.memory_space<vmem>>, vector<4x892xbf16>
    %c4_74 = arith.constant 4 : index
    %c0_75 = arith.constant 0 : index
    %64 = vector.load %arg16[%c4_74, %c0_75] : memref<100x1024xbf16, #tpu.memory_space<vmem>>, vector<4x892xbf16>
    tpu.vector_store %arg16[%c4_74, %c0_75], %63 {strides = array<i32>} : memref<100x1024xbf16, #tpu.memory_space<vmem>>, vector<4x892xbf16>,
    %c0_76 = arith.constant 0 : index
    %c1026 = arith.constant 1026 : index
    %65 = vector.load %arg1[%c0_76, %c1026] : memref<4x2048xbf16, #tpu.memory_space<vmem>>, vector<4x892xbf16>
    %c8_77 = arith.constant 8 : index
    %c0_78 = arith.constant 0 : index
    %66 = vector.load %arg16[%c8_77, %c0_78] : memref<100x1024xbf16, #tpu.memory_space<vmem>>, vector<4x892xbf16>
    tpu.vector_store %arg16[%c8_77, %c0_78], %65 {strides = array<i32>} : memref<100x1024xbf16, #tpu.memory_space<vmem>>, vector<4x892xbf16>,
    %c0_79 = arith.constant 0 : index
    %c1027 = arith.constant 1027 : index
    %67 = vector.load %arg1[%c0_79, %c1027] : memref<4x2048xbf16, #tpu.memory_space<vmem>>, vector<4x892xbf16>
    %c12_80 = arith.constant 12 : index
    %c0_81 = arith.constant 0 : index
    %68 = vector.load %arg16[%c12_80, %c0_81] : memref<100x1024xbf16, #tpu.memory_space<vmem>>, vector<4x892xbf16>
    tpu.vector_store %arg16[%c12_80, %c0_81], %67 {strides = array<i32>} : memref<100x1024xbf16, #tpu.memory_space<vmem>>, vector<4x892xbf16>,
    %c0_82 = arith.constant 0 : index
    %c1028 = arith.constant 1028 : index
    %69 = vector.load %arg1[%c0_82, %c1028] : memref<4x2048xbf16, #tpu.memory_space<vmem>>, vector<4x892xbf16>
    %c16_83 = arith.constant 16 : index
    %c0_84 = arith.constant 0 : index
    %70 = vector.load %arg16[%c16_83, %c0_84] : memref<100x1024xbf16, #tpu.memory_space<vmem>>, vector<4x892xbf16>
    tpu.vector_store %arg16[%c16_83, %c0_84], %69 {strides = array<i32>} : memref<100x1024xbf16, #tpu.memory_space<vmem>>, vector<4x892xbf16>,
    %c0_85 = arith.constant 0 : index
    %c1056 = arith.constant 1056 : index
    %71 = vector.load %arg1[%c0_85, %c1056] : memref<4x2048xbf16, #tpu.memory_space<vmem>>, vector<4x892xbf16>
    %c20_86 = arith.constant 20 : index
    %c0_87 = arith.constant 0 : index
    %72 = vector.load %arg16[%c20_86, %c0_87] : memref<100x1024xbf16, #tpu.memory_space<vmem>>, vector<4x892xbf16>
    tpu.vector_store %arg16[%c20_86, %c0_87], %71 {strides = array<i32>} : memref<100x1024xbf16, #tpu.memory_space<vmem>>, vector<4x892xbf16>,
    %c0_88 = arith.constant 0 : index
    %c1057 = arith.constant 1057 : index
    %73 = vector.load %arg1[%c0_88, %c1057] : memref<4x2048xbf16, #tpu.memory_space<vmem>>, vector<4x892xbf16>
    %c24_89 = arith.constant 24 : index
    %c0_90 = arith.constant 0 : index
    %74 = vector.load %arg16[%c24_89, %c0_90] : memref<100x1024xbf16, #tpu.memory_space<vmem>>, vector<4x892xbf16>
    tpu.vector_store %arg16[%c24_89, %c0_90], %73 {strides = array<i32>} : memref<100x1024xbf16, #tpu.memory_space<vmem>>, vector<4x892xbf16>,
    %c0_91 = arith.constant 0 : index
    %c1058 = arith.constant 1058 : index
    %75 = vector.load %arg1[%c0_91, %c1058] : memref<4x2048xbf16, #tpu.memory_space<vmem>>, vector<4x892xbf16>
    %c28_92 = arith.constant 28 : index
    %c0_93 = arith.constant 0 : index
    %76 = vector.load %arg16[%c28_92, %c0_93] : memref<100x1024xbf16, #tpu.memory_space<vmem>>, vector<4x892xbf16>
    tpu.vector_store %arg16[%c28_92, %c0_93], %75 {strides = array<i32>} : memref<100x1024xbf16, #tpu.memory_space<vmem>>, vector<4x892xbf16>,
    %c0_94 = arith.constant 0 : index
    %c1059 = arith.constant 1059 : index
    %77 = vector.load %arg1[%c0_94, %c1059] : memref<4x2048xbf16, #tpu.memory_space<vmem>>, vector<4x892xbf16>
    %c32_95 = arith.constant 32 : index
    %c0_96 = arith.constant 0 : index
    %78 = vector.load %arg16[%c32_95, %c0_96] : memref<100x1024xbf16, #tpu.memory_space<vmem>>, vector<4x892xbf16>
    tpu.vector_store %arg16[%c32_95, %c0_96], %77 {strides = array<i32>} : memref<100x1024xbf16, #tpu.memory_space<vmem>>, vector<4x892xbf16>,
    %c0_97 = arith.constant 0 : index
    %c1060 = arith.constant 1060 : index
    %79 = vector.load %arg1[%c0_97, %c1060] : memref<4x2048xbf16, #tpu.memory_space<vmem>>, vector<4x892xbf16>
    %c36_98 = arith.constant 36 : index
    %c0_99 = arith.constant 0 : index
    %80 = vector.load %arg16[%c36_98, %c0_99] : memref<100x1024xbf16, #tpu.memory_space<vmem>>, vector<4x892xbf16>
    tpu.vector_store %arg16[%c36_98, %c0_99], %79 {strides = array<i32>} : memref<100x1024xbf16, #tpu.memory_space<vmem>>, vector<4x892xbf16>,
    %c0_100 = arith.constant 0 : index
    %c1088 = arith.constant 1088 : index
    %81 = vector.load %arg1[%c0_100, %c1088] : memref<4x2048xbf16, #tpu.memory_space<vmem>>, vector<4x892xbf16>
    %c40_101 = arith.constant 40 : index
    %c0_102 = arith.constant 0 : index
    %82 = vector.load %arg16[%c40_101, %c0_102] : memref<100x1024xbf16, #tpu.memory_space<vmem>>, vector<4x892xbf16>
    tpu.vector_store %arg16[%c40_101, %c0_102], %81 {strides = array<i32>} : memref<100x1024xbf16, #tpu.memory_space<vmem>>, vector<4x892xbf16>,
    %c0_103 = arith.constant 0 : index
    %c1089 = arith.constant 1089 : index
    %83 = vector.load %arg1[%c0_103, %c1089] : memref<4x2048xbf16, #tpu.memory_space<vmem>>, vector<4x892xbf16>
    %c44_104 = arith.constant 44 : index
    %c0_105 = arith.constant 0 : index
    %84 = vector.load %arg16[%c44_104, %c0_105] : memref<100x1024xbf16, #tpu.memory_space<vmem>>, vector<4x892xbf16>
    tpu.vector_store %arg16[%c44_104, %c0_105], %83 {strides = array<i32>} : memref<100x1024xbf16, #tpu.memory_space<vmem>>, vector<4x892xbf16>,
    %c0_106 = arith.constant 0 : index
    %c1090 = arith.constant 1090 : index
    %85 = vector.load %arg1[%c0_106, %c1090] : memref<4x2048xbf16, #tpu.memory_space<vmem>>, vector<4x892xbf16>
    %c48_107 = arith.constant 48 : index
    %c0_108 = arith.constant 0 : index
    %86 = vector.load %arg16[%c48_107, %c0_108] : memref<100x1024xbf16, #tpu.memory_space<vmem>>, vector<4x892xbf16>
    tpu.vector_store %arg16[%c48_107, %c0_108], %85 {strides = array<i32>} : memref<100x1024xbf16, #tpu.memory_space<vmem>>, vector<4x892xbf16>,
    %c0_109 = arith.constant 0 : index
    %c1091 = arith.constant 1091 : index
    %87 = vector.load %arg1[%c0_109, %c1091] : memref<4x2048xbf16, #tpu.memory_space<vmem>>, vector<4x892xbf16>
    %c52_110 = arith.constant 52 : index
    %c0_111 = arith.constant 0 : index
    %88 = vector.load %arg16[%c52_110, %c0_111] : memref<100x1024xbf16, #tpu.memory_space<vmem>>, vector<4x892xbf16>
    tpu.vector_store %arg16[%c52_110, %c0_111], %87 {strides = array<i32>} : memref<100x1024xbf16, #tpu.memory_space<vmem>>, vector<4x892xbf16>,
    %c0_112 = arith.constant 0 : index
    %c1092 = arith.constant 1092 : index
    %89 = vector.load %arg1[%c0_112, %c1092] : memref<4x2048xbf16, #tpu.memory_space<vmem>>, vector<4x892xbf16>
    %c56_113 = arith.constant 56 : index
    %c0_114 = arith.constant 0 : index
    %90 = vector.load %arg16[%c56_113, %c0_114] : memref<100x1024xbf16, #tpu.memory_space<vmem>>, vector<4x892xbf16>
    tpu.vector_store %arg16[%c56_113, %c0_114], %89 {strides = array<i32>} : memref<100x1024xbf16, #tpu.memory_space<vmem>>, vector<4x892xbf16>,
    %c0_115 = arith.constant 0 : index
    %c1120 = arith.constant 1120 : index
    %91 = vector.load %arg1[%c0_115, %c1120] : memref<4x2048xbf16, #tpu.memory_space<vmem>>, vector<4x892xbf16>
    %c60_116 = arith.constant 60 : index
    %c0_117 = arith.constant 0 : index
    %92 = vector.load %arg16[%c60_116, %c0_117] : memref<100x1024xbf16, #tpu.memory_space<vmem>>, vector<4x892xbf16>
    tpu.vector_store %arg16[%c60_116, %c0_117], %91 {strides = array<i32>} : memref<100x1024xbf16, #tpu.memory_space<vmem>>, vector<4x892xbf16>,
    %c0_118 = arith.constant 0 : index
    %c1121 = arith.constant 1121 : index
    %93 = vector.load %arg1[%c0_118, %c1121] : memref<4x2048xbf16, #tpu.memory_space<vmem>>, vector<4x892xbf16>
    %c64_119 = arith.constant 64 : index
    %c0_120 = arith.constant 0 : index
    %94 = vector.load %arg16[%c64_119, %c0_120] : memref<100x1024xbf16, #tpu.memory_space<vmem>>, vector<4x892xbf16>
    tpu.vector_store %arg16[%c64_119, %c0_120], %93 {strides = array<i32>} : memref<100x1024xbf16, #tpu.memory_space<vmem>>, vector<4x892xbf16>,
    %c0_121 = arith.constant 0 : index
    %c1122 = arith.constant 1122 : index
    %95 = vector.load %arg1[%c0_121, %c1122] : memref<4x2048xbf16, #tpu.memory_space<vmem>>, vector<4x892xbf16>
    %c68_122 = arith.constant 68 : index
    %c0_123 = arith.constant 0 : index
    %96 = vector.load %arg16[%c68_122, %c0_123] : memref<100x1024xbf16, #tpu.memory_space<vmem>>, vector<4x892xbf16>
    tpu.vector_store %arg16[%c68_122, %c0_123], %95 {strides = array<i32>} : memref<100x1024xbf16, #tpu.memory_space<vmem>>, vector<4x892xbf16>,
    %c0_124 = arith.constant 0 : index
    %c1123 = arith.constant 1123 : index
    %97 = vector.load %arg1[%c0_124, %c1123] : memref<4x2048xbf16, #tpu.memory_space<vmem>>, vector<4x892xbf16>
    %c72_125 = arith.constant 72 : index
    %c0_126 = arith.constant 0 : index
    %98 = vector.load %arg16[%c72_125, %c0_126] : memref<100x1024xbf16, #tpu.memory_space<vmem>>, vector<4x892xbf16>
    tpu.vector_store %arg16[%c72_125, %c0_126], %97 {strides = array<i32>} : memref<100x1024xbf16, #tpu.memory_space<vmem>>, vector<4x892xbf16>,
    %c0_127 = arith.constant 0 : index
    %c1124 = arith.constant 1124 : index
    %99 = vector.load %arg1[%c0_127, %c1124] : memref<4x2048xbf16, #tpu.memory_space<vmem>>, vector<4x892xbf16>
    %c76_128 = arith.constant 76 : index
    %c0_129 = arith.constant 0 : index
    %100 = vector.load %arg16[%c76_128, %c0_129] : memref<100x1024xbf16, #tpu.memory_space<vmem>>, vector<4x892xbf16>
    tpu.vector_store %arg16[%c76_128, %c0_129], %99 {strides = array<i32>} : memref<100x1024xbf16, #tpu.memory_space<vmem>>, vector<4x892xbf16>,
    %c0_130 = arith.constant 0 : index
    %c1152 = arith.constant 1152 : index
    %101 = vector.load %arg1[%c0_130, %c1152] : memref<4x2048xbf16, #tpu.memory_space<vmem>>, vector<4x892xbf16>
    %c80_131 = arith.constant 80 : index
    %c0_132 = arith.constant 0 : index
    %102 = vector.load %arg16[%c80_131, %c0_132] : memref<100x1024xbf16, #tpu.memory_space<vmem>>, vector<4x892xbf16>
    tpu.vector_store %arg16[%c80_131, %c0_132], %101 {strides = array<i32>} : memref<100x1024xbf16, #tpu.memory_space<vmem>>, vector<4x892xbf16>,
    %c0_133 = arith.constant 0 : index
    %c1153 = arith.constant 1153 : index
    %103 = vector.load %arg1[%c0_133, %c1153] : memref<4x2048xbf16, #tpu.memory_space<vmem>>, vector<4x892xbf16>
    %c84_134 = arith.constant 84 : index
    %c0_135 = arith.constant 0 : index
    %104 = vector.load %arg16[%c84_134, %c0_135] : memref<100x1024xbf16, #tpu.memory_space<vmem>>, vector<4x892xbf16>
    tpu.vector_store %arg16[%c84_134, %c0_135], %103 {strides = array<i32>} : memref<100x1024xbf16, #tpu.memory_space<vmem>>, vector<4x892xbf16>,
    %c0_136 = arith.constant 0 : index
    %c1154 = arith.constant 1154 : index
    %105 = vector.load %arg1[%c0_136, %c1154] : memref<4x2048xbf16, #tpu.memory_space<vmem>>, vector<4x892xbf16>
    %c88_137 = arith.constant 88 : index
    %c0_138 = arith.constant 0 : index
    %106 = vector.load %arg16[%c88_137, %c0_138] : memref<100x1024xbf16, #tpu.memory_space<vmem>>, vector<4x892xbf16>
    tpu.vector_store %arg16[%c88_137, %c0_138], %105 {strides = array<i32>} : memref<100x1024xbf16, #tpu.memory_space<vmem>>, vector<4x892xbf16>,
    %c0_139 = arith.constant 0 : index
    %c1155 = arith.constant 1155 : index
    %107 = vector.load %arg1[%c0_139, %c1155] : memref<4x2048xbf16, #tpu.memory_space<vmem>>, vector<4x892xbf16>
    %c92_140 = arith.constant 92 : index
    %c0_141 = arith.constant 0 : index
    %108 = vector.load %arg16[%c92_140, %c0_141] : memref<100x1024xbf16, #tpu.memory_space<vmem>>, vector<4x892xbf16>
    tpu.vector_store %arg16[%c92_140, %c0_141], %107 {strides = array<i32>} : memref<100x1024xbf16, #tpu.memory_space<vmem>>, vector<4x892xbf16>,
    %c0_142 = arith.constant 0 : index
    %c1156 = arith.constant 1156 : index
    %109 = vector.load %arg1[%c0_142, %c1156] : memref<4x2048xbf16, #tpu.memory_space<vmem>>, vector<4x892xbf16>
    %c96_143 = arith.constant 96 : index
    %c0_144 = arith.constant 0 : index
    %110 = vector.load %arg16[%c96_143, %c0_144] : memref<100x1024xbf16, #tpu.memory_space<vmem>>, vector<4x892xbf16>
    tpu.vector_store %arg16[%c96_143, %c0_144], %109 {strides = array<i32>} : memref<100x1024xbf16, #tpu.memory_space<vmem>>, vector<4x892xbf16>,
    %c0_145 = arith.constant 0 : index
    %c0_146 = arith.constant 0 : index
    %111 = vector.load %arg16[%c0_145, %c0_146] : memref<100x1024xbf16, #tpu.memory_space<vmem>>, vector<100x892xbf16>
    %cst_147 = arith.constant dense<0.000000e+00> : vector<8x892xf32>
    %112 = tpu.matmul %0, %111, %cst_147 {dimension_numbers = #tpu.dot_dimension_numbers<[1], [0], [0], [1], [0, 0, 1, 1], [], []>} : vector<8x100xbf16>, vector<100x892xbf16>, vector<8x892xf32> -> vector<8x892xf32>
    %113 = vector.broadcast %1 : vector<8x1xf32> to vector<8x892xf32>
    %114 = arith.addf %112, %113 : vector<8x892xf32>
    %cst_148 = arith.constant 0.000000e+00 : f32
    %115 = vector.broadcast %cst_148 : f32 to vector<8x892xf32>
    %116 = arith.maximumf %114, %115 : vector<8x892xf32>
    %c0_149 = arith.constant 0 : index
    %c1024_150 = arith.constant 1024 : index
    %117 = vector.load %arg17[%c0_149, %c1024_150] : memref<8x1916xf32, #tpu.memory_space<vmem>>, vector<8x892xf32>
    tpu.vector_store %arg17[%c0_149, %c1024_150], %116 {strides = array<i32>} : memref<8x1916xf32, #tpu.memory_space<vmem>>, vector<8x892xf32>,
    %c0_151 = arith.constant 0 : index
    %c0_152 = arith.constant 0 : index
    %118 = vector.load %arg6[%c0_151, %c0_152] : memref<859x196xbf16, #tpu.memory_space<vmem>>, vector<859x196xbf16>
    %c0_153 = arith.constant 0 : index
    %c0_154 = arith.constant 0 : index
    %119 = vector.load %arg17[%c0_153, %c0_154] : memref<8x1916xf32, #tpu.memory_space<vmem>>, vector<8x859xf32>
    %c0_155 = arith.constant 0 : index
    %c1_156 = arith.constant 1 : index
    %120 = vector.load %arg17[%c0_155, %c1_156] : memref<8x1916xf32, #tpu.memory_space<vmem>>, vector<8x859xf32>
    %121 = arith.maximumf %119, %120 : vector<8x859xf32>
    %c0_157 = arith.constant 0 : index
    %c32_158 = arith.constant 32 : index
    %122 = vector.load %arg17[%c0_157, %c32_158] : memref<8x1916xf32, #tpu.memory_space<vmem>>, vector<8x859xf32>
    %c0_159 = arith.constant 0 : index
    %c33_160 = arith.constant 33 : index
    %123 = vector.load %arg17[%c0_159, %c33_160] : memref<8x1916xf32, #tpu.memory_space<vmem>>, vector<8x859xf32>
    %124 = arith.maximumf %122, %123 : vector<8x859xf32>
    %125 = arith.maximumf %121, %124 : vector<8x859xf32>
    %126 = arith.truncf %125 : vector<8x859xf32> to vector<8x859xbf16>
    %cst_161 = arith.constant dense<0.000000e+00> : vector<8x196xf32>
    %127 = tpu.matmul %126, %118, %cst_161 {dimension_numbers = #tpu.dot_dimension_numbers<[1], [0], [0], [1], [0, 0, 1, 1], [], []>} : vector<8x859xbf16>, vector<859x196xbf16>, vector<8x196xf32> -> vector<8x196xf32>
    %128 = arith.truncf %127 : vector<8x196xf32> to vector<8x196xbf16>
    %c0_162 = arith.constant 0 : index
    %c0_163 = arith.constant 0 : index
    %129 = vector.load %arg18[%c0_162, %c0_163] : memref<8x392xbf16, #tpu.memory_space<vmem>>, vector<8x196xbf16>
    tpu.vector_store %arg18[%c0_162, %c0_163], %128 {strides = array<i32>} : memref<8x392xbf16, #tpu.memory_space<vmem>>, vector<8x196xbf16>,
    %c0_164 = arith.constant 0 : index
    %c1024_165 = arith.constant 1024 : index
    %130 = vector.load %arg17[%c0_164, %c1024_165] : memref<8x1916xf32, #tpu.memory_space<vmem>>, vector<8x859xf32>
    %c0_166 = arith.constant 0 : index
    %c1025_167 = arith.constant 1025 : index
    %131 = vector.load %arg17[%c0_166, %c1025_167] : memref<8x1916xf32, #tpu.memory_space<vmem>>, vector<8x859xf32>
    %132 = arith.maximumf %130, %131 : vector<8x859xf32>
    %c0_168 = arith.constant 0 : index
    %c1056_169 = arith.constant 1056 : index
    %133 = vector.load %arg17[%c0_168, %c1056_169] : memref<8x1916xf32, #tpu.memory_space<vmem>>, vector<8x859xf32>
    %c0_170 = arith.constant 0 : index
    %c1057_171 = arith.constant 1057 : index
    %134 = vector.load %arg17[%c0_170, %c1057_171] : memref<8x1916xf32, #tpu.memory_space<vmem>>, vector<8x859xf32>
    %135 = arith.maximumf %133, %134 : vector<8x859xf32>
    %136 = arith.maximumf %132, %135 : vector<8x859xf32>
    %137 = arith.truncf %136 : vector<8x859xf32> to vector<8x859xbf16>
    %cst_172 = arith.constant dense<0.000000e+00> : vector<8x196xf32>
    %138 = tpu.matmul %137, %118, %cst_172 {dimension_numbers = #tpu.dot_dimension_numbers<[1], [0], [0], [1], [0, 0, 1, 1], [], []>} : vector<8x859xbf16>, vector<859x196xbf16>, vector<8x196xf32> -> vector<8x196xf32>
    %139 = arith.truncf %138 : vector<8x196xf32> to vector<8x196xbf16>
    %c0_173 = arith.constant 0 : index
    %c196 = arith.constant 196 : index
    %140 = vector.load %arg18[%c0_173, %c196] : memref<8x392xbf16, #tpu.memory_space<vmem>>, vector<8x196xbf16>
    tpu.vector_store %arg18[%c0_173, %c196], %139 {strides = array<i32>} : memref<8x392xbf16, #tpu.memory_space<vmem>>, vector<8x196xbf16>,
    %c0_174 = arith.constant 0 : index
    %c0_175 = arith.constant 0 : index
    %141 = vector.load %arg18[%c0_174, %c0_175] : memref<8x392xbf16, #tpu.memory_space<vmem>>, vector<8x332xbf16>
    %c0_176 = arith.constant 0 : index
    %c0_177 = arith.constant 0 : index
    %142 = vector.load %arg19[%c0_176, %c0_177] : memref<200x384xbf16, #tpu.memory_space<vmem>>, vector<8x332xbf16>
    tpu.vector_store %arg19[%c0_176, %c0_177], %141 {strides = array<i32>} : memref<200x384xbf16, #tpu.memory_space<vmem>>, vector<8x332xbf16>,
    %c0_178 = arith.constant 0 : index
    %c1_179 = arith.constant 1 : index
    %143 = vector.load %arg18[%c0_178, %c1_179] : memref<8x392xbf16, #tpu.memory_space<vmem>>, vector<8x332xbf16>
    %c8_180 = arith.constant 8 : index
    %c0_181 = arith.constant 0 : index
    %144 = vector.load %arg19[%c8_180, %c0_181] : memref<200x384xbf16, #tpu.memory_space<vmem>>, vector<8x332xbf16>
    tpu.vector_store %arg19[%c8_180, %c0_181], %143 {strides = array<i32>} : memref<200x384xbf16, #tpu.memory_space<vmem>>, vector<8x332xbf16>,
    %c0_182 = arith.constant 0 : index
    %c2_183 = arith.constant 2 : index
    %145 = vector.load %arg18[%c0_182, %c2_183] : memref<8x392xbf16, #tpu.memory_space<vmem>>, vector<8x332xbf16>
    %c16_184 = arith.constant 16 : index
    %c0_185 = arith.constant 0 : index
    %146 = vector.load %arg19[%c16_184, %c0_185] : memref<200x384xbf16, #tpu.memory_space<vmem>>, vector<8x332xbf16>
    tpu.vector_store %arg19[%c16_184, %c0_185], %145 {strides = array<i32>} : memref<200x384xbf16, #tpu.memory_space<vmem>>, vector<8x332xbf16>,
    %c0_186 = arith.constant 0 : index
    %c3_187 = arith.constant 3 : index
    %147 = vector.load %arg18[%c0_186, %c3_187] : memref<8x392xbf16, #tpu.memory_space<vmem>>, vector<8x332xbf16>
    %c24_188 = arith.constant 24 : index
    %c0_189 = arith.constant 0 : index
    %148 = vector.load %arg19[%c24_188, %c0_189] : memref<200x384xbf16, #tpu.memory_space<vmem>>, vector<8x332xbf16>
    tpu.vector_store %arg19[%c24_188, %c0_189], %147 {strides = array<i32>} : memref<200x384xbf16, #tpu.memory_space<vmem>>, vector<8x332xbf16>,
    %c0_190 = arith.constant 0 : index
    %c4_191 = arith.constant 4 : index
    %149 = vector.load %arg18[%c0_190, %c4_191] : memref<8x392xbf16, #tpu.memory_space<vmem>>, vector<8x332xbf16>
    %c32_192 = arith.constant 32 : index
    %c0_193 = arith.constant 0 : index
    %150 = vector.load %arg19[%c32_192, %c0_193] : memref<200x384xbf16, #tpu.memory_space<vmem>>, vector<8x332xbf16>
    tpu.vector_store %arg19[%c32_192, %c0_193], %149 {strides = array<i32>} : memref<200x384xbf16, #tpu.memory_space<vmem>>, vector<8x332xbf16>,
    %c0_194 = arith.constant 0 : index
    %c14 = arith.constant 14 : index
    %151 = vector.load %arg18[%c0_194, %c14] : memref<8x392xbf16, #tpu.memory_space<vmem>>, vector<8x332xbf16>
    %c40_195 = arith.constant 40 : index
    %c0_196 = arith.constant 0 : index
    %152 = vector.load %arg19[%c40_195, %c0_196] : memref<200x384xbf16, #tpu.memory_space<vmem>>, vector<8x332xbf16>
    tpu.vector_store %arg19[%c40_195, %c0_196], %151 {strides = array<i32>} : memref<200x384xbf16, #tpu.memory_space<vmem>>, vector<8x332xbf16>,
    %c0_197 = arith.constant 0 : index
    %c15 = arith.constant 15 : index
    %153 = vector.load %arg18[%c0_197, %c15] : memref<8x392xbf16, #tpu.memory_space<vmem>>, vector<8x332xbf16>
    %c48_198 = arith.constant 48 : index
    %c0_199 = arith.constant 0 : index
    %154 = vector.load %arg19[%c48_198, %c0_199] : memref<200x384xbf16, #tpu.memory_space<vmem>>, vector<8x332xbf16>
    tpu.vector_store %arg19[%c48_198, %c0_199], %153 {strides = array<i32>} : memref<200x384xbf16, #tpu.memory_space<vmem>>, vector<8x332xbf16>,
    %c0_200 = arith.constant 0 : index
    %c16_201 = arith.constant 16 : index
    %155 = vector.load %arg18[%c0_200, %c16_201] : memref<8x392xbf16, #tpu.memory_space<vmem>>, vector<8x332xbf16>
    %c56_202 = arith.constant 56 : index
    %c0_203 = arith.constant 0 : index
    %156 = vector.load %arg19[%c56_202, %c0_203] : memref<200x384xbf16, #tpu.memory_space<vmem>>, vector<8x332xbf16>
    tpu.vector_store %arg19[%c56_202, %c0_203], %155 {strides = array<i32>} : memref<200x384xbf16, #tpu.memory_space<vmem>>, vector<8x332xbf16>,
    %c0_204 = arith.constant 0 : index
    %c17 = arith.constant 17 : index
    %157 = vector.load %arg18[%c0_204, %c17] : memref<8x392xbf16, #tpu.memory_space<vmem>>, vector<8x332xbf16>
    %c64_205 = arith.constant 64 : index
    %c0_206 = arith.constant 0 : index
    %158 = vector.load %arg19[%c64_205, %c0_206] : memref<200x384xbf16, #tpu.memory_space<vmem>>, vector<8x332xbf16>
    tpu.vector_store %arg19[%c64_205, %c0_206], %157 {strides = array<i32>} : memref<200x384xbf16, #tpu.memory_space<vmem>>, vector<8x332xbf16>,
    %c0_207 = arith.constant 0 : index
    %c18 = arith.constant 18 : index
    %159 = vector.load %arg18[%c0_207, %c18] : memref<8x392xbf16, #tpu.memory_space<vmem>>, vector<8x332xbf16>
    %c72_208 = arith.constant 72 : index
    %c0_209 = arith.constant 0 : index
    %160 = vector.load %arg19[%c72_208, %c0_209] : memref<200x384xbf16, #tpu.memory_space<vmem>>, vector<8x332xbf16>
    tpu.vector_store %arg19[%c72_208, %c0_209], %159 {strides = array<i32>} : memref<200x384xbf16, #tpu.memory_space<vmem>>, vector<8x332xbf16>,
    %c0_210 = arith.constant 0 : index
    %c28_211 = arith.constant 28 : index
    %161 = vector.load %arg18[%c0_210, %c28_211] : memref<8x392xbf16, #tpu.memory_space<vmem>>, vector<8x332xbf16>
    %c80_212 = arith.constant 80 : index
    %c0_213 = arith.constant 0 : index
    %162 = vector.load %arg19[%c80_212, %c0_213] : memref<200x384xbf16, #tpu.memory_space<vmem>>, vector<8x332xbf16>
    tpu.vector_store %arg19[%c80_212, %c0_213], %161 {strides = array<i32>} : memref<200x384xbf16, #tpu.memory_space<vmem>>, vector<8x332xbf16>,
    %c0_214 = arith.constant 0 : index
    %c29 = arith.constant 29 : index
    %163 = vector.load %arg18[%c0_214, %c29] : memref<8x392xbf16, #tpu.memory_space<vmem>>, vector<8x332xbf16>
    %c88_215 = arith.constant 88 : index
    %c0_216 = arith.constant 0 : index
    %164 = vector.load %arg19[%c88_215, %c0_216] : memref<200x384xbf16, #tpu.memory_space<vmem>>, vector<8x332xbf16>
    tpu.vector_store %arg19[%c88_215, %c0_216], %163 {strides = array<i32>} : memref<200x384xbf16, #tpu.memory_space<vmem>>, vector<8x332xbf16>,
    %c0_217 = arith.constant 0 : index
    %c30 = arith.constant 30 : index
    %165 = vector.load %arg18[%c0_217, %c30] : memref<8x392xbf16, #tpu.memory_space<vmem>>, vector<8x332xbf16>
    %c96_218 = arith.constant 96 : index
    %c0_219 = arith.constant 0 : index
    %166 = vector.load %arg19[%c96_218, %c0_219] : memref<200x384xbf16, #tpu.memory_space<vmem>>, vector<8x332xbf16>
    tpu.vector_store %arg19[%c96_218, %c0_219], %165 {strides = array<i32>} : memref<200x384xbf16, #tpu.memory_space<vmem>>, vector<8x332xbf16>,
    %c0_220 = arith.constant 0 : index
    %c31 = arith.constant 31 : index
    %167 = vector.load %arg18[%c0_220, %c31] : memref<8x392xbf16, #tpu.memory_space<vmem>>, vector<8x332xbf16>
    %c104 = arith.constant 104 : index
    %c0_221 = arith.constant 0 : index
    %168 = vector.load %arg19[%c104, %c0_221] : memref<200x384xbf16, #tpu.memory_space<vmem>>, vector<8x332xbf16>
    tpu.vector_store %arg19[%c104, %c0_221], %167 {strides = array<i32>} : memref<200x384xbf16, #tpu.memory_space<vmem>>, vector<8x332xbf16>,
    %c0_222 = arith.constant 0 : index
    %c32_223 = arith.constant 32 : index
    %169 = vector.load %arg18[%c0_222, %c32_223] : memref<8x392xbf16, #tpu.memory_space<vmem>>, vector<8x332xbf16>
    %c112 = arith.constant 112 : index
    %c0_224 = arith.constant 0 : index
    %170 = vector.load %arg19[%c112, %c0_224] : memref<200x384xbf16, #tpu.memory_space<vmem>>, vector<8x332xbf16>
    tpu.vector_store %arg19[%c112, %c0_224], %169 {strides = array<i32>} : memref<200x384xbf16, #tpu.memory_space<vmem>>, vector<8x332xbf16>,
    %c0_225 = arith.constant 0 : index
    %c42 = arith.constant 42 : index
    %171 = vector.load %arg18[%c0_225, %c42] : memref<8x392xbf16, #tpu.memory_space<vmem>>, vector<8x332xbf16>
    %c120 = arith.constant 120 : index
    %c0_226 = arith.constant 0 : index
    %172 = vector.load %arg19[%c120, %c0_226] : memref<200x384xbf16, #tpu.memory_space<vmem>>, vector<8x332xbf16>
    tpu.vector_store %arg19[%c120, %c0_226], %171 {strides = array<i32>} : memref<200x384xbf16, #tpu.memory_space<vmem>>, vector<8x332xbf16>,
    %c0_227 = arith.constant 0 : index
    %c43 = arith.constant 43 : index
    %173 = vector.load %arg18[%c0_227, %c43] : memref<8x392xbf16, #tpu.memory_space<vmem>>, vector<8x332xbf16>
    %c128_228 = arith.constant 128 : index
    %c0_229 = arith.constant 0 : index
    %174 = vector.load %arg19[%c128_228, %c0_229] : memref<200x384xbf16, #tpu.memory_space<vmem>>, vector<8x332xbf16>
    tpu.vector_store %arg19[%c128_228, %c0_229], %173 {strides = array<i32>} : memref<200x384xbf16, #tpu.memory_space<vmem>>, vector<8x332xbf16>,
    %c0_230 = arith.constant 0 : index
    %c44_231 = arith.constant 44 : index
    %175 = vector.load %arg18[%c0_230, %c44_231] : memref<8x392xbf16, #tpu.memory_space<vmem>>, vector<8x332xbf16>
    %c136 = arith.constant 136 : index
    %c0_232 = arith.constant 0 : index
    %176 = vector.load %arg19[%c136, %c0_232] : memref<200x384xbf16, #tpu.memory_space<vmem>>, vector<8x332xbf16>
    tpu.vector_store %arg19[%c136, %c0_232], %175 {strides = array<i32>} : memref<200x384xbf16, #tpu.memory_space<vmem>>, vector<8x332xbf16>,
    %c0_233 = arith.constant 0 : index
    %c45 = arith.constant 45 : index
    %177 = vector.load %arg18[%c0_233, %c45] : memref<8x392xbf16, #tpu.memory_space<vmem>>, vector<8x332xbf16>
    %c144 = arith.constant 144 : index
    %c0_234 = arith.constant 0 : index
    %178 = vector.load %arg19[%c144, %c0_234] : memref<200x384xbf16, #tpu.memory_space<vmem>>, vector<8x332xbf16>
    tpu.vector_store %arg19[%c144, %c0_234], %177 {strides = array<i32>} : memref<200x384xbf16, #tpu.memory_space<vmem>>, vector<8x332xbf16>,
    %c0_235 = arith.constant 0 : index
    %c46 = arith.constant 46 : index
    %179 = vector.load %arg18[%c0_235, %c46] : memref<8x392xbf16, #tpu.memory_space<vmem>>, vector<8x332xbf16>
    %c152 = arith.constant 152 : index
    %c0_236 = arith.constant 0 : index
    %180 = vector.load %arg19[%c152, %c0_236] : memref<200x384xbf16, #tpu.memory_space<vmem>>, vector<8x332xbf16>
    tpu.vector_store %arg19[%c152, %c0_236], %179 {strides = array<i32>} : memref<200x384xbf16, #tpu.memory_space<vmem>>, vector<8x332xbf16>,
    %c0_237 = arith.constant 0 : index
    %c56_238 = arith.constant 56 : index
    %181 = vector.load %arg18[%c0_237, %c56_238] : memref<8x392xbf16, #tpu.memory_space<vmem>>, vector<8x332xbf16>
    %c160 = arith.constant 160 : index
    %c0_239 = arith.constant 0 : index
    %182 = vector.load %arg19[%c160, %c0_239] : memref<200x384xbf16, #tpu.memory_space<vmem>>, vector<8x332xbf16>
    tpu.vector_store %arg19[%c160, %c0_239], %181 {strides = array<i32>} : memref<200x384xbf16, #tpu.memory_space<vmem>>, vector<8x332xbf16>,
    %c0_240 = arith.constant 0 : index
    %c57 = arith.constant 57 : index
    %183 = vector.load %arg18[%c0_240, %c57] : memref<8x392xbf16, #tpu.memory_space<vmem>>, vector<8x332xbf16>
    %c168 = arith.constant 168 : index
    %c0_241 = arith.constant 0 : index
    %184 = vector.load %arg19[%c168, %c0_241] : memref<200x384xbf16, #tpu.memory_space<vmem>>, vector<8x332xbf16>
    tpu.vector_store %arg19[%c168, %c0_241], %183 {strides = array<i32>} : memref<200x384xbf16, #tpu.memory_space<vmem>>, vector<8x332xbf16>,
    %c0_242 = arith.constant 0 : index
    %c58 = arith.constant 58 : index
    %185 = vector.load %arg18[%c0_242, %c58] : memref<8x392xbf16, #tpu.memory_space<vmem>>, vector<8x332xbf16>
    %c176 = arith.constant 176 : index
    %c0_243 = arith.constant 0 : index
    %186 = vector.load %arg19[%c176, %c0_243] : memref<200x384xbf16, #tpu.memory_space<vmem>>, vector<8x332xbf16>
    tpu.vector_store %arg19[%c176, %c0_243], %185 {strides = array<i32>} : memref<200x384xbf16, #tpu.memory_space<vmem>>, vector<8x332xbf16>,
    %c0_244 = arith.constant 0 : index
    %c59 = arith.constant 59 : index
    %187 = vector.load %arg18[%c0_244, %c59] : memref<8x392xbf16, #tpu.memory_space<vmem>>, vector<8x332xbf16>
    %c184 = arith.constant 184 : index
    %c0_245 = arith.constant 0 : index
    %188 = vector.load %arg19[%c184, %c0_245] : memref<200x384xbf16, #tpu.memory_space<vmem>>, vector<8x332xbf16>
    tpu.vector_store %arg19[%c184, %c0_245], %187 {strides = array<i32>} : memref<200x384xbf16, #tpu.memory_space<vmem>>, vector<8x332xbf16>,
    %c0_246 = arith.constant 0 : index
    %c60_247 = arith.constant 60 : index
    %189 = vector.load %arg18[%c0_246, %c60_247] : memref<8x392xbf16, #tpu.memory_space<vmem>>, vector<8x332xbf16>
    %c192 = arith.constant 192 : index
    %c0_248 = arith.constant 0 : index
    %190 = vector.load %arg19[%c192, %c0_248] : memref<200x384xbf16, #tpu.memory_space<vmem>>, vector<8x332xbf16>
    tpu.vector_store %arg19[%c192, %c0_248], %189 {strides = array<i32>} : memref<200x384xbf16, #tpu.memory_space<vmem>>, vector<8x332xbf16>,
    %c0_249 = arith.constant 0 : index
    %c0_250 = arith.constant 0 : index
    %191 = vector.load %arg19[%c0_249, %c0_250] : memref<200x384xbf16, #tpu.memory_space<vmem>>, vector<200x332xbf16>
    %cst_251 = arith.constant dense<0.000000e+00> : vector<16x332xf32>
    %192 = tpu.matmul %2, %191, %cst_251 {dimension_numbers = #tpu.dot_dimension_numbers<[1], [0], [0], [1], [0, 0, 1, 1], [], []>} : vector<16x200xbf16>, vector<200x332xbf16>, vector<16x332xf32> -> vector<16x332xf32>
    %193 = vector.broadcast %3 : vector<16x1xf32> to vector<16x332xf32>
    %194 = arith.addf %192, %193 : vector<16x332xf32>
    %cst_252 = arith.constant 0.000000e+00 : f32
    %195 = vector.broadcast %cst_252 : f32 to vector<16x332xf32>
    %196 = arith.maximumf %194, %195 : vector<16x332xf32>
    %c0_253 = arith.constant 0 : index
    %c0_254 = arith.constant 0 : index
    %197 = vector.load %arg20[%c0_253, %c0_254] : memref<16x332xf32, #tpu.memory_space<vmem>>, vector<16x332xf32>
    tpu.vector_store %arg20[%c0_253, %c0_254], %196 {strides = array<i32>} : memref<16x332xf32, #tpu.memory_space<vmem>>, vector<16x332xf32>,
    %c0_255 = arith.constant 0 : index
    %c0_256 = arith.constant 0 : index
    %198 = vector.load %arg7[%c0_255, %c0_256] : memref<121x400xbf16, #tpu.memory_space<vmem>>, vector<121x400xbf16>
    %c0_257 = arith.constant 0 : index
    %c0_258 = arith.constant 0 : index
    %199 = vector.load %arg8[%c0_257, %c0_258] : memref<16x400xf32, #tpu.memory_space<vmem>>, vector<16x400xf32>
    %cst_259 = arith.constant 1.000000e+00 : bf16
    %200 = vector.broadcast %cst_259 : bf16 to vector<1x16xbf16>
    %c0_260 = arith.constant 0 : index
    %c0_261 = arith.constant 0 : index
    %201 = vector.load %arg20[%c0_260, %c0_261] : memref<16x332xf32, #tpu.memory_space<vmem>>, vector<16x121xf32>
    %c0_262 = arith.constant 0 : index
    %c1_263 = arith.constant 1 : index
    %202 = vector.load %arg20[%c0_262, %c1_263] : memref<16x332xf32, #tpu.memory_space<vmem>>, vector<16x121xf32>
    %203 = arith.maximumf %201, %202 : vector<16x121xf32>
    %c0_264 = arith.constant 0 : index
    %c14_265 = arith.constant 14 : index
    %204 = vector.load %arg20[%c0_264, %c14_265] : memref<16x332xf32, #tpu.memory_space<vmem>>, vector<16x121xf32>
    %c0_266 = arith.constant 0 : index
    %c15_267 = arith.constant 15 : index
    %205 = vector.load %arg20[%c0_266, %c15_267] : memref<16x332xf32, #tpu.memory_space<vmem>>, vector<16x121xf32>
    %206 = arith.maximumf %204, %205 : vector<16x121xf32>
    %207 = arith.maximumf %203, %206 : vector<16x121xf32>
    %208 = arith.truncf %207 : vector<16x121xf32> to vector<16x121xbf16>
    %cst_268 = arith.constant dense<0.000000e+00> : vector<16x400xf32>
    %209 = tpu.matmul %208, %198, %cst_268 {dimension_numbers = #tpu.dot_dimension_numbers<[1], [0], [0], [1], [0, 0, 1, 1], [], []>} : vector<16x121xbf16>, vector<121x400xbf16>, vector<16x400xf32> -> vector<16x400xf32>
    %210 = arith.mulf %209, %199 : vector<16x400xf32>
    %211 = arith.truncf %210 : vector<16x400xf32> to vector<16x400xbf16>
    %cst_269 = arith.constant dense<0.000000e+00> : vector<1x400xf32>
    %212 = tpu.matmul %200, %211, %cst_269 {dimension_numbers = #tpu.dot_dimension_numbers<[1], [0], [0], [1], [0, 0, 1, 1], [], []>} : vector<1x16xbf16>, vector<16x400xbf16>, vector<1x400xf32> -> vector<1x400xf32>
    %c0_270 = arith.constant 0 : index
    %c0_271 = arith.constant 0 : index
    %213 = vector.load %arg21[%c0_270, %c0_271] : memref<2x400xf32, #tpu.memory_space<vmem>>, vector<1x400xf32>
    tpu.vector_store %arg21[%c0_270, %c0_271], %212 {strides = array<i32>} : memref<2x400xf32, #tpu.memory_space<vmem>>, vector<1x400xf32>,
    %c0_272 = arith.constant 0 : index
    %c196_273 = arith.constant 196 : index
    %214 = vector.load %arg20[%c0_272, %c196_273] : memref<16x332xf32, #tpu.memory_space<vmem>>, vector<16x121xf32>
    %c0_274 = arith.constant 0 : index
    %c197 = arith.constant 197 : index
    %215 = vector.load %arg20[%c0_274, %c197] : memref<16x332xf32, #tpu.memory_space<vmem>>, vector<16x121xf32>
    %216 = arith.maximumf %214, %215 : vector<16x121xf32>
    %c0_275 = arith.constant 0 : index
    %c210 = arith.constant 210 : index
    %217 = vector.load %arg20[%c0_275, %c210] : memref<16x332xf32, #tpu.memory_space<vmem>>, vector<16x121xf32>
    %c0_276 = arith.constant 0 : index
    %c211 = arith.constant 211 : index
    %218 = vector.load %arg20[%c0_276, %c211] : memref<16x332xf32, #tpu.memory_space<vmem>>, vector<16x121xf32>
    %219 = arith.maximumf %217, %218 : vector<16x121xf32>
    %220 = arith.maximumf %216, %219 : vector<16x121xf32>
    %221 = arith.truncf %220 : vector<16x121xf32> to vector<16x121xbf16>
    %cst_277 = arith.constant dense<0.000000e+00> : vector<16x400xf32>
    %222 = tpu.matmul %221, %198, %cst_277 {dimension_numbers = #tpu.dot_dimension_numbers<[1], [0], [0], [1], [0, 0, 1, 1], [], []>} : vector<16x121xbf16>, vector<121x400xbf16>, vector<16x400xf32> -> vector<16x400xf32>
    %223 = arith.mulf %222, %199 : vector<16x400xf32>
    %224 = arith.truncf %223 : vector<16x400xf32> to vector<16x400xbf16>
    %cst_278 = arith.constant dense<0.000000e+00> : vector<1x400xf32>
    %225 = tpu.matmul %200, %224, %cst_278 {dimension_numbers = #tpu.dot_dimension_numbers<[1], [0], [0], [1], [0, 0, 1, 1], [], []>} : vector<1x16xbf16>, vector<16x400xbf16>, vector<1x400xf32> -> vector<1x400xf32>
    %c1_279 = arith.constant 1 : index
    %c0_280 = arith.constant 0 : index
    %226 = vector.load %arg21[%c1_279, %c0_280] : memref<2x400xf32, #tpu.memory_space<vmem>>, vector<1x400xf32>
    tpu.vector_store %arg21[%c1_279, %c0_280], %225 {strides = array<i32>} : memref<2x400xf32, #tpu.memory_space<vmem>>, vector<1x400xf32>,
    %c0_281 = arith.constant 0 : index
    %c0_282 = arith.constant 0 : index
    %227 = vector.load %arg21[%c0_281, %c0_282] : memref<2x400xf32, #tpu.memory_space<vmem>>, vector<2x400xf32>
    %228 = arith.truncf %227 : vector<2x400xf32> to vector<2x400xbf16>
    %c0_283 = arith.constant 0 : index
    %c0_284 = arith.constant 0 : index
    %229 = vector.load %arg9[%c0_283, %c0_284] : memref<400x128xbf16, #tpu.memory_space<vmem>>, vector<400x128xbf16>
    %cst_285 = arith.constant dense<0.000000e+00> : vector<2x128xf32>
    %230 = tpu.matmul %228, %229, %cst_285 {dimension_numbers = #tpu.dot_dimension_numbers<[1], [0], [0], [1], [0, 0, 1, 1], [], []>} : vector<2x400xbf16>, vector<400x128xbf16>, vector<2x128xf32> -> vector<2x128xf32>
    %c0_286 = arith.constant 0 : index
    %c0_287 = arith.constant 0 : index
    %231 = vector.load %arg10[%c0_286, %c0_287] : memref<1x128xf32, #tpu.memory_space<vmem>>, vector<1x128xf32>
    %232 = vector.broadcast %231 : vector<1x128xf32> to vector<2x128xf32>
    %233 = arith.addf %230, %232 : vector<2x128xf32>
    %cst_288 = arith.constant 0.000000e+00 : f32
    %234 = vector.broadcast %cst_288 : f32 to vector<2x128xf32>
    %235 = arith.maximumf %233, %234 : vector<2x128xf32>
    %236 = arith.truncf %235 : vector<2x128xf32> to vector<2x128xbf16>
    %c0_289 = arith.constant 0 : index
    %c0_290 = arith.constant 0 : index
    %237 = vector.load %arg11[%c0_289, %c0_290] : memref<128x128xbf16, #tpu.memory_space<vmem>>, vector<128x128xbf16>
    %cst_291 = arith.constant dense<0.000000e+00> : vector<2x128xf32>
    %238 = tpu.matmul %236, %237, %cst_291 {dimension_numbers = #tpu.dot_dimension_numbers<[1], [0], [0], [1], [0, 0, 1, 1], [], []>} : vector<2x128xbf16>, vector<128x128xbf16>, vector<2x128xf32> -> vector<2x128xf32>
    %c0_292 = arith.constant 0 : index
    %c0_293 = arith.constant 0 : index
    %239 = vector.load %arg12[%c0_292, %c0_293] : memref<1x128xf32, #tpu.memory_space<vmem>>, vector<1x128xf32>
    %240 = vector.broadcast %239 : vector<1x128xf32> to vector<2x128xf32>
    %241 = arith.addf %238, %240 : vector<2x128xf32>
    %cst_294 = arith.constant 0.000000e+00 : f32
    %242 = vector.broadcast %cst_294 : f32 to vector<2x128xf32>
    %243 = arith.maximumf %241, %242 : vector<2x128xf32>
    %244 = arith.truncf %243 : vector<2x128xf32> to vector<2x128xbf16>
    %c0_295 = arith.constant 0 : index
    %c0_296 = arith.constant 0 : index
    %245 = vector.load %arg13[%c0_295, %c0_296] : memref<128x128xbf16, #tpu.memory_space<vmem>>, vector<128x128xbf16>
    %cst_297 = arith.constant dense<0.000000e+00> : vector<2x128xf32>
    %246 = tpu.matmul %244, %245, %cst_297 {dimension_numbers = #tpu.dot_dimension_numbers<[1], [0], [0], [1], [0, 0, 1, 1], [], []>} : vector<2x128xbf16>, vector<128x128xbf16>, vector<2x128xf32> -> vector<2x128xf32>
    %c0_298 = arith.constant 0 : index
    %c0_299 = arith.constant 0 : index
    %247 = vector.load %arg14[%c0_298, %c0_299] : memref<1x128xf32, #tpu.memory_space<vmem>>, vector<1x128xf32>
    %248 = vector.broadcast %247 : vector<1x128xf32> to vector<2x128xf32>
    %249 = arith.addf %246, %248 : vector<2x128xf32>
    %c0_300 = arith.constant 0 : index
    %c0_301 = arith.constant 0 : index
    %c0_302 = arith.constant 0 : index
    %250 = vector.load %arg15[%c0_300, %c0_301, %c0_302] : memref<1x2x128xf32, #tpu.memory_space<vmem>>, vector<1x2x128xf32>
    %251 = vector.shape_cast %250 : vector<1x2x128xf32> to vector<2x128xf32>
    %252 = vector.shape_cast %249 : vector<2x128xf32> to vector<1x2x128xf32>
    tpu.vector_store %arg15[%c0_300, %c0_301, %c0_302], %252 {strides = array<i32>} : memref<1x2x128xf32, #tpu.memory_space<vmem>>, vector<1x2x128xf32>,
    return
  }
  func.func @transform_0(%arg0: i32) -> (i32, i32) {
    %c0_i32 = arith.constant 0 : i32
    %c0_i32_0 = arith.constant 0 : i32
    return %c0_i32, %arg0 : i32, i32
  }
  func.func @transform_1(%arg0: i32) -> (i32, i32) {
    %c0_i32 = arith.constant 0 : i32
    %c0_i32_0 = arith.constant 0 : i32
    %c0_i32_1 = arith.constant 0 : i32
    return %c0_i32, %c0_i32_0 : i32, i32
  }
  func.func @transform_2(%arg0: i32) -> (i32, i32) {
    %c0_i32 = arith.constant 0 : i32
    %c0_i32_0 = arith.constant 0 : i32
    %c0_i32_1 = arith.constant 0 : i32
    return %c0_i32, %c0_i32_0 : i32, i32
  }
  func.func @transform_3(%arg0: i32) -> (i32, i32) {
    %c0_i32 = arith.constant 0 : i32
    %c0_i32_0 = arith.constant 0 : i32
    %c0_i32_1 = arith.constant 0 : i32
    return %c0_i32, %c0_i32_0 : i32, i32
  }
  func.func @transform_4(%arg0: i32) -> (i32, i32) {
    %c0_i32 = arith.constant 0 : i32
    %c0_i32_0 = arith.constant 0 : i32
    %c0_i32_1 = arith.constant 0 : i32
    return %c0_i32, %c0_i32_0 : i32, i32
  }
  func.func @transform_5(%arg0: i32) -> (i32, i32) {
    %c0_i32 = arith.constant 0 : i32
    %c0_i32_0 = arith.constant 0 : i32
    %c0_i32_1 = arith.constant 0 : i32
    return %c0_i32, %c0_i32_0 : i32, i32
  }
  func.func @transform_6(%arg0: i32) -> (i32, i32) {
    %c0_i32 = arith.constant 0 : i32
    %c0_i32_0 = arith.constant 0 : i32
    %c0_i32_1 = arith.constant 0 : i32
    return %c0_i32, %c0_i32_0 : i32, i32
  }
  func.func @transform_7(%arg0: i32) -> (i32, i32) {
    %c0_i32 = arith.constant 0 : i32
    %c0_i32_0 = arith.constant 0 : i32
    %c0_i32_1 = arith.constant 0 : i32
    return %c0_i32, %c0_i32_0 : i32, i32
  }
  func.func @transform_8(%arg0: i32) -> (i32, i32) {
    %c0_i32 = arith.constant 0 : i32
    %c0_i32_0 = arith.constant 0 : i32
    %c0_i32_1 = arith.constant 0 : i32
    return %c0_i32, %c0_i32_0 : i32, i32
  }
  func.func @transform_9(%arg0: i32) -> (i32, i32) {
    %c0_i32 = arith.constant 0 : i32
    %c0_i32_0 = arith.constant 0 : i32
    %c0_i32_1 = arith.constant 0 : i32
    return %c0_i32, %c0_i32_0 : i32, i32
  }
  func.func @transform_10(%arg0: i32) -> (i32, i32) {
    %c0_i32 = arith.constant 0 : i32
    %c0_i32_0 = arith.constant 0 : i32
    %c0_i32_1 = arith.constant 0 : i32
    return %c0_i32, %c0_i32_0 : i32, i32
  }
  func.func @transform_11(%arg0: i32) -> (i32, i32) {
    %c0_i32 = arith.constant 0 : i32
    %c0_i32_0 = arith.constant 0 : i32
    %c0_i32_1 = arith.constant 0 : i32
    return %c0_i32, %c0_i32_0 : i32, i32
  }
  func.func @transform_12(%arg0: i32) -> (i32, i32) {
    %c0_i32 = arith.constant 0 : i32
    %c0_i32_0 = arith.constant 0 : i32
    %c0_i32_1 = arith.constant 0 : i32
    return %c0_i32, %c0_i32_0 : i32, i32
  }
  func.func @transform_13(%arg0: i32) -> (i32, i32) {
    %c0_i32 = arith.constant 0 : i32
    %c0_i32_0 = arith.constant 0 : i32
    %c0_i32_1 = arith.constant 0 : i32
    return %c0_i32, %c0_i32_0 : i32, i32
  }
  func.func @transform_14(%arg0: i32) -> (i32, i32, i32) {
    %c0_i32 = arith.constant 0 : i32
    %c0_i32_0 = arith.constant 0 : i32
    %c0_i32_1 = arith.constant 0 : i32
    return %arg0, %c0_i32, %c0_i32_0 : i32, i32, i32
  }
}

</mosaic_0001>

<llo_original>
// kernel: net_forward.1
$region0: #{net_forward.1}
  #allocation0 [shape = 'u32[]', space=smem, size = 0x4, offset = 0x4, fixed_abs, tag = 'smem constant byte address 0x4 - core index']
  #allocation1 [shape = 'u32[144,128]{1,0:T(1,128)}', space=vmem, size = 0x12000, scoped, tag = 'internal scratch']
  #allocation2 [shape = 'bf16[100,1024]{1,0:T(8,128)(2,1)}', space=vmem, size = 0x34000, scoped, tag = 'scratch operand']
  #allocation3 [shape = 'f32[8,1916]{1,0:T(8,128)}', space=vmem, size = 0xf000, scoped, tag = 'scratch operand']
  #allocation4 [shape = 'bf16[8,392]{1,0:T(8,128)(2,1)}', space=vmem, size = 0x2000, scoped, tag = 'scratch operand']
  #allocation5 [shape = 'bf16[200,384]{1,0:T(8,128)(2,1)}', space=vmem, size = 0x25800, scoped, tag = 'scratch operand']
  #allocation6 [shape = 'f32[16,332]{1,0:T(8,128)}', space=vmem, size = 0x6000, scoped, tag = 'scratch operand']
  #allocation7 [shape = 'f32[2,400]{1,0:T(2,128)}', space=vmem, size = 0x1000, scoped, tag = 'scratch operand']
  %s0 = inlined_call_operand.vmem [shape: bf16[4,2048], index: 0, kind: input, shape index: {}]
  %s1 = inlined_call_operand.vmem [shape: bf16[8,100], index: 1, kind: input, shape index: {}]
  %s2 = inlined_call_operand.vmem [shape: f32[8,1], index: 2, kind: input, shape index: {}]
  %s3 = inlined_call_operand.vmem [shape: bf16[16,200], index: 3, kind: input, shape index: {}]
  %s4 = inlined_call_operand.vmem [shape: f32[16,1], index: 4, kind: input, shape index: {}]
  %s5 = inlined_call_operand.vmem [shape: bf16[859,196], index: 5, kind: input, shape index: {}]
  %s6 = inlined_call_operand.vmem [shape: bf16[121,400], index: 6, kind: input, shape index: {}]
  %s7 = inlined_call_operand.vmem [shape: f32[16,400], index: 7, kind: input, shape index: {}]
  %s8 = inlined_call_operand.vmem [shape: bf16[400,128], index: 8, kind: input, shape index: {}]
  %s9 = inlined_call_operand.vmem [shape: f32[1,128], index: 9, kind: input, shape index: {}]
  %s10 = inlined_call_operand.vmem [shape: bf16[128,128], index: 10, kind: input, shape index: {}]
  %s11 = inlined_call_operand.vmem [shape: f32[1,128], index: 11, kind: input, shape index: {}]
  %s12 = inlined_call_operand.vmem [shape: bf16[128,128], index: 12, kind: input, shape index: {}]
  %s13 = inlined_call_operand.vmem [shape: f32[1,128], index: 13, kind: input, shape index: {}]
  %s14 = inlined_call_operand.hbm [shape: f32[1,2,128], index: 14, kind: output, shape index: {}]
  %s15 = sld [smem:[#allocation0]]
  $region66: #{net_forward.1} parent=0
    _
  %s17 = ssub.s32 1, %s15
  %s18 = scalar_select 0, %s17, %s15
  $region1: #{net_forward.1} parent=0
    #allocation8 [shape = 'u8[1024]{0}', space=vmem, size = 0x400, scoped, tag = 'output window, operand 0, single buffered']
    #allocation9 [shape = 's32[1]{0}', space=sflag, size = 0x4, scoped, tag = 'scoped memory for net_forward.1']
    %19 = vsyncpa [#allocation9], 0
    // Predicated region
    $region2: #{net_forward.1} parent=1 // pred_check
      _
    $region3: #{net_forward.1} parent=1 // pred_check_branch
      %21 = sbr.rel (0) target = $region5
    $region4: #{net_forward.1} parent=1 // pred_region
      _
    $region5: #{net_forward.1} parent=1 // pred_fallthru
      _
    // Predicated region
    $region6: #{net_forward.1} parent=1 // pred_check
      _
    $region7: #{net_forward.1} parent=1 // pred_check_branch
      %23 = sbr.rel (0) target = $region9
    $region8: #{net_forward.1} parent=1 // pred_region
      _
    $region9: #{net_forward.1} parent=1 // pred_fallthru
      _
    // Predicated region
    $region10: #{net_forward.1} parent=1 // pred_check
      _
    $region11: #{net_forward.1} parent=1 // pred_check_branch
      %25 = sbr.rel (0) target = $region13
    $region12: #{net_forward.1} parent=1 // pred_region
      _
    $region13: #{net_forward.1} parent=1 // pred_fallthru
      _
    // Predicated region
    $region14: #{net_forward.1} parent=1 // pred_check
      _
    $region15: #{net_forward.1} parent=1 // pred_check_branch
      %27 = sbr.rel (0) target = $region17
    $region16: #{net_forward.1} parent=1 // pred_region
      _
    $region17: #{net_forward.1} parent=1 // pred_fallthru
      _
    // Predicated region
    $region18: #{net_forward.1} parent=1 // pred_check
      _
    $region19: #{net_forward.1} parent=1 // pred_check_branch
      %29 = sbr.rel (0) target = $region21
    $region20: #{net_forward.1} parent=1 // pred_region
      _
    $region21: #{net_forward.1} parent=1 // pred_fallthru
      _
    // Predicated region
    $region22: #{net_forward.1} parent=1 // pred_check
      _
    $region23: #{net_forward.1} parent=1 // pred_check_branch
      %31 = sbr.rel (0) target = $region25
    $region24: #{net_forward.1} parent=1 // pred_region
      _
    $region25: #{net_forward.1} parent=1 // pred_fallthru
      _
    // Predicated region
    $region26: #{net_forward.1} parent=1 // pred_check
      _
    $region27: #{net_forward.1} parent=1 // pred_check_branch
      %33 = sbr.rel (0) target = $region29
    $region28: #{net_forward.1} parent=1 // pred_region
      _
    $region29: #{net_forward.1} parent=1 // pred_fallthru
      _
    // Predicated region
    $region30: #{net_forward.1} parent=1 // pred_check
      _
    $region31: #{net_forward.1} parent=1 // pred_check_branch
      %35 = sbr.rel (0) target = $region33
    $region32: #{net_forward.1} parent=1 // pred_region
      _
    $region33: #{net_forward.1} parent=1 // pred_fallthru
      _
    // Predicated region
    $region34: #{net_forward.1} parent=1 // pred_check
      _
    $region35: #{net_forward.1} parent=1 // pred_check_branch
      %37 = sbr.rel (0) target = $region37
    $region36: #{net_forward.1} parent=1 // pred_region
      _
    $region37: #{net_forward.1} parent=1 // pred_fallthru
      _
    // Predicated region
    $region38: #{net_forward.1} parent=1 // pred_check
      _
    $region39: #{net_forward.1} parent=1 // pred_check_branch
      %39 = sbr.rel (0) target = $region41
    $region40: #{net_forward.1} parent=1 // pred_region
      _
    $region41: #{net_forward.1} parent=1 // pred_fallthru
      _
    // Predicated region
    $region42: #{net_forward.1} parent=1 // pred_check
      _
    $region43: #{net_forward.1} parent=1 // pred_check_branch
      %41 = sbr.rel (0) target = $region45
    $region44: #{net_forward.1} parent=1 // pred_region
      _
    $region45: #{net_forward.1} parent=1 // pred_fallthru
      _
    // Predicated region
    $region46: #{net_forward.1} parent=1 // pred_check
      _
    $region47: #{net_forward.1} parent=1 // pred_check_branch
      %43 = sbr.rel (0) target = $region49
    $region48: #{net_forward.1} parent=1 // pred_region
      _
    $region49: #{net_forward.1} parent=1 // pred_fallthru
      _
    // Predicated region
    $region50: #{net_forward.1} parent=1 // pred_check
      _
    $region51: #{net_forward.1} parent=1 // pred_check_branch
      %45 = sbr.rel (0) target = $region53
    $region52: #{net_forward.1} parent=1 // pred_region
      _
    $region53: #{net_forward.1} parent=1 // pred_fallthru
      _
    // Predicated region
    $region54: #{net_forward.1} parent=1 // pred_check
      _
    $region55: #{net_forward.1} parent=1 // pred_check_branch
      %47 = sbr.rel (0) target = $region57
    $region56: #{net_forward.1} parent=1 // pred_region
      _
    $region57: #{net_forward.1} parent=1 // pred_fallthru
      _
    %v50 = vld [vmem:[%s1] sm:$0xf]
    %v51 = vld [vmem:[%s2] sm:$0xff]
    %v52 = vld [vmem:[%s3] sm:$0xff]
    %v53 = vld [vmem:[%s3 + $0x8] sm:$0xff]
    %v54 = vld [vmem:[%s4] sm:$0xff]
    %v55 = vld [vmem:[%s4 + $0x8] sm:$0xff]
    %v56 = vld [vmem:[%s0] sm:$0xff]
    %v57 = vld [vmem:[%s0 + $0x8] sm:$0xff]
    %v60 = vcombine.high %v56, %v56
    %v62 = vunpack.c.l.s4 1983009808
    %v63 = vunpack.c.0.s8 %v62
    %v64 = vlaneseq
    %v65 = vshrl.u32 %v64, 7
    %v66 = vsub.s32 %v63, %v65
    %v67 = vrot.slane %v56, %v66
    %v69 = vunpack.c.l.s4 1983009808
    %v70 = vunpack.c.0.s8 %v69
    %v71 = vlaneseq
    %v72 = vshrl.u32 %v71, 7
    %v73 = vsub.s32 %v70, %v72
    %v74 = vrot.slane %v60, %v73
    %v75 = vcombine.high %v57, %v57
    %v77 = vunpack.c.l.s4 1983009808
    %v78 = vunpack.c.0.s8 %v77
    %v79 = vlaneseq
    %v80 = vshrl.u32 %v79, 7
    %v81 = vsub.s32 %v78, %v80
    %v82 = vrot.slane %v57, %v81
    %v84 = vunpack.c.l.s4 1983009808
    %v85 = vunpack.c.0.s8 %v84
    %v86 = vlaneseq
    %v87 = vshrl.u32 %v86, 7
    %v88 = vsub.s32 %v85, %v87
    %v89 = vrot.slane %v75, %v88
    %94 = vst [vmem:[#allocation2] sm:$0x33] %v67
    %95 = vst [vmem:[#allocation2 + $0x8] sm:$0x33] %v74
    %96 = vst [vmem:[#allocation2 + $0x10] sm:$0x33] %v82
    %97 = vst [vmem:[#allocation2 + $0x18] sm:$0x33] %v89
    %v98 = vld [vmem:[%s0] sm:$0xff]
    %v99 = vld [vmem:[%s0 + $0x8] sm:$0xff]
    %v100 = vld [vmem:[%s0 + $0x10] sm:$0x3]
    %v104 = vcombine.low %v98, %v98
    %v106 = vunpack.c.l.s4 1983009808
    %v107 = vunpack.c.0.s8 %v106
    %v108 = vlaneseq
    %v109 = vshrl.u32 %v108, 7
    %v110 = vsub.s32 %v107, %v109
    %v111 = vrot.slane %v104, %v110
    %v113 = vunpack.c.l.s4 1983009808
    %v114 = vunpack.c.0.s8 %v113
    %v115 = vlaneseq
    %v116 = vshrl.u32 %v115, 7
    %v117 = vsub.s32 %v114, %v116
    %v118 = vrot.slane %v98, %v117
    %v119 = vcombine.low %v99, %v99
    %v121 = vunpack.c.l.s4 1983009808
    %v122 = vunpack.c.0.s8 %v121
    %v123 = vlaneseq
    %v124 = vshrl.u32 %v123, 7
    %v125 = vsub.s32 %v122, %v124
    %v126 = vrot.slane %v119, %v125
    %v128 = vunpack.c.l.s4 1983009808
    %v129 = vunpack.c.0.s8 %v128
    %v130 = vlaneseq
    %v131 = vshrl.u32 %v130, 7
    %v132 = vsub.s32 %v129, %v131
    %v133 = vrot.slane %v99, %v132
    %v134 = vcombine.low %v100, %v100
    %v136 = vunpack.c.l.s4 1983009808
    %v137 = vunpack.c.0.s8 %v136
    %v138 = vlaneseq
    %v139 = vshrl.u32 %v138, 7
    %v140 = vsub.s32 %v137, %v139
    %v141 = vrot.slane %v134, %v140
    %142 = vrot.lane.b32.xlu0 %v111, 127
    %v143 = vpop.permute.xlu0 %142
    %144 = vrot.lane.b32.xlu0 %v118, 127
    %v145 = vpop.permute.xlu0 %144
    %146 = vrot.lane.b32.xlu0 %v126, 127
    %v147 = vpop.permute.xlu0 %146
    %148 = vrot.lane.b32.xlu0 %v133, 127
    %v149 = vpop.permute.xlu0 %148
    %150 = vrot.lane.b32.xlu0 %v141, 127
    %v151 = vpop.permute.xlu0 %150
    %v152 = vrot.slane %v143, 4
    %v153 = vrot.slane %v145, 4
    %v154 = vrot.slane %v147, 4
    %v155 = vrot.slane %v149, 4
    %v156 = vrot.slane %v151, 4
    %vm157 = vcmask 1043456
    %v158 = vsel %vm157, %v152, %v153
    %vm159 = vcmask 1039360
    %v160 = vsel %vm159, %v143, %v158
    %v161 = vsel %vm157, %v153, %v154
    %v162 = vsel %vm159, %v145, %v161
    %v163 = vsel %vm157, %v154, %v155
    %v164 = vsel %vm159, %v147, %v163
    %v165 = vsel %vm157, %v155, %v156
    %v166 = vsel %vm159, %v149, %v165
    %171 = vst [vmem:[#allocation2] sm:$0xcc] %v160
    %172 = vst [vmem:[#allocation2 + $0x8] sm:$0xcc] %v162
    %173 = vst [vmem:[#allocation2 + $0x10] sm:$0xcc] %v164
    %174 = vst [vmem:[#allocation2 + $0x18] sm:$0xcc] %v166
    %v175 = vld [vmem:[%s0] sm:$0xff]
    %v176 = vld [vmem:[%s0 + $0x8] sm:$0xff]
    %v177 = vld [vmem:[%s0 + $0x10] sm:$0x3]
    %v181 = vcombine.high %v175, %v175
    %v183 = vunpack.c.l.s4 1983009808
    %v184 = vunpack.c.0.s8 %v183
    %v185 = vlaneseq
    %v186 = vshrl.u32 %v185, 7
    %v187 = vsub.s32 %v184, %v186
    %v188 = vrot.slane %v175, %v187
    %v190 = vunpack.c.l.s4 1983009808
    %v191 = vunpack.c.0.s8 %v190
    %v192 = vlaneseq
    %v193 = vshrl.u32 %v192, 7
    %v194 = vsub.s32 %v191, %v193
    %v195 = vrot.slane %v181, %v194
    %v196 = vcombine.high %v176, %v176
    %v198 = vunpack.c.l.s4 1983009808
    %v199 = vunpack.c.0.s8 %v198
    %v200 = vlaneseq
    %v201 = vshrl.u32 %v200, 7
    %v202 = vsub.s32 %v199, %v201
    %v203 = vrot.slane %v176, %v202
    %v205 = vunpack.c.l.s4 1983009808
    %v206 = vunpack.c.0.s8 %v205
    %v207 = vlaneseq
    %v208 = vshrl.u32 %v207, 7
    %v209 = vsub.s32 %v206, %v208
    %v210 = vrot.slane %v196, %v209
    %v212 = vunpack.c.l.s4 1983009808
    %v213 = vunpack.c.0.s8 %v212
    %v214 = vlaneseq
    %v215 = vshrl.u32 %v214, 7
    %v216 = vsub.s32 %v213, %v215
    %v217 = vrot.slane %v177, %v216
    %218 = vrot.lane.b32.xlu0 %v188, 126
    %v219 = vpop.permute.xlu0 %218
    %220 = vrot.lane.b32.xlu0 %v195, 126
    %v221 = vpop.permute.xlu0 %220
    %222 = vrot.lane.b32.xlu0 %v203, 126
    %v223 = vpop.permute.xlu0 %222
    %224 = vrot.lane.b32.xlu0 %v210, 126
    %v225 = vpop.permute.xlu0 %224
    %226 = vrot.lane.b32.xlu0 %v217, 126
    %v227 = vpop.permute.xlu0 %226
    %v228 = vrot.slane %v219, 4
    %v229 = vrot.slane %v221, 4
    %v230 = vrot.slane %v223, 4
    %v231 = vrot.slane %v225, 4
    %v232 = vrot.slane %v227, 4
    %v233 = vsel %vm157, %v228, %v229
    %vm234 = vcmask 1031168
    %v235 = vsel %vm234, %v219, %v233
    %v236 = vsel %vm157, %v229, %v230
    %v237 = vsel %vm234, %v221, %v236
    %v238 = vsel %vm157, %v230, %v231
    %v239 = vsel %vm234, %v223, %v238
    %v240 = vsel %vm157, %v231, %v232
    %v241 = vsel %vm234, %v225, %v240
    %246 = vst [vmem:[#allocation2 + $0x20] sm:$0x33] %v235
    %247 = vst [vmem:[#allocation2 + $0x28] sm:$0x33] %v237
    %248 = vst [vmem:[#allocation2 + $0x30] sm:$0x33] %v239
    %249 = vst [vmem:[#allocation2 + $0x38] sm:$0x33] %v241
    %v250 = vld [vmem:[%s0] sm:$0xff]
    %v251 = vld [vmem:[%s0 + $0x8] sm:$0xff]
    %v252 = vld [vmem:[%s0 + $0x10] sm:$0x3]
    %v256 = vcombine.low %v250, %v250
    %v258 = vunpack.c.l.s4 1983009808
    %v259 = vunpack.c.0.s8 %v258
    %v260 = vlaneseq
    %v261 = vshrl.u32 %v260, 7
    %v262 = vsub.s32 %v259, %v261
    %v263 = vrot.slane %v256, %v262
    %v265 = vunpack.c.l.s4 1983009808
    %v266 = vunpack.c.0.s8 %v265
    %v267 = vlaneseq
    %v268 = vshrl.u32 %v267, 7
    %v269 = vsub.s32 %v266, %v268
    %v270 = vrot.slane %v250, %v269
    %v271 = vcombine.low %v251, %v251
    %v273 = vunpack.c.l.s4 1983009808
    %v274 = vunpack.c.0.s8 %v273
    %v275 = vlaneseq
    %v276 = vshrl.u32 %v275, 7
    %v277 = vsub.s32 %v274, %v276
    %v278 = vrot.slane %v271, %v277
    %v280 = vunpack.c.l.s4 1983009808
    %v281 = vunpack.c.0.s8 %v280
    %v282 = vlaneseq
    %v283 = vshrl.u32 %v282, 7
    %v284 = vsub.s32 %v281, %v283
    %v285 = vrot.slane %v251, %v284
    %v286 = vcombine.low %v252, %v252
    %v288 = vunpack.c.l.s4 1983009808
    %v289 = vunpack.c.0.s8 %v288
    %v290 = vlaneseq
    %v291 = vshrl.u32 %v290, 7
    %v292 = vsub.s32 %v289, %v291
    %v293 = vrot.slane %v286, %v292
    %294 = vrot.lane.b32.xlu0 %v263, 125
    %v295 = vpop.permute.xlu0 %294
    %296 = vrot.lane.b32.xlu0 %v270, 125
    %v297 = vpop.permute.xlu0 %296
    %298 = vrot.lane.b32.xlu0 %v278, 125
    %v299 = vpop.permute.xlu0 %298
    %300 = vrot.lane.b32.xlu0 %v285, 125
    %v301 = vpop.permute.xlu0 %300
    %302 = vrot.lane.b32.xlu0 %v293, 125
    %v303 = vpop.permute.xlu0 %302
    %v304 = vrot.slane %v295, 4
    %v305 = vrot.slane %v297, 4
    %v306 = vrot.slane %v299, 4
    %v307 = vrot.slane %v301, 4
    %v308 = vrot.slane %v303, 4
    %v309 = vsel %vm157, %v304, %v305
    %vm310 = vcmask 1022976
    %v311 = vsel %vm310, %v295, %v309
    %v312 = vsel %vm157, %v305, %v306
    %v313 = vsel %vm310, %v297, %v312
    %v314 = vsel %vm157, %v306, %v307
    %v315 = vsel %vm310, %v299, %v314
    %v316 = vsel %vm157, %v307, %v308
    %v317 = vsel %vm310, %v301, %v316
    %322 = vst [vmem:[#allocation2 + $0x20] sm:$0xcc] %v311
    %323 = vst [vmem:[#allocation2 + $0x28] sm:$0xcc] %v313
    %324 = vst [vmem:[#allocation2 + $0x30] sm:$0xcc] %v315
    %325 = vst [vmem:[#allocation2 + $0x38] sm:$0xcc] %v317
    %v326 = vld [vmem:[%s0] sm:$0xff]
    %v327 = vld [vmem:[%s0 + $0x8] sm:$0xff]
    %v328 = vld [vmem:[%s0 + $0x10] sm:$0x3]
    %v332 = vcombine.high %v326, %v326
    %v334 = vunpack.c.l.s4 1983009808
    %v335 = vunpack.c.0.s8 %v334
    %v336 = vlaneseq
    %v337 = vshrl.u32 %v336, 7
    %v338 = vsub.s32 %v335, %v337
    %v339 = vrot.slane %v326, %v338
    %v341 = vunpack.c.l.s4 1983009808
    %v342 = vunpack.c.0.s8 %v341
    %v343 = vlaneseq
    %v344 = vshrl.u32 %v343, 7
    %v345 = vsub.s32 %v342, %v344
    %v346 = vrot.slane %v332, %v345
    %v347 = vcombine.high %v327, %v327
    %v349 = vunpack.c.l.s4 1983009808
    %v350 = vunpack.c.0.s8 %v349
    %v351 = vlaneseq
    %v352 = vshrl.u32 %v351, 7
    %v353 = vsub.s32 %v350, %v352
    %v354 = vrot.slane %v327, %v353
    %v356 = vunpack.c.l.s4 1983009808
    %v357 = vunpack.c.0.s8 %v356
    %v358 = vlaneseq
    %v359 = vshrl.u32 %v358, 7
    %v360 = vsub.s32 %v357, %v359
    %v361 = vrot.slane %v347, %v360
    %v363 = vunpack.c.l.s4 1983009808
    %v364 = vunpack.c.0.s8 %v363
    %v365 = vlaneseq
    %v366 = vshrl.u32 %v365, 7
    %v367 = vsub.s32 %v364, %v366
    %v368 = vrot.slane %v328, %v367
    %369 = vrot.lane.b32.xlu0 %v339, 124
    %v370 = vpop.permute.xlu0 %369
    %371 = vrot.lane.b32.xlu0 %v346, 124
    %v372 = vpop.permute.xlu0 %371
    %373 = vrot.lane.b32.xlu0 %v354, 124
    %v374 = vpop.permute.xlu0 %373
    %375 = vrot.lane.b32.xlu0 %v361, 124
    %v376 = vpop.permute.xlu0 %375
    %377 = vrot.lane.b32.xlu0 %v368, 124
    %v378 = vpop.permute.xlu0 %377
    %v379 = vrot.slane %v370, 4
    %v380 = vrot.slane %v372, 4
    %v381 = vrot.slane %v374, 4
    %v382 = vrot.slane %v376, 4
    %v383 = vrot.slane %v378, 4
    %v384 = vsel %vm157, %v379, %v380
    %vm385 = vcmask 1014784
    %v386 = vsel %vm385, %v370, %v384
    %v387 = vsel %vm157, %v380, %v381
    %v388 = vsel %vm385, %v372, %v387
    %v389 = vsel %vm157, %v381, %v382
    %v390 = vsel %vm385, %v374, %v389
    %v391 = vsel %vm157, %v382, %v383
    %v392 = vsel %vm385, %v376, %v391
    %397 = vst [vmem:[#allocation2 + $0x40] sm:$0x33] %v386
    %398 = vst [vmem:[#allocation2 + $0x48] sm:$0x33] %v388
    %399 = vst [vmem:[#allocation2 + $0x50] sm:$0x33] %v390
    %400 = vst [vmem:[#allocation2 + $0x58] sm:$0x33] %v392
    %v401 = vld [vmem:[%s0] sm:$0xff]
    %v402 = vld [vmem:[%s0 + $0x8] sm:$0xff]
    %v403 = vld [vmem:[%s0 + $0x10] sm:$0x3]
    %v407 = vcombine.low %v401, %v401
    %v409 = vunpack.c.l.s4 1983009808
    %v410 = vunpack.c.0.s8 %v409
    %v411 = vlaneseq
    %v412 = vshrl.u32 %v411, 7
    %v413 = vsub.s32 %v410, %v412
    %v414 = vrot.slane %v407, %v413
    %v416 = vunpack.c.l.s4 1983009808
    %v417 = vunpack.c.0.s8 %v416
    %v418 = vlaneseq
    %v419 = vshrl.u32 %v418, 7
    %v420 = vsub.s32 %v417, %v419
    %v421 = vrot.slane %v401, %v420
    %v422 = vcombine.low %v402, %v402
    %v424 = vunpack.c.l.s4 1983009808
    %v425 = vunpack.c.0.s8 %v424
    %v426 = vlaneseq
    %v427 = vshrl.u32 %v426, 7
    %v428 = vsub.s32 %v425, %v427
    %v429 = vrot.slane %v422, %v428
    %v431 = vunpack.c.l.s4 1983009808
    %v432 = vunpack.c.0.s8 %v431
    %v433 = vlaneseq
    %v434 = vshrl.u32 %v433, 7
    %v435 = vsub.s32 %v432, %v434
    %v436 = vrot.slane %v402, %v435
    %v437 = vcombine.low %v403, %v403
    %v439 = vunpack.c.l.s4 1983009808
    %v440 = vunpack.c.0.s8 %v439
    %v441 = vlaneseq
    %v442 = vshrl.u32 %v441, 7
    %v443 = vsub.s32 %v440, %v442
    %v444 = vrot.slane %v437, %v443
    %445 = vrot.lane.b32.xlu0 %v414, 96
    %v446 = vpop.permute.xlu0 %445
    %447 = vrot.lane.b32.xlu0 %v421, 96
    %v448 = vpop.permute.xlu0 %447
    %449 = vrot.lane.b32.xlu0 %v429, 96
    %v450 = vpop.permute.xlu0 %449
    %451 = vrot.lane.b32.xlu0 %v436, 96
    %v452 = vpop.permute.xlu0 %451
    %453 = vrot.lane.b32.xlu0 %v444, 96
    %v454 = vpop.permute.xlu0 %453
    %v455 = vrot.slane %v446, 4
    %v456 = vrot.slane %v448, 4
    %v457 = vrot.slane %v450, 4
    %v458 = vrot.slane %v452, 4
    %v459 = vrot.slane %v454, 4
    %v460 = vsel %vm157, %v455, %v456
    %vm461 = vcmask 785408
    %v462 = vsel %vm461, %v446, %v460
    %v463 = vsel %vm157, %v456, %v457
    %v464 = vsel %vm461, %v448, %v463
    %v465 = vsel %vm157, %v457, %v458
    %v466 = vsel %vm461, %v450, %v465
    %v467 = vsel %vm157, %v458, %v459
    %v468 = vsel %vm461, %v452, %v467
    %473 = vst [vmem:[#allocation2 + $0x40] sm:$0xcc] %v462
    %474 = vst [vmem:[#allocation2 + $0x48] sm:$0xcc] %v464
    %475 = vst [vmem:[#allocation2 + $0x50] sm:$0xcc] %v466
    %476 = vst [vmem:[#allocation2 + $0x58] sm:$0xcc] %v468
    %v477 = vld [vmem:[%s0] sm:$0xff]
    %v478 = vld [vmem:[%s0 + $0x8] sm:$0xff]
    %v479 = vld [vmem:[%s0 + $0x10] sm:$0x3]
    %v483 = vcombine.high %v477, %v477
    %v485 = vunpack.c.l.s4 1983009808
    %v486 = vunpack.c.0.s8 %v485
    %v487 = vlaneseq
    %v488 = vshrl.u32 %v487, 7
    %v489 = vsub.s32 %v486, %v488
    %v490 = vrot.slane %v477, %v489
    %v492 = vunpack.c.l.s4 1983009808
    %v493 = vunpack.c.0.s8 %v492
    %v494 = vlaneseq
    %v495 = vshrl.u32 %v494, 7
    %v496 = vsub.s32 %v493, %v495
    %v497 = vrot.slane %v483, %v496
    %v498 = vcombine.high %v478, %v478
    %v500 = vunpack.c.l.s4 1983009808
    %v501 = vunpack.c.0.s8 %v500
    %v502 = vlaneseq
    %v503 = vshrl.u32 %v502, 7
    %v504 = vsub.s32 %v501, %v503
    %v505 = vrot.slane %v478, %v504
    %v507 = vunpack.c.l.s4 1983009808
    %v508 = vunpack.c.0.s8 %v507
    %v509 = vlaneseq
    %v510 = vshrl.u32 %v509, 7
    %v511 = vsub.s32 %v508, %v510
    %v512 = vrot.slane %v498, %v511
    %v514 = vunpack.c.l.s4 1983009808
    %v515 = vunpack.c.0.s8 %v514
    %v516 = vlaneseq
    %v517 = vshrl.u32 %v516, 7
    %v518 = vsub.s32 %v515, %v517
    %v519 = vrot.slane %v479, %v518
    %520 = vrot.lane.b32.xlu0 %v490, 95
    %v521 = vpop.permute.xlu0 %520
    %522 = vrot.lane.b32.xlu0 %v497, 95
    %v523 = vpop.permute.xlu0 %522
    %524 = vrot.lane.b32.xlu0 %v505, 95
    %v525 = vpop.permute.xlu0 %524
    %526 = vrot.lane.b32.xlu0 %v512, 95
    %v527 = vpop.permute.xlu0 %526
    %528 = vrot.lane.b32.xlu0 %v519, 95
    %v529 = vpop.permute.xlu0 %528
    %v530 = vrot.slane %v521, 4
    %v531 = vrot.slane %v523, 4
    %v532 = vrot.slane %v525, 4
    %v533 = vrot.slane %v527, 4
    %v534 = vrot.slane %v529, 4
    %v535 = vsel %vm157, %v530, %v531
    %vm536 = vcmask 777216
    %v537 = vsel %vm536, %v521, %v535
    %v538 = vsel %vm157, %v531, %v532
    %v539 = vsel %vm536, %v523, %v538
    %v540 = vsel %vm157, %v532, %v533
    %v541 = vsel %vm536, %v525, %v540
    %v542 = vsel %vm157, %v533, %v534
    %v543 = vsel %vm536, %v527, %v542
    %548 = vst [vmem:[#allocation2 + $0x60] sm:$0x33] %v537
    %549 = vst [vmem:[#allocation2 + $0x68] sm:$0x33] %v539
    %550 = vst [vmem:[#allocation2 + $0x70] sm:$0x33] %v541
    %551 = vst [vmem:[#allocation2 + $0x78] sm:$0x33] %v543
    %v552 = vld [vmem:[%s0] sm:$0xff]
    %v553 = vld [vmem:[%s0 + $0x8] sm:$0xff]
    %v554 = vld [vmem:[%s0 + $0x10] sm:$0x3]
    %v558 = vcombine.low %v552, %v552
    %v560 = vunpack.c.l.s4 1983009808
    %v561 = vunpack.c.0.s8 %v560
    %v562 = vlaneseq
    %v563 = vshrl.u32 %v562, 7
    %v564 = vsub.s32 %v561, %v563
    %v565 = vrot.slane %v558, %v564
    %v567 = vunpack.c.l.s4 1983009808
    %v568 = vunpack.c.0.s8 %v567
    %v569 = vlaneseq
    %v570 = vshrl.u32 %v569, 7
    %v571 = vsub.s32 %v568, %v570
    %v572 = vrot.slane %v552, %v571
    %v573 = vcombine.low %v553, %v553
    %v575 = vunpack.c.l.s4 1983009808
    %v576 = vunpack.c.0.s8 %v575
    %v577 = vlaneseq
    %v578 = vshrl.u32 %v577, 7
    %v579 = vsub.s32 %v576, %v578
    %v580 = vrot.slane %v573, %v579
    %v582 = vunpack.c.l.s4 1983009808
    %v583 = vunpack.c.0.s8 %v582
    %v584 = vlaneseq
    %v585 = vshrl.u32 %v584, 7
    %v586 = vsub.s32 %v583, %v585
    %v587 = vrot.slane %v553, %v586
    %v588 = vcombine.low %v554, %v554
    %v590 = vunpack.c.l.s4 1983009808
    %v591 = vunpack.c.0.s8 %v590
    %v592 = vlaneseq
    %v593 = vshrl.u32 %v592, 7
    %v594 = vsub.s32 %v591, %v593
    %v595 = vrot.slane %v588, %v594
    %596 = vrot.lane.b32.xlu0 %v565, 94
    %v597 = vpop.permute.xlu0 %596
    %598 = vrot.lane.b32.xlu0 %v572, 94
    %v599 = vpop.permute.xlu0 %598
    %600 = vrot.lane.b32.xlu0 %v580, 94
    %v601 = vpop.permute.xlu0 %600
    %602 = vrot.lane.b32.xlu0 %v587, 94
    %v603 = vpop.permute.xlu0 %602
    %604 = vrot.lane.b32.xlu0 %v595, 94
    %v605 = vpop.permute.xlu0 %604
    %v606 = vrot.slane %v597, 4
    %v607 = vrot.slane %v599, 4
    %v608 = vrot.slane %v601, 4
    %v609 = vrot.slane %v603, 4
    %v610 = vrot.slane %v605, 4
    %v611 = vsel %vm157, %v606, %v607
    %vm612 = vcmask 769024
    %v613 = vsel %vm612, %v597, %v611
    %v614 = vsel %vm157, %v607, %v608
    %v615 = vsel %vm612, %v599, %v614
    %v616 = vsel %vm157, %v608, %v609
    %v617 = vsel %vm612, %v601, %v616
    %v618 = vsel %vm157, %v609, %v610
    %v619 = vsel %vm612, %v603, %v618
    %624 = vst [vmem:[#allocation2 + $0x60] sm:$0xcc] %v613
    %625 = vst [vmem:[#allocation2 + $0x68] sm:$0xcc] %v615
    %626 = vst [vmem:[#allocation2 + $0x70] sm:$0xcc] %v617
    %627 = vst [vmem:[#allocation2 + $0x78] sm:$0xcc] %v619
    %v628 = vld [vmem:[%s0] sm:$0xff]
    %v629 = vld [vmem:[%s0 + $0x8] sm:$0xff]
    %v630 = vld [vmem:[%s0 + $0x10] sm:$0x3]
    %v634 = vcombine.high %v628, %v628
    %v636 = vunpack.c.l.s4 1983009808
    %v637 = vunpack.c.0.s8 %v636
    %v638 = vlaneseq
    %v639 = vshrl.u32 %v638, 7
    %v640 = vsub.s32 %v637, %v639
    %v641 = vrot.slane %v628, %v640
    %v643 = vunpack.c.l.s4 1983009808
    %v644 = vunpack.c.0.s8 %v643
    %v645 = vlaneseq
    %v646 = vshrl.u32 %v645, 7
    %v647 = vsub.s32 %v644, %v646
    %v648 = vrot.slane %v634, %v647
    %v649 = vcombine.high %v629, %v629
    %v651 = vunpack.c.l.s4 1983009808
    %v652 = vunpack.c.0.s8 %v651
    %v653 = vlaneseq
    %v654 = vshrl.u32 %v653, 7
    %v655 = vsub.s32 %v652, %v654
    %v656 = vrot.slane %v629, %v655
    %v658 = vunpack.c.l.s4 1983009808
    %v659 = vunpack.c.0.s8 %v658
    %v660 = vlaneseq
    %v661 = vshrl.u32 %v660, 7
    %v662 = vsub.s32 %v659, %v661
    %v663 = vrot.slane %v649, %v662
    %v665 = vunpack.c.l.s4 1983009808
    %v666 = vunpack.c.0.s8 %v665
    %v667 = vlaneseq
    %v668 = vshrl.u32 %v667, 7
    %v669 = vsub.s32 %v666, %v668
    %v670 = vrot.slane %v630, %v669
    %671 = vrot.lane.b32.xlu0 %v641, 93
    %v672 = vpop.permute.xlu0 %671
    %673 = vrot.lane.b32.xlu0 %v648, 93
    %v674 = vpop.permute.xlu0 %673
    %675 = vrot.lane.b32.xlu0 %v656, 93
    %v676 = vpop.permute.xlu0 %675
    %677 = vrot.lane.b32.xlu0 %v663, 93
    %v678 = vpop.permute.xlu0 %677
    %679 = vrot.lane.b32.xlu0 %v670, 93
    %v680 = vpop.permute.xlu0 %679
    %v681 = vrot.slane %v672, 4
    %v682 = vrot.slane %v674, 4
    %v683 = vrot.slane %v676, 4
    %v684 = vrot.slane %v678, 4
    %v685 = vrot.slane %v680, 4
    %v686 = vsel %vm157, %v681, %v682
    %vm687 = vcmask 760832
    %v688 = vsel %vm687, %v672, %v686
    %v689 = vsel %vm157, %v682, %v683
    %v690 = vsel %vm687, %v674, %v689
    %v691 = vsel %vm157, %v683, %v684
    %v692 = vsel %vm687, %v676, %v691
    %v693 = vsel %vm157, %v684, %v685
    %v694 = vsel %vm687, %v678, %v693
    %699 = vst [vmem:[#allocation2 + $0x80] sm:$0x33] %v688
    %700 = vst [vmem:[#allocation2 + $0x88] sm:$0x33] %v690
    %701 = vst [vmem:[#allocation2 + $0x90] sm:$0x33] %v692
    %702 = vst [vmem:[#allocation2 + $0x98] sm:$0x33] %v694
    %v703 = vld [vmem:[%s0] sm:$0xff]
    %v704 = vld [vmem:[%s0 + $0x8] sm:$0xff]
    %v705 = vld [vmem:[%s0 + $0x10] sm:$0x3]
    %v709 = vcombine.low %v703, %v703
    %v711 = vunpack.c.l.s4 1983009808
    %v712 = vunpack.c.0.s8 %v711
    %v713 = vlaneseq
    %v714 = vshrl.u32 %v713, 7
    %v715 = vsub.s32 %v712, %v714
    %v716 = vrot.slane %v709, %v715
    %v718 = vunpack.c.l.s4 1983009808
    %v719 = vunpack.c.0.s8 %v718
    %v720 = vlaneseq
    %v721 = vshrl.u32 %v720, 7
    %v722 = vsub.s32 %v719, %v721
    %v723 = vrot.slane %v703, %v722
    %v724 = vcombine.low %v704, %v704
    %v726 = vunpack.c.l.s4 1983009808
    %v727 = vunpack.c.0.s8 %v726
    %v728 = vlaneseq
    %v729 = vshrl.u32 %v728, 7
    %v730 = vsub.s32 %v727, %v729
    %v731 = vrot.slane %v724, %v730
    %v733 = vunpack.c.l.s4 1983009808
    %v734 = vunpack.c.0.s8 %v733
    %v735 = vlaneseq
    %v736 = vshrl.u32 %v735, 7
    %v737 = vsub.s32 %v734, %v736
    %v738 = vrot.slane %v704, %v737
    %v739 = vcombine.low %v705, %v705
    %v741 = vunpack.c.l.s4 1983009808
    %v742 = vunpack.c.0.s8 %v741
    %v743 = vlaneseq
    %v744 = vshrl.u32 %v743, 7
    %v745 = vsub.s32 %v742, %v744
    %v746 = vrot.slane %v739, %v745
    %747 = vrot.lane.b32.xlu0 %v716, 92
    %v748 = vpop.permute.xlu0 %747
    %749 = vrot.lane.b32.xlu0 %v723, 92
    %v750 = vpop.permute.xlu0 %749
    %751 = vrot.lane.b32.xlu0 %v731, 92
    %v752 = vpop.permute.xlu0 %751
    %753 = vrot.lane.b32.xlu0 %v738, 92
    %v754 = vpop.permute.xlu0 %753
    %755 = vrot.lane.b32.xlu0 %v746, 92
    %v756 = vpop.permute.xlu0 %755
    %v757 = vrot.slane %v748, 4
    %v758 = vrot.slane %v750, 4
    %v759 = vrot.slane %v752, 4
    %v760 = vrot.slane %v754, 4
    %v761 = vrot.slane %v756, 4
    %v762 = vsel %vm157, %v757, %v758
    %vm763 = vcmask 752640
    %v764 = vsel %vm763, %v748, %v762
    %v765 = vsel %vm157, %v758, %v759
    %v766 = vsel %vm763, %v750, %v765
    %v767 = vsel %vm157, %v759, %v760
    %v768 = vsel %vm763, %v752, %v767
    %v769 = vsel %vm157, %v760, %v761
    %v770 = vsel %vm763, %v754, %v769
    %775 = vst [vmem:[#allocation2 + $0x80] sm:$0xcc] %v764
    %776 = vst [vmem:[#allocation2 + $0x88] sm:$0xcc] %v766
    %777 = vst [vmem:[#allocation2 + $0x90] sm:$0xcc] %v768
    %778 = vst [vmem:[#allocation2 + $0x98] sm:$0xcc] %v770
    %v779 = vld [vmem:[%s0] sm:$0xff]
    %v780 = vld [vmem:[%s0 + $0x8] sm:$0xff]
    %v781 = vld [vmem:[%s0 + $0x10] sm:$0x3]
    %v785 = vcombine.high %v779, %v779
    %v787 = vunpack.c.l.s4 1983009808
    %v788 = vunpack.c.0.s8 %v787
    %v789 = vlaneseq
    %v790 = vshrl.u32 %v789, 7
    %v791 = vsub.s32 %v788, %v790
    %v792 = vrot.slane %v779, %v791
    %v794 = vunpack.c.l.s4 1983009808
    %v795 = vunpack.c.0.s8 %v794
    %v796 = vlaneseq
    %v797 = vshrl.u32 %v796, 7
    %v798 = vsub.s32 %v795, %v797
    %v799 = vrot.slane %v785, %v798
    %v800 = vcombine.high %v780, %v780
    %v802 = vunpack.c.l.s4 1983009808
    %v803 = vunpack.c.0.s8 %v802
    %v804 = vlaneseq
    %v805 = vshrl.u32 %v804, 7
    %v806 = vsub.s32 %v803, %v805
    %v807 = vrot.slane %v780, %v806
    %v809 = vunpack.c.l.s4 1983009808
    %v810 = vunpack.c.0.s8 %v809
    %v811 = vlaneseq
    %v812 = vshrl.u32 %v811, 7
    %v813 = vsub.s32 %v810, %v812
    %v814 = vrot.slane %v800, %v813
    %v816 = vunpack.c.l.s4 1983009808
    %v817 = vunpack.c.0.s8 %v816
    %v818 = vlaneseq
    %v819 = vshrl.u32 %v818, 7
    %v820 = vsub.s32 %v817, %v819
    %v821 = vrot.slane %v781, %v820
    %822 = vrot.lane.b32.xlu0 %v792, 64
    %v823 = vpop.permute.xlu0 %822
    %824 = vrot.lane.b32.xlu0 %v799, 64
    %v825 = vpop.permute.xlu0 %824
    %826 = vrot.lane.b32.xlu0 %v807, 64
    %v827 = vpop.permute.xlu0 %826
    %828 = vrot.lane.b32.xlu0 %v814, 64
    %v829 = vpop.permute.xlu0 %828
    %830 = vrot.lane.b32.xlu0 %v821, 64
    %v831 = vpop.permute.xlu0 %830
    %v832 = vrot.slane %v823, 4
    %v833 = vrot.slane %v825, 4
    %v834 = vrot.slane %v827, 4
    %v835 = vrot.slane %v829, 4
    %v836 = vrot.slane %v831, 4
    %v837 = vsel %vm157, %v832, %v833
    %vm838 = vcmask 523264
    %v839 = vsel %vm838, %v823, %v837
    %v840 = vsel %vm157, %v833, %v834
    %v841 = vsel %vm838, %v825, %v840
    %v842 = vsel %vm157, %v834, %v835
    %v843 = vsel %vm838, %v827, %v842
    %v844 = vsel %vm157, %v835, %v836
    %v845 = vsel %vm838, %v829, %v844
    %850 = vst [vmem:[#allocation2 + $0xa0] sm:$0x33] %v839
    %851 = vst [vmem:[#allocation2 + $0xa8] sm:$0x33] %v841
    %852 = vst [vmem:[#allocation2 + $0xb0] sm:$0x33] %v843
    %853 = vst [vmem:[#allocation2 + $0xb8] sm:$0x33] %v845
    %v854 = vld [vmem:[%s0] sm:$0xff]
    %v855 = vld [vmem:[%s0 + $0x8] sm:$0xff]
    %v856 = vld [vmem:[%s0 + $0x10] sm:$0x3]
    %v860 = vcombine.low %v854, %v854
    %v862 = vunpack.c.l.s4 1983009808
    %v863 = vunpack.c.0.s8 %v862
    %v864 = vlaneseq
    %v865 = vshrl.u32 %v864, 7
    %v866 = vsub.s32 %v863, %v865
    %v867 = vrot.slane %v860, %v866
    %v869 = vunpack.c.l.s4 1983009808
    %v870 = vunpack.c.0.s8 %v869
    %v871 = vlaneseq
    %v872 = vshrl.u32 %v871, 7
    %v873 = vsub.s32 %v870, %v872
    %v874 = vrot.slane %v854, %v873
    %v875 = vcombine.low %v855, %v855
    %v877 = vunpack.c.l.s4 1983009808
    %v878 = vunpack.c.0.s8 %v877
    %v879 = vlaneseq
    %v880 = vshrl.u32 %v879, 7
    %v881 = vsub.s32 %v878, %v880
    %v882 = vrot.slane %v875, %v881
    %v884 = vunpack.c.l.s4 1983009808
    %v885 = vunpack.c.0.s8 %v884
    %v886 = vlaneseq
    %v887 = vshrl.u32 %v886, 7
    %v888 = vsub.s32 %v885, %v887
    %v889 = vrot.slane %v855, %v888
    %v890 = vcombine.low %v856, %v856
    %v892 = vunpack.c.l.s4 1983009808
    %v893 = vunpack.c.0.s8 %v892
    %v894 = vlaneseq
    %v895 = vshrl.u32 %v894, 7
    %v896 = vsub.s32 %v893, %v895
    %v897 = vrot.slane %v890, %v896
    %898 = vrot.lane.b32.xlu0 %v867, 63
    %v899 = vpop.permute.xlu0 %898
    %900 = vrot.lane.b32.xlu0 %v874, 63
    %v901 = vpop.permute.xlu0 %900
    %902 = vrot.lane.b32.xlu0 %v882, 63
    %v903 = vpop.permute.xlu0 %902
    %904 = vrot.lane.b32.xlu0 %v889, 63
    %v905 = vpop.permute.xlu0 %904
    %906 = vrot.lane.b32.xlu0 %v897, 63
    %v907 = vpop.permute.xlu0 %906
    %v908 = vrot.slane %v899, 4
    %v909 = vrot.slane %v901, 4
    %v910 = vrot.slane %v903, 4
    %v911 = vrot.slane %v905, 4
    %v912 = vrot.slane %v907, 4
    %v913 = vsel %vm157, %v908, %v909
    %vm914 = vcmask 515072
    %v915 = vsel %vm914, %v899, %v913
    %v916 = vsel %vm157, %v909, %v910
    %v917 = vsel %vm914, %v901, %v916
    %v918 = vsel %vm157, %v910, %v911
    %v919 = vsel %vm914, %v903, %v918
    %v920 = vsel %vm157, %v911, %v912
    %v921 = vsel %vm914, %v905, %v920
    %926 = vst [vmem:[#allocation2 + $0xa0] sm:$0xcc] %v915
    %927 = vst [vmem:[#allocation2 + $0xa8] sm:$0xcc] %v917
    %928 = vst [vmem:[#allocation2 + $0xb0] sm:$0xcc] %v919
    %929 = vst [vmem:[#allocation2 + $0xb8] sm:$0xcc] %v921
    %v930 = vld [vmem:[%s0] sm:$0xff]
    %v931 = vld [vmem:[%s0 + $0x8] sm:$0xff]
    %v932 = vld [vmem:[%s0 + $0x10] sm:$0x3]
    %v936 = vcombine.high %v930, %v930
    %v938 = vunpack.c.l.s4 1983009808
    %v939 = vunpack.c.0.s8 %v938
    %v940 = vlaneseq
    %v941 = vshrl.u32 %v940, 7
    %v942 = vsub.s32 %v939, %v941
    %v943 = vrot.slane %v930, %v942
    %v945 = vunpack.c.l.s4 1983009808
    %v946 = vunpack.c.0.s8 %v945
    %v947 = vlaneseq
    %v948 = vshrl.u32 %v947, 7
    %v949 = vsub.s32 %v946, %v948
    %v950 = vrot.slane %v936, %v949
    %v951 = vcombine.high %v931, %v931
    %v953 = vunpack.c.l.s4 1983009808
    %v954 = vunpack.c.0.s8 %v953
    %v955 = vlaneseq
    %v956 = vshrl.u32 %v955, 7
    %v957 = vsub.s32 %v954, %v956
    %v958 = vrot.slane %v931, %v957
    %v960 = vunpack.c.l.s4 1983009808
    %v961 = vunpack.c.0.s8 %v960
    %v962 = vlaneseq
    %v963 = vshrl.u32 %v962, 7
    %v964 = vsub.s32 %v961, %v963
    %v965 = vrot.slane %v951, %v964
    %v967 = vunpack.c.l.s4 1983009808
    %v968 = vunpack.c.0.s8 %v967
    %v969 = vlaneseq
    %v970 = vshrl.u32 %v969, 7
    %v971 = vsub.s32 %v968, %v970
    %v972 = vrot.slane %v932, %v971
    %973 = vrot.lane.b32.xlu0 %v943, 62
    %v974 = vpop.permute.xlu0 %973
    %975 = vrot.lane.b32.xlu0 %v950, 62
    %v976 = vpop.permute.xlu0 %975
    %977 = vrot.lane.b32.xlu0 %v958, 62
    %v978 = vpop.permute.xlu0 %977
    %979 = vrot.lane.b32.xlu0 %v965, 62
    %v980 = vpop.permute.xlu0 %979
    %981 = vrot.lane.b32.xlu0 %v972, 62
    %v982 = vpop.permute.xlu0 %981
    %v983 = vrot.slane %v974, 4
    %v984 = vrot.slane %v976, 4
    %v985 = vrot.slane %v978, 4
    %v986 = vrot.slane %v980, 4
    %v987 = vrot.slane %v982, 4
    %v988 = vsel %vm157, %v983, %v984
    %vm989 = vcmask 506880
    %v990 = vsel %vm989, %v974, %v988
    %v991 = vsel %vm157, %v984, %v985
    %v992 = vsel %vm989, %v976, %v991
    %v993 = vsel %vm157, %v985, %v986
    %v994 = vsel %vm989, %v978, %v993
    %v995 = vsel %vm157, %v986, %v987
    %v996 = vsel %vm989, %v980, %v995
    %1001 = vst [vmem:[#allocation2 + $0xc0] sm:$0x33] %v990
    %1002 = vst [vmem:[#allocation2 + $0xc8] sm:$0x33] %v992
    %1003 = vst [vmem:[#allocation2 + $0xd0] sm:$0x33] %v994
    %1004 = vst [vmem:[#allocation2 + $0xd8] sm:$0x33] %v996
    %v1005 = vld [vmem:[%s0] sm:$0xff]
    %v1006 = vld [vmem:[%s0 + $0x8] sm:$0xff]
    %v1007 = vld [vmem:[%s0 + $0x10] sm:$0x3]
    %v1011 = vcombine.low %v1005, %v1005
    %v1013 = vunpack.c.l.s4 1983009808
    %v1014 = vunpack.c.0.s8 %v1013
    %v1015 = vlaneseq
    %v1016 = vshrl.u32 %v1015, 7
    %v1017 = vsub.s32 %v1014, %v1016
    %v1018 = vrot.slane %v1011, %v1017
    %v1020 = vunpack.c.l.s4 1983009808
    %v1021 = vunpack.c.0.s8 %v1020
    %v1022 = vlaneseq
    %v1023 = vshrl.u32 %v1022, 7
    %v1024 = vsub.s32 %v1021, %v1023
    %v1025 = vrot.slane %v1005, %v1024
    %v1026 = vcombine.low %v1006, %v1006
    %v1028 = vunpack.c.l.s4 1983009808
    %v1029 = vunpack.c.0.s8 %v1028
    %v1030 = vlaneseq
    %v1031 = vshrl.u32 %v1030, 7
    %v1032 = vsub.s32 %v1029, %v1031
    %v1033 = vrot.slane %v1026, %v1032
    %v1035 = vunpack.c.l.s4 1983009808
    %v1036 = vunpack.c.0.s8 %v1035
    %v1037 = vlaneseq
    %v1038 = vshrl.u32 %v1037, 7
    %v1039 = vsub.s32 %v1036, %v1038
    %v1040 = vrot.slane %v1006, %v1039
    %v1041 = vcombine.low %v1007, %v1007
    %v1043 = vunpack.c.l.s4 1983009808
    %v1044 = vunpack.c.0.s8 %v1043
    %v1045 = vlaneseq
    %v1046 = vshrl.u32 %v1045, 7
    %v1047 = vsub.s32 %v1044, %v1046
    %v1048 = vrot.slane %v1041, %v1047
    %1049 = vrot.lane.b32.xlu0 %v1018, 61
    %v1050 = vpop.permute.xlu0 %1049
    %1051 = vrot.lane.b32.xlu0 %v1025, 61
    %v1052 = vpop.permute.xlu0 %1051
    %1053 = vrot.lane.b32.xlu0 %v1033, 61
    %v1054 = vpop.permute.xlu0 %1053
    %1055 = vrot.lane.b32.xlu0 %v1040, 61
    %v1056 = vpop.permute.xlu0 %1055
    %1057 = vrot.lane.b32.xlu0 %v1048, 61
    %v1058 = vpop.permute.xlu0 %1057
    %v1059 = vrot.slane %v1050, 4
    %v1060 = vrot.slane %v1052, 4
    %v1061 = vrot.slane %v1054, 4
    %v1062 = vrot.slane %v1056, 4
    %v1063 = vrot.slane %v1058, 4
    %v1064 = vsel %vm157, %v1059, %v1060
    %vm1065 = vcmask 498688
    %v1066 = vsel %vm1065, %v1050, %v1064
    %v1067 = vsel %vm157, %v1060, %v1061
    %v1068 = vsel %vm1065, %v1052, %v1067
    %v1069 = vsel %vm157, %v1061, %v1062
    %v1070 = vsel %vm1065, %v1054, %v1069
    %v1071 = vsel %vm157, %v1062, %v1063
    %v1072 = vsel %vm1065, %v1056, %v1071
    %1077 = vst [vmem:[#allocation2 + $0xc0] sm:$0xcc] %v1066
    %1078 = vst [vmem:[#allocation2 + $0xc8] sm:$0xcc] %v1068
    %1079 = vst [vmem:[#allocation2 + $0xd0] sm:$0xcc] %v1070
    %1080 = vst [vmem:[#allocation2 + $0xd8] sm:$0xcc] %v1072
    %v1081 = vld [vmem:[%s0] sm:$0xff]
    %v1082 = vld [vmem:[%s0 + $0x8] sm:$0xff]
    %v1083 = vld [vmem:[%s0 + $0x10] sm:$0x3]
    %v1087 = vcombine.high %v1081, %v1081
    %v1089 = vunpack.c.l.s4 1983009808
    %v1090 = vunpack.c.0.s8 %v1089
    %v1091 = vlaneseq
    %v1092 = vshrl.u32 %v1091, 7
    %v1093 = vsub.s32 %v1090, %v1092
    %v1094 = vrot.slane %v1081, %v1093
    %v1096 = vunpack.c.l.s4 1983009808
    %v1097 = vunpack.c.0.s8 %v1096
    %v1098 = vlaneseq
    %v1099 = vshrl.u32 %v1098, 7
    %v1100 = vsub.s32 %v1097, %v1099
    %v1101 = vrot.slane %v1087, %v1100
    %v1102 = vcombine.high %v1082, %v1082
    %v1104 = vunpack.c.l.s4 1983009808
    %v1105 = vunpack.c.0.s8 %v1104
    %v1106 = vlaneseq
    %v1107 = vshrl.u32 %v1106, 7
    %v1108 = vsub.s32 %v1105, %v1107
    %v1109 = vrot.slane %v1082, %v1108
    %v1111 = vunpack.c.l.s4 1983009808
    %v1112 = vunpack.c.0.s8 %v1111
    %v1113 = vlaneseq
    %v1114 = vshrl.u32 %v1113, 7
    %v1115 = vsub.s32 %v1112, %v1114
    %v1116 = vrot.slane %v1102, %v1115
    %v1118 = vunpack.c.l.s4 1983009808
    %v1119 = vunpack.c.0.s8 %v1118
    %v1120 = vlaneseq
    %v1121 = vshrl.u32 %v1120, 7
    %v1122 = vsub.s32 %v1119, %v1121
    %v1123 = vrot.slane %v1083, %v1122
    %1124 = vrot.lane.b32.xlu0 %v1094, 60
    %v1125 = vpop.permute.xlu0 %1124
    %1126 = vrot.lane.b32.xlu0 %v1101, 60
    %v1127 = vpop.permute.xlu0 %1126
    %1128 = vrot.lane.b32.xlu0 %v1109, 60
    %v1129 = vpop.permute.xlu0 %1128
    %1130 = vrot.lane.b32.xlu0 %v1116, 60
    %v1131 = vpop.permute.xlu0 %1130
    %1132 = vrot.lane.b32.xlu0 %v1123, 60
    %v1133 = vpop.permute.xlu0 %1132
    %v1134 = vrot.slane %v1125, 4
    %v1135 = vrot.slane %v1127, 4
    %v1136 = vrot.slane %v1129, 4
    %v1137 = vrot.slane %v1131, 4
    %v1138 = vrot.slane %v1133, 4
    %v1139 = vsel %vm157, %v1134, %v1135
    %vm1140 = vcmask 490496
    %v1141 = vsel %vm1140, %v1125, %v1139
    %v1142 = vsel %vm157, %v1135, %v1136
    %v1143 = vsel %vm1140, %v1127, %v1142
    %v1144 = vsel %vm157, %v1136, %v1137
    %v1145 = vsel %vm1140, %v1129, %v1144
    %v1146 = vsel %vm157, %v1137, %v1138
    %v1147 = vsel %vm1140, %v1131, %v1146
    %1152 = vst [vmem:[#allocation2 + $0xe0] sm:$0x33] %v1141
    %1153 = vst [vmem:[#allocation2 + $0xe8] sm:$0x33] %v1143
    %1154 = vst [vmem:[#allocation2 + $0xf0] sm:$0x33] %v1145
    %1155 = vst [vmem:[#allocation2 + $0xf8] sm:$0x33] %v1147
    %v1156 = vld [vmem:[%s0] sm:$0xff]
    %v1157 = vld [vmem:[%s0 + $0x8] sm:$0xff]
    %v1158 = vld [vmem:[%s0 + $0x10] sm:$0x3]
    %v1162 = vcombine.low %v1156, %v1156
    %v1164 = vunpack.c.l.s4 1983009808
    %v1165 = vunpack.c.0.s8 %v1164
    %v1166 = vlaneseq
    %v1167 = vshrl.u32 %v1166, 7
    %v1168 = vsub.s32 %v1165, %v1167
    %v1169 = vrot.slane %v1162, %v1168
    %v1171 = vunpack.c.l.s4 1983009808
    %v1172 = vunpack.c.0.s8 %v1171
    %v1173 = vlaneseq
    %v1174 = vshrl.u32 %v1173, 7
    %v1175 = vsub.s32 %v1172, %v1174
    %v1176 = vrot.slane %v1156, %v1175
    %v1177 = vcombine.low %v1157, %v1157
    %v1179 = vunpack.c.l.s4 1983009808
    %v1180 = vunpack.c.0.s8 %v1179
    %v1181 = vlaneseq
    %v1182 = vshrl.u32 %v1181, 7
    %v1183 = vsub.s32 %v1180, %v1182
    %v1184 = vrot.slane %v1177, %v1183
    %v1186 = vunpack.c.l.s4 1983009808
    %v1187 = vunpack.c.0.s8 %v1186
    %v1188 = vlaneseq
    %v1189 = vshrl.u32 %v1188, 7
    %v1190 = vsub.s32 %v1187, %v1189
    %v1191 = vrot.slane %v1157, %v1190
    %v1192 = vcombine.low %v1158, %v1158
    %v1194 = vunpack.c.l.s4 1983009808
    %v1195 = vunpack.c.0.s8 %v1194
    %v1196 = vlaneseq
    %v1197 = vshrl.u32 %v1196, 7
    %v1198 = vsub.s32 %v1195, %v1197
    %v1199 = vrot.slane %v1192, %v1198
    %1200 = vrot.lane.b32.xlu0 %v1169, 32
    %v1201 = vpop.permute.xlu0 %1200
    %1202 = vrot.lane.b32.xlu0 %v1176, 32
    %v1203 = vpop.permute.xlu0 %1202
    %1204 = vrot.lane.b32.xlu0 %v1184, 32
    %v1205 = vpop.permute.xlu0 %1204
    %1206 = vrot.lane.b32.xlu0 %v1191, 32
    %v1207 = vpop.permute.xlu0 %1206
    %1208 = vrot.lane.b32.xlu0 %v1199, 32
    %v1209 = vpop.permute.xlu0 %1208
    %v1210 = vrot.slane %v1201, 4
    %v1211 = vrot.slane %v1203, 4
    %v1212 = vrot.slane %v1205, 4
    %v1213 = vrot.slane %v1207, 4
    %v1214 = vrot.slane %v1209, 4
    %v1215 = vsel %vm157, %v1210, %v1211
    %vm1216 = vcmask 261120
    %v1217 = vsel %vm1216, %v1201, %v1215
    %v1218 = vsel %vm157, %v1211, %v1212
    %v1219 = vsel %vm1216, %v1203, %v1218
    %v1220 = vsel %vm157, %v1212, %v1213
    %v1221 = vsel %vm1216, %v1205, %v1220
    %v1222 = vsel %vm157, %v1213, %v1214
    %v1223 = vsel %vm1216, %v1207, %v1222
    %1228 = vst [vmem:[#allocation2 + $0xe0] sm:$0xcc] %v1217
    %1229 = vst [vmem:[#allocation2 + $0xe8] sm:$0xcc] %v1219
    %1230 = vst [vmem:[#allocation2 + $0xf0] sm:$0xcc] %v1221
    %1231 = vst [vmem:[#allocation2 + $0xf8] sm:$0xcc] %v1223
    %v1232 = vld [vmem:[%s0] sm:$0xff]
    %v1233 = vld [vmem:[%s0 + $0x8] sm:$0xff]
    %v1234 = vld [vmem:[%s0 + $0x10] sm:$0x3]
    %v1238 = vcombine.high %v1232, %v1232
    %v1240 = vunpack.c.l.s4 1983009808
    %v1241 = vunpack.c.0.s8 %v1240
    %v1242 = vlaneseq
    %v1243 = vshrl.u32 %v1242, 7
    %v1244 = vsub.s32 %v1241, %v1243
    %v1245 = vrot.slane %v1232, %v1244
    %v1247 = vunpack.c.l.s4 1983009808
    %v1248 = vunpack.c.0.s8 %v1247
    %v1249 = vlaneseq
    %v1250 = vshrl.u32 %v1249, 7
    %v1251 = vsub.s32 %v1248, %v1250
    %v1252 = vrot.slane %v1238, %v1251
    %v1253 = vcombine.high %v1233, %v1233
    %v1255 = vunpack.c.l.s4 1983009808
    %v1256 = vunpack.c.0.s8 %v1255
    %v1257 = vlaneseq
    %v1258 = vshrl.u32 %v1257, 7
    %v1259 = vsub.s32 %v1256, %v1258
    %v1260 = vrot.slane %v1233, %v1259
    %v1262 = vunpack.c.l.s4 1983009808
    %v1263 = vunpack.c.0.s8 %v1262
    %v1264 = vlaneseq
    %v1265 = vshrl.u32 %v1264, 7
    %v1266 = vsub.s32 %v1263, %v1265
    %v1267 = vrot.slane %v1253, %v1266
    %v1269 = vunpack.c.l.s4 1983009808
    %v1270 = vunpack.c.0.s8 %v1269
    %v1271 = vlaneseq
    %v1272 = vshrl.u32 %v1271, 7
    %v1273 = vsub.s32 %v1270, %v1272
    %v1274 = vrot.slane %v1234, %v1273
    %1275 = vrot.lane.b32.xlu0 %v1245, 31
    %v1276 = vpop.permute.xlu0 %1275
    %1277 = vrot.lane.b32.xlu0 %v1252, 31
    %v1278 = vpop.permute.xlu0 %1277
    %1279 = vrot.lane.b32.xlu0 %v1260, 31
    %v1280 = vpop.permute.xlu0 %1279
    %1281 = vrot.lane.b32.xlu0 %v1267, 31
    %v1282 = vpop.permute.xlu0 %1281
    %1283 = vrot.lane.b32.xlu0 %v1274, 31
    %v1284 = vpop.permute.xlu0 %1283
    %v1285 = vrot.slane %v1276, 4
    %v1286 = vrot.slane %v1278, 4
    %v1287 = vrot.slane %v1280, 4
    %v1288 = vrot.slane %v1282, 4
    %v1289 = vrot.slane %v1284, 4
    %v1290 = vsel %vm157, %v1285, %v1286
    %vm1291 = vcmask 252928
    %v1292 = vsel %vm1291, %v1276, %v1290
    %v1293 = vsel %vm157, %v1286, %v1287
    %v1294 = vsel %vm1291, %v1278, %v1293
    %v1295 = vsel %vm157, %v1287, %v1288
    %v1296 = vsel %vm1291, %v1280, %v1295
    %v1297 = vsel %vm157, %v1288, %v1289
    %v1298 = vsel %vm1291, %v1282, %v1297
    %1303 = vst [vmem:[#allocation2 + $0x100] sm:$0x33] %v1292
    %1304 = vst [vmem:[#allocation2 + $0x108] sm:$0x33] %v1294
    %1305 = vst [vmem:[#allocation2 + $0x110] sm:$0x33] %v1296
    %1306 = vst [vmem:[#allocation2 + $0x118] sm:$0x33] %v1298
    %v1307 = vld [vmem:[%s0] sm:$0xff]
    %v1308 = vld [vmem:[%s0 + $0x8] sm:$0xff]
    %v1309 = vld [vmem:[%s0 + $0x10] sm:$0x3]
    %v1313 = vcombine.low %v1307, %v1307
    %v1315 = vunpack.c.l.s4 1983009808
    %v1316 = vunpack.c.0.s8 %v1315
    %v1317 = vlaneseq
    %v1318 = vshrl.u32 %v1317, 7
    %v1319 = vsub.s32 %v1316, %v1318
    %v1320 = vrot.slane %v1313, %v1319
    %v1322 = vunpack.c.l.s4 1983009808
    %v1323 = vunpack.c.0.s8 %v1322
    %v1324 = vlaneseq
    %v1325 = vshrl.u32 %v1324, 7
    %v1326 = vsub.s32 %v1323, %v1325
    %v1327 = vrot.slane %v1307, %v1326
    %v1328 = vcombine.low %v1308, %v1308
    %v1330 = vunpack.c.l.s4 1983009808
    %v1331 = vunpack.c.0.s8 %v1330
    %v1332 = vlaneseq
    %v1333 = vshrl.u32 %v1332, 7
    %v1334 = vsub.s32 %v1331, %v1333
    %v1335 = vrot.slane %v1328, %v1334
    %v1337 = vunpack.c.l.s4 1983009808
    %v1338 = vunpack.c.0.s8 %v1337
    %v1339 = vlaneseq
    %v1340 = vshrl.u32 %v1339, 7
    %v1341 = vsub.s32 %v1338, %v1340
    %v1342 = vrot.slane %v1308, %v1341
    %v1343 = vcombine.low %v1309, %v1309
    %v1345 = vunpack.c.l.s4 1983009808
    %v1346 = vunpack.c.0.s8 %v1345
    %v1347 = vlaneseq
    %v1348 = vshrl.u32 %v1347, 7
    %v1349 = vsub.s32 %v1346, %v1348
    %v1350 = vrot.slane %v1343, %v1349
    %1351 = vrot.lane.b32.xlu0 %v1320, 30
    %v1352 = vpop.permute.xlu0 %1351
    %1353 = vrot.lane.b32.xlu0 %v1327, 30
    %v1354 = vpop.permute.xlu0 %1353
    %1355 = vrot.lane.b32.xlu0 %v1335, 30
    %v1356 = vpop.permute.xlu0 %1355
    %1357 = vrot.lane.b32.xlu0 %v1342, 30
    %v1358 = vpop.permute.xlu0 %1357
    %1359 = vrot.lane.b32.xlu0 %v1350, 30
    %v1360 = vpop.permute.xlu0 %1359
    %v1361 = vrot.slane %v1352, 4
    %v1362 = vrot.slane %v1354, 4
    %v1363 = vrot.slane %v1356, 4
    %v1364 = vrot.slane %v1358, 4
    %v1365 = vrot.slane %v1360, 4
    %v1366 = vsel %vm157, %v1361, %v1362
    %vm1367 = vcmask 244736
    %v1368 = vsel %vm1367, %v1352, %v1366
    %v1369 = vsel %vm157, %v1362, %v1363
    %v1370 = vsel %vm1367, %v1354, %v1369
    %v1371 = vsel %vm157, %v1363, %v1364
    %v1372 = vsel %vm1367, %v1356, %v1371
    %v1373 = vsel %vm157, %v1364, %v1365
    %v1374 = vsel %vm1367, %v1358, %v1373
    %1379 = vst [vmem:[#allocation2 + $0x100] sm:$0xcc] %v1368
    %1380 = vst [vmem:[#allocation2 + $0x108] sm:$0xcc] %v1370
    %1381 = vst [vmem:[#allocation2 + $0x110] sm:$0xcc] %v1372
    %1382 = vst [vmem:[#allocation2 + $0x118] sm:$0xcc] %v1374
    %v1383 = vld [vmem:[%s0] sm:$0xff]
    %v1384 = vld [vmem:[%s0 + $0x8] sm:$0xff]
    %v1385 = vld [vmem:[%s0 + $0x10] sm:$0x3]
    %v1389 = vcombine.high %v1383, %v1383
    %v1391 = vunpack.c.l.s4 1983009808
    %v1392 = vunpack.c.0.s8 %v1391
    %v1393 = vlaneseq
    %v1394 = vshrl.u32 %v1393, 7
    %v1395 = vsub.s32 %v1392, %v1394
    %v1396 = vrot.slane %v1383, %v1395
    %v1398 = vunpack.c.l.s4 1983009808
    %v1399 = vunpack.c.0.s8 %v1398
    %v1400 = vlaneseq
    %v1401 = vshrl.u32 %v1400, 7
    %v1402 = vsub.s32 %v1399, %v1401
    %v1403 = vrot.slane %v1389, %v1402
    %v1404 = vcombine.high %v1384, %v1384
    %v1406 = vunpack.c.l.s4 1983009808
    %v1407 = vunpack.c.0.s8 %v1406
    %v1408 = vlaneseq
    %v1409 = vshrl.u32 %v1408, 7
    %v1410 = vsub.s32 %v1407, %v1409
    %v1411 = vrot.slane %v1384, %v1410
    %v1413 = vunpack.c.l.s4 1983009808
    %v1414 = vunpack.c.0.s8 %v1413
    %v1415 = vlaneseq
    %v1416 = vshrl.u32 %v1415, 7
    %v1417 = vsub.s32 %v1414, %v1416
    %v1418 = vrot.slane %v1404, %v1417
    %v1420 = vunpack.c.l.s4 1983009808
    %v1421 = vunpack.c.0.s8 %v1420
    %v1422 = vlaneseq
    %v1423 = vshrl.u32 %v1422, 7
    %v1424 = vsub.s32 %v1421, %v1423
    %v1425 = vrot.slane %v1385, %v1424
    %1426 = vrot.lane.b32.xlu0 %v1396, 29
    %v1427 = vpop.permute.xlu0 %1426
    %1428 = vrot.lane.b32.xlu0 %v1403, 29
    %v1429 = vpop.permute.xlu0 %1428
    %1430 = vrot.lane.b32.xlu0 %v1411, 29
    %v1431 = vpop.permute.xlu0 %1430
    %1432 = vrot.lane.b32.xlu0 %v1418, 29
    %v1433 = vpop.permute.xlu0 %1432
    %1434 = vrot.lane.b32.xlu0 %v1425, 29
    %v1435 = vpop.permute.xlu0 %1434
    %v1436 = vrot.slane %v1427, 4
    %v1437 = vrot.slane %v1429, 4
    %v1438 = vrot.slane %v1431, 4
    %v1439 = vrot.slane %v1433, 4
    %v1440 = vrot.slane %v1435, 4
    %v1441 = vsel %vm157, %v1436, %v1437
    %vm1442 = vcmask 236544
    %v1443 = vsel %vm1442, %v1427, %v1441
    %v1444 = vsel %vm157, %v1437, %v1438
    %v1445 = vsel %vm1442, %v1429, %v1444
    %v1446 = vsel %vm157, %v1438, %v1439
    %v1447 = vsel %vm1442, %v1431, %v1446
    %v1448 = vsel %vm157, %v1439, %v1440
    %v1449 = vsel %vm1442, %v1433, %v1448
    %1454 = vst [vmem:[#allocation2 + $0x120] sm:$0x33] %v1443
    %1455 = vst [vmem:[#allocation2 + $0x128] sm:$0x33] %v1445
    %1456 = vst [vmem:[#allocation2 + $0x130] sm:$0x33] %v1447
    %1457 = vst [vmem:[#allocation2 + $0x138] sm:$0x33] %v1449
    %v1458 = vld [vmem:[%s0] sm:$0xff]
    %v1459 = vld [vmem:[%s0 + $0x8] sm:$0xff]
    %v1460 = vld [vmem:[%s0 + $0x10] sm:$0x3]
    %v1464 = vcombine.low %v1458, %v1458
    %v1466 = vunpack.c.l.s4 1983009808
    %v1467 = vunpack.c.0.s8 %v1466
    %v1468 = vlaneseq
    %v1469 = vshrl.u32 %v1468, 7
    %v1470 = vsub.s32 %v1467, %v1469
    %v1471 = vrot.slane %v1464, %v1470
    %v1473 = vunpack.c.l.s4 1983009808
    %v1474 = vunpack.c.0.s8 %v1473
    %v1475 = vlaneseq
    %v1476 = vshrl.u32 %v1475, 7
    %v1477 = vsub.s32 %v1474, %v1476
    %v1478 = vrot.slane %v1458, %v1477
    %v1479 = vcombine.low %v1459, %v1459
    %v1481 = vunpack.c.l.s4 1983009808
    %v1482 = vunpack.c.0.s8 %v1481
    %v1483 = vlaneseq
    %v1484 = vshrl.u32 %v1483, 7
    %v1485 = vsub.s32 %v1482, %v1484
    %v1486 = vrot.slane %v1479, %v1485
    %v1488 = vunpack.c.l.s4 1983009808
    %v1489 = vunpack.c.0.s8 %v1488
    %v1490 = vlaneseq
    %v1491 = vshrl.u32 %v1490, 7
    %v1492 = vsub.s32 %v1489, %v1491
    %v1493 = vrot.slane %v1459, %v1492
    %v1494 = vcombine.low %v1460, %v1460
    %v1496 = vunpack.c.l.s4 1983009808
    %v1497 = vunpack.c.0.s8 %v1496
    %v1498 = vlaneseq
    %v1499 = vshrl.u32 %v1498, 7
    %v1500 = vsub.s32 %v1497, %v1499
    %v1501 = vrot.slane %v1494, %v1500
    %1502 = vrot.lane.b32.xlu0 %v1471, 28
    %v1503 = vpop.permute.xlu0 %1502
    %1504 = vrot.lane.b32.xlu0 %v1478, 28
    %v1505 = vpop.permute.xlu0 %1504
    %1506 = vrot.lane.b32.xlu0 %v1486, 28
    %v1507 = vpop.permute.xlu0 %1506
    %1508 = vrot.lane.b32.xlu0 %v1493, 28
    %v1509 = vpop.permute.xlu0 %1508
    %1510 = vrot.lane.b32.xlu0 %v1501, 28
    %v1511 = vpop.permute.xlu0 %1510
    %v1512 = vrot.slane %v1503, 4
    %v1513 = vrot.slane %v1505, 4
    %v1514 = vrot.slane %v1507, 4
    %v1515 = vrot.slane %v1509, 4
    %v1516 = vrot.slane %v1511, 4
    %v1517 = vsel %vm157, %v1512, %v1513
    %vm1518 = vcmask 228352
    %v1519 = vsel %vm1518, %v1503, %v1517
    %v1520 = vsel %vm157, %v1513, %v1514
    %v1521 = vsel %vm1518, %v1505, %v1520
    %v1522 = vsel %vm157, %v1514, %v1515
    %v1523 = vsel %vm1518, %v1507, %v1522
    %v1524 = vsel %vm157, %v1515, %v1516
    %v1525 = vsel %vm1518, %v1509, %v1524
    %1530 = vst [vmem:[#allocation2 + $0x120] sm:$0xcc] %v1519
    %1531 = vst [vmem:[#allocation2 + $0x128] sm:$0xcc] %v1521
    %1532 = vst [vmem:[#allocation2 + $0x130] sm:$0xcc] %v1523
    %1533 = vst [vmem:[#allocation2 + $0x138] sm:$0xcc] %v1525
    %v1534 = vld [vmem:[%s0 + $0x2] sm:$0xff]
    %v1535 = vld [vmem:[%s0 + $0xa] sm:$0xff]
    %v1538 = vcombine.high %v1534, %v1534
    %v1540 = vunpack.c.l.s4 1983009808
    %v1541 = vunpack.c.0.s8 %v1540
    %v1542 = vlaneseq
    %v1543 = vshrl.u32 %v1542, 7
    %v1544 = vsub.s32 %v1541, %v1543
    %v1545 = vrot.slane %v1534, %v1544
    %v1547 = vunpack.c.l.s4 1983009808
    %v1548 = vunpack.c.0.s8 %v1547
    %v1549 = vlaneseq
    %v1550 = vshrl.u32 %v1549, 7
    %v1551 = vsub.s32 %v1548, %v1550
    %v1552 = vrot.slane %v1538, %v1551
    %v1553 = vcombine.high %v1535, %v1535
    %v1555 = vunpack.c.l.s4 1983009808
    %v1556 = vunpack.c.0.s8 %v1555
    %v1557 = vlaneseq
    %v1558 = vshrl.u32 %v1557, 7
    %v1559 = vsub.s32 %v1556, %v1558
    %v1560 = vrot.slane %v1535, %v1559
    %v1562 = vunpack.c.l.s4 1983009808
    %v1563 = vunpack.c.0.s8 %v1562
    %v1564 = vlaneseq
    %v1565 = vshrl.u32 %v1564, 7
    %v1566 = vsub.s32 %v1563, %v1565
    %v1567 = vrot.slane %v1553, %v1566
    %1572 = vst [vmem:[#allocation2 + $0x140] sm:$0x33] %v1545
    %1573 = vst [vmem:[#allocation2 + $0x148] sm:$0x33] %v1552
    %1574 = vst [vmem:[#allocation2 + $0x150] sm:$0x33] %v1560
    %1575 = vst [vmem:[#allocation2 + $0x158] sm:$0x33] %v1567
    %v1576 = vld [vmem:[%s0 + $0x2] sm:$0xff]
    %v1577 = vld [vmem:[%s0 + $0xa] sm:$0xff]
    %v1578 = vld [vmem:[%s0 + $0x12] sm:$0x3]
    %v1582 = vcombine.low %v1576, %v1576
    %v1584 = vunpack.c.l.s4 1983009808
    %v1585 = vunpack.c.0.s8 %v1584
    %v1586 = vlaneseq
    %v1587 = vshrl.u32 %v1586, 7
    %v1588 = vsub.s32 %v1585, %v1587
    %v1589 = vrot.slane %v1582, %v1588
    %v1591 = vunpack.c.l.s4 1983009808
    %v1592 = vunpack.c.0.s8 %v1591
    %v1593 = vlaneseq
    %v1594 = vshrl.u32 %v1593, 7
    %v1595 = vsub.s32 %v1592, %v1594
    %v1596 = vrot.slane %v1576, %v1595
    %v1597 = vcombine.low %v1577, %v1577
    %v1599 = vunpack.c.l.s4 1983009808
    %v1600 = vunpack.c.0.s8 %v1599
    %v1601 = vlaneseq
    %v1602 = vshrl.u32 %v1601, 7
    %v1603 = vsub.s32 %v1600, %v1602
    %v1604 = vrot.slane %v1597, %v1603
    %v1606 = vunpack.c.l.s4 1983009808
    %v1607 = vunpack.c.0.s8 %v1606
    %v1608 = vlaneseq
    %v1609 = vshrl.u32 %v1608, 7
    %v1610 = vsub.s32 %v1607, %v1609
    %v1611 = vrot.slane %v1577, %v1610
    %v1612 = vcombine.low %v1578, %v1578
    %v1614 = vunpack.c.l.s4 1983009808
    %v1615 = vunpack.c.0.s8 %v1614
    %v1616 = vlaneseq
    %v1617 = vshrl.u32 %v1616, 7
    %v1618 = vsub.s32 %v1615, %v1617
    %v1619 = vrot.slane %v1612, %v1618
    %1620 = vrot.lane.b32.xlu0 %v1589, 127
    %v1621 = vpop.permute.xlu0 %1620
    %1622 = vrot.lane.b32.xlu0 %v1596, 127
    %v1623 = vpop.permute.xlu0 %1622
    %1624 = vrot.lane.b32.xlu0 %v1604, 127
    %v1625 = vpop.permute.xlu0 %1624
    %1626 = vrot.lane.b32.xlu0 %v1611, 127
    %v1627 = vpop.permute.xlu0 %1626
    %1628 = vrot.lane.b32.xlu0 %v1619, 127
    %v1629 = vpop.permute.xlu0 %1628
    %v1630 = vrot.slane %v1621, 4
    %v1631 = vrot.slane %v1623, 4
    %v1632 = vrot.slane %v1625, 4
    %v1633 = vrot.slane %v1627, 4
    %v1634 = vrot.slane %v1629, 4
    %v1635 = vsel %vm157, %v1630, %v1631
    %v1636 = vsel %vm159, %v1621, %v1635
    %v1637 = vsel %vm157, %v1631, %v1632
    %v1638 = vsel %vm159, %v1623, %v1637
    %v1639 = vsel %vm157, %v1632, %v1633
    %v1640 = vsel %vm159, %v1625, %v1639
    %v1641 = vsel %vm157, %v1633, %v1634
    %v1642 = vsel %vm159, %v1627, %v1641
    %1647 = vst [vmem:[#allocation2 + $0x140] sm:$0xcc] %v1636
    %1648 = vst [vmem:[#allocation2 + $0x148] sm:$0xcc] %v1638
    %1649 = vst [vmem:[#allocation2 + $0x150] sm:$0xcc] %v1640
    %1650 = vst [vmem:[#allocation2 + $0x158] sm:$0xcc] %v1642
    %v1651 = vld [vmem:[%s0 + $0x2] sm:$0xff]
    %v1652 = vld [vmem:[%s0 + $0xa] sm:$0xff]
    %v1653 = vld [vmem:[%s0 + $0x12] sm:$0x3]
    %v1657 = vcombine.high %v1651, %v1651
    %v1659 = vunpack.c.l.s4 1983009808
    %v1660 = vunpack.c.0.s8 %v1659
    %v1661 = vlaneseq
    %v1662 = vshrl.u32 %v1661, 7
    %v1663 = vsub.s32 %v1660, %v1662
    %v1664 = vrot.slane %v1651, %v1663
    %v1666 = vunpack.c.l.s4 1983009808
    %v1667 = vunpack.c.0.s8 %v1666
    %v1668 = vlaneseq
    %v1669 = vshrl.u32 %v1668, 7
    %v1670 = vsub.s32 %v1667, %v1669
    %v1671 = vrot.slane %v1657, %v1670
    %v1672 = vcombine.high %v1652, %v1652
    %v1674 = vunpack.c.l.s4 1983009808
    %v1675 = vunpack.c.0.s8 %v1674
    %v1676 = vlaneseq
    %v1677 = vshrl.u32 %v1676, 7
    %v1678 = vsub.s32 %v1675, %v1677
    %v1679 = vrot.slane %v1652, %v1678
    %v1681 = vunpack.c.l.s4 1983009808
    %v1682 = vunpack.c.0.s8 %v1681
    %v1683 = vlaneseq
    %v1684 = vshrl.u32 %v1683, 7
    %v1685 = vsub.s32 %v1682, %v1684
    %v1686 = vrot.slane %v1672, %v1685
    %v1688 = vunpack.c.l.s4 1983009808
    %v1689 = vunpack.c.0.s8 %v1688
    %v1690 = vlaneseq
    %v1691 = vshrl.u32 %v1690, 7
    %v1692 = vsub.s32 %v1689, %v1691
    %v1693 = vrot.slane %v1653, %v1692
    %1694 = vrot.lane.b32.xlu0 %v1664, 126
    %v1695 = vpop.permute.xlu0 %1694
    %1696 = vrot.lane.b32.xlu0 %v1671, 126
    %v1697 = vpop.permute.xlu0 %1696
    %1698 = vrot.lane.b32.xlu0 %v1679, 126
    %v1699 = vpop.permute.xlu0 %1698
    %1700 = vrot.lane.b32.xlu0 %v1686, 126
    %v1701 = vpop.permute.xlu0 %1700
    %1702 = vrot.lane.b32.xlu0 %v1693, 126
    %v1703 = vpop.permute.xlu0 %1702
    %v1704 = vrot.slane %v1695, 4
    %v1705 = vrot.slane %v1697, 4
    %v1706 = vrot.slane %v1699, 4
    %v1707 = vrot.slane %v1701, 4
    %v1708 = vrot.slane %v1703, 4
    %v1709 = vsel %vm157, %v1704, %v1705
    %v1710 = vsel %vm234, %v1695, %v1709
    %v1711 = vsel %vm157, %v1705, %v1706
    %v1712 = vsel %vm234, %v1697, %v1711
    %v1713 = vsel %vm157, %v1706, %v1707
    %v1714 = vsel %vm234, %v1699, %v1713
    %v1715 = vsel %vm157, %v1707, %v1708
    %v1716 = vsel %vm234, %v1701, %v1715
    %1721 = vst [vmem:[#allocation2 + $0x160] sm:$0x33] %v1710
    %1722 = vst [vmem:[#allocation2 + $0x168] sm:$0x33] %v1712
    %1723 = vst [vmem:[#allocation2 + $0x170] sm:$0x33] %v1714
    %1724 = vst [vmem:[#allocation2 + $0x178] sm:$0x33] %v1716
    %v1725 = vld [vmem:[%s0 + $0x2] sm:$0xff]
    %v1726 = vld [vmem:[%s0 + $0xa] sm:$0xff]
    %v1727 = vld [vmem:[%s0 + $0x12] sm:$0x3]
    %v1731 = vcombine.low %v1725, %v1725
    %v1733 = vunpack.c.l.s4 1983009808
    %v1734 = vunpack.c.0.s8 %v1733
    %v1735 = vlaneseq
    %v1736 = vshrl.u32 %v1735, 7
    %v1737 = vsub.s32 %v1734, %v1736
    %v1738 = vrot.slane %v1731, %v1737
    %v1740 = vunpack.c.l.s4 1983009808
    %v1741 = vunpack.c.0.s8 %v1740
    %v1742 = vlaneseq
    %v1743 = vshrl.u32 %v1742, 7
    %v1744 = vsub.s32 %v1741, %v1743
    %v1745 = vrot.slane %v1725, %v1744
    %v1746 = vcombine.low %v1726, %v1726
    %v1748 = vunpack.c.l.s4 1983009808
    %v1749 = vunpack.c.0.s8 %v1748
    %v1750 = vlaneseq
    %v1751 = vshrl.u32 %v1750, 7
    %v1752 = vsub.s32 %v1749, %v1751
    %v1753 = vrot.slane %v1746, %v1752
    %v1755 = vunpack.c.l.s4 1983009808
    %v1756 = vunpack.c.0.s8 %v1755
    %v1757 = vlaneseq
    %v1758 = vshrl.u32 %v1757, 7
    %v1759 = vsub.s32 %v1756, %v1758
    %v1760 = vrot.slane %v1726, %v1759
    %v1761 = vcombine.low %v1727, %v1727
    %v1763 = vunpack.c.l.s4 1983009808
    %v1764 = vunpack.c.0.s8 %v1763
    %v1765 = vlaneseq
    %v1766 = vshrl.u32 %v1765, 7
    %v1767 = vsub.s32 %v1764, %v1766
    %v1768 = vrot.slane %v1761, %v1767
    %1769 = vrot.lane.b32.xlu0 %v1738, 125
    %v1770 = vpop.permute.xlu0 %1769
    %1771 = vrot.lane.b32.xlu0 %v1745, 125
    %v1772 = vpop.permute.xlu0 %1771
    %1773 = vrot.lane.b32.xlu0 %v1753, 125
    %v1774 = vpop.permute.xlu0 %1773
    %1775 = vrot.lane.b32.xlu0 %v1760, 125
    %v1776 = vpop.permute.xlu0 %1775
    %1777 = vrot.lane.b32.xlu0 %v1768, 125
    %v1778 = vpop.permute.xlu0 %1777
    %v1779 = vrot.slane %v1770, 4
    %v1780 = vrot.slane %v1772, 4
    %v1781 = vrot.slane %v1774, 4
    %v1782 = vrot.slane %v1776, 4
    %v1783 = vrot.slane %v1778, 4
    %v1784 = vsel %vm157, %v1779, %v1780
    %v1785 = vsel %vm310, %v1770, %v1784
    %v1786 = vsel %vm157, %v1780, %v1781
    %v1787 = vsel %vm310, %v1772, %v1786
    %v1788 = vsel %vm157, %v1781, %v1782
    %v1789 = vsel %vm310, %v1774, %v1788
    %v1790 = vsel %vm157, %v1782, %v1783
    %v1791 = vsel %vm310, %v1776, %v1790
    %1796 = vst [vmem:[#allocation2 + $0x160] sm:$0xcc] %v1785
    %1797 = vst [vmem:[#allocation2 + $0x168] sm:$0xcc] %v1787
    %1798 = vst [vmem:[#allocation2 + $0x170] sm:$0xcc] %v1789
    %1799 = vst [vmem:[#allocation2 + $0x178] sm:$0xcc] %v1791
    %v1800 = vld [vmem:[%s0 + $0x2] sm:$0xff]
    %v1801 = vld [vmem:[%s0 + $0xa] sm:$0xff]
    %v1802 = vld [vmem:[%s0 + $0x12] sm:$0x3]
    %v1806 = vcombine.high %v1800, %v1800
    %v1808 = vunpack.c.l.s4 1983009808
    %v1809 = vunpack.c.0.s8 %v1808
    %v1810 = vlaneseq
    %v1811 = vshrl.u32 %v1810, 7
    %v1812 = vsub.s32 %v1809, %v1811
    %v1813 = vrot.slane %v1800, %v1812
    %v1815 = vunpack.c.l.s4 1983009808
    %v1816 = vunpack.c.0.s8 %v1815
    %v1817 = vlaneseq
    %v1818 = vshrl.u32 %v1817, 7
    %v1819 = vsub.s32 %v1816, %v1818
    %v1820 = vrot.slane %v1806, %v1819
    %v1821 = vcombine.high %v1801, %v1801
    %v1823 = vunpack.c.l.s4 1983009808
    %v1824 = vunpack.c.0.s8 %v1823
    %v1825 = vlaneseq
    %v1826 = vshrl.u32 %v1825, 7
    %v1827 = vsub.s32 %v1824, %v1826
    %v1828 = vrot.slane %v1801, %v1827
    %v1830 = vunpack.c.l.s4 1983009808
    %v1831 = vunpack.c.0.s8 %v1830
    %v1832 = vlaneseq
    %v1833 = vshrl.u32 %v1832, 7
    %v1834 = vsub.s32 %v1831, %v1833
    %v1835 = vrot.slane %v1821, %v1834
    %v1837 = vunpack.c.l.s4 1983009808
    %v1838 = vunpack.c.0.s8 %v1837
    %v1839 = vlaneseq
    %v1840 = vshrl.u32 %v1839, 7
    %v1841 = vsub.s32 %v1838, %v1840
    %v1842 = vrot.slane %v1802, %v1841
    %1843 = vrot.lane.b32.xlu0 %v1813, 124
    %v1844 = vpop.permute.xlu0 %1843
    %1845 = vrot.lane.b32.xlu0 %v1820, 124
    %v1846 = vpop.permute.xlu0 %1845
    %1847 = vrot.lane.b32.xlu0 %v1828, 124
    %v1848 = vpop.permute.xlu0 %1847
    %1849 = vrot.lane.b32.xlu0 %v1835, 124
    %v1850 = vpop.permute.xlu0 %1849
    %1851 = vrot.lane.b32.xlu0 %v1842, 124
    %v1852 = vpop.permute.xlu0 %1851
    %v1853 = vrot.slane %v1844, 4
    %v1854 = vrot.slane %v1846, 4
    %v1855 = vrot.slane %v1848, 4
    %v1856 = vrot.slane %v1850, 4
    %v1857 = vrot.slane %v1852, 4
    %v1858 = vsel %vm157, %v1853, %v1854
    %v1859 = vsel %vm385, %v1844, %v1858
    %v1860 = vsel %vm157, %v1854, %v1855
    %v1861 = vsel %vm385, %v1846, %v1860
    %v1862 = vsel %vm157, %v1855, %v1856
    %v1863 = vsel %vm385, %v1848, %v1862
    %v1864 = vsel %vm157, %v1856, %v1857
    %v1865 = vsel %vm385, %v1850, %v1864
    %1870 = vst [vmem:[#allocation2 + $0x180] sm:$0x33] %v1859
    %1871 = vst [vmem:[#allocation2 + $0x188] sm:$0x33] %v1861
    %1872 = vst [vmem:[#allocation2 + $0x190] sm:$0x33] %v1863
    %1873 = vst [vmem:[#allocation2 + $0x198] sm:$0x33] %v1865
    %v1874 = vld [vmem:[#allocation2] sm:$0xff]
    %v1875 = vld [vmem:[#allocation2 + $0x8] sm:$0xff]
    %v1876 = vld [vmem:[#allocation2 + $0x10] sm:$0xff]
    %v1877 = vld [vmem:[#allocation2 + $0x18] sm:$0xff]
    %v1878 = vld [vmem:[#allocation2 + $0x20] sm:$0xff]
    %v1879 = vld [vmem:[#allocation2 + $0x28] sm:$0xff]
    %v1880 = vld [vmem:[#allocation2 + $0x30] sm:$0xff]
    %v1881 = vld [vmem:[#allocation2 + $0x38] sm:$0xff]
    %v1882 = vld [vmem:[#allocation2 + $0x40] sm:$0xff]
    %v1883 = vld [vmem:[#allocation2 + $0x48] sm:$0xff]
    %v1884 = vld [vmem:[#allocation2 + $0x50] sm:$0xff]
    %v1885 = vld [vmem:[#allocation2 + $0x58] sm:$0xff]
    %v1886 = vld [vmem:[#allocation2 + $0x60] sm:$0xff]
    %v1887 = vld [vmem:[#allocation2 + $0x68] sm:$0xff]
    %v1888 = vld [vmem:[#allocation2 + $0x70] sm:$0xff]
    %v1889 = vld [vmem:[#allocation2 + $0x78] sm:$0xff]
    %v1890 = vld [vmem:[#allocation2 + $0x80] sm:$0xff]
    %v1891 = vld [vmem:[#allocation2 + $0x88] sm:$0xff]
    %v1892 = vld [vmem:[#allocation2 + $0x90] sm:$0xff]
    %v1893 = vld [vmem:[#allocation2 + $0x98] sm:$0xff]
    %v1894 = vld [vmem:[#allocation2 + $0xa0] sm:$0xff]
    %v1895 = vld [vmem:[#allocation2 + $0xa8] sm:$0xff]
    %v1896 = vld [vmem:[#allocation2 + $0xb0] sm:$0xff]
    %v1897 = vld [vmem:[#allocation2 + $0xb8] sm:$0xff]
    %v1898 = vld [vmem:[#allocation2 + $0xc0] sm:$0xff]
    %v1899 = vld [vmem:[#allocation2 + $0xc8] sm:$0xff]
    %v1900 = vld [vmem:[#allocation2 + $0xd0] sm:$0xff]
    %v1901 = vld [vmem:[#allocation2 + $0xd8] sm:$0xff]
    %v1902 = vld [vmem:[#allocation2 + $0xe0] sm:$0xff]
    %v1903 = vld [vmem:[#allocation2 + $0xe8] sm:$0xff]
    %v1904 = vld [vmem:[#allocation2 + $0xf0] sm:$0xff]
    %v1905 = vld [vmem:[#allocation2 + $0xf8] sm:$0xff]
    %v1906 = vld [vmem:[#allocation2 + $0x100] sm:$0xff]
    %v1907 = vld [vmem:[#allocation2 + $0x108] sm:$0xff]
    %v1908 = vld [vmem:[#allocation2 + $0x110] sm:$0xff]
    %v1909 = vld [vmem:[#allocation2 + $0x118] sm:$0xff]
    %v1910 = vld [vmem:[#allocation2 + $0x120] sm:$0xff]
    %v1911 = vld [vmem:[#allocation2 + $0x128] sm:$0xff]
    %v1912 = vld [vmem:[#allocation2 + $0x130] sm:$0xff]
    %v1913 = vld [vmem:[#allocation2 + $0x138] sm:$0xff]
    %v1914 = vld [vmem:[#allocation2 + $0x140] sm:$0xff]
    %v1915 = vld [vmem:[#allocation2 + $0x148] sm:$0xff]
    %v1916 = vld [vmem:[#allocation2 + $0x150] sm:$0xff]
    %v1917 = vld [vmem:[#allocation2 + $0x158] sm:$0xff]
    %v1918 = vld [vmem:[#allocation2 + $0x160] sm:$0xff]
    %v1919 = vld [vmem:[#allocation2 + $0x168] sm:$0xff]
    %v1920 = vld [vmem:[#allocation2 + $0x170] sm:$0xff]
    %v1921 = vld [vmem:[#allocation2 + $0x178] sm:$0xff]
    %v1922 = vld [vmem:[#allocation2 + $0x180] sm:$0x33]
    %v1923 = vld [vmem:[#allocation2 + $0x188] sm:$0x33]
    %v1924 = vld [vmem:[#allocation2 + $0x190] sm:$0x33]
    %v1925 = vld [vmem:[#allocation2 + $0x198] sm:$0x33]
    %1927 = vset.pattern.permute.xlu0 0
    %1928 = vperm.xlu0 %1927, %v51
    %v1929 = vpop.permute.xlu0 %1928
    %v1983 = vunpack.c.l.b16 %v1874
    %v1984 = vunpack.c.h.b16 %v1874
    %v1985 = vunpack.c.l.b16 %v1875
    %v1986 = vunpack.c.h.b16 %v1875
    %v1987 = vunpack.c.l.b16 %v1876
    %v1988 = vunpack.c.h.b16 %v1876
    %v1989 = vunpack.c.l.b16 %v1877
    %v1990 = vunpack.c.h.b16 %v1877
    %v1991 = vunpack.c.l.b16 %v1878
    %v1992 = vunpack.c.h.b16 %v1878
    %v1993 = vunpack.c.l.b16 %v1879
    %v1994 = vunpack.c.h.b16 %v1879
    %v1995 = vunpack.c.l.b16 %v1880
    %v1996 = vunpack.c.h.b16 %v1880
    %v1997 = vunpack.c.l.b16 %v1881
    %v1998 = vunpack.c.h.b16 %v1881
    %v1999 = vunpack.c.l.b16 %v1882
    %v2000 = vunpack.c.h.b16 %v1882
    %v2001 = vunpack.c.l.b16 %v1883
    %v2002 = vunpack.c.h.b16 %v1883
    %v2003 = vunpack.c.l.b16 %v1884
    %v2004 = vunpack.c.h.b16 %v1884
    %v2005 = vunpack.c.l.b16 %v1885
    %v2006 = vunpack.c.h.b16 %v1885
    %v2007 = vunpack.c.l.b16 %v1886
    %v2008 = vunpack.c.h.b16 %v1886
    %v2009 = vunpack.c.l.b16 %v1887
    %v2010 = vunpack.c.h.b16 %v1887
    %v2011 = vunpack.c.l.b16 %v1888
    %v2012 = vunpack.c.h.b16 %v1888
    %v2013 = vunpack.c.l.b16 %v1889
    %v2014 = vunpack.c.h.b16 %v1889
    %v2015 = vunpack.c.l.b16 %v1890
    %v2016 = vunpack.c.h.b16 %v1890
    %v2017 = vunpack.c.l.b16 %v1891
    %v2018 = vunpack.c.h.b16 %v1891
    %v2019 = vunpack.c.l.b16 %v1892
    %v2020 = vunpack.c.h.b16 %v1892
    %v2021 = vunpack.c.l.b16 %v1893
    %v2022 = vunpack.c.h.b16 %v1893
    %v2023 = vunpack.c.l.b16 %v1894
    %v2024 = vunpack.c.h.b16 %v1894
    %v2025 = vunpack.c.l.b16 %v1895
    %v2026 = vunpack.c.h.b16 %v1895
    %v2027 = vunpack.c.l.b16 %v1896
    %v2028 = vunpack.c.h.b16 %v1896
    %v2029 = vunpack.c.l.b16 %v1897
    %v2030 = vunpack.c.h.b16 %v1897
    %v2031 = vunpack.c.l.b16 %v1898
    %v2032 = vunpack.c.h.b16 %v1898
    %v2033 = vunpack.c.l.b16 %v1899
    %v2034 = vunpack.c.h.b16 %v1899
    %v2035 = vunpack.c.l.b16 %v1900
    %v2036 = vunpack.c.h.b16 %v1900
    %v2037 = vunpack.c.l.b16 %v1901
    %v2038 = vunpack.c.h.b16 %v1901
    %v2039 = vunpack.c.l.b16 %v1902
    %v2040 = vunpack.c.h.b16 %v1902
    %v2041 = vunpack.c.l.b16 %v1903
    %v2042 = vunpack.c.h.b16 %v1903
    %v2043 = vunpack.c.l.b16 %v1904
    %v2044 = vunpack.c.h.b16 %v1904
    %v2045 = vunpack.c.l.b16 %v1905
    %v2046 = vunpack.c.h.b16 %v1905
    %v2047 = vunpack.c.l.b16 %v1906
    %v2048 = vunpack.c.h.b16 %v1906
    %v2049 = vunpack.c.l.b16 %v1907
    %v2050 = vunpack.c.h.b16 %v1907
    %v2051 = vunpack.c.l.b16 %v1908
    %v2052 = vunpack.c.h.b16 %v1908
    %v2053 = vunpack.c.l.b16 %v1909
    %v2054 = vunpack.c.h.b16 %v1909
    %v2055 = vunpack.c.l.b16 %v1910
    %v2056 = vunpack.c.h.b16 %v1910
    %v2057 = vunpack.c.l.b16 %v1911
    %v2058 = vunpack.c.h.b16 %v1911
    %v2059 = vunpack.c.l.b16 %v1912
    %v2060 = vunpack.c.h.b16 %v1912
    %v2061 = vunpack.c.l.b16 %v1913
    %v2062 = vunpack.c.h.b16 %v1913
    %v2063 = vunpack.c.l.b16 %v1914
    %v2064 = vunpack.c.h.b16 %v1914
    %v2065 = vunpack.c.l.b16 %v1915
    %v2066 = vunpack.c.h.b16 %v1915
    %v2067 = vunpack.c.l.b16 %v1916
    %v2068 = vunpack.c.h.b16 %v1916
    %v2069 = vunpack.c.l.b16 %v1917
    %v2070 = vunpack.c.h.b16 %v1917
    %v2071 = vunpack.c.l.b16 %v1918
    %v2072 = vunpack.c.h.b16 %v1918
    %v2073 = vunpack.c.l.b16 %v1919
    %v2074 = vunpack.c.h.b16 %v1919
    %v2075 = vunpack.c.l.b16 %v1920
    %v2076 = vunpack.c.h.b16 %v1920
    %v2077 = vunpack.c.l.b16 %v1921
    %v2078 = vunpack.c.h.b16 %v1921
    %v2079 = vunpack.c.l.b16 %v1922
    %v2080 = vunpack.c.h.b16 %v1922
    %v2081 = vunpack.c.l.b16 %v1923
    %v2082 = vunpack.c.h.b16 %v1923
    %v2083 = vunpack.c.l.b16 %v1924
    %v2084 = vunpack.c.h.b16 %v1924
    %v2085 = vunpack.c.l.b16 %v1925
    %v2086 = vunpack.c.h.b16 %v1925
    %v2087 = vpack.c.b16 %v1991, %v1983
    %v2088 = vpack.c.b16 %v1992, %v1984
    %v2089 = vpack.c.b16 %v1993, %v1985
    %v2090 = vpack.c.b16 %v1994, %v1986
    %v2091 = vpack.c.b16 %v1995, %v1987
    %v2092 = vpack.c.b16 %v1996, %v1988
    %v2093 = vpack.c.b16 %v1997, %v1989
    %v2094 = vpack.c.b16 %v1998, %v1990
    %v2095 = vpack.c.b16 %v2007, %v1999
    %v2096 = vpack.c.b16 %v2008, %v2000
    %v2097 = vpack.c.b16 %v2009, %v2001
    %v2098 = vpack.c.b16 %v2010, %v2002
    %v2099 = vpack.c.b16 %v2011, %v2003
    %v2100 = vpack.c.b16 %v2012, %v2004
    %v2101 = vpack.c.b16 %v2013, %v2005
    %v2102 = vpack.c.b16 %v2014, %v2006
    %v2103 = vpack.c.b16 %v2023, %v2015
    %v2104 = vpack.c.b16 %v2024, %v2016
    %v2105 = vpack.c.b16 %v2025, %v2017
    %v2106 = vpack.c.b16 %v2026, %v2018
    %v2107 = vpack.c.b16 %v2027, %v2019
    %v2108 = vpack.c.b16 %v2028, %v2020
    %v2109 = vpack.c.b16 %v2029, %v2021
    %v2110 = vpack.c.b16 %v2030, %v2022
    %v2111 = vpack.c.b16 %v2039, %v2031
    %v2112 = vpack.c.b16 %v2040, %v2032
    %v2113 = vpack.c.b16 %v2041, %v2033
    %v2114 = vpack.c.b16 %v2042, %v2034
    %v2115 = vpack.c.b16 %v2043, %v2035
    %v2116 = vpack.c.b16 %v2044, %v2036
    %v2117 = vpack.c.b16 %v2045, %v2037
    %v2118 = vpack.c.b16 %v2046, %v2038
    %v2119 = vpack.c.b16 %v2055, %v2047
    %v2120 = vpack.c.b16 %v2056, %v2048
    %v2121 = vpack.c.b16 %v2057, %v2049
    %v2122 = vpack.c.b16 %v2058, %v2050
    %v2123 = vpack.c.b16 %v2059, %v2051
    %v2124 = vpack.c.b16 %v2060, %v2052
    %v2125 = vpack.c.b16 %v2061, %v2053
    %v2126 = vpack.c.b16 %v2062, %v2054
    %v2127 = vpack.c.b16 %v2071, %v2063
    %v2128 = vpack.c.b16 %v2072, %v2064
    %v2129 = vpack.c.b16 %v2073, %v2065
    %v2130 = vpack.c.b16 %v2074, %v2066
    %v2131 = vpack.c.b16 %v2075, %v2067
    %v2132 = vpack.c.b16 %v2076, %v2068
    %v2133 = vpack.c.b16 %v2077, %v2069
    %v2134 = vpack.c.b16 %v2078, %v2070
    %v2135 = vpack.c.b16 %v2079, %v2079
    %v2136 = vpack.c.b16 %v2080, %v2080
    %v2137 = vpack.c.b16 %v2081, %v2081
    %v2138 = vpack.c.b16 %v2082, %v2082
    %v2139 = vpack.c.b16 %v2083, %v2083
    %v2140 = vpack.c.b16 %v2084, %v2084
    %v2141 = vpack.c.b16 %v2085, %v2085
    %v2142 = vpack.c.b16 %v2086, %v2086
    %vm2191 = vcmask 818176
    %v2193 = vsel %vm2191, %v50, 0
    %vm2195 = vcmask 1041408
    %v2197 = vsel %vm2195, %v2135, 0
    %v2200 = vsel %vm2195, %v2136, 0
    %v2203 = vsel %vm2195, %v2137, 0
    %v2206 = vsel %vm2195, %v2138, 0
    %v2209 = vsel %vm2195, %v2139, 0
    %v2212 = vsel %vm2195, %v2140, 0
    %v2215 = vsel %vm2195, %v2141, 0
    %v2218 = vsel %vm2195, %v2142, 0
    %2220 = vmatprep.subr.bf16.mxu0 0
    %2221 = vmatpush1.bf16.msra.mxu0 0
    %2222 = vmatprep.subr.bf16.mxu0 %v2200
    %2223 = vmatpush1.bf16.msra.mxu0 %v2197
    %2224 = vmatprep.subr.bf16.mxu0 %v2128
    %2225 = vmatpush1.bf16.msra.mxu0 %v2127
    %2226 = vmatprep.subr.bf16.mxu0 %v2120
    %2227 = vmatpush1.bf16.msra.mxu0 %v2119
    %2228 = vmatprep.subr.bf16.mxu0 %v2112
    %2229 = vmatpush1.bf16.msra.mxu0 %v2111
    %2230 = vmatprep.subr.bf16.mxu0 %v2104
    %2231 = vmatpush1.bf16.msra.mxu0 %v2103
    %2232 = vmatprep.subr.bf16.mxu0 %v2096
    %2233 = vmatpush1.bf16.msra.mxu0 %v2095
    %2234 = vmatprep.subr.bf16.mxu0 %v2088
    %2235 = vmatpush1.bf16.msra.mxu0 %v2087
    %2236 = vmatprep.subr.bf16.mxu0 0
    %2237 = vmatpush2.bf16.msra.mxu0 0
    %2238 = vmatprep.subr.bf16.mxu0 0
    %2239 = vmatpush2.bf16.msra.mxu0 0
    %2240 = vmatprep.subr.bf16.mxu0 0
    %2241 = vmatpush2.bf16.msra.mxu0 0
    %2242 = vmatprep.subr.bf16.mxu0 0
    %2243 = vmatpush2.bf16.msra.mxu0 0
    %2244 = vmatprep.subr.bf16.mxu0 0
    %2245 = vmatpush2.bf16.msra.mxu0 0
    %2246 = vmatprep.subr.bf16.mxu0 0
    %2247 = vmatpush2.bf16.msra.mxu0 0
    %2248 = vmatprep.subr.bf16.mxu0 0
    %2249 = vmatpush2.bf16.msra.mxu0 0
    %2250 = vmatprep.subr.bf16.mxu0 0
    %2251 = vmatpush2.bf16.msra.mxu0 0
    %2252 = vmatprep.mubr.bf16.mxu0 0
    %2253 = vmatmul.mubr.bf16.gmra.mxu0 %v2193
    %v2254 = vpop.f32.mrf.mxu0
    %v2255 = vadd.f32 %v1929, %v2254
    %v2256 = vpop.f32.mrf.mxu0
    %v2257 = vadd.f32 %v1929, %v2256
    %v2258 = vpop.f32.mrf.mxu0
    %v2259 = vpop.f32.mrf.mxu0
    %2260 = vdwg.mxu0
    %2261 = vmatprep.subr.bf16.mxu0 0
    %2262 = vmatpush1.bf16.msra.mxu0 0
    %2263 = vmatprep.subr.bf16.mxu0 %v2206
    %2264 = vmatpush1.bf16.msra.mxu0 %v2203
    %2265 = vmatprep.subr.bf16.mxu0 %v2130
    %2266 = vmatpush1.bf16.msra.mxu0 %v2129
    %2267 = vmatprep.subr.bf16.mxu0 %v2122
    %2268 = vmatpush1.bf16.msra.mxu0 %v2121
    %2269 = vmatprep.subr.bf16.mxu0 %v2114
    %2270 = vmatpush1.bf16.msra.mxu0 %v2113
    %2271 = vmatprep.subr.bf16.mxu0 %v2106
    %2272 = vmatpush1.bf16.msra.mxu0 %v2105
    %2273 = vmatprep.subr.bf16.mxu0 %v2098
    %2274 = vmatpush1.bf16.msra.mxu0 %v2097
    %2275 = vmatprep.subr.bf16.mxu0 %v2090
    %2276 = vmatpush1.bf16.msra.mxu0 %v2089
    %2277 = vmatprep.subr.bf16.mxu0 0
    %2278 = vmatpush2.bf16.msra.mxu0 0
    %2279 = vmatprep.subr.bf16.mxu0 0
    %2280 = vmatpush2.bf16.msra.mxu0 0
    %2281 = vmatprep.subr.bf16.mxu0 0
    %2282 = vmatpush2.bf16.msra.mxu0 0
    %2283 = vmatprep.subr.bf16.mxu0 0
    %2284 = vmatpush2.bf16.msra.mxu0 0
    %2285 = vmatprep.subr.bf16.mxu0 0
    %2286 = vmatpush2.bf16.msra.mxu0 0
    %2287 = vmatprep.subr.bf16.mxu0 0
    %2288 = vmatpush2.bf16.msra.mxu0 0
    %2289 = vmatprep.subr.bf16.mxu0 0
    %2290 = vmatpush2.bf16.msra.mxu0 0
    %2291 = vmatprep.subr.bf16.mxu0 0
    %2292 = vmatpush2.bf16.msra.mxu0 0
    %2293 = vmatprep.mubr.bf16.mxu0 0
    %2294 = vmatmul.mubr.bf16.gmra.mxu0 %v2193
    %v2295 = vpop.f32.mrf.mxu0
    %v2296 = vadd.f32 %v1929, %v2295
    %v2297 = vpop.f32.mrf.mxu0
    %v2298 = vadd.f32 %v1929, %v2297
    %v2299 = vpop.f32.mrf.mxu0
    %v2300 = vpop.f32.mrf.mxu0
    %2301 = vdwg.mxu0
    %2302 = vmatprep.subr.bf16.mxu0 0
    %2303 = vmatpush1.bf16.msra.mxu0 0
    %2304 = vmatprep.subr.bf16.mxu0 %v2212
    %2305 = vmatpush1.bf16.msra.mxu0 %v2209
    %2306 = vmatprep.subr.bf16.mxu0 %v2132
    %2307 = vmatpush1.bf16.msra.mxu0 %v2131
    %2308 = vmatprep.subr.bf16.mxu0 %v2124
    %2309 = vmatpush1.bf16.msra.mxu0 %v2123
    %2310 = vmatprep.subr.bf16.mxu0 %v2116
    %2311 = vmatpush1.bf16.msra.mxu0 %v2115
    %2312 = vmatprep.subr.bf16.mxu0 %v2108
    %2313 = vmatpush1.bf16.msra.mxu0 %v2107
    %2314 = vmatprep.subr.bf16.mxu0 %v2100
    %2315 = vmatpush1.bf16.msra.mxu0 %v2099
    %2316 = vmatprep.subr.bf16.mxu0 %v2092
    %2317 = vmatpush1.bf16.msra.mxu0 %v2091
    %2318 = vmatprep.subr.bf16.mxu0 0
    %2319 = vmatpush2.bf16.msra.mxu0 0
    %2320 = vmatprep.subr.bf16.mxu0 0
    %2321 = vmatpush2.bf16.msra.mxu0 0
    %2322 = vmatprep.subr.bf16.mxu0 0
    %2323 = vmatpush2.bf16.msra.mxu0 0
    %2324 = vmatprep.subr.bf16.mxu0 0
    %2325 = vmatpush2.bf16.msra.mxu0 0
    %2326 = vmatprep.subr.bf16.mxu0 0
    %2327 = vmatpush2.bf16.msra.mxu0 0
    %2328 = vmatprep.subr.bf16.mxu0 0
    %2329 = vmatpush2.bf16.msra.mxu0 0
    %2330 = vmatprep.subr.bf16.mxu0 0
    %2331 = vmatpush2.bf16.msra.mxu0 0
    %2332 = vmatprep.subr.bf16.mxu0 0
    %2333 = vmatpush2.bf16.msra.mxu0 0
    %2334 = vmatprep.mubr.bf16.mxu0 0
    %2335 = vmatmul.mubr.bf16.gmra.mxu0 %v2193
    %v2336 = vpop.f32.mrf.mxu0
    %v2337 = vadd.f32 %v1929, %v2336
    %v2338 = vpop.f32.mrf.mxu0
    %v2339 = vadd.f32 %v1929, %v2338
    %v2340 = vpop.f32.mrf.mxu0
    %v2341 = vpop.f32.mrf.mxu0
    %2342 = vdwg.mxu0
    %2343 = vmatprep.subr.bf16.mxu0 0
    %2344 = vmatpush1.bf16.msra.mxu0 0
    %2345 = vmatprep.subr.bf16.mxu0 %v2218
    %2346 = vmatpush1.bf16.msra.mxu0 %v2215
    %2347 = vmatprep.subr.bf16.mxu0 %v2134
    %2348 = vmatpush1.bf16.msra.mxu0 %v2133
    %2349 = vmatprep.subr.bf16.mxu0 %v2126
    %2350 = vmatpush1.bf16.msra.mxu0 %v2125
    %2351 = vmatprep.subr.bf16.mxu0 %v2118
    %2352 = vmatpush1.bf16.msra.mxu0 %v2117
    %2353 = vmatprep.subr.bf16.mxu0 %v2110
    %2354 = vmatpush1.bf16.msra.mxu0 %v2109
    %2355 = vmatprep.subr.bf16.mxu0 %v2102
    %2356 = vmatpush1.bf16.msra.mxu0 %v2101
    %2357 = vmatprep.subr.bf16.mxu0 %v2094
    %2358 = vmatpush1.bf16.msra.mxu0 %v2093
    %2359 = vmatprep.subr.bf16.mxu0 0
    %2360 = vmatpush2.bf16.msra.mxu0 0
    %2361 = vmatprep.subr.bf16.mxu0 0
    %2362 = vmatpush2.bf16.msra.mxu0 0
    %2363 = vmatprep.subr.bf16.mxu0 0
    %2364 = vmatpush2.bf16.msra.mxu0 0
    %2365 = vmatprep.subr.bf16.mxu0 0
    %2366 = vmatpush2.bf16.msra.mxu0 0
    %2367 = vmatprep.subr.bf16.mxu0 0
    %2368 = vmatpush2.bf16.msra.mxu0 0
    %2369 = vmatprep.subr.bf16.mxu0 0
    %2370 = vmatpush2.bf16.msra.mxu0 0
    %2371 = vmatprep.subr.bf16.mxu0 0
    %2372 = vmatpush2.bf16.msra.mxu0 0
    %2373 = vmatprep.subr.bf16.mxu0 0
    %2374 = vmatpush2.bf16.msra.mxu0 0
    %2375 = vmatprep.mubr.bf16.mxu0 0
    %2376 = vmatmul.mubr.bf16.gmra.mxu0 %v2193
    %v2377 = vpop.f32.mrf.mxu0
    %v2378 = vadd.f32 %v1929, %v2377
    %v2379 = vpop.f32.mrf.mxu0
    %v2380 = vadd.f32 %v1929, %v2379
    %v2381 = vpop.f32.mrf.mxu0
    %v2382 = vpop.f32.mrf.mxu0
    %2383 = vdwg.mxu0
    %v2384 = vmax.f32 %v2255, 0.0
    %v2385 = vmax.f32 %v2257, 0.0
    %v2386 = vmax.f32 %v2296, 0.0
    %v2387 = vmax.f32 %v2298, 0.0
    %v2388 = vmax.f32 %v2337, 0.0
    %v2389 = vmax.f32 %v2339, 0.0
    %v2390 = vmax.f32 %v2378, 0.0
    %v2391 = vmax.f32 %v2380, 0.0
    %2392 = vst [vmem:[#allocation3] sm:$0xff] %v2384
    %2393 = vst [vmem:[#allocation3 + $0x8] sm:$0xff] %v2385
    %2394 = vst [vmem:[#allocation3 + $0x10] sm:$0xff] %v2386
    %2395 = vst [vmem:[#allocation3 + $0x18] sm:$0xff] %v2387
    %2396 = vst [vmem:[#allocation3 + $0x20] sm:$0xff] %v2388
    %2397 = vst [vmem:[#allocation3 + $0x28] sm:$0xff] %v2389
    %2398 = vst [vmem:[#allocation3 + $0x30] sm:$0xff] %v2390
    %2399 = vst [vmem:[#allocation3 + $0x38] sm:$0xff] %v2391
    %v2400 = vld [vmem:[%s0 + $0x10] sm:$0xff]
    %v2401 = vld [vmem:[%s0 + $0x18] sm:$0x3f]
    %v2404 = vcombine.high %v2400, %v2400
    %v2406 = vunpack.c.l.s4 1983009808
    %v2407 = vunpack.c.0.s8 %v2406
    %v2408 = vlaneseq
    %v2409 = vshrl.u32 %v2408, 7
    %v2410 = vsub.s32 %v2407, %v2409
    %v2411 = vrot.slane %v2400, %v2410
    %v2413 = vunpack.c.l.s4 1983009808
    %v2414 = vunpack.c.0.s8 %v2413
    %v2415 = vlaneseq
    %v2416 = vshrl.u32 %v2415, 7
    %v2417 = vsub.s32 %v2414, %v2416
    %v2418 = vrot.slane %v2404, %v2417
    %v2419 = vcombine.high %v2401, %v2401
    %v2421 = vunpack.c.l.s4 1983009808
    %v2422 = vunpack.c.0.s8 %v2421
    %v2423 = vlaneseq
    %v2424 = vshrl.u32 %v2423, 7
    %v2425 = vsub.s32 %v2422, %v2424
    %v2426 = vrot.slane %v2401, %v2425
    %v2428 = vunpack.c.l.s4 1983009808
    %v2429 = vunpack.c.0.s8 %v2428
    %v2430 = vlaneseq
    %v2431 = vshrl.u32 %v2430, 7
    %v2432 = vsub.s32 %v2429, %v2431
    %v2433 = vrot.slane %v2419, %v2432
    %2438 = vst [vmem:[#allocation2] sm:$0x33] %v2411
    %2439 = vst [vmem:[#allocation2 + $0x8] sm:$0x33] %v2418
    %2440 = vst [vmem:[#allocation2 + $0x10] sm:$0x33] %v2426
    %vm2441 = vcmask 1008640
    %2442 = vst.msk [vmem:[#allocation2 + $0x18] sm:$0x3] %vm2441, %v2433
    %v2443 = vld [vmem:[%s0 + $0x10] sm:$0xff]
    %v2444 = vld [vmem:[%s0 + $0x18] sm:$0x3f]
    %v2447 = vcombine.low %v2443, %v2443
    %v2449 = vunpack.c.l.s4 1983009808
    %v2450 = vunpack.c.0.s8 %v2449
    %v2451 = vlaneseq
    %v2452 = vshrl.u32 %v2451, 7
    %v2453 = vsub.s32 %v2450, %v2452
    %v2454 = vrot.slane %v2447, %v2453
    %v2456 = vunpack.c.l.s4 1983009808
    %v2457 = vunpack.c.0.s8 %v2456
    %v2458 = vlaneseq
    %v2459 = vshrl.u32 %v2458, 7
    %v2460 = vsub.s32 %v2457, %v2459
    %v2461 = vrot.slane %v2443, %v2460
    %v2462 = vcombine.low %v2444, %v2444
    %v2464 = vunpack.c.l.s4 1983009808
    %v2465 = vunpack.c.0.s8 %v2464
    %v2466 = vlaneseq
    %v2467 = vshrl.u32 %v2466, 7
    %v2468 = vsub.s32 %v2465, %v2467
    %v2469 = vrot.slane %v2462, %v2468
    %v2471 = vunpack.c.l.s4 1983009808
    %v2472 = vunpack.c.0.s8 %v2471
    %v2473 = vlaneseq
    %v2474 = vshrl.u32 %v2473, 7
    %v2475 = vsub.s32 %v2472, %v2474
    %v2476 = vrot.slane %v2444, %v2475
    %2477 = vrot.lane.b32.xlu0 %v2454, 127
    %v2478 = vpop.permute.xlu0 %2477
    %2479 = vrot.lane.b32.xlu0 %v2461, 127
    %v2480 = vpop.permute.xlu0 %2479
    %2481 = vrot.lane.b32.xlu0 %v2469, 127
    %v2482 = vpop.permute.xlu0 %2481
    %2483 = vrot.lane.b32.xlu0 %v2476, 127
    %v2484 = vpop.permute.xlu0 %2483
    %v2485 = vrot.slane %v2478, 4
    %v2486 = vrot.slane %v2480, 4
    %v2487 = vrot.slane %v2482, 4
    %v2488 = vrot.slane %v2484, 4
    %v2489 = vsel %vm157, %v2485, %v2486
    %v2490 = vsel %vm159, %v2478, %v2489
    %v2491 = vsel %vm157, %v2486, %v2487
    %v2492 = vsel %vm159, %v2480, %v2491
    %v2493 = vsel %vm157, %v2487, %v2488
    %v2494 = vsel %vm159, %v2482, %v2493
    %2499 = vst [vmem:[#allocation2] sm:$0xcc] %v2490
    %2500 = vst [vmem:[#allocation2 + $0x8] sm:$0xcc] %v2492
    %2501 = vst [vmem:[#allocation2 + $0x10] sm:$0xcc] %v2494
    %vm2502 = vcmask 1010690
    %2503 = vst.msk [vmem:[#allocation2 + $0x18] sm:$0xc] %vm2502, %v2484
    %v2504 = vld [vmem:[%s0 + $0x10] sm:$0xff]
    %v2505 = vld [vmem:[%s0 + $0x18] sm:$0x3f]
    %v2508 = vcombine.high %v2504, %v2504
    %v2510 = vunpack.c.l.s4 1983009808
    %v2511 = vunpack.c.0.s8 %v2510
    %v2512 = vlaneseq
    %v2513 = vshrl.u32 %v2512, 7
    %v2514 = vsub.s32 %v2511, %v2513
    %v2515 = vrot.slane %v2504, %v2514
    %v2517 = vunpack.c.l.s4 1983009808
    %v2518 = vunpack.c.0.s8 %v2517
    %v2519 = vlaneseq
    %v2520 = vshrl.u32 %v2519, 7
    %v2521 = vsub.s32 %v2518, %v2520
    %v2522 = vrot.slane %v2508, %v2521
    %v2523 = vcombine.high %v2505, %v2505
    %v2525 = vunpack.c.l.s4 1983009808
    %v2526 = vunpack.c.0.s8 %v2525
    %v2527 = vlaneseq
    %v2528 = vshrl.u32 %v2527, 7
    %v2529 = vsub.s32 %v2526, %v2528
    %v2530 = vrot.slane %v2505, %v2529
    %v2532 = vunpack.c.l.s4 1983009808
    %v2533 = vunpack.c.0.s8 %v2532
    %v2534 = vlaneseq
    %v2535 = vshrl.u32 %v2534, 7
    %v2536 = vsub.s32 %v2533, %v2535
    %v2537 = vrot.slane %v2523, %v2536
    %2538 = vrot.lane.b32.xlu0 %v2515, 126
    %v2539 = vpop.permute.xlu0 %2538
    %2540 = vrot.lane.b32.xlu0 %v2522, 126
    %v2541 = vpop.permute.xlu0 %2540
    %2542 = vrot.lane.b32.xlu0 %v2530, 126
    %v2543 = vpop.permute.xlu0 %2542
    %2544 = vrot.lane.b32.xlu0 %v2537, 126
    %v2545 = vpop.permute.xlu0 %2544
    %v2546 = vrot.slane %v2539, 4
    %v2547 = vrot.slane %v2541, 4
    %v2548 = vrot.slane %v2543, 4
    %v2549 = vrot.slane %v2545, 4
    %v2550 = vsel %vm157, %v2546, %v2547
    %v2551 = vsel %vm234, %v2539, %v2550
    %v2552 = vsel %vm157, %v2547, %v2548
    %v2553 = vsel %vm234, %v2541, %v2552
    %v2554 = vsel %vm157, %v2548, %v2549
    %v2555 = vsel %vm234, %v2543, %v2554
    %2560 = vst [vmem:[#allocation2 + $0x20] sm:$0x33] %v2551
    %2561 = vst [vmem:[#allocation2 + $0x28] sm:$0x33] %v2553
    %2562 = vst [vmem:[#allocation2 + $0x30] sm:$0x33] %v2555
    %2563 = vst.msk [vmem:[#allocation2 + $0x38] sm:$0x3] %vm2441, %v2545
    %v2564 = vld [vmem:[%s0 + $0x10] sm:$0xff]
    %v2565 = vld [vmem:[%s0 + $0x18] sm:$0x3f]
    %v2568 = vcombine.low %v2564, %v2564
    %v2570 = vunpack.c.l.s4 1983009808
    %v2571 = vunpack.c.0.s8 %v2570
    %v2572 = vlaneseq
    %v2573 = vshrl.u32 %v2572, 7
    %v2574 = vsub.s32 %v2571, %v2573
    %v2575 = vrot.slane %v2568, %v2574
    %v2577 = vunpack.c.l.s4 1983009808
    %v2578 = vunpack.c.0.s8 %v2577
    %v2579 = vlaneseq
    %v2580 = vshrl.u32 %v2579, 7
    %v2581 = vsub.s32 %v2578, %v2580
    %v2582 = vrot.slane %v2564, %v2581
    %v2583 = vcombine.low %v2565, %v2565
    %v2585 = vunpack.c.l.s4 1983009808
    %v2586 = vunpack.c.0.s8 %v2585
    %v2587 = vlaneseq
    %v2588 = vshrl.u32 %v2587, 7
    %v2589 = vsub.s32 %v2586, %v2588
    %v2590 = vrot.slane %v2583, %v2589
    %v2592 = vunpack.c.l.s4 1983009808
    %v2593 = vunpack.c.0.s8 %v2592
    %v2594 = vlaneseq
    %v2595 = vshrl.u32 %v2594, 7
    %v2596 = vsub.s32 %v2593, %v2595
    %v2597 = vrot.slane %v2565, %v2596
    %2598 = vrot.lane.b32.xlu0 %v2575, 125
    %v2599 = vpop.permute.xlu0 %2598
    %2600 = vrot.lane.b32.xlu0 %v2582, 125
    %v2601 = vpop.permute.xlu0 %2600
    %2602 = vrot.lane.b32.xlu0 %v2590, 125
    %v2603 = vpop.permute.xlu0 %2602
    %2604 = vrot.lane.b32.xlu0 %v2597, 125
    %v2605 = vpop.permute.xlu0 %2604
    %v2606 = vrot.slane %v2599, 4
    %v2607 = vrot.slane %v2601, 4
    %v2608 = vrot.slane %v2603, 4
    %v2609 = vrot.slane %v2605, 4
    %v2610 = vsel %vm157, %v2606, %v2607
    %v2611 = vsel %vm310, %v2599, %v2610
    %v2612 = vsel %vm157, %v2607, %v2608
    %v2613 = vsel %vm310, %v2601, %v2612
    %v2614 = vsel %vm157, %v2608, %v2609
    %v2615 = vsel %vm310, %v2603, %v2614
    %2620 = vst [vmem:[#allocation2 + $0x20] sm:$0xcc] %v2611
    %2621 = vst [vmem:[#allocation2 + $0x28] sm:$0xcc] %v2613
    %2622 = vst [vmem:[#allocation2 + $0x30] sm:$0xcc] %v2615
    %2623 = vst.msk [vmem:[#allocation2 + $0x38] sm:$0xc] %vm2502, %v2605
    %v2624 = vld [vmem:[%s0 + $0x10] sm:$0xff]
    %v2625 = vld [vmem:[%s0 + $0x18] sm:$0x3f]
    %v2628 = vcombine.high %v2624, %v2624
    %v2630 = vunpack.c.l.s4 1983009808
    %v2631 = vunpack.c.0.s8 %v2630
    %v2632 = vlaneseq
    %v2633 = vshrl.u32 %v2632, 7
    %v2634 = vsub.s32 %v2631, %v2633
    %v2635 = vrot.slane %v2624, %v2634
    %v2637 = vunpack.c.l.s4 1983009808
    %v2638 = vunpack.c.0.s8 %v2637
    %v2639 = vlaneseq
    %v2640 = vshrl.u32 %v2639, 7
    %v2641 = vsub.s32 %v2638, %v2640
    %v2642 = vrot.slane %v2628, %v2641
    %v2643 = vcombine.high %v2625, %v2625
    %v2645 = vunpack.c.l.s4 1983009808
    %v2646 = vunpack.c.0.s8 %v2645
    %v2647 = vlaneseq
    %v2648 = vshrl.u32 %v2647, 7
    %v2649 = vsub.s32 %v2646, %v2648
    %v2650 = vrot.slane %v2625, %v2649
    %v2652 = vunpack.c.l.s4 1983009808
    %v2653 = vunpack.c.0.s8 %v2652
    %v2654 = vlaneseq
    %v2655 = vshrl.u32 %v2654, 7
    %v2656 = vsub.s32 %v2653, %v2655
    %v2657 = vrot.slane %v2643, %v2656
    %2658 = vrot.lane.b32.xlu0 %v2635, 124
    %v2659 = vpop.permute.xlu0 %2658
    %2660 = vrot.lane.b32.xlu0 %v2642, 124
    %v2661 = vpop.permute.xlu0 %2660
    %2662 = vrot.lane.b32.xlu0 %v2650, 124
    %v2663 = vpop.permute.xlu0 %2662
    %2664 = vrot.lane.b32.xlu0 %v2657, 124
    %v2665 = vpop.permute.xlu0 %2664
    %v2666 = vrot.slane %v2659, 4
    %v2667 = vrot.slane %v2661, 4
    %v2668 = vrot.slane %v2663, 4
    %v2669 = vrot.slane %v2665, 4
    %v2670 = vsel %vm157, %v2666, %v2667
    %v2671 = vsel %vm385, %v2659, %v2670
    %v2672 = vsel %vm157, %v2667, %v2668
    %v2673 = vsel %vm385, %v2661, %v2672
    %v2674 = vsel %vm157, %v2668, %v2669
    %v2675 = vsel %vm385, %v2663, %v2674
    %2680 = vst [vmem:[#allocation2 + $0x40] sm:$0x33] %v2671
    %2681 = vst [vmem:[#allocation2 + $0x48] sm:$0x33] %v2673
    %2682 = vst [vmem:[#allocation2 + $0x50] sm:$0x33] %v2675
    %2683 = vst.msk [vmem:[#allocation2 + $0x58] sm:$0x3] %vm2441, %v2665
    %v2684 = vld [vmem:[%s0 + $0x10] sm:$0xff]
    %v2685 = vld [vmem:[%s0 + $0x18] sm:$0xff]
    %v2688 = vcombine.low %v2684, %v2684
    %v2690 = vunpack.c.l.s4 1983009808
    %v2691 = vunpack.c.0.s8 %v2690
    %v2692 = vlaneseq
    %v2693 = vshrl.u32 %v2692, 7
    %v2694 = vsub.s32 %v2691, %v2693
    %v2695 = vrot.slane %v2688, %v2694
    %v2697 = vunpack.c.l.s4 1983009808
    %v2698 = vunpack.c.0.s8 %v2697
    %v2699 = vlaneseq
    %v2700 = vshrl.u32 %v2699, 7
    %v2701 = vsub.s32 %v2698, %v2700
    %v2702 = vrot.slane %v2684, %v2701
    %v2703 = vcombine.low %v2685, %v2685
    %v2705 = vunpack.c.l.s4 1983009808
    %v2706 = vunpack.c.0.s8 %v2705
    %v2707 = vlaneseq
    %v2708 = vshrl.u32 %v2707, 7
    %v2709 = vsub.s32 %v2706, %v2708
    %v2710 = vrot.slane %v2703, %v2709
    %v2712 = vunpack.c.l.s4 1983009808
    %v2713 = vunpack.c.0.s8 %v2712
    %v2714 = vlaneseq
    %v2715 = vshrl.u32 %v2714, 7
    %v2716 = vsub.s32 %v2713, %v2715
    %v2717 = vrot.slane %v2685, %v2716
    %2718 = vrot.lane.b32.xlu0 %v2695, 96
    %v2719 = vpop.permute.xlu0 %2718
    %2720 = vrot.lane.b32.xlu0 %v2702, 96
    %v2721 = vpop.permute.xlu0 %2720
    %2722 = vrot.lane.b32.xlu0 %v2710, 96
    %v2723 = vpop.permute.xlu0 %2722
    %2724 = vrot.lane.b32.xlu0 %v2717, 96
    %v2725 = vpop.permute.xlu0 %2724
    %v2726 = vrot.slane %v2719, 4
    %v2727 = vrot.slane %v2721, 4
    %v2728 = vrot.slane %v2723, 4
    %v2729 = vrot.slane %v2725, 4
    %v2730 = vsel %vm157, %v2726, %v2727
    %v2731 = vsel %vm461, %v2719, %v2730
    %v2732 = vsel %vm157, %v2727, %v2728
    %v2733 = vsel %vm461, %v2721, %v2732
    %v2734 = vsel %vm157, %v2728, %v2729
    %v2735 = vsel %vm461, %v2723, %v2734
    %v2736 = vsel %vm461, %v2725, %v2729
    %2741 = vst [vmem:[#allocation2 + $0x40] sm:$0xcc] %v2731
    %2742 = vst [vmem:[#allocation2 + $0x48] sm:$0xcc] %v2733
    %2743 = vst [vmem:[#allocation2 + $0x50] sm:$0xcc] %v2735
    %2744 = vst.msk [vmem:[#allocation2 + $0x58] sm:$0xc] %vm2502, %v2736
    %v2745 = vld [vmem:[%s0 + $0x10] sm:$0xff]
    %v2746 = vld [vmem:[%s0 + $0x18] sm:$0xff]
    %v2749 = vcombine.high %v2745, %v2745
    %v2751 = vunpack.c.l.s4 1983009808
    %v2752 = vunpack.c.0.s8 %v2751
    %v2753 = vlaneseq
    %v2754 = vshrl.u32 %v2753, 7
    %v2755 = vsub.s32 %v2752, %v2754
    %v2756 = vrot.slane %v2745, %v2755
    %v2758 = vunpack.c.l.s4 1983009808
    %v2759 = vunpack.c.0.s8 %v2758
    %v2760 = vlaneseq
    %v2761 = vshrl.u32 %v2760, 7
    %v2762 = vsub.s32 %v2759, %v2761
    %v2763 = vrot.slane %v2749, %v2762
    %v2764 = vcombine.high %v2746, %v2746
    %v2766 = vunpack.c.l.s4 1983009808
    %v2767 = vunpack.c.0.s8 %v2766
    %v2768 = vlaneseq
    %v2769 = vshrl.u32 %v2768, 7
    %v2770 = vsub.s32 %v2767, %v2769
    %v2771 = vrot.slane %v2746, %v2770
    %v2773 = vunpack.c.l.s4 1983009808
    %v2774 = vunpack.c.0.s8 %v2773
    %v2775 = vlaneseq
    %v2776 = vshrl.u32 %v2775, 7
    %v2777 = vsub.s32 %v2774, %v2776
    %v2778 = vrot.slane %v2764, %v2777
    %2779 = vrot.lane.b32.xlu0 %v2756, 95
    %v2780 = vpop.permute.xlu0 %2779
    %2781 = vrot.lane.b32.xlu0 %v2763, 95
    %v2782 = vpop.permute.xlu0 %2781
    %2783 = vrot.lane.b32.xlu0 %v2771, 95
    %v2784 = vpop.permute.xlu0 %2783
    %2785 = vrot.lane.b32.xlu0 %v2778, 95
    %v2786 = vpop.permute.xlu0 %2785
    %v2787 = vrot.slane %v2780, 4
    %v2788 = vrot.slane %v2782, 4
    %v2789 = vrot.slane %v2784, 4
    %v2790 = vrot.slane %v2786, 4
    %v2791 = vsel %vm157, %v2787, %v2788
    %v2792 = vsel %vm536, %v2780, %v2791
    %v2793 = vsel %vm157, %v2788, %v2789
    %v2794 = vsel %vm536, %v2782, %v2793
    %v2795 = vsel %vm157, %v2789, %v2790
    %v2796 = vsel %vm536, %v2784, %v2795
    %v2797 = vsel %vm536, %v2786, %v2790
    %2802 = vst [vmem:[#allocation2 + $0x60] sm:$0x33] %v2792
    %2803 = vst [vmem:[#allocation2 + $0x68] sm:$0x33] %v2794
    %2804 = vst [vmem:[#allocation2 + $0x70] sm:$0x33] %v2796
    %2805 = vst.msk [vmem:[#allocation2 + $0x78] sm:$0x3] %vm2441, %v2797
    %v2806 = vld [vmem:[%s0 + $0x10] sm:$0xff]
    %v2807 = vld [vmem:[%s0 + $0x18] sm:$0xff]
    %v2810 = vcombine.low %v2806, %v2806
    %v2812 = vunpack.c.l.s4 1983009808
    %v2813 = vunpack.c.0.s8 %v2812
    %v2814 = vlaneseq
    %v2815 = vshrl.u32 %v2814, 7
    %v2816 = vsub.s32 %v2813, %v2815
    %v2817 = vrot.slane %v2810, %v2816
    %v2819 = vunpack.c.l.s4 1983009808
    %v2820 = vunpack.c.0.s8 %v2819
    %v2821 = vlaneseq
    %v2822 = vshrl.u32 %v2821, 7
    %v2823 = vsub.s32 %v2820, %v2822
    %v2824 = vrot.slane %v2806, %v2823
    %v2825 = vcombine.low %v2807, %v2807
    %v2827 = vunpack.c.l.s4 1983009808
    %v2828 = vunpack.c.0.s8 %v2827
    %v2829 = vlaneseq
    %v2830 = vshrl.u32 %v2829, 7
    %v2831 = vsub.s32 %v2828, %v2830
    %v2832 = vrot.slane %v2825, %v2831
    %v2834 = vunpack.c.l.s4 1983009808
    %v2835 = vunpack.c.0.s8 %v2834
    %v2836 = vlaneseq
    %v2837 = vshrl.u32 %v2836, 7
    %v2838 = vsub.s32 %v2835, %v2837
    %v2839 = vrot.slane %v2807, %v2838
    %2840 = vrot.lane.b32.xlu0 %v2817, 94
    %v2841 = vpop.permute.xlu0 %2840
    %2842 = vrot.lane.b32.xlu0 %v2824, 94
    %v2843 = vpop.permute.xlu0 %2842
    %2844 = vrot.lane.b32.xlu0 %v2832, 94
    %v2845 = vpop.permute.xlu0 %2844
    %2846 = vrot.lane.b32.xlu0 %v2839, 94
    %v2847 = vpop.permute.xlu0 %2846
    %v2848 = vrot.slane %v2841, 4
    %v2849 = vrot.slane %v2843, 4
    %v2850 = vrot.slane %v2845, 4
    %v2851 = vrot.slane %v2847, 4
    %v2852 = vsel %vm157, %v2848, %v2849
    %v2853 = vsel %vm612, %v2841, %v2852
    %v2854 = vsel %vm157, %v2849, %v2850
    %v2855 = vsel %vm612, %v2843, %v2854
    %v2856 = vsel %vm157, %v2850, %v2851
    %v2857 = vsel %vm612, %v2845, %v2856
    %v2858 = vsel %vm612, %v2847, %v2851
    %2863 = vst [vmem:[#allocation2 + $0x60] sm:$0xcc] %v2853
    %2864 = vst [vmem:[#allocation2 + $0x68] sm:$0xcc] %v2855
    %2865 = vst [vmem:[#allocation2 + $0x70] sm:$0xcc] %v2857
    %2866 = vst.msk [vmem:[#allocation2 + $0x78] sm:$0xc] %vm2502, %v2858
    %v2867 = vld [vmem:[%s0 + $0x10] sm:$0xff]
    %v2868 = vld [vmem:[%s0 + $0x18] sm:$0xff]
    %v2871 = vcombine.high %v2867, %v2867
    %v2873 = vunpack.c.l.s4 1983009808
    %v2874 = vunpack.c.0.s8 %v2873
    %v2875 = vlaneseq
    %v2876 = vshrl.u32 %v2875, 7
    %v2877 = vsub.s32 %v2874, %v2876
    %v2878 = vrot.slane %v2867, %v2877
    %v2880 = vunpack.c.l.s4 1983009808
    %v2881 = vunpack.c.0.s8 %v2880
    %v2882 = vlaneseq
    %v2883 = vshrl.u32 %v2882, 7
    %v2884 = vsub.s32 %v2881, %v2883
    %v2885 = vrot.slane %v2871, %v2884
    %v2886 = vcombine.high %v2868, %v2868
    %v2888 = vunpack.c.l.s4 1983009808
    %v2889 = vunpack.c.0.s8 %v2888
    %v2890 = vlaneseq
    %v2891 = vshrl.u32 %v2890, 7
    %v2892 = vsub.s32 %v2889, %v2891
    %v2893 = vrot.slane %v2868, %v2892
    %v2895 = vunpack.c.l.s4 1983009808
    %v2896 = vunpack.c.0.s8 %v2895
    %v2897 = vlaneseq
    %v2898 = vshrl.u32 %v2897, 7
    %v2899 = vsub.s32 %v2896, %v2898
    %v2900 = vrot.slane %v2886, %v2899
    %2901 = vrot.lane.b32.xlu0 %v2878, 93
    %v2902 = vpop.permute.xlu0 %2901
    %2903 = vrot.lane.b32.xlu0 %v2885, 93
    %v2904 = vpop.permute.xlu0 %2903
    %2905 = vrot.lane.b32.xlu0 %v2893, 93
    %v2906 = vpop.permute.xlu0 %2905
    %2907 = vrot.lane.b32.xlu0 %v2900, 93
    %v2908 = vpop.permute.xlu0 %2907
    %v2909 = vrot.slane %v2902, 4
    %v2910 = vrot.slane %v2904, 4
    %v2911 = vrot.slane %v2906, 4
    %v2912 = vrot.slane %v2908, 4
    %v2913 = vsel %vm157, %v2909, %v2910
    %v2914 = vsel %vm687, %v2902, %v2913
    %v2915 = vsel %vm157, %v2910, %v2911
    %v2916 = vsel %vm687, %v2904, %v2915
    %v2917 = vsel %vm157, %v2911, %v2912
    %v2918 = vsel %vm687, %v2906, %v2917
    %v2919 = vsel %vm687, %v2908, %v2912
    %2924 = vst [vmem:[#allocation2 + $0x80] sm:$0x33] %v2914
    %2925 = vst [vmem:[#allocation2 + $0x88] sm:$0x33] %v2916
    %2926 = vst [vmem:[#allocation2 + $0x90] sm:$0x33] %v2918
    %2927 = vst.msk [vmem:[#allocation2 + $0x98] sm:$0x3] %vm2441, %v2919
    %v2928 = vld [vmem:[%s0 + $0x10] sm:$0xff]
    %v2929 = vld [vmem:[%s0 + $0x18] sm:$0xff]
    %v2932 = vcombine.low %v2928, %v2928
    %v2934 = vunpack.c.l.s4 1983009808
    %v2935 = vunpack.c.0.s8 %v2934
    %v2936 = vlaneseq
    %v2937 = vshrl.u32 %v2936, 7
    %v2938 = vsub.s32 %v2935, %v2937
    %v2939 = vrot.slane %v2932, %v2938
    %v2941 = vunpack.c.l.s4 1983009808
    %v2942 = vunpack.c.0.s8 %v2941
    %v2943 = vlaneseq
    %v2944 = vshrl.u32 %v2943, 7
    %v2945 = vsub.s32 %v2942, %v2944
    %v2946 = vrot.slane %v2928, %v2945
    %v2947 = vcombine.low %v2929, %v2929
    %v2949 = vunpack.c.l.s4 1983009808
    %v2950 = vunpack.c.0.s8 %v2949
    %v2951 = vlaneseq
    %v2952 = vshrl.u32 %v2951, 7
    %v2953 = vsub.s32 %v2950, %v2952
    %v2954 = vrot.slane %v2947, %v2953
    %v2956 = vunpack.c.l.s4 1983009808
    %v2957 = vunpack.c.0.s8 %v2956
    %v2958 = vlaneseq
    %v2959 = vshrl.u32 %v2958, 7
    %v2960 = vsub.s32 %v2957, %v2959
    %v2961 = vrot.slane %v2929, %v2960
    %2962 = vrot.lane.b32.xlu0 %v2939, 92
    %v2963 = vpop.permute.xlu0 %2962
    %2964 = vrot.lane.b32.xlu0 %v2946, 92
    %v2965 = vpop.permute.xlu0 %2964
    %2966 = vrot.lane.b32.xlu0 %v2954, 92
    %v2967 = vpop.permute.xlu0 %2966
    %2968 = vrot.lane.b32.xlu0 %v2961, 92
    %v2969 = vpop.permute.xlu0 %2968
    %v2970 = vrot.slane %v2963, 4
    %v2971 = vrot.slane %v2965, 4
    %v2972 = vrot.slane %v2967, 4
    %v2973 = vrot.slane %v2969, 4
    %v2974 = vsel %vm157, %v2970, %v2971
    %v2975 = vsel %vm763, %v2963, %v2974
    %v2976 = vsel %vm157, %v2971, %v2972
    %v2977 = vsel %vm763, %v2965, %v2976
    %v2978 = vsel %vm157, %v2972, %v2973
    %v2979 = vsel %vm763, %v2967, %v2978
    %v2980 = vsel %vm763, %v2969, %v2973
    %2985 = vst [vmem:[#allocation2 + $0x80] sm:$0xcc] %v2975
    %2986 = vst [vmem:[#allocation2 + $0x88] sm:$0xcc] %v2977
    %2987 = vst [vmem:[#allocation2 + $0x90] sm:$0xcc] %v2979
    %2988 = vst.msk [vmem:[#allocation2 + $0x98] sm:$0xc] %vm2502, %v2980
    %v2989 = vld [vmem:[%s0 + $0x10] sm:$0xff]
    %v2990 = vld [vmem:[%s0 + $0x18] sm:$0xff]
    %v2993 = vcombine.high %v2989, %v2989
    %v2995 = vunpack.c.l.s4 1983009808
    %v2996 = vunpack.c.0.s8 %v2995
    %v2997 = vlaneseq
    %v2998 = vshrl.u32 %v2997, 7
    %v2999 = vsub.s32 %v2996, %v2998
    %v3000 = vrot.slane %v2989, %v2999
    %v3002 = vunpack.c.l.s4 1983009808
    %v3003 = vunpack.c.0.s8 %v3002
    %v3004 = vlaneseq
    %v3005 = vshrl.u32 %v3004, 7
    %v3006 = vsub.s32 %v3003, %v3005
    %v3007 = vrot.slane %v2993, %v3006
    %v3008 = vcombine.high %v2990, %v2990
    %v3010 = vunpack.c.l.s4 1983009808
    %v3011 = vunpack.c.0.s8 %v3010
    %v3012 = vlaneseq
    %v3013 = vshrl.u32 %v3012, 7
    %v3014 = vsub.s32 %v3011, %v3013
    %v3015 = vrot.slane %v2990, %v3014
    %v3017 = vunpack.c.l.s4 1983009808
    %v3018 = vunpack.c.0.s8 %v3017
    %v3019 = vlaneseq
    %v3020 = vshrl.u32 %v3019, 7
    %v3021 = vsub.s32 %v3018, %v3020
    %v3022 = vrot.slane %v3008, %v3021
    %3023 = vrot.lane.b32.xlu0 %v3000, 64
    %v3024 = vpop.permute.xlu0 %3023
    %3025 = vrot.lane.b32.xlu0 %v3007, 64
    %v3026 = vpop.permute.xlu0 %3025
    %3027 = vrot.lane.b32.xlu0 %v3015, 64
    %v3028 = vpop.permute.xlu0 %3027
    %3029 = vrot.lane.b32.xlu0 %v3022, 64
    %v3030 = vpop.permute.xlu0 %3029
    %v3031 = vrot.slane %v3024, 4
    %v3032 = vrot.slane %v3026, 4
    %v3033 = vrot.slane %v3028, 4
    %v3034 = vrot.slane %v3030, 4
    %v3035 = vsel %vm157, %v3031, %v3032
    %v3036 = vsel %vm838, %v3024, %v3035
    %v3037 = vsel %vm157, %v3032, %v3033
    %v3038 = vsel %vm838, %v3026, %v3037
    %v3039 = vsel %vm157, %v3033, %v3034
    %v3040 = vsel %vm838, %v3028, %v3039
    %v3041 = vsel %vm838, %v3030, %v3034
    %3046 = vst [vmem:[#allocation2 + $0xa0] sm:$0x33] %v3036
    %3047 = vst [vmem:[#allocation2 + $0xa8] sm:$0x33] %v3038
    %3048 = vst [vmem:[#allocation2 + $0xb0] sm:$0x33] %v3040
    %3049 = vst.msk [vmem:[#allocation2 + $0xb8] sm:$0x3] %vm2441, %v3041
    %v3050 = vld [vmem:[%s0 + $0x10] sm:$0xff]
    %v3051 = vld [vmem:[%s0 + $0x18] sm:$0xff]
    %v3054 = vcombine.low %v3050, %v3050
    %v3056 = vunpack.c.l.s4 1983009808
    %v3057 = vunpack.c.0.s8 %v3056
    %v3058 = vlaneseq
    %v3059 = vshrl.u32 %v3058, 7
    %v3060 = vsub.s32 %v3057, %v3059
    %v3061 = vrot.slane %v3054, %v3060
    %v3063 = vunpack.c.l.s4 1983009808
    %v3064 = vunpack.c.0.s8 %v3063
    %v3065 = vlaneseq
    %v3066 = vshrl.u32 %v3065, 7
    %v3067 = vsub.s32 %v3064, %v3066
    %v3068 = vrot.slane %v3050, %v3067
    %v3069 = vcombine.low %v3051, %v3051
    %v3071 = vunpack.c.l.s4 1983009808
    %v3072 = vunpack.c.0.s8 %v3071
    %v3073 = vlaneseq
    %v3074 = vshrl.u32 %v3073, 7
    %v3075 = vsub.s32 %v3072, %v3074
    %v3076 = vrot.slane %v3069, %v3075
    %v3078 = vunpack.c.l.s4 1983009808
    %v3079 = vunpack.c.0.s8 %v3078
    %v3080 = vlaneseq
    %v3081 = vshrl.u32 %v3080, 7
    %v3082 = vsub.s32 %v3079, %v3081
    %v3083 = vrot.slane %v3051, %v3082
    %3084 = vrot.lane.b32.xlu0 %v3061, 63
    %v3085 = vpop.permute.xlu0 %3084
    %3086 = vrot.lane.b32.xlu0 %v3068, 63
    %v3087 = vpop.permute.xlu0 %3086
    %3088 = vrot.lane.b32.xlu0 %v3076, 63
    %v3089 = vpop.permute.xlu0 %3088
    %3090 = vrot.lane.b32.xlu0 %v3083, 63
    %v3091 = vpop.permute.xlu0 %3090
    %v3092 = vrot.slane %v3085, 4
    %v3093 = vrot.slane %v3087, 4
    %v3094 = vrot.slane %v3089, 4
    %v3095 = vrot.slane %v3091, 4
    %v3096 = vsel %vm157, %v3092, %v3093
    %v3097 = vsel %vm914, %v3085, %v3096
    %v3098 = vsel %vm157, %v3093, %v3094
    %v3099 = vsel %vm914, %v3087, %v3098
    %v3100 = vsel %vm157, %v3094, %v3095
    %v3101 = vsel %vm914, %v3089, %v3100
    %v3102 = vsel %vm914, %v3091, %v3095
    %3107 = vst [vmem:[#allocation2 + $0xa0] sm:$0xcc] %v3097
    %3108 = vst [vmem:[#allocation2 + $0xa8] sm:$0xcc] %v3099
    %3109 = vst [vmem:[#allocation2 + $0xb0] sm:$0xcc] %v3101
    %3110 = vst.msk [vmem:[#allocation2 + $0xb8] sm:$0xc] %vm2502, %v3102
    %v3111 = vld [vmem:[%s0 + $0x10] sm:$0xff]
    %v3112 = vld [vmem:[%s0 + $0x18] sm:$0xff]
    %v3115 = vcombine.high %v3111, %v3111
    %v3117 = vunpack.c.l.s4 1983009808
    %v3118 = vunpack.c.0.s8 %v3117
    %v3119 = vlaneseq
    %v3120 = vshrl.u32 %v3119, 7
    %v3121 = vsub.s32 %v3118, %v3120
    %v3122 = vrot.slane %v3111, %v3121
    %v3124 = vunpack.c.l.s4 1983009808
    %v3125 = vunpack.c.0.s8 %v3124
    %v3126 = vlaneseq
    %v3127 = vshrl.u32 %v3126, 7
    %v3128 = vsub.s32 %v3125, %v3127
    %v3129 = vrot.slane %v3115, %v3128
    %v3130 = vcombine.high %v3112, %v3112
    %v3132 = vunpack.c.l.s4 1983009808
    %v3133 = vunpack.c.0.s8 %v3132
    %v3134 = vlaneseq
    %v3135 = vshrl.u32 %v3134, 7
    %v3136 = vsub.s32 %v3133, %v3135
    %v3137 = vrot.slane %v3112, %v3136
    %v3139 = vunpack.c.l.s4 1983009808
    %v3140 = vunpack.c.0.s8 %v3139
    %v3141 = vlaneseq
    %v3142 = vshrl.u32 %v3141, 7
    %v3143 = vsub.s32 %v3140, %v3142
    %v3144 = vrot.slane %v3130, %v3143
    %3145 = vrot.lane.b32.xlu0 %v3122, 62
    %v3146 = vpop.permute.xlu0 %3145
    %3147 = vrot.lane.b32.xlu0 %v3129, 62
    %v3148 = vpop.permute.xlu0 %3147
    %3149 = vrot.lane.b32.xlu0 %v3137, 62
    %v3150 = vpop.permute.xlu0 %3149
    %3151 = vrot.lane.b32.xlu0 %v3144, 62
    %v3152 = vpop.permute.xlu0 %3151
    %v3153 = vrot.slane %v3146, 4
    %v3154 = vrot.slane %v3148, 4
    %v3155 = vrot.slane %v3150, 4
    %v3156 = vrot.slane %v3152, 4
    %v3157 = vsel %vm157, %v3153, %v3154
    %v3158 = vsel %vm989, %v3146, %v3157
    %v3159 = vsel %vm157, %v3154, %v3155
    %v3160 = vsel %vm989, %v3148, %v3159
    %v3161 = vsel %vm157, %v3155, %v3156
    %v3162 = vsel %vm989, %v3150, %v3161
    %v3163 = vsel %vm989, %v3152, %v3156
    %3168 = vst [vmem:[#allocation2 + $0xc0] sm:$0x33] %v3158
    %3169 = vst [vmem:[#allocation2 + $0xc8] sm:$0x33] %v3160
    %3170 = vst [vmem:[#allocation2 + $0xd0] sm:$0x33] %v3162
    %3171 = vst.msk [vmem:[#allocation2 + $0xd8] sm:$0x3] %vm2441, %v3163
    %v3172 = vld [vmem:[%s0 + $0x10] sm:$0xff]
    %v3173 = vld [vmem:[%s0 + $0x18] sm:$0xff]
    %v3176 = vcombine.low %v3172, %v3172
    %v3178 = vunpack.c.l.s4 1983009808
    %v3179 = vunpack.c.0.s8 %v3178
    %v3180 = vlaneseq
    %v3181 = vshrl.u32 %v3180, 7
    %v3182 = vsub.s32 %v3179, %v3181
    %v3183 = vrot.slane %v3176, %v3182
    %v3185 = vunpack.c.l.s4 1983009808
    %v3186 = vunpack.c.0.s8 %v3185
    %v3187 = vlaneseq
    %v3188 = vshrl.u32 %v3187, 7
    %v3189 = vsub.s32 %v3186, %v3188
    %v3190 = vrot.slane %v3172, %v3189
    %v3191 = vcombine.low %v3173, %v3173
    %v3193 = vunpack.c.l.s4 1983009808
    %v3194 = vunpack.c.0.s8 %v3193
    %v3195 = vlaneseq
    %v3196 = vshrl.u32 %v3195, 7
    %v3197 = vsub.s32 %v3194, %v3196
    %v3198 = vrot.slane %v3191, %v3197
    %v3200 = vunpack.c.l.s4 1983009808
    %v3201 = vunpack.c.0.s8 %v3200
    %v3202 = vlaneseq
    %v3203 = vshrl.u32 %v3202, 7
    %v3204 = vsub.s32 %v3201, %v3203
    %v3205 = vrot.slane %v3173, %v3204
    %3206 = vrot.lane.b32.xlu0 %v3183, 61
    %v3207 = vpop.permute.xlu0 %3206
    %3208 = vrot.lane.b32.xlu0 %v3190, 61
    %v3209 = vpop.permute.xlu0 %3208
    %3210 = vrot.lane.b32.xlu0 %v3198, 61
    %v3211 = vpop.permute.xlu0 %3210
    %3212 = vrot.lane.b32.xlu0 %v3205, 61
    %v3213 = vpop.permute.xlu0 %3212
    %v3214 = vrot.slane %v3207, 4
    %v3215 = vrot.slane %v3209, 4
    %v3216 = vrot.slane %v3211, 4
    %v3217 = vrot.slane %v3213, 4
    %v3218 = vsel %vm157, %v3214, %v3215
    %v3219 = vsel %vm1065, %v3207, %v3218
    %v3220 = vsel %vm157, %v3215, %v3216
    %v3221 = vsel %vm1065, %v3209, %v3220
    %v3222 = vsel %vm157, %v3216, %v3217
    %v3223 = vsel %vm1065, %v3211, %v3222
    %v3224 = vsel %vm1065, %v3213, %v3217
    %3229 = vst [vmem:[#allocation2 + $0xc0] sm:$0xcc] %v3219
    %3230 = vst [vmem:[#allocation2 + $0xc8] sm:$0xcc] %v3221
    %3231 = vst [vmem:[#allocation2 + $0xd0] sm:$0xcc] %v3223
    %3232 = vst.msk [vmem:[#allocation2 + $0xd8] sm:$0xc] %vm2502, %v3224
    %v3233 = vld [vmem:[%s0 + $0x10] sm:$0xff]
    %v3234 = vld [vmem:[%s0 + $0x18] sm:$0xff]
    %v3237 = vcombine.high %v3233, %v3233
    %v3239 = vunpack.c.l.s4 1983009808
    %v3240 = vunpack.c.0.s8 %v3239
    %v3241 = vlaneseq
    %v3242 = vshrl.u32 %v3241, 7
    %v3243 = vsub.s32 %v3240, %v3242
    %v3244 = vrot.slane %v3233, %v3243
    %v3246 = vunpack.c.l.s4 1983009808
    %v3247 = vunpack.c.0.s8 %v3246
    %v3248 = vlaneseq
    %v3249 = vshrl.u32 %v3248, 7
    %v3250 = vsub.s32 %v3247, %v3249
    %v3251 = vrot.slane %v3237, %v3250
    %v3252 = vcombine.high %v3234, %v3234
    %v3254 = vunpack.c.l.s4 1983009808
    %v3255 = vunpack.c.0.s8 %v3254
    %v3256 = vlaneseq
    %v3257 = vshrl.u32 %v3256, 7
    %v3258 = vsub.s32 %v3255, %v3257
    %v3259 = vrot.slane %v3234, %v3258
    %v3261 = vunpack.c.l.s4 1983009808
    %v3262 = vunpack.c.0.s8 %v3261
    %v3263 = vlaneseq
    %v3264 = vshrl.u32 %v3263, 7
    %v3265 = vsub.s32 %v3262, %v3264
    %v3266 = vrot.slane %v3252, %v3265
    %3267 = vrot.lane.b32.xlu0 %v3244, 60
    %v3268 = vpop.permute.xlu0 %3267
    %3269 = vrot.lane.b32.xlu0 %v3251, 60
    %v3270 = vpop.permute.xlu0 %3269
    %3271 = vrot.lane.b32.xlu0 %v3259, 60
    %v3272 = vpop.permute.xlu0 %3271
    %3273 = vrot.lane.b32.xlu0 %v3266, 60
    %v3274 = vpop.permute.xlu0 %3273
    %v3275 = vrot.slane %v3268, 4
    %v3276 = vrot.slane %v3270, 4
    %v3277 = vrot.slane %v3272, 4
    %v3278 = vrot.slane %v3274, 4
    %v3279 = vsel %vm157, %v3275, %v3276
    %v3280 = vsel %vm1140, %v3268, %v3279
    %v3281 = vsel %vm157, %v3276, %v3277
    %v3282 = vsel %vm1140, %v3270, %v3281
    %v3283 = vsel %vm157, %v3277, %v3278
    %v3284 = vsel %vm1140, %v3272, %v3283
    %v3285 = vsel %vm1140, %v3274, %v3278
    %3290 = vst [vmem:[#allocation2 + $0xe0] sm:$0x33] %v3280
    %3291 = vst [vmem:[#allocation2 + $0xe8] sm:$0x33] %v3282
    %3292 = vst [vmem:[#allocation2 + $0xf0] sm:$0x33] %v3284
    %3293 = vst.msk [vmem:[#allocation2 + $0xf8] sm:$0x3] %vm2441, %v3285
    %v3294 = vld [vmem:[%s0 + $0x10] sm:$0xff]
    %v3295 = vld [vmem:[%s0 + $0x18] sm:$0xff]
    %v3298 = vcombine.low %v3294, %v3294
    %v3300 = vunpack.c.l.s4 1983009808
    %v3301 = vunpack.c.0.s8 %v3300
    %v3302 = vlaneseq
    %v3303 = vshrl.u32 %v3302, 7
    %v3304 = vsub.s32 %v3301, %v3303
    %v3305 = vrot.slane %v3298, %v3304
    %v3307 = vunpack.c.l.s4 1983009808
    %v3308 = vunpack.c.0.s8 %v3307
    %v3309 = vlaneseq
    %v3310 = vshrl.u32 %v3309, 7
    %v3311 = vsub.s32 %v3308, %v3310
    %v3312 = vrot.slane %v3294, %v3311
    %v3313 = vcombine.low %v3295, %v3295
    %v3315 = vunpack.c.l.s4 1983009808
    %v3316 = vunpack.c.0.s8 %v3315
    %v3317 = vlaneseq
    %v3318 = vshrl.u32 %v3317, 7
    %v3319 = vsub.s32 %v3316, %v3318
    %v3320 = vrot.slane %v3313, %v3319
    %v3322 = vunpack.c.l.s4 1983009808
    %v3323 = vunpack.c.0.s8 %v3322
    %v3324 = vlaneseq
    %v3325 = vshrl.u32 %v3324, 7
    %v3326 = vsub.s32 %v3323, %v3325
    %v3327 = vrot.slane %v3295, %v3326
    %3328 = vrot.lane.b32.xlu0 %v3305, 32
    %v3329 = vpop.permute.xlu0 %3328
    %3330 = vrot.lane.b32.xlu0 %v3312, 32
    %v3331 = vpop.permute.xlu0 %3330
    %3332 = vrot.lane.b32.xlu0 %v3320, 32
    %v3333 = vpop.permute.xlu0 %3332
    %3334 = vrot.lane.b32.xlu0 %v3327, 32
    %v3335 = vpop.permute.xlu0 %3334
    %v3336 = vrot.slane %v3329, 4
    %v3337 = vrot.slane %v3331, 4
    %v3338 = vrot.slane %v3333, 4
    %v3339 = vrot.slane %v3335, 4
    %v3340 = vsel %vm157, %v3336, %v3337
    %v3341 = vsel %vm1216, %v3329, %v3340
    %v3342 = vsel %vm157, %v3337, %v3338
    %v3343 = vsel %vm1216, %v3331, %v3342
    %v3344 = vsel %vm157, %v3338, %v3339
    %v3345 = vsel %vm1216, %v3333, %v3344
    %v3346 = vsel %vm1216, %v3335, %v3339
    %3351 = vst [vmem:[#allocation2 + $0xe0] sm:$0xcc] %v3341
    %3352 = vst [vmem:[#allocation2 + $0xe8] sm:$0xcc] %v3343
    %3353 = vst [vmem:[#allocation2 + $0xf0] sm:$0xcc] %v3345
    %3354 = vst.msk [vmem:[#allocation2 + $0xf8] sm:$0xc] %vm2502, %v3346
    %v3355 = vld [vmem:[%s0 + $0x10] sm:$0xff]
    %v3356 = vld [vmem:[%s0 + $0x18] sm:$0xff]
    %v3359 = vcombine.high %v3355, %v3355
    %v3361 = vunpack.c.l.s4 1983009808
    %v3362 = vunpack.c.0.s8 %v3361
    %v3363 = vlaneseq
    %v3364 = vshrl.u32 %v3363, 7
    %v3365 = vsub.s32 %v3362, %v3364
    %v3366 = vrot.slane %v3355, %v3365
    %v3368 = vunpack.c.l.s4 1983009808
    %v3369 = vunpack.c.0.s8 %v3368
    %v3370 = vlaneseq
    %v3371 = vshrl.u32 %v3370, 7
    %v3372 = vsub.s32 %v3369, %v3371
    %v3373 = vrot.slane %v3359, %v3372
    %v3374 = vcombine.high %v3356, %v3356
    %v3376 = vunpack.c.l.s4 1983009808
    %v3377 = vunpack.c.0.s8 %v3376
    %v3378 = vlaneseq
    %v3379 = vshrl.u32 %v3378, 7
    %v3380 = vsub.s32 %v3377, %v3379
    %v3381 = vrot.slane %v3356, %v3380
    %v3383 = vunpack.c.l.s4 1983009808
    %v3384 = vunpack.c.0.s8 %v3383
    %v3385 = vlaneseq
    %v3386 = vshrl.u32 %v3385, 7
    %v3387 = vsub.s32 %v3384, %v3386
    %v3388 = vrot.slane %v3374, %v3387
    %3389 = vrot.lane.b32.xlu0 %v3366, 31
    %v3390 = vpop.permute.xlu0 %3389
    %3391 = vrot.lane.b32.xlu0 %v3373, 31
    %v3392 = vpop.permute.xlu0 %3391
    %3393 = vrot.lane.b32.xlu0 %v3381, 31
    %v3394 = vpop.permute.xlu0 %3393
    %3395 = vrot.lane.b32.xlu0 %v3388, 31
    %v3396 = vpop.permute.xlu0 %3395
    %v3397 = vrot.slane %v3390, 4
    %v3398 = vrot.slane %v3392, 4
    %v3399 = vrot.slane %v3394, 4
    %v3400 = vrot.slane %v3396, 4
    %v3401 = vsel %vm157, %v3397, %v3398
    %v3402 = vsel %vm1291, %v3390, %v3401
    %v3403 = vsel %vm157, %v3398, %v3399
    %v3404 = vsel %vm1291, %v3392, %v3403
    %v3405 = vsel %vm157, %v3399, %v3400
    %v3406 = vsel %vm1291, %v3394, %v3405
    %v3407 = vsel %vm1291, %v3396, %v3400
    %3412 = vst [vmem:[#allocation2 + $0x100] sm:$0x33] %v3402
    %3413 = vst [vmem:[#allocation2 + $0x108] sm:$0x33] %v3404
    %3414 = vst [vmem:[#allocation2 + $0x110] sm:$0x33] %v3406
    %3415 = vst.msk [vmem:[#allocation2 + $0x118] sm:$0x3] %vm2441, %v3407
    %v3416 = vld [vmem:[%s0 + $0x10] sm:$0xff]
    %v3417 = vld [vmem:[%s0 + $0x18] sm:$0xff]
    %v3420 = vcombine.low %v3416, %v3416
    %v3422 = vunpack.c.l.s4 1983009808
    %v3423 = vunpack.c.0.s8 %v3422
    %v3424 = vlaneseq
    %v3425 = vshrl.u32 %v3424, 7
    %v3426 = vsub.s32 %v3423, %v3425
    %v3427 = vrot.slane %v3420, %v3426
    %v3429 = vunpack.c.l.s4 1983009808
    %v3430 = vunpack.c.0.s8 %v3429
    %v3431 = vlaneseq
    %v3432 = vshrl.u32 %v3431, 7
    %v3433 = vsub.s32 %v3430, %v3432
    %v3434 = vrot.slane %v3416, %v3433
    %v3435 = vcombine.low %v3417, %v3417
    %v3437 = vunpack.c.l.s4 1983009808
    %v3438 = vunpack.c.0.s8 %v3437
    %v3439 = vlaneseq
    %v3440 = vshrl.u32 %v3439, 7
    %v3441 = vsub.s32 %v3438, %v3440
    %v3442 = vrot.slane %v3435, %v3441
    %v3444 = vunpack.c.l.s4 1983009808
    %v3445 = vunpack.c.0.s8 %v3444
    %v3446 = vlaneseq
    %v3447 = vshrl.u32 %v3446, 7
    %v3448 = vsub.s32 %v3445, %v3447
    %v3449 = vrot.slane %v3417, %v3448
    %3450 = vrot.lane.b32.xlu0 %v3427, 30
    %v3451 = vpop.permute.xlu0 %3450
    %3452 = vrot.lane.b32.xlu0 %v3434, 30
    %v3453 = vpop.permute.xlu0 %3452
    %3454 = vrot.lane.b32.xlu0 %v3442, 30
    %v3455 = vpop.permute.xlu0 %3454
    %3456 = vrot.lane.b32.xlu0 %v3449, 30
    %v3457 = vpop.permute.xlu0 %3456
    %v3458 = vrot.slane %v3451, 4
    %v3459 = vrot.slane %v3453, 4
    %v3460 = vrot.slane %v3455, 4
    %v3461 = vrot.slane %v3457, 4
    %v3462 = vsel %vm157, %v3458, %v3459
    %v3463 = vsel %vm1367, %v3451, %v3462
    %v3464 = vsel %vm157, %v3459, %v3460
    %v3465 = vsel %vm1367, %v3453, %v3464
    %v3466 = vsel %vm157, %v3460, %v3461
    %v3467 = vsel %vm1367, %v3455, %v3466
    %v3468 = vsel %vm1367, %v3457, %v3461
    %3473 = vst [vmem:[#allocation2 + $0x100] sm:$0xcc] %v3463
    %3474 = vst [vmem:[#allocation2 + $0x108] sm:$0xcc] %v3465
    %3475 = vst [vmem:[#allocation2 + $0x110] sm:$0xcc] %v3467
    %3476 = vst.msk [vmem:[#allocation2 + $0x118] sm:$0xc] %vm2502, %v3468
    %v3477 = vld [vmem:[%s0 + $0x10] sm:$0xff]
    %v3478 = vld [vmem:[%s0 + $0x18] sm:$0xff]
    %v3481 = vcombine.high %v3477, %v3477
    %v3483 = vunpack.c.l.s4 1983009808
    %v3484 = vunpack.c.0.s8 %v3483
    %v3485 = vlaneseq
    %v3486 = vshrl.u32 %v3485, 7
    %v3487 = vsub.s32 %v3484, %v3486
    %v3488 = vrot.slane %v3477, %v3487
    %v3490 = vunpack.c.l.s4 1983009808
    %v3491 = vunpack.c.0.s8 %v3490
    %v3492 = vlaneseq
    %v3493 = vshrl.u32 %v3492, 7
    %v3494 = vsub.s32 %v3491, %v3493
    %v3495 = vrot.slane %v3481, %v3494
    %v3496 = vcombine.high %v3478, %v3478
    %v3498 = vunpack.c.l.s4 1983009808
    %v3499 = vunpack.c.0.s8 %v3498
    %v3500 = vlaneseq
    %v3501 = vshrl.u32 %v3500, 7
    %v3502 = vsub.s32 %v3499, %v3501
    %v3503 = vrot.slane %v3478, %v3502
    %v3505 = vunpack.c.l.s4 1983009808
    %v3506 = vunpack.c.0.s8 %v3505
    %v3507 = vlaneseq
    %v3508 = vshrl.u32 %v3507, 7
    %v3509 = vsub.s32 %v3506, %v3508
    %v3510 = vrot.slane %v3496, %v3509
    %3511 = vrot.lane.b32.xlu0 %v3488, 29
    %v3512 = vpop.permute.xlu0 %3511
    %3513 = vrot.lane.b32.xlu0 %v3495, 29
    %v3514 = vpop.permute.xlu0 %3513
    %3515 = vrot.lane.b32.xlu0 %v3503, 29
    %v3516 = vpop.permute.xlu0 %3515
    %3517 = vrot.lane.b32.xlu0 %v3510, 29
    %v3518 = vpop.permute.xlu0 %3517
    %v3519 = vrot.slane %v3512, 4
    %v3520 = vrot.slane %v3514, 4
    %v3521 = vrot.slane %v3516, 4
    %v3522 = vrot.slane %v3518, 4
    %v3523 = vsel %vm157, %v3519, %v3520
    %v3524 = vsel %vm1442, %v3512, %v3523
    %v3525 = vsel %vm157, %v3520, %v3521
    %v3526 = vsel %vm1442, %v3514, %v3525
    %v3527 = vsel %vm157, %v3521, %v3522
    %v3528 = vsel %vm1442, %v3516, %v3527
    %v3529 = vsel %vm1442, %v3518, %v3522
    %3534 = vst [vmem:[#allocation2 + $0x120] sm:$0x33] %v3524
    %3535 = vst [vmem:[#allocation2 + $0x128] sm:$0x33] %v3526
    %3536 = vst [vmem:[#allocation2 + $0x130] sm:$0x33] %v3528
    %3537 = vst.msk [vmem:[#allocation2 + $0x138] sm:$0x3] %vm2441, %v3529
    %v3538 = vld [vmem:[%s0 + $0x10] sm:$0xff]
    %v3539 = vld [vmem:[%s0 + $0x18] sm:$0xff]
    %v3542 = vcombine.low %v3538, %v3538
    %v3544 = vunpack.c.l.s4 1983009808
    %v3545 = vunpack.c.0.s8 %v3544
    %v3546 = vlaneseq
    %v3547 = vshrl.u32 %v3546, 7
    %v3548 = vsub.s32 %v3545, %v3547
    %v3549 = vrot.slane %v3542, %v3548
    %v3551 = vunpack.c.l.s4 1983009808
    %v3552 = vunpack.c.0.s8 %v3551
    %v3553 = vlaneseq
    %v3554 = vshrl.u32 %v3553, 7
    %v3555 = vsub.s32 %v3552, %v3554
    %v3556 = vrot.slane %v3538, %v3555
    %v3557 = vcombine.low %v3539, %v3539
    %v3559 = vunpack.c.l.s4 1983009808
    %v3560 = vunpack.c.0.s8 %v3559
    %v3561 = vlaneseq
    %v3562 = vshrl.u32 %v3561, 7
    %v3563 = vsub.s32 %v3560, %v3562
    %v3564 = vrot.slane %v3557, %v3563
    %v3566 = vunpack.c.l.s4 1983009808
    %v3567 = vunpack.c.0.s8 %v3566
    %v3568 = vlaneseq
    %v3569 = vshrl.u32 %v3568, 7
    %v3570 = vsub.s32 %v3567, %v3569
    %v3571 = vrot.slane %v3539, %v3570
    %3572 = vrot.lane.b32.xlu0 %v3549, 28
    %v3573 = vpop.permute.xlu0 %3572
    %3574 = vrot.lane.b32.xlu0 %v3556, 28
    %v3575 = vpop.permute.xlu0 %3574
    %3576 = vrot.lane.b32.xlu0 %v3564, 28
    %v3577 = vpop.permute.xlu0 %3576
    %3578 = vrot.lane.b32.xlu0 %v3571, 28
    %v3579 = vpop.permute.xlu0 %3578
    %v3580 = vrot.slane %v3573, 4
    %v3581 = vrot.slane %v3575, 4
    %v3582 = vrot.slane %v3577, 4
    %v3583 = vrot.slane %v3579, 4
    %v3584 = vsel %vm157, %v3580, %v3581
    %v3585 = vsel %vm1518, %v3573, %v3584
    %v3586 = vsel %vm157, %v3581, %v3582
    %v3587 = vsel %vm1518, %v3575, %v3586
    %v3588 = vsel %vm157, %v3582, %v3583
    %v3589 = vsel %vm1518, %v3577, %v3588
    %v3590 = vsel %vm1518, %v3579, %v3583
    %3595 = vst [vmem:[#allocation2 + $0x120] sm:$0xcc] %v3585
    %3596 = vst [vmem:[#allocation2 + $0x128] sm:$0xcc] %v3587
    %3597 = vst [vmem:[#allocation2 + $0x130] sm:$0xcc] %v3589
    %3598 = vst.msk [vmem:[#allocation2 + $0x138] sm:$0xc] %vm2502, %v3590
    %v3599 = vld [vmem:[%s0 + $0x12] sm:$0xff]
    %v3600 = vld [vmem:[%s0 + $0x1a] sm:$0x3f]
    %v3603 = vcombine.high %v3599, %v3599
    %v3605 = vunpack.c.l.s4 1983009808
    %v3606 = vunpack.c.0.s8 %v3605
    %v3607 = vlaneseq
    %v3608 = vshrl.u32 %v3607, 7
    %v3609 = vsub.s32 %v3606, %v3608
    %v3610 = vrot.slane %v3599, %v3609
    %v3612 = vunpack.c.l.s4 1983009808
    %v3613 = vunpack.c.0.s8 %v3612
    %v3614 = vlaneseq
    %v3615 = vshrl.u32 %v3614, 7
    %v3616 = vsub.s32 %v3613, %v3615
    %v3617 = vrot.slane %v3603, %v3616
    %v3618 = vcombine.high %v3600, %v3600
    %v3620 = vunpack.c.l.s4 1983009808
    %v3621 = vunpack.c.0.s8 %v3620
    %v3622 = vlaneseq
    %v3623 = vshrl.u32 %v3622, 7
    %v3624 = vsub.s32 %v3621, %v3623
    %v3625 = vrot.slane %v3600, %v3624
    %v3627 = vunpack.c.l.s4 1983009808
    %v3628 = vunpack.c.0.s8 %v3627
    %v3629 = vlaneseq
    %v3630 = vshrl.u32 %v3629, 7
    %v3631 = vsub.s32 %v3628, %v3630
    %v3632 = vrot.slane %v3618, %v3631
    %3637 = vst [vmem:[#allocation2 + $0x140] sm:$0x33] %v3610
    %3638 = vst [vmem:[#allocation2 + $0x148] sm:$0x33] %v3617
    %3639 = vst [vmem:[#allocation2 + $0x150] sm:$0x33] %v3625
    %3640 = vst.msk [vmem:[#allocation2 + $0x158] sm:$0x3] %vm2441, %v3632
    %v3641 = vld [vmem:[%s0 + $0x12] sm:$0xff]
    %v3642 = vld [vmem:[%s0 + $0x1a] sm:$0x3f]
    %v3645 = vcombine.low %v3641, %v3641
    %v3647 = vunpack.c.l.s4 1983009808
    %v3648 = vunpack.c.0.s8 %v3647
    %v3649 = vlaneseq
    %v3650 = vshrl.u32 %v3649, 7
    %v3651 = vsub.s32 %v3648, %v3650
    %v3652 = vrot.slane %v3645, %v3651
    %v3654 = vunpack.c.l.s4 1983009808
    %v3655 = vunpack.c.0.s8 %v3654
    %v3656 = vlaneseq
    %v3657 = vshrl.u32 %v3656, 7
    %v3658 = vsub.s32 %v3655, %v3657
    %v3659 = vrot.slane %v3641, %v3658
    %v3660 = vcombine.low %v3642, %v3642
    %v3662 = vunpack.c.l.s4 1983009808
    %v3663 = vunpack.c.0.s8 %v3662
    %v3664 = vlaneseq
    %v3665 = vshrl.u32 %v3664, 7
    %v3666 = vsub.s32 %v3663, %v3665
    %v3667 = vrot.slane %v3660, %v3666
    %v3669 = vunpack.c.l.s4 1983009808
    %v3670 = vunpack.c.0.s8 %v3669
    %v3671 = vlaneseq
    %v3672 = vshrl.u32 %v3671, 7
    %v3673 = vsub.s32 %v3670, %v3672
    %v3674 = vrot.slane %v3642, %v3673
    %3675 = vrot.lane.b32.xlu0 %v3652, 127
    %v3676 = vpop.permute.xlu0 %3675
    %3677 = vrot.lane.b32.xlu0 %v3659, 127
    %v3678 = vpop.permute.xlu0 %3677
    %3679 = vrot.lane.b32.xlu0 %v3667, 127
    %v3680 = vpop.permute.xlu0 %3679
    %3681 = vrot.lane.b32.xlu0 %v3674, 127
    %v3682 = vpop.permute.xlu0 %3681
    %v3683 = vrot.slane %v3676, 4
    %v3684 = vrot.slane %v3678, 4
    %v3685 = vrot.slane %v3680, 4
    %v3686 = vrot.slane %v3682, 4
    %v3687 = vsel %vm157, %v3683, %v3684
    %v3688 = vsel %vm159, %v3676, %v3687
    %v3689 = vsel %vm157, %v3684, %v3685
    %v3690 = vsel %vm159, %v3678, %v3689
    %v3691 = vsel %vm157, %v3685, %v3686
    %v3692 = vsel %vm159, %v3680, %v3691
    %3697 = vst [vmem:[#allocation2 + $0x140] sm:$0xcc] %v3688
    %3698 = vst [vmem:[#allocation2 + $0x148] sm:$0xcc] %v3690
    %3699 = vst [vmem:[#allocation2 + $0x150] sm:$0xcc] %v3692
    %3700 = vst.msk [vmem:[#allocation2 + $0x158] sm:$0xc] %vm2502, %v3682
    %v3701 = vld [vmem:[%s0 + $0x12] sm:$0xff]
    %v3702 = vld [vmem:[%s0 + $0x1a] sm:$0x3f]
    %v3705 = vcombine.high %v3701, %v3701
    %v3707 = vunpack.c.l.s4 1983009808
    %v3708 = vunpack.c.0.s8 %v3707
    %v3709 = vlaneseq
    %v3710 = vshrl.u32 %v3709, 7
    %v3711 = vsub.s32 %v3708, %v3710
    %v3712 = vrot.slane %v3701, %v3711
    %v3714 = vunpack.c.l.s4 1983009808
    %v3715 = vunpack.c.0.s8 %v3714
    %v3716 = vlaneseq
    %v3717 = vshrl.u32 %v3716, 7
    %v3718 = vsub.s32 %v3715, %v3717
    %v3719 = vrot.slane %v3705, %v3718
    %v3720 = vcombine.high %v3702, %v3702
    %v3722 = vunpack.c.l.s4 1983009808
    %v3723 = vunpack.c.0.s8 %v3722
    %v3724 = vlaneseq
    %v3725 = vshrl.u32 %v3724, 7
    %v3726 = vsub.s32 %v3723, %v3725
    %v3727 = vrot.slane %v3702, %v3726
    %v3729 = vunpack.c.l.s4 1983009808
    %v3730 = vunpack.c.0.s8 %v3729
    %v3731 = vlaneseq
    %v3732 = vshrl.u32 %v3731, 7
    %v3733 = vsub.s32 %v3730, %v3732
    %v3734 = vrot.slane %v3720, %v3733
    %3735 = vrot.lane.b32.xlu0 %v3712, 126
    %v3736 = vpop.permute.xlu0 %3735
    %3737 = vrot.lane.b32.xlu0 %v3719, 126
    %v3738 = vpop.permute.xlu0 %3737
    %3739 = vrot.lane.b32.xlu0 %v3727, 126
    %v3740 = vpop.permute.xlu0 %3739
    %3741 = vrot.lane.b32.xlu0 %v3734, 126
    %v3742 = vpop.permute.xlu0 %3741
    %v3743 = vrot.slane %v3736, 4
    %v3744 = vrot.slane %v3738, 4
    %v3745 = vrot.slane %v3740, 4
    %v3746 = vrot.slane %v3742, 4
    %v3747 = vsel %vm157, %v3743, %v3744
    %v3748 = vsel %vm234, %v3736, %v3747
    %v3749 = vsel %vm157, %v3744, %v3745
    %v3750 = vsel %vm234, %v3738, %v3749
    %v3751 = vsel %vm157, %v3745, %v3746
    %v3752 = vsel %vm234, %v3740, %v3751
    %3757 = vst [vmem:[#allocation2 + $0x160] sm:$0x33] %v3748
    %3758 = vst [vmem:[#allocation2 + $0x168] sm:$0x33] %v3750
    %3759 = vst [vmem:[#allocation2 + $0x170] sm:$0x33] %v3752
    %3760 = vst.msk [vmem:[#allocation2 + $0x178] sm:$0x3] %vm2441, %v3742
    %v3761 = vld [vmem:[%s0 + $0x12] sm:$0xff]
    %v3762 = vld [vmem:[%s0 + $0x1a] sm:$0x3f]
    %v3765 = vcombine.low %v3761, %v3761
    %v3767 = vunpack.c.l.s4 1983009808
    %v3768 = vunpack.c.0.s8 %v3767
    %v3769 = vlaneseq
    %v3770 = vshrl.u32 %v3769, 7
    %v3771 = vsub.s32 %v3768, %v3770
    %v3772 = vrot.slane %v3765, %v3771
    %v3774 = vunpack.c.l.s4 1983009808
    %v3775 = vunpack.c.0.s8 %v3774
    %v3776 = vlaneseq
    %v3777 = vshrl.u32 %v3776, 7
    %v3778 = vsub.s32 %v3775, %v3777
    %v3779 = vrot.slane %v3761, %v3778
    %v3780 = vcombine.low %v3762, %v3762
    %v3782 = vunpack.c.l.s4 1983009808
    %v3783 = vunpack.c.0.s8 %v3782
    %v3784 = vlaneseq
    %v3785 = vshrl.u32 %v3784, 7
    %v3786 = vsub.s32 %v3783, %v3785
    %v3787 = vrot.slane %v3780, %v3786
    %v3789 = vunpack.c.l.s4 1983009808
    %v3790 = vunpack.c.0.s8 %v3789
    %v3791 = vlaneseq
    %v3792 = vshrl.u32 %v3791, 7
    %v3793 = vsub.s32 %v3790, %v3792
    %v3794 = vrot.slane %v3762, %v3793
    %3795 = vrot.lane.b32.xlu0 %v3772, 125
    %v3796 = vpop.permute.xlu0 %3795
    %3797 = vrot.lane.b32.xlu0 %v3779, 125
    %v3798 = vpop.permute.xlu0 %3797
    %3799 = vrot.lane.b32.xlu0 %v3787, 125
    %v3800 = vpop.permute.xlu0 %3799
    %3801 = vrot.lane.b32.xlu0 %v3794, 125
    %v3802 = vpop.permute.xlu0 %3801
    %v3803 = vrot.slane %v3796, 4
    %v3804 = vrot.slane %v3798, 4
    %v3805 = vrot.slane %v3800, 4
    %v3806 = vrot.slane %v3802, 4
    %v3807 = vsel %vm157, %v3803, %v3804
    %v3808 = vsel %vm310, %v3796, %v3807
    %v3809 = vsel %vm157, %v3804, %v3805
    %v3810 = vsel %vm310, %v3798, %v3809
    %v3811 = vsel %vm157, %v3805, %v3806
    %v3812 = vsel %vm310, %v3800, %v3811
    %3817 = vst [vmem:[#allocation2 + $0x160] sm:$0xcc] %v3808
    %3818 = vst [vmem:[#allocation2 + $0x168] sm:$0xcc] %v3810
    %3819 = vst [vmem:[#allocation2 + $0x170] sm:$0xcc] %v3812
    %3820 = vst.msk [vmem:[#allocation2 + $0x178] sm:$0xc] %vm2502, %v3802
    %v3821 = vld [vmem:[%s0 + $0x12] sm:$0xff]
    %v3822 = vld [vmem:[%s0 + $0x1a] sm:$0x3f]
    %v3825 = vcombine.high %v3821, %v3821
    %v3827 = vunpack.c.l.s4 1983009808
    %v3828 = vunpack.c.0.s8 %v3827
    %v3829 = vlaneseq
    %v3830 = vshrl.u32 %v3829, 7
    %v3831 = vsub.s32 %v3828, %v3830
    %v3832 = vrot.slane %v3821, %v3831
    %v3834 = vunpack.c.l.s4 1983009808
    %v3835 = vunpack.c.0.s8 %v3834
    %v3836 = vlaneseq
    %v3837 = vshrl.u32 %v3836, 7
    %v3838 = vsub.s32 %v3835, %v3837
    %v3839 = vrot.slane %v3825, %v3838
    %v3840 = vcombine.high %v3822, %v3822
    %v3842 = vunpack.c.l.s4 1983009808
    %v3843 = vunpack.c.0.s8 %v3842
    %v3844 = vlaneseq
    %v3845 = vshrl.u32 %v3844, 7
    %v3846 = vsub.s32 %v3843, %v3845
    %v3847 = vrot.slane %v3822, %v3846
    %v3849 = vunpack.c.l.s4 1983009808
    %v3850 = vunpack.c.0.s8 %v3849
    %v3851 = vlaneseq
    %v3852 = vshrl.u32 %v3851, 7
    %v3853 = vsub.s32 %v3850, %v3852
    %v3854 = vrot.slane %v3840, %v3853
    %3855 = vrot.lane.b32.xlu0 %v3832, 124
    %v3856 = vpop.permute.xlu0 %3855
    %3857 = vrot.lane.b32.xlu0 %v3839, 124
    %v3858 = vpop.permute.xlu0 %3857
    %3859 = vrot.lane.b32.xlu0 %v3847, 124
    %v3860 = vpop.permute.xlu0 %3859
    %3861 = vrot.lane.b32.xlu0 %v3854, 124
    %v3862 = vpop.permute.xlu0 %3861
    %v3863 = vrot.slane %v3856, 4
    %v3864 = vrot.slane %v3858, 4
    %v3865 = vrot.slane %v3860, 4
    %v3866 = vrot.slane %v3862, 4
    %v3867 = vsel %vm157, %v3863, %v3864
    %v3868 = vsel %vm385, %v3856, %v3867
    %v3869 = vsel %vm157, %v3864, %v3865
    %v3870 = vsel %vm385, %v3858, %v3869
    %v3871 = vsel %vm157, %v3865, %v3866
    %v3872 = vsel %vm385, %v3860, %v3871
    %3877 = vst [vmem:[#allocation2 + $0x180] sm:$0x33] %v3868
    %3878 = vst [vmem:[#allocation2 + $0x188] sm:$0x33] %v3870
    %3879 = vst [vmem:[#allocation2 + $0x190] sm:$0x33] %v3872
    %3880 = vst.msk [vmem:[#allocation2 + $0x198] sm:$0x3] %vm2441, %v3862
    %v3881 = vld [vmem:[#allocation2] sm:$0xff]
    %v3882 = vld [vmem:[#allocation2 + $0x8] sm:$0xff]
    %v3883 = vld [vmem:[#allocation2 + $0x10] sm:$0xff]
    %v3884 = vld [vmem:[#allocation2 + $0x18] sm:$0xf]
    %v3885 = vld [vmem:[#allocation2 + $0x20] sm:$0xff]
    %v3886 = vld [vmem:[#allocation2 + $0x28] sm:$0xff]
    %v3887 = vld [vmem:[#allocation2 + $0x30] sm:$0xff]
    %v3888 = vld [vmem:[#allocation2 + $0x38] sm:$0xf]
    %v3889 = vld [vmem:[#allocation2 + $0x40] sm:$0xff]
    %v3890 = vld [vmem:[#allocation2 + $0x48] sm:$0xff]
    %v3891 = vld [vmem:[#allocation2 + $0x50] sm:$0xff]
    %v3892 = vld [vmem:[#allocation2 + $0x58] sm:$0xf]
    %v3893 = vld [vmem:[#allocation2 + $0x60] sm:$0xff]
    %v3894 = vld [vmem:[#allocation2 + $0x68] sm:$0xff]
    %v3895 = vld [vmem:[#allocation2 + $0x70] sm:$0xff]
    %v3896 = vld [vmem:[#allocation2 + $0x78] sm:$0xf]
    %v3897 = vld [vmem:[#allocation2 + $0x80] sm:$0xff]
    %v3898 = vld [vmem:[#allocation2 + $0x88] sm:$0xff]
    %v3899 = vld [vmem:[#allocation2 + $0x90] sm:$0xff]
    %v3900 = vld [vmem:[#allocation2 + $0x98] sm:$0xf]
    %v3901 = vld [vmem:[#allocation2 + $0xa0] sm:$0xff]
    %v3902 = vld [vmem:[#allocation2 + $0xa8] sm:$0xff]
    %v3903 = vld [vmem:[#allocation2 + $0xb0] sm:$0xff]
    %v3904 = vld [vmem:[#allocation2 + $0xb8] sm:$0xf]
    %v3905 = vld [vmem:[#allocation2 + $0xc0] sm:$0xff]
    %v3906 = vld [vmem:[#allocation2 + $0xc8] sm:$0xff]
    %v3907 = vld [vmem:[#allocation2 + $0xd0] sm:$0xff]
    %v3908 = vld [vmem:[#allocation2 + $0xd8] sm:$0xf]
    %v3909 = vld [vmem:[#allocation2 + $0xe0] sm:$0xff]
    %v3910 = vld [vmem:[#allocation2 + $0xe8] sm:$0xff]
    %v3911 = vld [vmem:[#allocation2 + $0xf0] sm:$0xff]
    %v3912 = vld [vmem:[#allocation2 + $0xf8] sm:$0xf]
    %v3913 = vld [vmem:[#allocation2 + $0x100] sm:$0xff]
    %v3914 = vld [vmem:[#allocation2 + $0x108] sm:$0xff]
    %v3915 = vld [vmem:[#allocation2 + $0x110] sm:$0xff]
    %v3916 = vld [vmem:[#allocation2 + $0x118] sm:$0xf]
    %v3917 = vld [vmem:[#allocation2 + $0x120] sm:$0xff]
    %v3918 = vld [vmem:[#allocation2 + $0x128] sm:$0xff]
    %v3919 = vld [vmem:[#allocation2 + $0x130] sm:$0xff]
    %v3920 = vld [vmem:[#allocation2 + $0x138] sm:$0xf]
    %v3921 = vld [vmem:[#allocation2 + $0x140] sm:$0xff]
    %v3922 = vld [vmem:[#allocation2 + $0x148] sm:$0xff]
    %v3923 = vld [vmem:[#allocation2 + $0x150] sm:$0xff]
    %v3924 = vld [vmem:[#allocation2 + $0x158] sm:$0xf]
    %v3925 = vld [vmem:[#allocation2 + $0x160] sm:$0xff]
    %v3926 = vld [vmem:[#allocation2 + $0x168] sm:$0xff]
    %v3927 = vld [vmem:[#allocation2 + $0x170] sm:$0xff]
    %v3928 = vld [vmem:[#allocation2 + $0x178] sm:$0xf]
    %v3929 = vld [vmem:[#allocation2 + $0x180] sm:$0x33]
    %v3930 = vld [vmem:[#allocation2 + $0x188] sm:$0x33]
    %v3931 = vld [vmem:[#allocation2 + $0x190] sm:$0x33]
    %v3932 = vld [vmem:[#allocation2 + $0x198] sm:$0x3]
    %v3985 = vunpack.c.l.b16 %v3881
    %v3986 = vunpack.c.h.b16 %v3881
    %v3987 = vunpack.c.l.b16 %v3882
    %v3988 = vunpack.c.h.b16 %v3882
    %v3989 = vunpack.c.l.b16 %v3883
    %v3990 = vunpack.c.h.b16 %v3883
    %v3991 = vunpack.c.l.b16 %v3884
    %v3992 = vunpack.c.l.b16 %v3885
    %v3993 = vunpack.c.h.b16 %v3885
    %v3994 = vunpack.c.l.b16 %v3886
    %v3995 = vunpack.c.h.b16 %v3886
    %v3996 = vunpack.c.l.b16 %v3887
    %v3997 = vunpack.c.h.b16 %v3887
    %v3998 = vunpack.c.l.b16 %v3888
    %v3999 = vunpack.c.l.b16 %v3889
    %v4000 = vunpack.c.h.b16 %v3889
    %v4001 = vunpack.c.l.b16 %v3890
    %v4002 = vunpack.c.h.b16 %v3890
    %v4003 = vunpack.c.l.b16 %v3891
    %v4004 = vunpack.c.h.b16 %v3891
    %v4005 = vunpack.c.l.b16 %v3892
    %v4006 = vunpack.c.l.b16 %v3893
    %v4007 = vunpack.c.h.b16 %v3893
    %v4008 = vunpack.c.l.b16 %v3894
    %v4009 = vunpack.c.h.b16 %v3894
    %v4010 = vunpack.c.l.b16 %v3895
    %v4011 = vunpack.c.h.b16 %v3895
    %v4012 = vunpack.c.l.b16 %v3896
    %v4013 = vunpack.c.l.b16 %v3897
    %v4014 = vunpack.c.h.b16 %v3897
    %v4015 = vunpack.c.l.b16 %v3898
    %v4016 = vunpack.c.h.b16 %v3898
    %v4017 = vunpack.c.l.b16 %v3899
    %v4018 = vunpack.c.h.b16 %v3899
    %v4019 = vunpack.c.l.b16 %v3900
    %v4020 = vunpack.c.l.b16 %v3901
    %v4021 = vunpack.c.h.b16 %v3901
    %v4022 = vunpack.c.l.b16 %v3902
    %v4023 = vunpack.c.h.b16 %v3902
    %v4024 = vunpack.c.l.b16 %v3903
    %v4025 = vunpack.c.h.b16 %v3903
    %v4026 = vunpack.c.l.b16 %v3904
    %v4027 = vunpack.c.l.b16 %v3905
    %v4028 = vunpack.c.h.b16 %v3905
    %v4029 = vunpack.c.l.b16 %v3906
    %v4030 = vunpack.c.h.b16 %v3906
    %v4031 = vunpack.c.l.b16 %v3907
    %v4032 = vunpack.c.h.b16 %v3907
    %v4033 = vunpack.c.l.b16 %v3908
    %v4034 = vunpack.c.l.b16 %v3909
    %v4035 = vunpack.c.h.b16 %v3909
    %v4036 = vunpack.c.l.b16 %v3910
    %v4037 = vunpack.c.h.b16 %v3910
    %v4038 = vunpack.c.l.b16 %v3911
    %v4039 = vunpack.c.h.b16 %v3911
    %v4040 = vunpack.c.l.b16 %v3912
    %v4041 = vunpack.c.l.b16 %v3913
    %v4042 = vunpack.c.h.b16 %v3913
    %v4043 = vunpack.c.l.b16 %v3914
    %v4044 = vunpack.c.h.b16 %v3914
    %v4045 = vunpack.c.l.b16 %v3915
    %v4046 = vunpack.c.h.b16 %v3915
    %v4047 = vunpack.c.l.b16 %v3916
    %v4048 = vunpack.c.l.b16 %v3917
    %v4049 = vunpack.c.h.b16 %v3917
    %v4050 = vunpack.c.l.b16 %v3918
    %v4051 = vunpack.c.h.b16 %v3918
    %v4052 = vunpack.c.l.b16 %v3919
    %v4053 = vunpack.c.h.b16 %v3919
    %v4054 = vunpack.c.l.b16 %v3920
    %v4055 = vunpack.c.l.b16 %v3921
    %v4056 = vunpack.c.h.b16 %v3921
    %v4057 = vunpack.c.l.b16 %v3922
    %v4058 = vunpack.c.h.b16 %v3922
    %v4059 = vunpack.c.l.b16 %v3923
    %v4060 = vunpack.c.h.b16 %v3923
    %v4061 = vunpack.c.l.b16 %v3924
    %v4062 = vunpack.c.l.b16 %v3925
    %v4063 = vunpack.c.h.b16 %v3925
    %v4064 = vunpack.c.l.b16 %v3926
    %v4065 = vunpack.c.h.b16 %v3926
    %v4066 = vunpack.c.l.b16 %v3927
    %v4067 = vunpack.c.h.b16 %v3927
    %v4068 = vunpack.c.l.b16 %v3928
    %v4069 = vunpack.c.l.b16 %v3929
    %v4070 = vunpack.c.h.b16 %v3929
    %v4071 = vunpack.c.l.b16 %v3930
    %v4072 = vunpack.c.h.b16 %v3930
    %v4073 = vunpack.c.l.b16 %v3931
    %v4074 = vunpack.c.h.b16 %v3931
    %v4075 = vunpack.c.l.b16 %v3932
    %v4076 = vpack.c.b16 %v3992, %v3985
    %v4077 = vpack.c.b16 %v3993, %v3986
    %v4078 = vpack.c.b16 %v3994, %v3987
    %v4079 = vpack.c.b16 %v3995, %v3988
    %v4080 = vpack.c.b16 %v3996, %v3989
    %v4081 = vpack.c.b16 %v3997, %v3990
    %v4082 = vpack.c.b16 %v3998, %v3991
    %v4083 = vpack.c.b16 %v4006, %v3999
    %v4084 = vpack.c.b16 %v4007, %v4000
    %v4085 = vpack.c.b16 %v4008, %v4001
    %v4086 = vpack.c.b16 %v4009, %v4002
    %v4087 = vpack.c.b16 %v4010, %v4003
    %v4088 = vpack.c.b16 %v4011, %v4004
    %v4089 = vpack.c.b16 %v4012, %v4005
    %v4090 = vpack.c.b16 %v4020, %v4013
    %v4091 = vpack.c.b16 %v4021, %v4014
    %v4092 = vpack.c.b16 %v4022, %v4015
    %v4093 = vpack.c.b16 %v4023, %v4016
    %v4094 = vpack.c.b16 %v4024, %v4017
    %v4095 = vpack.c.b16 %v4025, %v4018
    %v4096 = vpack.c.b16 %v4026, %v4019
    %v4097 = vpack.c.b16 %v4034, %v4027
    %v4098 = vpack.c.b16 %v4035, %v4028
    %v4099 = vpack.c.b16 %v4036, %v4029
    %v4100 = vpack.c.b16 %v4037, %v4030
    %v4101 = vpack.c.b16 %v4038, %v4031
    %v4102 = vpack.c.b16 %v4039, %v4032
    %v4103 = vpack.c.b16 %v4040, %v4033
    %v4104 = vpack.c.b16 %v4048, %v4041
    %v4105 = vpack.c.b16 %v4049, %v4042
    %v4106 = vpack.c.b16 %v4050, %v4043
    %v4107 = vpack.c.b16 %v4051, %v4044
    %v4108 = vpack.c.b16 %v4052, %v4045
    %v4109 = vpack.c.b16 %v4053, %v4046
    %v4110 = vpack.c.b16 %v4054, %v4047
    %v4111 = vpack.c.b16 %v4062, %v4055
    %v4112 = vpack.c.b16 %v4063, %v4056
    %v4113 = vpack.c.b16 %v4064, %v4057
    %v4114 = vpack.c.b16 %v4065, %v4058
    %v4115 = vpack.c.b16 %v4066, %v4059
    %v4116 = vpack.c.b16 %v4067, %v4060
    %v4117 = vpack.c.b16 %v4068, %v4061
    %v4118 = vpack.c.b16 %v4069, %v4069
    %v4119 = vpack.c.b16 %v4070, %v4070
    %v4120 = vpack.c.b16 %v4071, %v4071
    %v4121 = vpack.c.b16 %v4072, %v4072
    %v4122 = vpack.c.b16 %v4073, %v4073
    %v4123 = vpack.c.b16 %v4074, %v4074
    %v4124 = vpack.c.b16 %v4075, %v4075
    %v4168 = vsel %vm2195, %v4118, 0
    %v4171 = vsel %vm2195, %v4119, 0
    %v4174 = vsel %vm2195, %v4120, 0
    %v4177 = vsel %vm2195, %v4121, 0
    %v4180 = vsel %vm2195, %v4122, 0
    %v4183 = vsel %vm2195, %v4123, 0
    %v4186 = vsel %vm2195, %v4124, 0
    %4188 = vmatprep.subr.bf16.mxu0 0
    %4189 = vmatpush1.bf16.msra.mxu0 0
    %4190 = vmatprep.subr.bf16.mxu0 %v4171
    %4191 = vmatpush1.bf16.msra.mxu0 %v4168
    %4192 = vmatprep.subr.bf16.mxu0 %v4112
    %4193 = vmatpush1.bf16.msra.mxu0 %v4111
    %4194 = vmatprep.subr.bf16.mxu0 %v4105
    %4195 = vmatpush1.bf16.msra.mxu0 %v4104
    %4196 = vmatprep.subr.bf16.mxu0 %v4098
    %4197 = vmatpush1.bf16.msra.mxu0 %v4097
    %4198 = vmatprep.subr.bf16.mxu0 %v4091
    %4199 = vmatpush1.bf16.msra.mxu0 %v4090
    %4200 = vmatprep.subr.bf16.mxu0 %v4084
    %4201 = vmatpush1.bf16.msra.mxu0 %v4083
    %4202 = vmatprep.subr.bf16.mxu0 %v4077
    %4203 = vmatpush1.bf16.msra.mxu0 %v4076
    %4204 = vmatprep.subr.bf16.mxu0 0
    %4205 = vmatpush2.bf16.msra.mxu0 0
    %4206 = vmatprep.subr.bf16.mxu0 0
    %4207 = vmatpush2.bf16.msra.mxu0 0
    %4208 = vmatprep.subr.bf16.mxu0 0
    %4209 = vmatpush2.bf16.msra.mxu0 0
    %4210 = vmatprep.subr.bf16.mxu0 0
    %4211 = vmatpush2.bf16.msra.mxu0 0
    %4212 = vmatprep.subr.bf16.mxu0 0
    %4213 = vmatpush2.bf16.msra.mxu0 0
    %4214 = vmatprep.subr.bf16.mxu0 0
    %4215 = vmatpush2.bf16.msra.mxu0 0
    %4216 = vmatprep.subr.bf16.mxu0 0
    %4217 = vmatpush2.bf16.msra.mxu0 0
    %4218 = vmatprep.subr.bf16.mxu0 0
    %4219 = vmatpush2.bf16.msra.mxu0 0
    %4220 = vmatprep.mubr.bf16.mxu0 0
    %4221 = vmatmul.mubr.bf16.gmra.mxu0 %v2193
    %v4222 = vpop.f32.mrf.mxu0
    %v4223 = vadd.f32 %v1929, %v4222
    %v4224 = vpop.f32.mrf.mxu0
    %v4225 = vadd.f32 %v1929, %v4224
    %v4226 = vpop.f32.mrf.mxu0
    %v4227 = vpop.f32.mrf.mxu0
    %4228 = vdwg.mxu0
    %4229 = vmatprep.subr.bf16.mxu0 0
    %4230 = vmatpush1.bf16.msra.mxu0 0
    %4231 = vmatprep.subr.bf16.mxu0 %v4177
    %4232 = vmatpush1.bf16.msra.mxu0 %v4174
    %4233 = vmatprep.subr.bf16.mxu0 %v4114
    %4234 = vmatpush1.bf16.msra.mxu0 %v4113
    %4235 = vmatprep.subr.bf16.mxu0 %v4107
    %4236 = vmatpush1.bf16.msra.mxu0 %v4106
    %4237 = vmatprep.subr.bf16.mxu0 %v4100
    %4238 = vmatpush1.bf16.msra.mxu0 %v4099
    %4239 = vmatprep.subr.bf16.mxu0 %v4093
    %4240 = vmatpush1.bf16.msra.mxu0 %v4092
    %4241 = vmatprep.subr.bf16.mxu0 %v4086
    %4242 = vmatpush1.bf16.msra.mxu0 %v4085
    %4243 = vmatprep.subr.bf16.mxu0 %v4079
    %4244 = vmatpush1.bf16.msra.mxu0 %v4078
    %4245 = vmatprep.subr.bf16.mxu0 0
    %4246 = vmatpush2.bf16.msra.mxu0 0
    %4247 = vmatprep.subr.bf16.mxu0 0
    %4248 = vmatpush2.bf16.msra.mxu0 0
    %4249 = vmatprep.subr.bf16.mxu0 0
    %4250 = vmatpush2.bf16.msra.mxu0 0
    %4251 = vmatprep.subr.bf16.mxu0 0
    %4252 = vmatpush2.bf16.msra.mxu0 0
    %4253 = vmatprep.subr.bf16.mxu0 0
    %4254 = vmatpush2.bf16.msra.mxu0 0
    %4255 = vmatprep.subr.bf16.mxu0 0
    %4256 = vmatpush2.bf16.msra.mxu0 0
    %4257 = vmatprep.subr.bf16.mxu0 0
    %4258 = vmatpush2.bf16.msra.mxu0 0
    %4259 = vmatprep.subr.bf16.mxu0 0
    %4260 = vmatpush2.bf16.msra.mxu0 0
    %4261 = vmatprep.mubr.bf16.mxu0 0
    %4262 = vmatmul.mubr.bf16.gmra.mxu0 %v2193
    %v4263 = vpop.f32.mrf.mxu0
    %v4264 = vadd.f32 %v1929, %v4263
    %v4265 = vpop.f32.mrf.mxu0
    %v4266 = vadd.f32 %v1929, %v4265
    %v4267 = vpop.f32.mrf.mxu0
    %v4268 = vpop.f32.mrf.mxu0
    %4269 = vdwg.mxu0
    %4270 = vmatprep.subr.bf16.mxu0 0
    %4271 = vmatpush1.bf16.msra.mxu0 0
    %4272 = vmatprep.subr.bf16.mxu0 %v4183
    %4273 = vmatpush1.bf16.msra.mxu0 %v4180
    %4274 = vmatprep.subr.bf16.mxu0 %v4116
    %4275 = vmatpush1.bf16.msra.mxu0 %v4115
    %4276 = vmatprep.subr.bf16.mxu0 %v4109
    %4277 = vmatpush1.bf16.msra.mxu0 %v4108
    %4278 = vmatprep.subr.bf16.mxu0 %v4102
    %4279 = vmatpush1.bf16.msra.mxu0 %v4101
    %4280 = vmatprep.subr.bf16.mxu0 %v4095
    %4281 = vmatpush1.bf16.msra.mxu0 %v4094
    %4282 = vmatprep.subr.bf16.mxu0 %v4088
    %4283 = vmatpush1.bf16.msra.mxu0 %v4087
    %4284 = vmatprep.subr.bf16.mxu0 %v4081
    %4285 = vmatpush1.bf16.msra.mxu0 %v4080
    %4286 = vmatprep.subr.bf16.mxu0 0
    %4287 = vmatpush2.bf16.msra.mxu0 0
    %4288 = vmatprep.subr.bf16.mxu0 0
    %4289 = vmatpush2.bf16.msra.mxu0 0
    %4290 = vmatprep.subr.bf16.mxu0 0
    %4291 = vmatpush2.bf16.msra.mxu0 0
    %4292 = vmatprep.subr.bf16.mxu0 0
    %4293 = vmatpush2.bf16.msra.mxu0 0
    %4294 = vmatprep.subr.bf16.mxu0 0
    %4295 = vmatpush2.bf16.msra.mxu0 0
    %4296 = vmatprep.subr.bf16.mxu0 0
    %4297 = vmatpush2.bf16.msra.mxu0 0
    %4298 = vmatprep.subr.bf16.mxu0 0
    %4299 = vmatpush2.bf16.msra.mxu0 0
    %4300 = vmatprep.subr.bf16.mxu0 0
    %4301 = vmatpush2.bf16.msra.mxu0 0
    %4302 = vmatprep.mubr.bf16.mxu0 0
    %4303 = vmatmul.mubr.bf16.gmra.mxu0 %v2193
    %v4304 = vpop.f32.mrf.mxu0
    %v4305 = vadd.f32 %v1929, %v4304
    %v4306 = vpop.f32.mrf.mxu0
    %v4307 = vadd.f32 %v1929, %v4306
    %v4308 = vpop.f32.mrf.mxu0
    %v4309 = vpop.f32.mrf.mxu0
    %4310 = vdwg.mxu0
    %4311 = vmatprep.subr.bf16.mxu0 0
    %4312 = vmatpush1.bf16.msra.mxu0 0
    %4313 = vmatprep.subr.bf16.mxu0 0
    %4314 = vmatpush1.bf16.msra.mxu0 %v4186
    %4315 = vmatprep.subr.bf16.mxu0 0
    %4316 = vmatpush1.bf16.msra.mxu0 %v4117
    %4317 = vmatprep.subr.bf16.mxu0 0
    %4318 = vmatpush1.bf16.msra.mxu0 %v4110
    %4319 = vmatprep.subr.bf16.mxu0 0
    %4320 = vmatpush1.bf16.msra.mxu0 %v4103
    %4321 = vmatprep.subr.bf16.mxu0 0
    %4322 = vmatpush1.bf16.msra.mxu0 %v4096
    %4323 = vmatprep.subr.bf16.mxu0 0
    %4324 = vmatpush1.bf16.msra.mxu0 %v4089
    %4325 = vmatprep.subr.bf16.mxu0 0
    %4326 = vmatpush1.bf16.msra.mxu0 %v4082
    %4327 = vmatprep.subr.bf16.mxu0 0
    %4328 = vmatpush2.bf16.msra.mxu0 0
    %4329 = vmatprep.subr.bf16.mxu0 0
    %4330 = vmatpush2.bf16.msra.mxu0 0
    %4331 = vmatprep.subr.bf16.mxu0 0
    %4332 = vmatpush2.bf16.msra.mxu0 0
    %4333 = vmatprep.subr.bf16.mxu0 0
    %4334 = vmatpush2.bf16.msra.mxu0 0
    %4335 = vmatprep.subr.bf16.mxu0 0
    %4336 = vmatpush2.bf16.msra.mxu0 0
    %4337 = vmatprep.subr.bf16.mxu0 0
    %4338 = vmatpush2.bf16.msra.mxu0 0
    %4339 = vmatprep.subr.bf16.mxu0 0
    %4340 = vmatpush2.bf16.msra.mxu0 0
    %4341 = vmatprep.subr.bf16.mxu0 0
    %4342 = vmatpush2.bf16.msra.mxu0 0
    %4343 = vmatprep.mubr.bf16.mxu0 0
    %4344 = vmatmul.mubr.bf16.gmra.mxu0 %v2193
    %v4345 = vpop.f32.mrf.mxu0
    %v4346 = vadd.f32 %v1929, %v4345
    %v4347 = vpop.f32.mrf.mxu0
    %v4348 = vpop.f32.mrf.mxu0
    %v4349 = vpop.f32.mrf.mxu0
    %4350 = vdwg.mxu0
    %v4351 = vmax.f32 %v4223, 0.0
    %v4352 = vmax.f32 %v4225, 0.0
    %v4353 = vmax.f32 %v4264, 0.0
    %v4354 = vmax.f32 %v4266, 0.0
    %v4355 = vmax.f32 %v4305, 0.0
    %v4356 = vmax.f32 %v4307, 0.0
    %v4357 = vmax.f32 %v4346, 0.0
    %4358 = vst [vmem:[#allocation3 + $0x40] sm:$0xff] %v4351
    %4359 = vst [vmem:[#allocation3 + $0x48] sm:$0xff] %v4352
    %4360 = vst [vmem:[#allocation3 + $0x50] sm:$0xff] %v4353
    %4361 = vst [vmem:[#allocation3 + $0x58] sm:$0xff] %v4354
    %4362 = vst [vmem:[#allocation3 + $0x60] sm:$0xff] %v4355
    %4363 = vst [vmem:[#allocation3 + $0x68] sm:$0xff] %v4356
    %vm4364 = vcmask 1014784
    %4365 = vst.msk [vmem:[#allocation3 + $0x70] sm:$0xff] %vm4364, %v4357
    %v4366 = vld [vmem:[%s5] sm:$0xff]
    %v4367 = vld [vmem:[%s5 + $0x8] sm:$0xff]
    %v4368 = vld [vmem:[%s5 + $0x10] sm:$0xff]
    %v4369 = vld [vmem:[%s5 + $0x18] sm:$0xff]
    %v4370 = vld [vmem:[%s5 + $0x20] sm:$0xff]
    %v4371 = vld [vmem:[%s5 + $0x28] sm:$0xff]
    %v4372 = vld [vmem:[%s5 + $0x30] sm:$0xff]
    %v4373 = vld [vmem:[%s5 + $0x38] sm:$0xff]
    %v4374 = vld [vmem:[%s5 + $0x40] sm:$0xff]
    %v4375 = vld [vmem:[%s5 + $0x48] sm:$0xff]
    %v4376 = vld [vmem:[%s5 + $0x50] sm:$0xff]
    %v4377 = vld [vmem:[%s5 + $0x58] sm:$0xff]
    %v4378 = vld [vmem:[%s5 + $0x60] sm:$0xff]
    %v4379 = vld [vmem:[%s5 + $0x68] sm:$0xff]
    %v4380 = vld [vmem:[%s5 + $0x70] sm:$0xff]
    %v4381 = vld [vmem:[%s5 + $0x78] sm:$0xff]
    %v4382 = vld [vmem:[%s5 + $0x80] sm:$0xff]
    %v4383 = vld [vmem:[%s5 + $0x88] sm:$0xff]
    %v4384 = vld [vmem:[%s5 + $0x90] sm:$0xff]
    %v4385 = vld [vmem:[%s5 + $0x98] sm:$0xff]
    %v4386 = vld [vmem:[%s5 + $0xa0] sm:$0xff]
    %v4387 = vld [vmem:[%s5 + $0xa8] sm:$0xff]
    %v4388 = vld [vmem:[%s5 + $0xb0] sm:$0xff]
    %v4389 = vld [vmem:[%s5 + $0xb8] sm:$0xff]
    %v4390 = vld [vmem:[%s5 + $0xc0] sm:$0xff]
    %v4391 = vld [vmem:[%s5 + $0xc8] sm:$0xff]
    %v4392 = vld [vmem:[%s5 + $0xd0] sm:$0xff]
    %v4393 = vld [vmem:[%s5 + $0xd8] sm:$0xff]
    %v4394 = vld [vmem:[%s5 + $0xe0] sm:$0xff]
    %v4395 = vld [vmem:[%s5 + $0xe8] sm:$0xff]
    %v4396 = vld [vmem:[%s5 + $0xf0] sm:$0xff]
    %v4397 = vld [vmem:[%s5 + $0xf8] sm:$0xff]
    %v4398 = vld [vmem:[%s5 + $0x100] sm:$0xff]
    %v4399 = vld [vmem:[%s5 + $0x108] sm:$0xff]
    %v4400 = vld [vmem:[%s5 + $0x110] sm:$0xff]
    %v4401 = vld [vmem:[%s5 + $0x118] sm:$0xff]
    %v4402 = vld [vmem:[%s5 + $0x120] sm:$0xff]
    %v4403 = vld [vmem:[%s5 + $0x128] sm:$0xff]
    %v4404 = vld [vmem:[%s5 + $0x130] sm:$0xff]
    %v4405 = vld [vmem:[%s5 + $0x138] sm:$0xff]
    %v4406 = vld [vmem:[%s5 + $0x140] sm:$0xff]
    %v4407 = vld [vmem:[%s5 + $0x148] sm:$0xff]
    %v4408 = vld [vmem:[%s5 + $0x150] sm:$0xff]
    %v4409 = vld [vmem:[%s5 + $0x158] sm:$0xff]
    %v4410 = vld [vmem:[%s5 + $0x160] sm:$0xff]
    %v4411 = vld [vmem:[%s5 + $0x168] sm:$0xff]
    %v4412 = vld [vmem:[%s5 + $0x170] sm:$0xff]
    %v4413 = vld [vmem:[%s5 + $0x178] sm:$0xff]
    %v4414 = vld [vmem:[%s5 + $0x180] sm:$0xff]
    %v4415 = vld [vmem:[%s5 + $0x188] sm:$0xff]
    %v4416 = vld [vmem:[%s5 + $0x190] sm:$0xff]
    %v4417 = vld [vmem:[%s5 + $0x198] sm:$0xff]
    %v4418 = vld [vmem:[%s5 + $0x1a0] sm:$0xff]
    %v4419 = vld [vmem:[%s5 + $0x1a8] sm:$0xff]
    %v4420 = vld [vmem:[%s5 + $0x1b0] sm:$0xff]
    %v4421 = vld [vmem:[%s5 + $0x1b8] sm:$0xff]
    %v4422 = vld [vmem:[%s5 + $0x1c0] sm:$0xff]
    %v4423 = vld [vmem:[%s5 + $0x1c8] sm:$0xff]
    %v4424 = vld [vmem:[%s5 + $0x1d0] sm:$0xff]
    %v4425 = vld [vmem:[%s5 + $0x1d8] sm:$0xff]
    %v4426 = vld [vmem:[%s5 + $0x1e0] sm:$0xff]
    %v4427 = vld [vmem:[%s5 + $0x1e8] sm:$0xff]
    %v4428 = vld [vmem:[%s5 + $0x1f0] sm:$0xff]
    %v4429 = vld [vmem:[%s5 + $0x1f8] sm:$0xff]
    %v4430 = vld [vmem:[%s5 + $0x200] sm:$0xff]
    %v4431 = vld [vmem:[%s5 + $0x208] sm:$0xff]
    %v4432 = vld [vmem:[%s5 + $0x210] sm:$0xff]
    %v4433 = vld [vmem:[%s5 + $0x218] sm:$0xff]
    %v4434 = vld [vmem:[%s5 + $0x220] sm:$0xff]
    %v4435 = vld [vmem:[%s5 + $0x228] sm:$0xff]
    %v4436 = vld [vmem:[%s5 + $0x230] sm:$0xff]
    %v4437 = vld [vmem:[%s5 + $0x238] sm:$0xff]
    %v4438 = vld [vmem:[%s5 + $0x240] sm:$0xff]
    %v4439 = vld [vmem:[%s5 + $0x248] sm:$0xff]
    %v4440 = vld [vmem:[%s5 + $0x250] sm:$0xff]
    %v4441 = vld [vmem:[%s5 + $0x258] sm:$0xff]
    %v4442 = vld [vmem:[%s5 + $0x260] sm:$0xff]
    %v4443 = vld [vmem:[%s5 + $0x268] sm:$0xff]
    %v4444 = vld [vmem:[%s5 + $0x270] sm:$0xff]
    %v4445 = vld [vmem:[%s5 + $0x278] sm:$0xff]
    %v4446 = vld [vmem:[%s5 + $0x280] sm:$0xff]
    %v4447 = vld [vmem:[%s5 + $0x288] sm:$0xff]
    %v4448 = vld [vmem:[%s5 + $0x290] sm:$0xff]
    %v4449 = vld [vmem:[%s5 + $0x298] sm:$0xff]
    %v4450 = vld [vmem:[%s5 + $0x2a0] sm:$0xff]
    %v4451 = vld [vmem:[%s5 + $0x2a8] sm:$0xff]
    %v4452 = vld [vmem:[%s5 + $0x2b0] sm:$0xff]
    %v4453 = vld [vmem:[%s5 + $0x2b8] sm:$0xff]
    %v4454 = vld [vmem:[%s5 + $0x2c0] sm:$0xff]
    %v4455 = vld [vmem:[%s5 + $0x2c8] sm:$0xff]
    %v4456 = vld [vmem:[%s5 + $0x2d0] sm:$0xff]
    %v4457 = vld [vmem:[%s5 + $0x2d8] sm:$0xff]
    %v4458 = vld [vmem:[%s5 + $0x2e0] sm:$0xff]
    %v4459 = vld [vmem:[%s5 + $0x2e8] sm:$0xff]
    %v4460 = vld [vmem:[%s5 + $0x2f0] sm:$0xff]
    %v4461 = vld [vmem:[%s5 + $0x2f8] sm:$0xff]
    %v4462 = vld [vmem:[%s5 + $0x300] sm:$0xff]
    %v4463 = vld [vmem:[%s5 + $0x308] sm:$0xff]
    %v4464 = vld [vmem:[%s5 + $0x310] sm:$0xff]
    %v4465 = vld [vmem:[%s5 + $0x318] sm:$0xff]
    %v4466 = vld [vmem:[%s5 + $0x320] sm:$0xff]
    %v4467 = vld [vmem:[%s5 + $0x328] sm:$0xff]
    %v4468 = vld [vmem:[%s5 + $0x330] sm:$0xff]
    %v4469 = vld [vmem:[%s5 + $0x338] sm:$0xff]
    %v4470 = vld [vmem:[%s5 + $0x340] sm:$0xff]
    %v4471 = vld [vmem:[%s5 + $0x348] sm:$0xff]
    %v4472 = vld [vmem:[%s5 + $0x350] sm:$0xff]
    %v4473 = vld [vmem:[%s5 + $0x358] sm:$0x33]
    %v4474 = vld [vmem:[#allocation3] sm:$0xff]
    %v4475 = vld [vmem:[#allocation3 + $0x8] sm:$0xff]
    %v4476 = vld [vmem:[#allocation3 + $0x10] sm:$0xff]
    %v4477 = vld [vmem:[#allocation3 + $0x18] sm:$0xff]
    %v4478 = vld [vmem:[#allocation3 + $0x20] sm:$0xff]
    %v4479 = vld [vmem:[#allocation3 + $0x28] sm:$0xff]
    %v4480 = vld [vmem:[#allocation3 + $0x30] sm:$0xff]
    %4488 = vrot.lane.b32.xlu0 %v4474, 127
    %v4489 = vpop.permute.xlu0 %4488
    %4490 = vrot.lane.b32.xlu0 %v4475, 127
    %v4491 = vpop.permute.xlu0 %4490
    %4492 = vrot.lane.b32.xlu0 %v4476, 127
    %v4493 = vpop.permute.xlu0 %4492
    %4494 = vrot.lane.b32.xlu0 %v4477, 127
    %v4495 = vpop.permute.xlu0 %4494
    %4496 = vrot.lane.b32.xlu0 %v4478, 127
    %v4497 = vpop.permute.xlu0 %4496
    %4498 = vrot.lane.b32.xlu0 %v4479, 127
    %v4499 = vpop.permute.xlu0 %4498
    %4500 = vrot.lane.b32.xlu0 %v4480, 127
    %v4501 = vpop.permute.xlu0 %4500
    %vm4502 = vcmask 1039360
    %v4503 = vsel %vm4502, %v4489, %v4491
    %v4504 = vsel %vm4502, %v4491, %v4493
    %v4505 = vsel %vm4502, %v4493, %v4495
    %v4506 = vsel %vm4502, %v4495, %v4497
    %v4507 = vsel %vm4502, %v4497, %v4499
    %v4508 = vsel %vm4502, %v4499, %v4501
    %v4516 = vmax.f32 %v4474, %v4503
    %v4517 = vmax.f32 %v4475, %v4504
    %v4518 = vmax.f32 %v4476, %v4505
    %v4519 = vmax.f32 %v4477, %v4506
    %v4520 = vmax.f32 %v4478, %v4507
    %v4521 = vmax.f32 %v4479, %v4508
    %v4522 = vmax.f32 %v4480, %v4501
    %4530 = vrot.lane.b32.xlu0 %v4516, 96
    %v4531 = vpop.permute.xlu0 %4530
    %4532 = vrot.lane.b32.xlu0 %v4517, 96
    %v4533 = vpop.permute.xlu0 %4532
    %4534 = vrot.lane.b32.xlu0 %v4518, 96
    %v4535 = vpop.permute.xlu0 %4534
    %4536 = vrot.lane.b32.xlu0 %v4519, 96
    %v4537 = vpop.permute.xlu0 %4536
    %4538 = vrot.lane.b32.xlu0 %v4520, 96
    %v4539 = vpop.permute.xlu0 %4538
    %4540 = vrot.lane.b32.xlu0 %v4521, 96
    %v4541 = vpop.permute.xlu0 %4540
    %4542 = vrot.lane.b32.xlu0 %v4522, 96
    %v4543 = vpop.permute.xlu0 %4542
    %vm4544 = vcmask 785408
    %v4545 = vsel %vm4544, %v4531, %v4533
    %v4546 = vsel %vm4544, %v4533, %v4535
    %v4547 = vsel %vm4544, %v4535, %v4537
    %v4548 = vsel %vm4544, %v4537, %v4539
    %v4549 = vsel %vm4544, %v4539, %v4541
    %v4550 = vsel %vm4544, %v4541, %v4543
    %v4558 = vmax.f32 %v4516, %v4545
    %v4559 = vmax.f32 %v4517, %v4546
    %v4560 = vmax.f32 %v4518, %v4547
    %v4561 = vmax.f32 %v4519, %v4548
    %v4562 = vmax.f32 %v4520, %v4549
    %v4563 = vmax.f32 %v4521, %v4550
    %v4564 = vmax.f32 %v4522, %v4543
    %v4565 = vpack.c.bf16 %v4558, %v4558
    %v4566 = vpack.c.bf16 %v4559, %v4559
    %v4567 = vpack.c.bf16 %v4560, %v4560
    %v4568 = vpack.c.bf16 %v4561, %v4561
    %v4569 = vpack.c.bf16 %v4562, %v4562
    %v4570 = vpack.c.bf16 %v4563, %v4563
    %v4571 = vpack.c.bf16 %v4564, %v4564
    %v4680 = vunpack.c.l.b16 %v4366
    %v4681 = vunpack.c.h.b16 %v4366
    %v4682 = vunpack.c.l.b16 %v4367
    %v4683 = vunpack.c.h.b16 %v4367
    %v4684 = vunpack.c.l.b16 %v4368
    %v4685 = vunpack.c.h.b16 %v4368
    %v4686 = vunpack.c.l.b16 %v4369
    %v4687 = vunpack.c.h.b16 %v4369
    %v4688 = vunpack.c.l.b16 %v4370
    %v4689 = vunpack.c.h.b16 %v4370
    %v4690 = vunpack.c.l.b16 %v4371
    %v4691 = vunpack.c.h.b16 %v4371
    %v4692 = vunpack.c.l.b16 %v4372
    %v4693 = vunpack.c.h.b16 %v4372
    %v4694 = vunpack.c.l.b16 %v4373
    %v4695 = vunpack.c.h.b16 %v4373
    %v4696 = vunpack.c.l.b16 %v4374
    %v4697 = vunpack.c.h.b16 %v4374
    %v4698 = vunpack.c.l.b16 %v4375
    %v4699 = vunpack.c.h.b16 %v4375
    %v4700 = vunpack.c.l.b16 %v4376
    %v4701 = vunpack.c.h.b16 %v4376
    %v4702 = vunpack.c.l.b16 %v4377
    %v4703 = vunpack.c.h.b16 %v4377
    %v4704 = vunpack.c.l.b16 %v4378
    %v4705 = vunpack.c.h.b16 %v4378
    %v4706 = vunpack.c.l.b16 %v4379
    %v4707 = vunpack.c.h.b16 %v4379
    %v4708 = vunpack.c.l.b16 %v4380
    %v4709 = vunpack.c.h.b16 %v4380
    %v4710 = vunpack.c.l.b16 %v4381
    %v4711 = vunpack.c.h.b16 %v4381
    %v4712 = vunpack.c.l.b16 %v4382
    %v4713 = vunpack.c.h.b16 %v4382
    %v4714 = vunpack.c.l.b16 %v4383
    %v4715 = vunpack.c.h.b16 %v4383
    %v4716 = vunpack.c.l.b16 %v4384
    %v4717 = vunpack.c.h.b16 %v4384
    %v4718 = vunpack.c.l.b16 %v4385
    %v4719 = vunpack.c.h.b16 %v4385
    %v4720 = vunpack.c.l.b16 %v4386
    %v4721 = vunpack.c.h.b16 %v4386
    %v4722 = vunpack.c.l.b16 %v4387
    %v4723 = vunpack.c.h.b16 %v4387
    %v4724 = vunpack.c.l.b16 %v4388
    %v4725 = vunpack.c.h.b16 %v4388
    %v4726 = vunpack.c.l.b16 %v4389
    %v4727 = vunpack.c.h.b16 %v4389
    %v4728 = vunpack.c.l.b16 %v4390
    %v4729 = vunpack.c.h.b16 %v4390
    %v4730 = vunpack.c.l.b16 %v4391
    %v4731 = vunpack.c.h.b16 %v4391
    %v4732 = vunpack.c.l.b16 %v4392
    %v4733 = vunpack.c.h.b16 %v4392
    %v4734 = vunpack.c.l.b16 %v4393
    %v4735 = vunpack.c.h.b16 %v4393
    %v4736 = vunpack.c.l.b16 %v4394
    %v4737 = vunpack.c.h.b16 %v4394
    %v4738 = vunpack.c.l.b16 %v4395
    %v4739 = vunpack.c.h.b16 %v4395
    %v4740 = vunpack.c.l.b16 %v4396
    %v4741 = vunpack.c.h.b16 %v4396
    %v4742 = vunpack.c.l.b16 %v4397
    %v4743 = vunpack.c.h.b16 %v4397
    %v4744 = vunpack.c.l.b16 %v4398
    %v4745 = vunpack.c.h.b16 %v4398
    %v4746 = vunpack.c.l.b16 %v4399
    %v4747 = vunpack.c.h.b16 %v4399
    %v4748 = vunpack.c.l.b16 %v4400
    %v4749 = vunpack.c.h.b16 %v4400
    %v4750 = vunpack.c.l.b16 %v4401
    %v4751 = vunpack.c.h.b16 %v4401
    %v4752 = vunpack.c.l.b16 %v4402
    %v4753 = vunpack.c.h.b16 %v4402
    %v4754 = vunpack.c.l.b16 %v4403
    %v4755 = vunpack.c.h.b16 %v4403
    %v4756 = vunpack.c.l.b16 %v4404
    %v4757 = vunpack.c.h.b16 %v4404
    %v4758 = vunpack.c.l.b16 %v4405
    %v4759 = vunpack.c.h.b16 %v4405
    %v4760 = vunpack.c.l.b16 %v4406
    %v4761 = vunpack.c.h.b16 %v4406
    %v4762 = vunpack.c.l.b16 %v4407
    %v4763 = vunpack.c.h.b16 %v4407
    %v4764 = vunpack.c.l.b16 %v4408
    %v4765 = vunpack.c.h.b16 %v4408
    %v4766 = vunpack.c.l.b16 %v4409
    %v4767 = vunpack.c.h.b16 %v4409
    %v4768 = vunpack.c.l.b16 %v4410
    %v4769 = vunpack.c.h.b16 %v4410
    %v4770 = vunpack.c.l.b16 %v4411
    %v4771 = vunpack.c.h.b16 %v4411
    %v4772 = vunpack.c.l.b16 %v4412
    %v4773 = vunpack.c.h.b16 %v4412
    %v4774 = vunpack.c.l.b16 %v4413
    %v4775 = vunpack.c.h.b16 %v4413
    %v4776 = vunpack.c.l.b16 %v4414
    %v4777 = vunpack.c.h.b16 %v4414
    %v4778 = vunpack.c.l.b16 %v4415
    %v4779 = vunpack.c.h.b16 %v4415
    %v4780 = vunpack.c.l.b16 %v4416
    %v4781 = vunpack.c.h.b16 %v4416
    %v4782 = vunpack.c.l.b16 %v4417
    %v4783 = vunpack.c.h.b16 %v4417
    %v4784 = vunpack.c.l.b16 %v4418
    %v4785 = vunpack.c.h.b16 %v4418
    %v4786 = vunpack.c.l.b16 %v4419
    %v4787 = vunpack.c.h.b16 %v4419
    %v4788 = vunpack.c.l.b16 %v4420
    %v4789 = vunpack.c.h.b16 %v4420
    %v4790 = vunpack.c.l.b16 %v4421
    %v4791 = vunpack.c.h.b16 %v4421
    %v4792 = vunpack.c.l.b16 %v4422
    %v4793 = vunpack.c.h.b16 %v4422
    %v4794 = vunpack.c.l.b16 %v4423
    %v4795 = vunpack.c.h.b16 %v4423
    %v4796 = vunpack.c.l.b16 %v4424
    %v4797 = vunpack.c.h.b16 %v4424
    %v4798 = vunpack.c.l.b16 %v4425
    %v4799 = vunpack.c.h.b16 %v4425
    %v4800 = vunpack.c.l.b16 %v4426
    %v4801 = vunpack.c.h.b16 %v4426
    %v4802 = vunpack.c.l.b16 %v4427
    %v4803 = vunpack.c.h.b16 %v4427
    %v4804 = vunpack.c.l.b16 %v4428
    %v4805 = vunpack.c.h.b16 %v4428
    %v4806 = vunpack.c.l.b16 %v4429
    %v4807 = vunpack.c.h.b16 %v4429
    %v4808 = vunpack.c.l.b16 %v4430
    %v4809 = vunpack.c.h.b16 %v4430
    %v4810 = vunpack.c.l.b16 %v4431
    %v4811 = vunpack.c.h.b16 %v4431
    %v4812 = vunpack.c.l.b16 %v4432
    %v4813 = vunpack.c.h.b16 %v4432
    %v4814 = vunpack.c.l.b16 %v4433
    %v4815 = vunpack.c.h.b16 %v4433
    %v4816 = vunpack.c.l.b16 %v4434
    %v4817 = vunpack.c.h.b16 %v4434
    %v4818 = vunpack.c.l.b16 %v4435
    %v4819 = vunpack.c.h.b16 %v4435
    %v4820 = vunpack.c.l.b16 %v4436
    %v4821 = vunpack.c.h.b16 %v4436
    %v4822 = vunpack.c.l.b16 %v4437
    %v4823 = vunpack.c.h.b16 %v4437
    %v4824 = vunpack.c.l.b16 %v4438
    %v4825 = vunpack.c.h.b16 %v4438
    %v4826 = vunpack.c.l.b16 %v4439
    %v4827 = vunpack.c.h.b16 %v4439
    %v4828 = vunpack.c.l.b16 %v4440
    %v4829 = vunpack.c.h.b16 %v4440
    %v4830 = vunpack.c.l.b16 %v4441
    %v4831 = vunpack.c.h.b16 %v4441
    %v4832 = vunpack.c.l.b16 %v4442
    %v4833 = vunpack.c.h.b16 %v4442
    %v4834 = vunpack.c.l.b16 %v4443
    %v4835 = vunpack.c.h.b16 %v4443
    %v4836 = vunpack.c.l.b16 %v4444
    %v4837 = vunpack.c.h.b16 %v4444
    %v4838 = vunpack.c.l.b16 %v4445
    %v4839 = vunpack.c.h.b16 %v4445
    %v4840 = vunpack.c.l.b16 %v4446
    %v4841 = vunpack.c.h.b16 %v4446
    %v4842 = vunpack.c.l.b16 %v4447
    %v4843 = vunpack.c.h.b16 %v4447
    %v4844 = vunpack.c.l.b16 %v4448
    %v4845 = vunpack.c.h.b16 %v4448
    %v4846 = vunpack.c.l.b16 %v4449
    %v4847 = vunpack.c.h.b16 %v4449
    %v4848 = vunpack.c.l.b16 %v4450
    %v4849 = vunpack.c.h.b16 %v4450
    %v4850 = vunpack.c.l.b16 %v4451
    %v4851 = vunpack.c.h.b16 %v4451
    %v4852 = vunpack.c.l.b16 %v4452
    %v4853 = vunpack.c.h.b16 %v4452
    %v4854 = vunpack.c.l.b16 %v4453
    %v4855 = vunpack.c.h.b16 %v4453
    %v4856 = vunpack.c.l.b16 %v4454
    %v4857 = vunpack.c.h.b16 %v4454
    %v4858 = vunpack.c.l.b16 %v4455
    %v4859 = vunpack.c.h.b16 %v4455
    %v4860 = vunpack.c.l.b16 %v4456
    %v4861 = vunpack.c.h.b16 %v4456
    %v4862 = vunpack.c.l.b16 %v4457
    %v4863 = vunpack.c.h.b16 %v4457
    %v4864 = vunpack.c.l.b16 %v4458
    %v4865 = vunpack.c.h.b16 %v4458
    %v4866 = vunpack.c.l.b16 %v4459
    %v4867 = vunpack.c.h.b16 %v4459
    %v4868 = vunpack.c.l.b16 %v4460
    %v4869 = vunpack.c.h.b16 %v4460
    %v4870 = vunpack.c.l.b16 %v4461
    %v4871 = vunpack.c.h.b16 %v4461
    %v4872 = vunpack.c.l.b16 %v4462
    %v4873 = vunpack.c.h.b16 %v4462
    %v4874 = vunpack.c.l.b16 %v4463
    %v4875 = vunpack.c.h.b16 %v4463
    %v4876 = vunpack.c.l.b16 %v4464
    %v4877 = vunpack.c.h.b16 %v4464
    %v4878 = vunpack.c.l.b16 %v4465
    %v4879 = vunpack.c.h.b16 %v4465
    %v4880 = vunpack.c.l.b16 %v4466
    %v4881 = vunpack.c.h.b16 %v4466
    %v4882 = vunpack.c.l.b16 %v4467
    %v4883 = vunpack.c.h.b16 %v4467
    %v4884 = vunpack.c.l.b16 %v4468
    %v4885 = vunpack.c.h.b16 %v4468
    %v4886 = vunpack.c.l.b16 %v4469
    %v4887 = vunpack.c.h.b16 %v4469
    %v4888 = vunpack.c.l.b16 %v4470
    %v4889 = vunpack.c.h.b16 %v4470
    %v4890 = vunpack.c.l.b16 %v4471
    %v4891 = vunpack.c.h.b16 %v4471
    %v4892 = vunpack.c.l.b16 %v4472
    %v4893 = vunpack.c.h.b16 %v4472
    %v4894 = vunpack.c.l.b16 %v4473
    %v4895 = vunpack.c.h.b16 %v4473
    %v4896 = vpack.c.b16 %v4682, %v4680
    %v4897 = vpack.c.b16 %v4683, %v4681
    %v4898 = vpack.c.b16 %v4686, %v4684
    %v4899 = vpack.c.b16 %v4687, %v4685
    %v4900 = vpack.c.b16 %v4690, %v4688
    %v4901 = vpack.c.b16 %v4691, %v4689
    %v4902 = vpack.c.b16 %v4694, %v4692
    %v4903 = vpack.c.b16 %v4695, %v4693
    %v4904 = vpack.c.b16 %v4698, %v4696
    %v4905 = vpack.c.b16 %v4699, %v4697
    %v4906 = vpack.c.b16 %v4702, %v4700
    %v4907 = vpack.c.b16 %v4703, %v4701
    %v4908 = vpack.c.b16 %v4706, %v4704
    %v4909 = vpack.c.b16 %v4707, %v4705
    %v4910 = vpack.c.b16 %v4710, %v4708
    %v4911 = vpack.c.b16 %v4711, %v4709
    %v4912 = vpack.c.b16 %v4714, %v4712
    %v4913 = vpack.c.b16 %v4715, %v4713
    %v4914 = vpack.c.b16 %v4718, %v4716
    %v4915 = vpack.c.b16 %v4719, %v4717
    %v4916 = vpack.c.b16 %v4722, %v4720
    %v4917 = vpack.c.b16 %v4723, %v4721
    %v4918 = vpack.c.b16 %v4726, %v4724
    %v4919 = vpack.c.b16 %v4727, %v4725
    %v4920 = vpack.c.b16 %v4730, %v4728
    %v4921 = vpack.c.b16 %v4731, %v4729
    %v4922 = vpack.c.b16 %v4734, %v4732
    %v4923 = vpack.c.b16 %v4735, %v4733
    %v4924 = vpack.c.b16 %v4738, %v4736
    %v4925 = vpack.c.b16 %v4739, %v4737
    %v4926 = vpack.c.b16 %v4742, %v4740
    %v4927 = vpack.c.b16 %v4743, %v4741
    %v4928 = vpack.c.b16 %v4746, %v4744
    %v4929 = vpack.c.b16 %v4747, %v4745
    %v4930 = vpack.c.b16 %v4750, %v4748
    %v4931 = vpack.c.b16 %v4751, %v4749
    %v4932 = vpack.c.b16 %v4754, %v4752
    %v4933 = vpack.c.b16 %v4755, %v4753
    %v4934 = vpack.c.b16 %v4758, %v4756
    %v4935 = vpack.c.b16 %v4759, %v4757
    %v4936 = vpack.c.b16 %v4762, %v4760
    %v4937 = vpack.c.b16 %v4763, %v4761
    %v4938 = vpack.c.b16 %v4766, %v4764
    %v4939 = vpack.c.b16 %v4767, %v4765
    %v4940 = vpack.c.b16 %v4770, %v4768
    %v4941 = vpack.c.b16 %v4771, %v4769
    %v4942 = vpack.c.b16 %v4774, %v4772
    %v4943 = vpack.c.b16 %v4775, %v4773
    %v4944 = vpack.c.b16 %v4778, %v4776
    %v4945 = vpack.c.b16 %v4779, %v4777
    %v4946 = vpack.c.b16 %v4782, %v4780
    %v4947 = vpack.c.b16 %v4783, %v4781
    %v4948 = vpack.c.b16 %v4786, %v4784
    %v4949 = vpack.c.b16 %v4787, %v4785
    %v4950 = vpack.c.b16 %v4790, %v4788
    %v4951 = vpack.c.b16 %v4791, %v4789
    %v4952 = vpack.c.b16 %v4794, %v4792
    %v4953 = vpack.c.b16 %v4795, %v4793
    %v4954 = vpack.c.b16 %v4798, %v4796
    %v4955 = vpack.c.b16 %v4799, %v4797
    %v4956 = vpack.c.b16 %v4802, %v4800
    %v4957 = vpack.c.b16 %v4803, %v4801
    %v4958 = vpack.c.b16 %v4806, %v4804
    %v4959 = vpack.c.b16 %v4807, %v4805
    %v4960 = vpack.c.b16 %v4810, %v4808
    %v4961 = vpack.c.b16 %v4811, %v4809
    %v4962 = vpack.c.b16 %v4814, %v4812
    %v4963 = vpack.c.b16 %v4815, %v4813
    %v4964 = vpack.c.b16 %v4818, %v4816
    %v4965 = vpack.c.b16 %v4819, %v4817
    %v4966 = vpack.c.b16 %v4822, %v4820
    %v4967 = vpack.c.b16 %v4823, %v4821
    %v4968 = vpack.c.b16 %v4826, %v4824
    %v4969 = vpack.c.b16 %v4827, %v4825
    %v4970 = vpack.c.b16 %v4830, %v4828
    %v4971 = vpack.c.b16 %v4831, %v4829
    %v4972 = vpack.c.b16 %v4834, %v4832
    %v4973 = vpack.c.b16 %v4835, %v4833
    %v4974 = vpack.c.b16 %v4838, %v4836
    %v4975 = vpack.c.b16 %v4839, %v4837
    %v4976 = vpack.c.b16 %v4842, %v4840
    %v4977 = vpack.c.b16 %v4843, %v4841
    %v4978 = vpack.c.b16 %v4846, %v4844
    %v4979 = vpack.c.b16 %v4847, %v4845
    %v4980 = vpack.c.b16 %v4850, %v4848
    %v4981 = vpack.c.b16 %v4851, %v4849
    %v4982 = vpack.c.b16 %v4854, %v4852
    %v4983 = vpack.c.b16 %v4855, %v4853
    %v4984 = vpack.c.b16 %v4858, %v4856
    %v4985 = vpack.c.b16 %v4859, %v4857
    %v4986 = vpack.c.b16 %v4862, %v4860
    %v4987 = vpack.c.b16 %v4863, %v4861
    %v4988 = vpack.c.b16 %v4866, %v4864
    %v4989 = vpack.c.b16 %v4867, %v4865
    %v4990 = vpack.c.b16 %v4870, %v4868
    %v4991 = vpack.c.b16 %v4871, %v4869
    %v4992 = vpack.c.b16 %v4874, %v4872
    %v4993 = vpack.c.b16 %v4875, %v4873
    %v4994 = vpack.c.b16 %v4878, %v4876
    %v4995 = vpack.c.b16 %v4879, %v4877
    %v4996 = vpack.c.b16 %v4882, %v4880
    %v4997 = vpack.c.b16 %v4883, %v4881
    %v4998 = vpack.c.b16 %v4886, %v4884
    %v4999 = vpack.c.b16 %v4887, %v4885
    %v5000 = vpack.c.b16 %v4890, %v4888
    %v5001 = vpack.c.b16 %v4891, %v4889
    %v5002 = vpack.c.b16 %v4894, %v4892
    %v5003 = vpack.c.b16 %v4895, %v4893
    %vm5110 = vcmask 744448
    %v5112 = vsel %vm5110, %v4571, 0
    %vm5114 = vcmask 1044480
    %vm5115 = vcmask 1045504
    %v5116 = vsel %vm5114, 4294967295, 65535
    %v5117 = vsel %vm5115, %v5116, 0
    %v5119 = vand.u32 %v5002, %v5117
    %v5122 = vand.u32 %v5003, %v5117
    %5124 = vmatprep.subr.bf16.mxu0 %v4911
    %5125 = vmatpush1.bf16.msra.mxu0 %v4910
    %5126 = vmatprep.subr.bf16.mxu0 %v4909
    %5127 = vmatpush1.bf16.msra.mxu0 %v4908
    %5128 = vmatprep.subr.bf16.mxu0 %v4907
    %5129 = vmatpush1.bf16.msra.mxu0 %v4906
    %5130 = vmatprep.subr.bf16.mxu0 %v4905
    %5131 = vmatpush1.bf16.msra.mxu0 %v4904
    %5132 = vmatprep.subr.bf16.mxu0 %v4903
    %5133 = vmatpush1.bf16.msra.mxu0 %v4902
    %5134 = vmatprep.subr.bf16.mxu0 %v4901
    %5135 = vmatpush1.bf16.msra.mxu0 %v4900
    %5136 = vmatprep.subr.bf16.mxu0 %v4899
    %5137 = vmatpush1.bf16.msra.mxu0 %v4898
    %5138 = vmatprep.subr.bf16.mxu0 %v4897
    %5139 = vmatpush1.bf16.msra.mxu0 %v4896
    %5140 = vmatprep.subr.bf16.mxu0 %v4927
    %5141 = vmatpush2.bf16.msra.mxu0 %v4926
    %5142 = vmatprep.subr.bf16.mxu0 %v4925
    %5143 = vmatpush2.bf16.msra.mxu0 %v4924
    %5144 = vmatprep.subr.bf16.mxu0 %v4923
    %5145 = vmatpush2.bf16.msra.mxu0 %v4922
    %5146 = vmatprep.subr.bf16.mxu0 %v4921
    %5147 = vmatpush2.bf16.msra.mxu0 %v4920
    %5148 = vmatprep.subr.bf16.mxu0 %v4919
    %5149 = vmatpush2.bf16.msra.mxu0 %v4918
    %5150 = vmatprep.subr.bf16.mxu0 %v4917
    %5151 = vmatpush2.bf16.msra.mxu0 %v4916
    %5152 = vmatprep.subr.bf16.mxu0 %v4915
    %5153 = vmatpush2.bf16.msra.mxu0 %v4914
    %5154 = vmatprep.subr.bf16.mxu0 %v4913
    %5155 = vmatpush2.bf16.msra.mxu0 %v4912
    %5156 = vmatprep.mubr.bf16.mxu0 %v4566
    %5157 = vmatmul.mubr.bf16.gmra.mxu0 %v4565
    %v5158 = vpop.f32.mrf.mxu0
    %v5159 = vadd.f32 0.0, %v5158
    %v5160 = vpop.f32.mrf.mxu0
    %v5161 = vadd.f32 0.0, %v5160
    %v5162 = vpop.f32.mrf.mxu0
    %v5163 = vpop.f32.mrf.mxu0
    %5164 = vdwg.mxu0
    %5165 = vmatprep.subr.bf16.mxu0 %v4943
    %5166 = vmatpush1.bf16.msra.mxu0 %v4942
    %5167 = vmatprep.subr.bf16.mxu0 %v4941
    %5168 = vmatpush1.bf16.msra.mxu0 %v4940
    %5169 = vmatprep.subr.bf16.mxu0 %v4939
    %5170 = vmatpush1.bf16.msra.mxu0 %v4938
    %5171 = vmatprep.subr.bf16.mxu0 %v4937
    %5172 = vmatpush1.bf16.msra.mxu0 %v4936
    %5173 = vmatprep.subr.bf16.mxu0 %v4935
    %5174 = vmatpush1.bf16.msra.mxu0 %v4934
    %5175 = vmatprep.subr.bf16.mxu0 %v4933
    %5176 = vmatpush1.bf16.msra.mxu0 %v4932
    %5177 = vmatprep.subr.bf16.mxu0 %v4931
    %5178 = vmatpush1.bf16.msra.mxu0 %v4930
    %5179 = vmatprep.subr.bf16.mxu0 %v4929
    %5180 = vmatpush1.bf16.msra.mxu0 %v4928
    %5181 = vmatprep.subr.bf16.mxu0 %v4959
    %5182 = vmatpush2.bf16.msra.mxu0 %v4958
    %5183 = vmatprep.subr.bf16.mxu0 %v4957
    %5184 = vmatpush2.bf16.msra.mxu0 %v4956
    %5185 = vmatprep.subr.bf16.mxu0 %v4955
    %5186 = vmatpush2.bf16.msra.mxu0 %v4954
    %5187 = vmatprep.subr.bf16.mxu0 %v4953
    %5188 = vmatpush2.bf16.msra.mxu0 %v4952
    %5189 = vmatprep.subr.bf16.mxu0 %v4951
    %5190 = vmatpush2.bf16.msra.mxu0 %v4950
    %5191 = vmatprep.subr.bf16.mxu0 %v4949
    %5192 = vmatpush2.bf16.msra.mxu0 %v4948
    %5193 = vmatprep.subr.bf16.mxu0 %v4947
    %5194 = vmatpush2.bf16.msra.mxu0 %v4946
    %5195 = vmatprep.subr.bf16.mxu0 %v4945
    %5196 = vmatpush2.bf16.msra.mxu0 %v4944
    %5197 = vmatprep.mubr.bf16.mxu0 %v4568
    %5198 = vmatmul.mubr.bf16.gmra.mxu0 %v4567
    %v5199 = vpop.f32.mrf.mxu0
    %v5200 = vadd.f32 %v5159, %v5199
    %v5201 = vpop.f32.mrf.mxu0
    %v5202 = vadd.f32 %v5161, %v5201
    %v5203 = vpop.f32.mrf.mxu0
    %v5204 = vpop.f32.mrf.mxu0
    %5205 = vdwg.mxu0
    %5206 = vmatprep.subr.bf16.mxu0 %v4975
    %5207 = vmatpush1.bf16.msra.mxu0 %v4974
    %5208 = vmatprep.subr.bf16.mxu0 %v4973
    %5209 = vmatpush1.bf16.msra.mxu0 %v4972
    %5210 = vmatprep.subr.bf16.mxu0 %v4971
    %5211 = vmatpush1.bf16.msra.mxu0 %v4970
    %5212 = vmatprep.subr.bf16.mxu0 %v4969
    %5213 = vmatpush1.bf16.msra.mxu0 %v4968
    %5214 = vmatprep.subr.bf16.mxu0 %v4967
    %5215 = vmatpush1.bf16.msra.mxu0 %v4966
    %5216 = vmatprep.subr.bf16.mxu0 %v4965
    %5217 = vmatpush1.bf16.msra.mxu0 %v4964
    %5218 = vmatprep.subr.bf16.mxu0 %v4963
    %5219 = vmatpush1.bf16.msra.mxu0 %v4962
    %5220 = vmatprep.subr.bf16.mxu0 %v4961
    %5221 = vmatpush1.bf16.msra.mxu0 %v4960
    %5222 = vmatprep.subr.bf16.mxu0 %v4991
    %5223 = vmatpush2.bf16.msra.mxu0 %v4990
    %5224 = vmatprep.subr.bf16.mxu0 %v4989
    %5225 = vmatpush2.bf16.msra.mxu0 %v4988
    %5226 = vmatprep.subr.bf16.mxu0 %v4987
    %5227 = vmatpush2.bf16.msra.mxu0 %v4986
    %5228 = vmatprep.subr.bf16.mxu0 %v4985
    %5229 = vmatpush2.bf16.msra.mxu0 %v4984
    %5230 = vmatprep.subr.bf16.mxu0 %v4983
    %5231 = vmatpush2.bf16.msra.mxu0 %v4982
    %5232 = vmatprep.subr.bf16.mxu0 %v4981
    %5233 = vmatpush2.bf16.msra.mxu0 %v4980
    %5234 = vmatprep.subr.bf16.mxu0 %v4979
    %5235 = vmatpush2.bf16.msra.mxu0 %v4978
    %5236 = vmatprep.subr.bf16.mxu0 %v4977
    %5237 = vmatpush2.bf16.msra.mxu0 %v4976
    %5238 = vmatprep.mubr.bf16.mxu0 %v4570
    %5239 = vmatmul.mubr.bf16.gmra.mxu0 %v4569
    %v5240 = vpop.f32.mrf.mxu0
    %v5241 = vadd.f32 %v5200, %v5240
    %v5242 = vpop.f32.mrf.mxu0
    %v5243 = vadd.f32 %v5202, %v5242
    %v5244 = vpop.f32.mrf.mxu0
    %v5245 = vpop.f32.mrf.mxu0
    %5246 = vdwg.mxu0
    %5247 = vmatprep.subr.bf16.mxu0 0
    %5248 = vmatpush1.bf16.msra.mxu0 0
    %5249 = vmatprep.subr.bf16.mxu0 0
    %5250 = vmatpush1.bf16.msra.mxu0 0
    %5251 = vmatprep.subr.bf16.mxu0 %v5122
    %5252 = vmatpush1.bf16.msra.mxu0 %v5119
    %5253 = vmatprep.subr.bf16.mxu0 %v5001
    %5254 = vmatpush1.bf16.msra.mxu0 %v5000
    %5255 = vmatprep.subr.bf16.mxu0 %v4999
    %5256 = vmatpush1.bf16.msra.mxu0 %v4998
    %5257 = vmatprep.subr.bf16.mxu0 %v4997
    %5258 = vmatpush1.bf16.msra.mxu0 %v4996
    %5259 = vmatprep.subr.bf16.mxu0 %v4995
    %5260 = vmatpush1.bf16.msra.mxu0 %v4994
    %5261 = vmatprep.subr.bf16.mxu0 %v4993
    %5262 = vmatpush1.bf16.msra.mxu0 %v4992
    %5263 = vmatprep.subr.bf16.mxu0 0
    %5264 = vmatpush2.bf16.msra.mxu0 0
    %5265 = vmatprep.subr.bf16.mxu0 0
    %5266 = vmatpush2.bf16.msra.mxu0 0
    %5267 = vmatprep.subr.bf16.mxu0 0
    %5268 = vmatpush2.bf16.msra.mxu0 0
    %5269 = vmatprep.subr.bf16.mxu0 0
    %5270 = vmatpush2.bf16.msra.mxu0 0
    %5271 = vmatprep.subr.bf16.mxu0 0
    %5272 = vmatpush2.bf16.msra.mxu0 0
    %5273 = vmatprep.subr.bf16.mxu0 0
    %5274 = vmatpush2.bf16.msra.mxu0 0
    %5275 = vmatprep.subr.bf16.mxu0 0
    %5276 = vmatpush2.bf16.msra.mxu0 0
    %5277 = vmatprep.subr.bf16.mxu0 0
    %5278 = vmatpush2.bf16.msra.mxu0 0
    %5279 = vmatprep.mubr.bf16.mxu0 0
    %5280 = vmatmul.mubr.bf16.gmra.mxu0 %v5112
    %v5281 = vpop.f32.mrf.mxu0
    %v5282 = vadd.f32 %v5241, %v5281
    %v5283 = vpop.f32.mrf.mxu0
    %v5284 = vadd.f32 %v5243, %v5283
    %v5285 = vpop.f32.mrf.mxu0
    %v5286 = vpop.f32.mrf.mxu0
    %5287 = vdwg.mxu0
    %v5288 = vpack.c.bf16 %v5282, %v5282
    %v5289 = vpack.c.bf16 %v5284, %v5284
    %v5292 = vunpack.c.l.b16 %v5288
    %v5293 = vunpack.c.l.b16 %v5289
    %v5294 = vpack.c.b16 %v5293, %v5292
    %vm5296 = vcmask 1043456
    %vm5297 = vcmask 556036
    %vm5298 = vmor %vm5297, %vm5296
    %5299 = vst.msk [vmem:[#allocation4] sm:$0xff] %vm5298, %v5294
    %v5300 = vld [vmem:[#allocation3 + $0x40] sm:$0xff]
    %v5301 = vld [vmem:[#allocation3 + $0x48] sm:$0xff]
    %v5302 = vld [vmem:[#allocation3 + $0x50] sm:$0xff]
    %v5303 = vld [vmem:[#allocation3 + $0x58] sm:$0xff]
    %v5304 = vld [vmem:[#allocation3 + $0x60] sm:$0xff]
    %v5305 = vld [vmem:[#allocation3 + $0x68] sm:$0xff]
    %v5306 = vld [vmem:[#allocation3 + $0x70] sm:$0xff]
    %5314 = vrot.lane.b32.xlu0 %v5300, 127
    %v5315 = vpop.permute.xlu0 %5314
    %5316 = vrot.lane.b32.xlu0 %v5301, 127
    %v5317 = vpop.permute.xlu0 %5316
    %5318 = vrot.lane.b32.xlu0 %v5302, 127
    %v5319 = vpop.permute.xlu0 %5318
    %5320 = vrot.lane.b32.xlu0 %v5303, 127
    %v5321 = vpop.permute.xlu0 %5320
    %5322 = vrot.lane.b32.xlu0 %v5304, 127
    %v5323 = vpop.permute.xlu0 %5322
    %5324 = vrot.lane.b32.xlu0 %v5305, 127
    %v5325 = vpop.permute.xlu0 %5324
    %5326 = vrot.lane.b32.xlu0 %v5306, 127
    %v5327 = vpop.permute.xlu0 %5326
    %v5328 = vsel %vm4502, %v5315, %v5317
    %v5329 = vsel %vm4502, %v5317, %v5319
    %v5330 = vsel %vm4502, %v5319, %v5321
    %v5331 = vsel %vm4502, %v5321, %v5323
    %v5332 = vsel %vm4502, %v5323, %v5325
    %v5333 = vsel %vm4502, %v5325, %v5327
    %v5341 = vmax.f32 %v5300, %v5328
    %v5342 = vmax.f32 %v5301, %v5329
    %v5343 = vmax.f32 %v5302, %v5330
    %v5344 = vmax.f32 %v5303, %v5331
    %v5345 = vmax.f32 %v5304, %v5332
    %v5346 = vmax.f32 %v5305, %v5333
    %v5347 = vmax.f32 %v5306, %v5327
    %5355 = vrot.lane.b32.xlu0 %v5341, 96
    %v5356 = vpop.permute.xlu0 %5355
    %5357 = vrot.lane.b32.xlu0 %v5342, 96
    %v5358 = vpop.permute.xlu0 %5357
    %5359 = vrot.lane.b32.xlu0 %v5343, 96
    %v5360 = vpop.permute.xlu0 %5359
    %5361 = vrot.lane.b32.xlu0 %v5344, 96
    %v5362 = vpop.permute.xlu0 %5361
    %5363 = vrot.lane.b32.xlu0 %v5345, 96
    %v5364 = vpop.permute.xlu0 %5363
    %5365 = vrot.lane.b32.xlu0 %v5346, 96
    %v5366 = vpop.permute.xlu0 %5365
    %5367 = vrot.lane.b32.xlu0 %v5347, 96
    %v5368 = vpop.permute.xlu0 %5367
    %v5369 = vsel %vm4544, %v5356, %v5358
    %v5370 = vsel %vm4544, %v5358, %v5360
    %v5371 = vsel %vm4544, %v5360, %v5362
    %v5372 = vsel %vm4544, %v5362, %v5364
    %v5373 = vsel %vm4544, %v5364, %v5366
    %v5374 = vsel %vm4544, %v5366, %v5368
    %v5382 = vmax.f32 %v5341, %v5369
    %v5383 = vmax.f32 %v5342, %v5370
    %v5384 = vmax.f32 %v5343, %v5371
    %v5385 = vmax.f32 %v5344, %v5372
    %v5386 = vmax.f32 %v5345, %v5373
    %v5387 = vmax.f32 %v5346, %v5374
    %v5388 = vmax.f32 %v5347, %v5368
    %v5389 = vpack.c.bf16 %v5382, %v5382
    %v5390 = vpack.c.bf16 %v5383, %v5383
    %v5391 = vpack.c.bf16 %v5384, %v5384
    %v5392 = vpack.c.bf16 %v5385, %v5385
    %v5393 = vpack.c.bf16 %v5386, %v5386
    %v5394 = vpack.c.bf16 %v5387, %v5387
    %v5395 = vpack.c.bf16 %v5388, %v5388
    %v5397 = vsel %vm5110, %v5395, 0
    %5399 = vmatprep.subr.bf16.mxu0 %v4911
    %5400 = vmatpush1.bf16.msra.mxu0 %v4910
    %5401 = vmatprep.subr.bf16.mxu0 %v4909
    %5402 = vmatpush1.bf16.msra.mxu0 %v4908
    %5403 = vmatprep.subr.bf16.mxu0 %v4907
    %5404 = vmatpush1.bf16.msra.mxu0 %v4906
    %5405 = vmatprep.subr.bf16.mxu0 %v4905
    %5406 = vmatpush1.bf16.msra.mxu0 %v4904
    %5407 = vmatprep.subr.bf16.mxu0 %v4903
    %5408 = vmatpush1.bf16.msra.mxu0 %v4902
    %5409 = vmatprep.subr.bf16.mxu0 %v4901
    %5410 = vmatpush1.bf16.msra.mxu0 %v4900
    %5411 = vmatprep.subr.bf16.mxu0 %v4899
    %5412 = vmatpush1.bf16.msra.mxu0 %v4898
    %5413 = vmatprep.subr.bf16.mxu0 %v4897
    %5414 = vmatpush1.bf16.msra.mxu0 %v4896
    %5415 = vmatprep.subr.bf16.mxu0 %v4927
    %5416 = vmatpush2.bf16.msra.mxu0 %v4926
    %5417 = vmatprep.subr.bf16.mxu0 %v4925
    %5418 = vmatpush2.bf16.msra.mxu0 %v4924
    %5419 = vmatprep.subr.bf16.mxu0 %v4923
    %5420 = vmatpush2.bf16.msra.mxu0 %v4922
    %5421 = vmatprep.subr.bf16.mxu0 %v4921
    %5422 = vmatpush2.bf16.msra.mxu0 %v4920
    %5423 = vmatprep.subr.bf16.mxu0 %v4919
    %5424 = vmatpush2.bf16.msra.mxu0 %v4918
    %5425 = vmatprep.subr.bf16.mxu0 %v4917
    %5426 = vmatpush2.bf16.msra.mxu0 %v4916
    %5427 = vmatprep.subr.bf16.mxu0 %v4915
    %5428 = vmatpush2.bf16.msra.mxu0 %v4914
    %5429 = vmatprep.subr.bf16.mxu0 %v4913
    %5430 = vmatpush2.bf16.msra.mxu0 %v4912
    %5431 = vmatprep.mubr.bf16.mxu0 %v5390
    %5432 = vmatmul.mubr.bf16.gmra.mxu0 %v5389
    %v5433 = vpop.f32.mrf.mxu0
    %v5434 = vadd.f32 0.0, %v5433
    %v5435 = vpop.f32.mrf.mxu0
    %v5436 = vadd.f32 0.0, %v5435
    %v5437 = vpop.f32.mrf.mxu0
    %v5438 = vpop.f32.mrf.mxu0
    %5439 = vdwg.mxu0
    %5440 = vmatprep.subr.bf16.mxu0 %v4943
    %5441 = vmatpush1.bf16.msra.mxu0 %v4942
    %5442 = vmatprep.subr.bf16.mxu0 %v4941
    %5443 = vmatpush1.bf16.msra.mxu0 %v4940
    %5444 = vmatprep.subr.bf16.mxu0 %v4939
    %5445 = vmatpush1.bf16.msra.mxu0 %v4938
    %5446 = vmatprep.subr.bf16.mxu0 %v4937
    %5447 = vmatpush1.bf16.msra.mxu0 %v4936
    %5448 = vmatprep.subr.bf16.mxu0 %v4935
    %5449 = vmatpush1.bf16.msra.mxu0 %v4934
    %5450 = vmatprep.subr.bf16.mxu0 %v4933
    %5451 = vmatpush1.bf16.msra.mxu0 %v4932
    %5452 = vmatprep.subr.bf16.mxu0 %v4931
    %5453 = vmatpush1.bf16.msra.mxu0 %v4930
    %5454 = vmatprep.subr.bf16.mxu0 %v4929
    %5455 = vmatpush1.bf16.msra.mxu0 %v4928
    %5456 = vmatprep.subr.bf16.mxu0 %v4959
    %5457 = vmatpush2.bf16.msra.mxu0 %v4958
    %5458 = vmatprep.subr.bf16.mxu0 %v4957
    %5459 = vmatpush2.bf16.msra.mxu0 %v4956
    %5460 = vmatprep.subr.bf16.mxu0 %v4955
    %5461 = vmatpush2.bf16.msra.mxu0 %v4954
    %5462 = vmatprep.subr.bf16.mxu0 %v4953
    %5463 = vmatpush2.bf16.msra.mxu0 %v4952
    %5464 = vmatprep.subr.bf16.mxu0 %v4951
    %5465 = vmatpush2.bf16.msra.mxu0 %v4950
    %5466 = vmatprep.subr.bf16.mxu0 %v4949
    %5467 = vmatpush2.bf16.msra.mxu0 %v4948
    %5468 = vmatprep.subr.bf16.mxu0 %v4947
    %5469 = vmatpush2.bf16.msra.mxu0 %v4946
    %5470 = vmatprep.subr.bf16.mxu0 %v4945
    %5471 = vmatpush2.bf16.msra.mxu0 %v4944
    %5472 = vmatprep.mubr.bf16.mxu0 %v5392
    %5473 = vmatmul.mubr.bf16.gmra.mxu0 %v5391
    %v5474 = vpop.f32.mrf.mxu0
    %v5475 = vadd.f32 %v5434, %v5474
    %v5476 = vpop.f32.mrf.mxu0
    %v5477 = vadd.f32 %v5436, %v5476
    %v5478 = vpop.f32.mrf.mxu0
    %v5479 = vpop.f32.mrf.mxu0
    %5480 = vdwg.mxu0
    %5481 = vmatprep.subr.bf16.mxu0 %v4975
    %5482 = vmatpush1.bf16.msra.mxu0 %v4974
    %5483 = vmatprep.subr.bf16.mxu0 %v4973
    %5484 = vmatpush1.bf16.msra.mxu0 %v4972
    %5485 = vmatprep.subr.bf16.mxu0 %v4971
    %5486 = vmatpush1.bf16.msra.mxu0 %v4970
    %5487 = vmatprep.subr.bf16.mxu0 %v4969
    %5488 = vmatpush1.bf16.msra.mxu0 %v4968
    %5489 = vmatprep.subr.bf16.mxu0 %v4967
    %5490 = vmatpush1.bf16.msra.mxu0 %v4966
    %5491 = vmatprep.subr.bf16.mxu0 %v4965
    %5492 = vmatpush1.bf16.msra.mxu0 %v4964
    %5493 = vmatprep.subr.bf16.mxu0 %v4963
    %5494 = vmatpush1.bf16.msra.mxu0 %v4962
    %5495 = vmatprep.subr.bf16.mxu0 %v4961
    %5496 = vmatpush1.bf16.msra.mxu0 %v4960
    %5497 = vmatprep.subr.bf16.mxu0 %v4991
    %5498 = vmatpush2.bf16.msra.mxu0 %v4990
    %5499 = vmatprep.subr.bf16.mxu0 %v4989
    %5500 = vmatpush2.bf16.msra.mxu0 %v4988
    %5501 = vmatprep.subr.bf16.mxu0 %v4987
    %5502 = vmatpush2.bf16.msra.mxu0 %v4986
    %5503 = vmatprep.subr.bf16.mxu0 %v4985
    %5504 = vmatpush2.bf16.msra.mxu0 %v4984
    %5505 = vmatprep.subr.bf16.mxu0 %v4983
    %5506 = vmatpush2.bf16.msra.mxu0 %v4982
    %5507 = vmatprep.subr.bf16.mxu0 %v4981
    %5508 = vmatpush2.bf16.msra.mxu0 %v4980
    %5509 = vmatprep.subr.bf16.mxu0 %v4979
    %5510 = vmatpush2.bf16.msra.mxu0 %v4978
    %5511 = vmatprep.subr.bf16.mxu0 %v4977
    %5512 = vmatpush2.bf16.msra.mxu0 %v4976
    %5513 = vmatprep.mubr.bf16.mxu0 %v5394
    %5514 = vmatmul.mubr.bf16.gmra.mxu0 %v5393
    %v5515 = vpop.f32.mrf.mxu0
    %v5516 = vadd.f32 %v5475, %v5515
    %v5517 = vpop.f32.mrf.mxu0
    %v5518 = vadd.f32 %v5477, %v5517
    %v5519 = vpop.f32.mrf.mxu0
    %v5520 = vpop.f32.mrf.mxu0
    %5521 = vdwg.mxu0
    %5522 = vmatprep.subr.bf16.mxu0 0
    %5523 = vmatpush1.bf16.msra.mxu0 0
    %5524 = vmatprep.subr.bf16.mxu0 0
    %5525 = vmatpush1.bf16.msra.mxu0 0
    %5526 = vmatprep.subr.bf16.mxu0 %v5122
    %5527 = vmatpush1.bf16.msra.mxu0 %v5119
    %5528 = vmatprep.subr.bf16.mxu0 %v5001
    %5529 = vmatpush1.bf16.msra.mxu0 %v5000
    %5530 = vmatprep.subr.bf16.mxu0 %v4999
    %5531 = vmatpush1.bf16.msra.mxu0 %v4998
    %5532 = vmatprep.subr.bf16.mxu0 %v4997
    %5533 = vmatpush1.bf16.msra.mxu0 %v4996
    %5534 = vmatprep.subr.bf16.mxu0 %v4995
    %5535 = vmatpush1.bf16.msra.mxu0 %v4994
    %5536 = vmatprep.subr.bf16.mxu0 %v4993
    %5537 = vmatpush1.bf16.msra.mxu0 %v4992
    %5538 = vmatprep.subr.bf16.mxu0 0
    %5539 = vmatpush2.bf16.msra.mxu0 0
    %5540 = vmatprep.subr.bf16.mxu0 0
    %5541 = vmatpush2.bf16.msra.mxu0 0
    %5542 = vmatprep.subr.bf16.mxu0 0
    %5543 = vmatpush2.bf16.msra.mxu0 0
    %5544 = vmatprep.subr.bf16.mxu0 0
    %5545 = vmatpush2.bf16.msra.mxu0 0
    %5546 = vmatprep.subr.bf16.mxu0 0
    %5547 = vmatpush2.bf16.msra.mxu0 0
    %5548 = vmatprep.subr.bf16.mxu0 0
    %5549 = vmatpush2.bf16.msra.mxu0 0
    %5550 = vmatprep.subr.bf16.mxu0 0
    %5551 = vmatpush2.bf16.msra.mxu0 0
    %5552 = vmatprep.subr.bf16.mxu0 0
    %5553 = vmatpush2.bf16.msra.mxu0 0
    %5554 = vmatprep.mubr.bf16.mxu0 0
    %5555 = vmatmul.mubr.bf16.gmra.mxu0 %v5397
    %v5556 = vpop.f32.mrf.mxu0
    %v5557 = vadd.f32 %v5516, %v5556
    %v5558 = vpop.f32.mrf.mxu0
    %v5559 = vadd.f32 %v5518, %v5558
    %v5560 = vpop.f32.mrf.mxu0
    %v5561 = vpop.f32.mrf.mxu0
    %5562 = vdwg.mxu0
    %v5563 = vpack.c.bf16 %v5557, %v5557
    %v5564 = vpack.c.bf16 %v5559, %v5559
    %v5567 = vunpack.c.l.b16 %v5563
    %v5568 = vunpack.c.l.b16 %v5564
    %v5569 = vpack.c.b16 %v5568, %v5567
    %5570 = vrot.lane.b32.xlu0 %v5569, 68
    %v5571 = vpop.permute.xlu0 %5570
    %v5572 = vrot.slane %v5571, 4
    %vm5573 = vcmask 556032
    %v5574 = vsel %vm5573, %v5572, %v5571
    %vm5577 = vcmask 1044000
    %vm5578 = vcmask 1047556
    %vm5579 = vmor %vm5578, %vm5577
    %5580 = vst.msk [vmem:[#allocation4 + $0x4] sm:$0xff] %vm5579, %v5574
    %vm5581 = vcmask 60416
    %5582 = vst.msk [vmem:[#allocation4 + $0xc] sm:$0xf] %vm5581, %v5572
    %v5583 = vld [vmem:[#allocation4] sm:$0xff]
    %v5584 = vld [vmem:[#allocation4 + $0x8] sm:$0xf]
    %5585 = vst [vmem:[#allocation5] sm:$0xff] %v5583
    %vm5586 = vcmask 617472
    %5587 = vst.msk [vmem:[#allocation5 + $0x8] sm:$0xf] %vm5586, %v5584
    %v5588 = vld [vmem:[#allocation4] sm:$0xff]
    %v5589 = vld [vmem:[#allocation4 + $0x8] sm:$0xf]
    %5592 = vrot.lane.b32.xlu0 %v5588, 127
    %v5593 = vpop.permute.xlu0 %5592
    %5594 = vrot.lane.b32.xlu0 %v5589, 127
    %v5595 = vpop.permute.xlu0 %5594
    %v5596 = vrot.slane %v5593, 4
    %v5597 = vrot.slane %v5595, 4
    %v5598 = vsel %vm157, %v5596, %v5597
    %v5599 = vsel %vm159, %v5593, %v5598
    %5602 = vst [vmem:[#allocation5 + $0xc] sm:$0xff] %v5599
    %5603 = vst.msk [vmem:[#allocation5 + $0x14] sm:$0xf] %vm5586, %v5595
    %v5604 = vld [vmem:[#allocation4] sm:$0xff]
    %v5605 = vld [vmem:[#allocation4 + $0x8] sm:$0xf]
    %5608 = vrot.lane.b32.xlu0 %v5604, 126
    %v5609 = vpop.permute.xlu0 %5608
    %5610 = vrot.lane.b32.xlu0 %v5605, 126
    %v5611 = vpop.permute.xlu0 %5610
    %v5612 = vrot.slane %v5609, 4
    %v5613 = vrot.slane %v5611, 4
    %v5614 = vsel %vm157, %v5612, %v5613
    %v5615 = vsel %vm234, %v5609, %v5614
    %5618 = vst [vmem:[#allocation5 + $0x18] sm:$0xff] %v5615
    %5619 = vst.msk [vmem:[#allocation5 + $0x20] sm:$0xf] %vm5586, %v5611
    %v5620 = vld [vmem:[#allocation4] sm:$0xff]
    %v5621 = vld [vmem:[#allocation4 + $0x8] sm:$0xf]
    %5624 = vrot.lane.b32.xlu0 %v5620, 125
    %v5625 = vpop.permute.xlu0 %5624
    %5626 = vrot.lane.b32.xlu0 %v5621, 125
    %v5627 = vpop.permute.xlu0 %5626
    %v5628 = vrot.slane %v5625, 4
    %v5629 = vrot.slane %v5627, 4
    %v5630 = vsel %vm157, %v5628, %v5629
    %v5631 = vsel %vm310, %v5625, %v5630
    %5634 = vst [vmem:[#allocation5 + $0x24] sm:$0xff] %v5631
    %5635 = vst.msk [vmem:[#allocation5 + $0x2c] sm:$0xf] %vm5586, %v5627
    %v5636 = vld [vmem:[#allocation4] sm:$0xff]
    %v5637 = vld [vmem:[#allocation4 + $0x8] sm:$0xf]
    %5640 = vrot.lane.b32.xlu0 %v5636, 124
    %v5641 = vpop.permute.xlu0 %5640
    %5642 = vrot.lane.b32.xlu0 %v5637, 124
    %v5643 = vpop.permute.xlu0 %5642
    %v5644 = vrot.slane %v5641, 4
    %v5645 = vrot.slane %v5643, 4
    %v5646 = vsel %vm157, %v5644, %v5645
    %v5647 = vsel %vm385, %v5641, %v5646
    %5650 = vst [vmem:[#allocation5 + $0x30] sm:$0xff] %v5647
    %5651 = vst.msk [vmem:[#allocation5 + $0x38] sm:$0xf] %vm5586, %v5643
    %v5652 = vld [vmem:[#allocation4] sm:$0xff]
    %v5653 = vld [vmem:[#allocation4 + $0x8] sm:$0xf]
    %5656 = vrot.lane.b32.xlu0 %v5652, 114
    %v5657 = vpop.permute.xlu0 %5656
    %5658 = vrot.lane.b32.xlu0 %v5653, 114
    %v5659 = vpop.permute.xlu0 %5658
    %v5660 = vrot.slane %v5657, 4
    %v5661 = vrot.slane %v5659, 4
    %v5662 = vsel %vm157, %v5660, %v5661
    %vm5663 = vcmask 932864
    %v5664 = vsel %vm5663, %v5657, %v5662
    %5667 = vst [vmem:[#allocation5 + $0x3c] sm:$0xff] %v5664
    %5668 = vst.msk [vmem:[#allocation5 + $0x44] sm:$0xf] %vm5586, %v5659
    %v5669 = vld [vmem:[#allocation4] sm:$0xff]
    %v5670 = vld [vmem:[#allocation4 + $0x8] sm:$0xf]
    %5673 = vrot.lane.b32.xlu0 %v5669, 113
    %v5674 = vpop.permute.xlu0 %5673
    %5675 = vrot.lane.b32.xlu0 %v5670, 113
    %v5676 = vpop.permute.xlu0 %5675
    %v5677 = vrot.slane %v5674, 4
    %v5678 = vrot.slane %v5676, 4
    %v5679 = vsel %vm157, %v5677, %v5678
    %vm5680 = vcmask 924672
    %v5681 = vsel %vm5680, %v5674, %v5679
    %5684 = vst [vmem:[#allocation5 + $0x48] sm:$0xff] %v5681
    %5685 = vst.msk [vmem:[#allocation5 + $0x50] sm:$0xf] %vm5586, %v5676
    %v5686 = vld [vmem:[#allocation4] sm:$0xff]
    %v5687 = vld [vmem:[#allocation4 + $0x8] sm:$0xf]
    %5690 = vrot.lane.b32.xlu0 %v5686, 112
    %v5691 = vpop.permute.xlu0 %5690
    %5692 = vrot.lane.b32.xlu0 %v5687, 112
    %v5693 = vpop.permute.xlu0 %5692
    %v5694 = vrot.slane %v5691, 4
    %v5695 = vrot.slane %v5693, 4
    %v5696 = vsel %vm157, %v5694, %v5695
    %vm5697 = vcmask 916480
    %v5698 = vsel %vm5697, %v5691, %v5696
    %5701 = vst [vmem:[#allocation5 + $0x54] sm:$0xff] %v5698
    %5702 = vst.msk [vmem:[#allocation5 + $0x5c] sm:$0xf] %vm5586, %v5693
    %v5703 = vld [vmem:[#allocation4] sm:$0xff]
    %v5704 = vld [vmem:[#allocation4 + $0x8] sm:$0xf]
    %5707 = vrot.lane.b32.xlu0 %v5703, 111
    %v5708 = vpop.permute.xlu0 %5707
    %5709 = vrot.lane.b32.xlu0 %v5704, 111
    %v5710 = vpop.permute.xlu0 %5709
    %v5711 = vrot.slane %v5708, 4
    %v5712 = vrot.slane %v5710, 4
    %v5713 = vsel %vm157, %v5711, %v5712
    %vm5714 = vcmask 908288
    %v5715 = vsel %vm5714, %v5708, %v5713
    %5718 = vst [vmem:[#allocation5 + $0x60] sm:$0xff] %v5715
    %5719 = vst.msk [vmem:[#allocation5 + $0x68] sm:$0xf] %vm5586, %v5710
    %v5720 = vld [vmem:[#allocation4] sm:$0xff]
    %v5721 = vld [vmem:[#allocation4 + $0x8] sm:$0xf]
    %5724 = vrot.lane.b32.xlu0 %v5720, 110
    %v5725 = vpop.permute.xlu0 %5724
    %5726 = vrot.lane.b32.xlu0 %v5721, 110
    %v5727 = vpop.permute.xlu0 %5726
    %v5728 = vrot.slane %v5725, 4
    %v5729 = vrot.slane %v5727, 4
    %v5730 = vsel %vm157, %v5728, %v5729
    %vm5731 = vcmask 900096
    %v5732 = vsel %vm5731, %v5725, %v5730
    %5735 = vst [vmem:[#allocation5 + $0x6c] sm:$0xff] %v5732
    %5736 = vst.msk [vmem:[#allocation5 + $0x74] sm:$0xf] %vm5586, %v5727
    %v5737 = vld [vmem:[#allocation4] sm:$0xff]
    %v5738 = vld [vmem:[#allocation4 + $0x8] sm:$0xf]
    %5741 = vrot.lane.b32.xlu0 %v5737, 100
    %v5742 = vpop.permute.xlu0 %5741
    %5743 = vrot.lane.b32.xlu0 %v5738, 100
    %v5744 = vpop.permute.xlu0 %5743
    %v5745 = vrot.slane %v5742, 4
    %v5746 = vrot.slane %v5744, 4
    %v5747 = vsel %vm157, %v5745, %v5746
    %vm5748 = vcmask 818176
    %v5749 = vsel %vm5748, %v5742, %v5747
    %5752 = vst [vmem:[#allocation5 + $0x78] sm:$0xff] %v5749
    %5753 = vst.msk [vmem:[#allocation5 + $0x80] sm:$0xf] %vm5586, %v5744
    %v5754 = vld [vmem:[#allocation4] sm:$0xff]
    %v5755 = vld [vmem:[#allocation4 + $0x8] sm:$0xf]
    %5758 = vrot.lane.b32.xlu0 %v5754, 99
    %v5759 = vpop.permute.xlu0 %5758
    %5760 = vrot.lane.b32.xlu0 %v5755, 99
    %v5761 = vpop.permute.xlu0 %5760
    %v5762 = vrot.slane %v5759, 4
    %v5763 = vrot.slane %v5761, 4
    %v5764 = vsel %vm157, %v5762, %v5763
    %vm5765 = vcmask 809984
    %v5766 = vsel %vm5765, %v5759, %v5764
    %5769 = vst [vmem:[#allocation5 + $0x84] sm:$0xff] %v5766
    %5770 = vst.msk [vmem:[#allocation5 + $0x8c] sm:$0xf] %vm5586, %v5761
    %v5771 = vld [vmem:[#allocation4] sm:$0xff]
    %v5772 = vld [vmem:[#allocation4 + $0x8] sm:$0xf]
    %5775 = vrot.lane.b32.xlu0 %v5771, 98
    %v5776 = vpop.permute.xlu0 %5775
    %5777 = vrot.lane.b32.xlu0 %v5772, 98
    %v5778 = vpop.permute.xlu0 %5777
    %v5779 = vrot.slane %v5776, 4
    %v5780 = vrot.slane %v5778, 4
    %v5781 = vsel %vm157, %v5779, %v5780
    %vm5782 = vcmask 801792
    %v5783 = vsel %vm5782, %v5776, %v5781
    %5786 = vst [vmem:[#allocation5 + $0x90] sm:$0xff] %v5783
    %5787 = vst.msk [vmem:[#allocation5 + $0x98] sm:$0xf] %vm5586, %v5778
    %v5788 = vld [vmem:[#allocation4] sm:$0xff]
    %v5789 = vld [vmem:[#allocation4 + $0x8] sm:$0xf]
    %5792 = vrot.lane.b32.xlu0 %v5788, 97
    %v5793 = vpop.permute.xlu0 %5792
    %5794 = vrot.lane.b32.xlu0 %v5789, 97
    %v5795 = vpop.permute.xlu0 %5794
    %v5796 = vrot.slane %v5793, 4
    %v5797 = vrot.slane %v5795, 4
    %v5798 = vsel %vm157, %v5796, %v5797
    %vm5799 = vcmask 793600
    %v5800 = vsel %vm5799, %v5793, %v5798
    %5803 = vst [vmem:[#allocation5 + $0x9c] sm:$0xff] %v5800
    %5804 = vst.msk [vmem:[#allocation5 + $0xa4] sm:$0xf] %vm5586, %v5795
    %v5805 = vld [vmem:[#allocation4] sm:$0xff]
    %v5806 = vld [vmem:[#allocation4 + $0x8] sm:$0xf]
    %5809 = vrot.lane.b32.xlu0 %v5805, 96
    %v5810 = vpop.permute.xlu0 %5809
    %5811 = vrot.lane.b32.xlu0 %v5806, 96
    %v5812 = vpop.permute.xlu0 %5811
    %v5813 = vrot.slane %v5810, 4
    %v5814 = vrot.slane %v5812, 4
    %v5815 = vsel %vm157, %v5813, %v5814
    %v5816 = vsel %vm461, %v5810, %v5815
    %5819 = vst [vmem:[#allocation5 + $0xa8] sm:$0xff] %v5816
    %5820 = vst.msk [vmem:[#allocation5 + $0xb0] sm:$0xf] %vm5586, %v5812
    %v5821 = vld [vmem:[#allocation4] sm:$0xff]
    %v5822 = vld [vmem:[#allocation4 + $0x8] sm:$0xf]
    %5825 = vrot.lane.b32.xlu0 %v5821, 86
    %v5826 = vpop.permute.xlu0 %5825
    %5827 = vrot.lane.b32.xlu0 %v5822, 86
    %v5828 = vpop.permute.xlu0 %5827
    %v5829 = vrot.slane %v5826, 4
    %v5830 = vrot.slane %v5828, 4
    %v5831 = vsel %vm157, %v5829, %v5830
    %vm5832 = vcmask 703488
    %v5833 = vsel %vm5832, %v5826, %v5831
    %5836 = vst [vmem:[#allocation5 + $0xb4] sm:$0xff] %v5833
    %5837 = vst.msk [vmem:[#allocation5 + $0xbc] sm:$0xf] %vm5586, %v5828
    %v5838 = vld [vmem:[#allocation4] sm:$0xff]
    %v5839 = vld [vmem:[#allocation4 + $0x8] sm:$0xf]
    %5842 = vrot.lane.b32.xlu0 %v5838, 85
    %v5843 = vpop.permute.xlu0 %5842
    %5844 = vrot.lane.b32.xlu0 %v5839, 85
    %v5845 = vpop.permute.xlu0 %5844
    %v5846 = vrot.slane %v5843, 4
    %v5847 = vrot.slane %v5845, 4
    %v5848 = vsel %vm157, %v5846, %v5847
    %vm5849 = vcmask 695296
    %v5850 = vsel %vm5849, %v5843, %v5848
    %5853 = vst [vmem:[#allocation5 + $0xc0] sm:$0xff] %v5850
    %5854 = vst.msk [vmem:[#allocation5 + $0xc8] sm:$0xf] %vm5586, %v5845
    %v5855 = vld [vmem:[#allocation4] sm:$0xff]
    %v5856 = vld [vmem:[#allocation4 + $0x8] sm:$0xf]
    %5859 = vrot.lane.b32.xlu0 %v5855, 84
    %v5860 = vpop.permute.xlu0 %5859
    %5861 = vrot.lane.b32.xlu0 %v5856, 84
    %v5862 = vpop.permute.xlu0 %5861
    %v5863 = vrot.slane %v5860, 4
    %v5864 = vrot.slane %v5862, 4
    %v5865 = vsel %vm157, %v5863, %v5864
    %vm5866 = vcmask 687104
    %v5867 = vsel %vm5866, %v5860, %v5865
    %5870 = vst [vmem:[#allocation5 + $0xcc] sm:$0xff] %v5867
    %5871 = vst.msk [vmem:[#allocation5 + $0xd4] sm:$0xf] %vm5586, %v5862
    %v5872 = vld [vmem:[#allocation4] sm:$0xff]
    %v5873 = vld [vmem:[#allocation4 + $0x8] sm:$0xf]
    %5876 = vrot.lane.b32.xlu0 %v5872, 83
    %v5877 = vpop.permute.xlu0 %5876
    %5878 = vrot.lane.b32.xlu0 %v5873, 83
    %v5879 = vpop.permute.xlu0 %5878
    %v5880 = vrot.slane %v5877, 4
    %v5881 = vrot.slane %v5879, 4
    %v5882 = vsel %vm157, %v5880, %v5881
    %vm5883 = vcmask 678912
    %v5884 = vsel %vm5883, %v5877, %v5882
    %5887 = vst [vmem:[#allocation5 + $0xd8] sm:$0xff] %v5884
    %5888 = vst.msk [vmem:[#allocation5 + $0xe0] sm:$0xf] %vm5586, %v5879
    %v5889 = vld [vmem:[#allocation4] sm:$0xff]
    %v5890 = vld [vmem:[#allocation4 + $0x8] sm:$0xf]
    %5893 = vrot.lane.b32.xlu0 %v5889, 82
    %v5894 = vpop.permute.xlu0 %5893
    %5895 = vrot.lane.b32.xlu0 %v5890, 82
    %v5896 = vpop.permute.xlu0 %5895
    %v5897 = vrot.slane %v5894, 4
    %v5898 = vrot.slane %v5896, 4
    %v5899 = vsel %vm157, %v5897, %v5898
    %vm5900 = vcmask 670720
    %v5901 = vsel %vm5900, %v5894, %v5899
    %5904 = vst [vmem:[#allocation5 + $0xe4] sm:$0xff] %v5901
    %5905 = vst.msk [vmem:[#allocation5 + $0xec] sm:$0xf] %vm5586, %v5896
    %v5906 = vld [vmem:[#allocation4] sm:$0xff]
    %v5907 = vld [vmem:[#allocation4 + $0x8] sm:$0xff]
    %5910 = vrot.lane.b32.xlu0 %v5906, 72
    %v5911 = vpop.permute.xlu0 %5910
    %5912 = vrot.lane.b32.xlu0 %v5907, 72
    %v5913 = vpop.permute.xlu0 %5912
    %v5914 = vrot.slane %v5911, 4
    %v5915 = vrot.slane %v5913, 4
    %v5916 = vsel %vm157, %v5914, %v5915
    %vm5917 = vcmask 588800
    %v5918 = vsel %vm5917, %v5911, %v5916
    %v5919 = vsel %vm5917, %v5913, %v5915
    %5922 = vst [vmem:[#allocation5 + $0xf0] sm:$0xff] %v5918
    %5923 = vst.msk [vmem:[#allocation5 + $0xf8] sm:$0xf] %vm5586, %v5919
    %v5924 = vld [vmem:[#allocation4] sm:$0xff]
    %v5925 = vld [vmem:[#allocation4 + $0x8] sm:$0xff]
    %5928 = vrot.lane.b32.xlu0 %v5924, 71
    %v5929 = vpop.permute.xlu0 %5928
    %5930 = vrot.lane.b32.xlu0 %v5925, 71
    %v5931 = vpop.permute.xlu0 %5930
    %v5932 = vrot.slane %v5929, 4
    %v5933 = vrot.slane %v5931, 4
    %v5934 = vsel %vm157, %v5932, %v5933
    %vm5935 = vcmask 580608
    %v5936 = vsel %vm5935, %v5929, %v5934
    %v5937 = vsel %vm5935, %v5931, %v5933
    %5940 = vst [vmem:[#allocation5 + $0xfc] sm:$0xff] %v5936
    %5941 = vst.msk [vmem:[#allocation5 + $0x104] sm:$0xf] %vm5586, %v5937
    %v5942 = vld [vmem:[#allocation4] sm:$0xff]
    %v5943 = vld [vmem:[#allocation4 + $0x8] sm:$0xff]
    %5946 = vrot.lane.b32.xlu0 %v5942, 70
    %v5947 = vpop.permute.xlu0 %5946
    %5948 = vrot.lane.b32.xlu0 %v5943, 70
    %v5949 = vpop.permute.xlu0 %5948
    %v5950 = vrot.slane %v5947, 4
    %v5951 = vrot.slane %v5949, 4
    %v5952 = vsel %vm157, %v5950, %v5951
    %vm5953 = vcmask 572416
    %v5954 = vsel %vm5953, %v5947, %v5952
    %v5955 = vsel %vm5953, %v5949, %v5951
    %5958 = vst [vmem:[#allocation5 + $0x108] sm:$0xff] %v5954
    %5959 = vst.msk [vmem:[#allocation5 + $0x110] sm:$0xf] %vm5586, %v5955
    %v5960 = vld [vmem:[#allocation4] sm:$0xff]
    %v5961 = vld [vmem:[#allocation4 + $0x8] sm:$0xff]
    %5964 = vrot.lane.b32.xlu0 %v5960, 69
    %v5965 = vpop.permute.xlu0 %5964
    %5966 = vrot.lane.b32.xlu0 %v5961, 69
    %v5967 = vpop.permute.xlu0 %5966
    %v5968 = vrot.slane %v5965, 4
    %v5969 = vrot.slane %v5967, 4
    %v5970 = vsel %vm157, %v5968, %v5969
    %vm5971 = vcmask 564224
    %v5972 = vsel %vm5971, %v5965, %v5970
    %v5973 = vsel %vm5971, %v5967, %v5969
    %5976 = vst [vmem:[#allocation5 + $0x114] sm:$0xff] %v5972
    %5977 = vst.msk [vmem:[#allocation5 + $0x11c] sm:$0xf] %vm5586, %v5973
    %v5978 = vld [vmem:[#allocation4] sm:$0xff]
    %v5979 = vld [vmem:[#allocation4 + $0x8] sm:$0xff]
    %5982 = vrot.lane.b32.xlu0 %v5978, 68
    %v5983 = vpop.permute.xlu0 %5982
    %5984 = vrot.lane.b32.xlu0 %v5979, 68
    %v5985 = vpop.permute.xlu0 %5984
    %v5986 = vrot.slane %v5983, 4
    %v5987 = vrot.slane %v5985, 4
    %v5988 = vsel %vm157, %v5986, %v5987
    %v5989 = vsel %vm5573, %v5983, %v5988
    %v5990 = vsel %vm5573, %v5985, %v5987
    %5993 = vst [vmem:[#allocation5 + $0x120] sm:$0xff] %v5989
    %5994 = vst.msk [vmem:[#allocation5 + $0x128] sm:$0xf] %vm5586, %v5990
    %v5995 = vld [vmem:[#allocation5] sm:$0xff]
    %v5996 = vld [vmem:[#allocation5 + $0x8] sm:$0xf]
    %v5997 = vld [vmem:[#allocation5 + $0xc] sm:$0xff]
    %v5998 = vld [vmem:[#allocation5 + $0x14] sm:$0xf]
    %v5999 = vld [vmem:[#allocation5 + $0x18] sm:$0xff]
    %v6000 = vld [vmem:[#allocation5 + $0x20] sm:$0xf]
    %v6001 = vld [vmem:[#allocation5 + $0x24] sm:$0xff]
    %v6002 = vld [vmem:[#allocation5 + $0x2c] sm:$0xf]
    %v6003 = vld [vmem:[#allocation5 + $0x30] sm:$0xff]
    %v6004 = vld [vmem:[#allocation5 + $0x38] sm:$0xf]
    %v6005 = vld [vmem:[#allocation5 + $0x3c] sm:$0xff]
    %v6006 = vld [vmem:[#allocation5 + $0x44] sm:$0xf]
    %v6007 = vld [vmem:[#allocation5 + $0x48] sm:$0xff]
    %v6008 = vld [vmem:[#allocation5 + $0x50] sm:$0xf]
    %v6009 = vld [vmem:[#allocation5 + $0x54] sm:$0xff]
    %v6010 = vld [vmem:[#allocation5 + $0x5c] sm:$0xf]
    %v6011 = vld [vmem:[#allocation5 + $0x60] sm:$0xff]
    %v6012 = vld [vmem:[#allocation5 + $0x68] sm:$0xf]
    %v6013 = vld [vmem:[#allocation5 + $0x6c] sm:$0xff]
    %v6014 = vld [vmem:[#allocation5 + $0x74] sm:$0xf]
    %v6015 = vld [vmem:[#allocation5 + $0x78] sm:$0xff]
    %v6016 = vld [vmem:[#allocation5 + $0x80] sm:$0xf]
    %v6017 = vld [vmem:[#allocation5 + $0x84] sm:$0xff]
    %v6018 = vld [vmem:[#allocation5 + $0x8c] sm:$0xf]
    %v6019 = vld [vmem:[#allocation5 + $0x90] sm:$0xff]
    %v6020 = vld [vmem:[#allocation5 + $0x98] sm:$0xf]
    %v6021 = vld [vmem:[#allocation5 + $0x9c] sm:$0xff]
    %v6022 = vld [vmem:[#allocation5 + $0xa4] sm:$0xf]
    %v6023 = vld [vmem:[#allocation5 + $0xa8] sm:$0xff]
    %v6024 = vld [vmem:[#allocation5 + $0xb0] sm:$0xf]
    %v6025 = vld [vmem:[#allocation5 + $0xb4] sm:$0xff]
    %v6026 = vld [vmem:[#allocation5 + $0xbc] sm:$0xf]
    %v6027 = vld [vmem:[#allocation5 + $0xc0] sm:$0xff]
    %v6028 = vld [vmem:[#allocation5 + $0xc8] sm:$0xf]
    %v6029 = vld [vmem:[#allocation5 + $0xcc] sm:$0xff]
    %v6030 = vld [vmem:[#allocation5 + $0xd4] sm:$0xf]
    %v6031 = vld [vmem:[#allocation5 + $0xd8] sm:$0xff]
    %v6032 = vld [vmem:[#allocation5 + $0xe0] sm:$0xf]
    %v6033 = vld [vmem:[#allocation5 + $0xe4] sm:$0xff]
    %v6034 = vld [vmem:[#allocation5 + $0xec] sm:$0xf]
    %v6035 = vld [vmem:[#allocation5 + $0xf0] sm:$0xff]
    %v6036 = vld [vmem:[#allocation5 + $0xf8] sm:$0xf]
    %v6037 = vld [vmem:[#allocation5 + $0xfc] sm:$0xff]
    %v6038 = vld [vmem:[#allocation5 + $0x104] sm:$0xf]
    %v6039 = vld [vmem:[#allocation5 + $0x108] sm:$0xff]
    %v6040 = vld [vmem:[#allocation5 + $0x110] sm:$0xf]
    %v6041 = vld [vmem:[#allocation5 + $0x114] sm:$0xff]
    %v6042 = vld [vmem:[#allocation5 + $0x11c] sm:$0xf]
    %v6043 = vld [vmem:[#allocation5 + $0x120] sm:$0xff]
    %v6044 = vld [vmem:[#allocation5 + $0x128] sm:$0xf]
    %6046 = vset.pattern.permute.xlu0 0
    %6047 = vperm.xlu0 %6046, %v54
    %v6048 = vpop.permute.xlu0 %6047
    %6051 = vset.pattern.permute.xlu0 0
    %6052 = vperm.xlu0 %6051, %v55
    %v6053 = vpop.permute.xlu0 %6052
    %v6057 = vunpack.c.l.b16 %v52
    %v6058 = vunpack.c.h.b16 %v52
    %v6059 = vunpack.c.l.b16 %v53
    %v6060 = vunpack.c.h.b16 %v53
    %v6061 = vpack.c.b16 %v6059, %v6057
    %v6062 = vpack.c.b16 %v6060, %v6058
    %v6114 = vunpack.c.l.b16 %v5995
    %v6115 = vunpack.c.h.b16 %v5995
    %v6116 = vunpack.c.l.b16 %v5996
    %v6117 = vunpack.c.l.b16 %v5997
    %v6118 = vunpack.c.h.b16 %v5997
    %v6119 = vunpack.c.l.b16 %v5998
    %v6120 = vunpack.c.l.b16 %v5999
    %v6121 = vunpack.c.h.b16 %v5999
    %v6122 = vunpack.c.l.b16 %v6000
    %v6123 = vunpack.c.l.b16 %v6001
    %v6124 = vunpack.c.h.b16 %v6001
    %v6125 = vunpack.c.l.b16 %v6002
    %v6126 = vunpack.c.l.b16 %v6003
    %v6127 = vunpack.c.h.b16 %v6003
    %v6128 = vunpack.c.l.b16 %v6004
    %v6129 = vunpack.c.l.b16 %v6005
    %v6130 = vunpack.c.h.b16 %v6005
    %v6131 = vunpack.c.l.b16 %v6006
    %v6132 = vunpack.c.l.b16 %v6007
    %v6133 = vunpack.c.h.b16 %v6007
    %v6134 = vunpack.c.l.b16 %v6008
    %v6135 = vunpack.c.l.b16 %v6009
    %v6136 = vunpack.c.h.b16 %v6009
    %v6137 = vunpack.c.l.b16 %v6010
    %v6138 = vunpack.c.l.b16 %v6011
    %v6139 = vunpack.c.h.b16 %v6011
    %v6140 = vunpack.c.l.b16 %v6012
    %v6141 = vunpack.c.l.b16 %v6013
    %v6142 = vunpack.c.h.b16 %v6013
    %v6143 = vunpack.c.l.b16 %v6014
    %v6144 = vunpack.c.l.b16 %v6015
    %v6145 = vunpack.c.h.b16 %v6015
    %v6146 = vunpack.c.l.b16 %v6016
    %v6147 = vunpack.c.l.b16 %v6017
    %v6148 = vunpack.c.h.b16 %v6017
    %v6149 = vunpack.c.l.b16 %v6018
    %v6150 = vunpack.c.l.b16 %v6019
    %v6151 = vunpack.c.h.b16 %v6019
    %v6152 = vunpack.c.l.b16 %v6020
    %v6153 = vunpack.c.l.b16 %v6021
    %v6154 = vunpack.c.h.b16 %v6021
    %v6155 = vunpack.c.l.b16 %v6022
    %v6156 = vunpack.c.l.b16 %v6023
    %v6157 = vunpack.c.h.b16 %v6023
    %v6158 = vunpack.c.l.b16 %v6024
    %v6159 = vunpack.c.l.b16 %v6025
    %v6160 = vunpack.c.h.b16 %v6025
    %v6161 = vunpack.c.l.b16 %v6026
    %v6162 = vunpack.c.l.b16 %v6027
    %v6163 = vunpack.c.h.b16 %v6027
    %v6164 = vunpack.c.l.b16 %v6028
    %v6165 = vunpack.c.l.b16 %v6029
    %v6166 = vunpack.c.h.b16 %v6029
    %v6167 = vunpack.c.l.b16 %v6030
    %v6168 = vunpack.c.l.b16 %v6031
    %v6169 = vunpack.c.h.b16 %v6031
    %v6170 = vunpack.c.l.b16 %v6032
    %v6171 = vunpack.c.l.b16 %v6033
    %v6172 = vunpack.c.h.b16 %v6033
    %v6173 = vunpack.c.l.b16 %v6034
    %v6174 = vunpack.c.l.b16 %v6035
    %v6175 = vunpack.c.h.b16 %v6035
    %v6176 = vunpack.c.l.b16 %v6036
    %v6177 = vunpack.c.l.b16 %v6037
    %v6178 = vunpack.c.h.b16 %v6037
    %v6179 = vunpack.c.l.b16 %v6038
    %v6180 = vunpack.c.l.b16 %v6039
    %v6181 = vunpack.c.h.b16 %v6039
    %v6182 = vunpack.c.l.b16 %v6040
    %v6183 = vunpack.c.l.b16 %v6041
    %v6184 = vunpack.c.h.b16 %v6041
    %v6185 = vunpack.c.l.b16 %v6042
    %v6186 = vunpack.c.l.b16 %v6043
    %v6187 = vunpack.c.h.b16 %v6043
    %v6188 = vunpack.c.l.b16 %v6044
    %v6189 = vpack.c.b16 %v6117, %v6114
    %v6190 = vpack.c.b16 %v6118, %v6115
    %v6191 = vpack.c.b16 %v6119, %v6116
    %v6192 = vpack.c.b16 %v6123, %v6120
    %v6193 = vpack.c.b16 %v6124, %v6121
    %v6194 = vpack.c.b16 %v6125, %v6122
    %v6195 = vpack.c.b16 %v6129, %v6126
    %v6196 = vpack.c.b16 %v6130, %v6127
    %v6197 = vpack.c.b16 %v6131, %v6128
    %v6198 = vpack.c.b16 %v6135, %v6132
    %v6199 = vpack.c.b16 %v6136, %v6133
    %v6200 = vpack.c.b16 %v6137, %v6134
    %v6201 = vpack.c.b16 %v6141, %v6138
    %v6202 = vpack.c.b16 %v6142, %v6139
    %v6203 = vpack.c.b16 %v6143, %v6140
    %v6204 = vpack.c.b16 %v6147, %v6144
    %v6205 = vpack.c.b16 %v6148, %v6145
    %v6206 = vpack.c.b16 %v6149, %v6146
    %v6207 = vpack.c.b16 %v6153, %v6150
    %v6208 = vpack.c.b16 %v6154, %v6151
    %v6209 = vpack.c.b16 %v6155, %v6152
    %v6210 = vpack.c.b16 %v6159, %v6156
    %v6211 = vpack.c.b16 %v6160, %v6157
    %v6212 = vpack.c.b16 %v6161, %v6158
    %v6213 = vpack.c.b16 %v6165, %v6162
    %v6214 = vpack.c.b16 %v6166, %v6163
    %v6215 = vpack.c.b16 %v6167, %v6164
    %v6216 = vpack.c.b16 %v6171, %v6168
    %v6217 = vpack.c.b16 %v6172, %v6169
    %v6218 = vpack.c.b16 %v6173, %v6170
    %v6219 = vpack.c.b16 %v6177, %v6174
    %v6220 = vpack.c.b16 %v6178, %v6175
    %v6221 = vpack.c.b16 %v6179, %v6176
    %v6222 = vpack.c.b16 %v6183, %v6180
    %v6223 = vpack.c.b16 %v6184, %v6181
    %v6224 = vpack.c.b16 %v6185, %v6182
    %v6225 = vpack.c.b16 %v6186, %v6186
    %v6226 = vpack.c.b16 %v6187, %v6187
    %v6227 = vpack.c.b16 %v6188, %v6188
    %vm6264 = vcmask 588800
    %v6266 = vsel %vm6264, %v6062, 0
    %v6269 = vsel %vm5296, %v6225, 0
    %v6272 = vsel %vm5296, %v6226, 0
    %v6275 = vsel %vm5296, %v6227, 0
    %6277 = vmatprep.subr.bf16.mxu0 %v6211
    %6278 = vmatpush1.bf16.msra.mxu0 %v6210
    %6279 = vmatprep.subr.bf16.mxu0 %v6208
    %6280 = vmatpush1.bf16.msra.mxu0 %v6207
    %6281 = vmatprep.subr.bf16.mxu0 %v6205
    %6282 = vmatpush1.bf16.msra.mxu0 %v6204
    %6283 = vmatprep.subr.bf16.mxu0 %v6202
    %6284 = vmatpush1.bf16.msra.mxu0 %v6201
    %6285 = vmatprep.subr.bf16.mxu0 %v6199
    %6286 = vmatpush1.bf16.msra.mxu0 %v6198
    %6287 = vmatprep.subr.bf16.mxu0 %v6196
    %6288 = vmatpush1.bf16.msra.mxu0 %v6195
    %6289 = vmatprep.subr.bf16.mxu0 %v6193
    %6290 = vmatpush1.bf16.msra.mxu0 %v6192
    %6291 = vmatprep.subr.bf16.mxu0 %v6190
    %6292 = vmatpush1.bf16.msra.mxu0 %v6189
    %6293 = vmatprep.subr.bf16.mxu0 0
    %6294 = vmatpush2.bf16.msra.mxu0 0
    %6295 = vmatprep.subr.bf16.mxu0 0
    %6296 = vmatpush2.bf16.msra.mxu0 0
    %6297 = vmatprep.subr.bf16.mxu0 0
    %6298 = vmatpush2.bf16.msra.mxu0 0
    %6299 = vmatprep.subr.bf16.mxu0 %v6272
    %6300 = vmatpush2.bf16.msra.mxu0 %v6269
    %6301 = vmatprep.subr.bf16.mxu0 %v6223
    %6302 = vmatpush2.bf16.msra.mxu0 %v6222
    %6303 = vmatprep.subr.bf16.mxu0 %v6220
    %6304 = vmatpush2.bf16.msra.mxu0 %v6219
    %6305 = vmatprep.subr.bf16.mxu0 %v6217
    %6306 = vmatpush2.bf16.msra.mxu0 %v6216
    %6307 = vmatprep.subr.bf16.mxu0 %v6214
    %6308 = vmatpush2.bf16.msra.mxu0 %v6213
    %6309 = vmatprep.mubr.bf16.mxu0 %v6266
    %6310 = vmatmul.mubr.bf16.gmra.mxu0 %v6061
    %v6311 = vpop.f32.mrf.mxu0
    %v6312 = vadd.f32 %v6048, %v6311
    %v6313 = vpop.f32.mrf.mxu0
    %v6314 = vadd.f32 %v6048, %v6313
    %v6315 = vpop.f32.mrf.mxu0
    %v6316 = vadd.f32 %v6053, %v6315
    %v6317 = vpop.f32.mrf.mxu0
    %v6318 = vadd.f32 %v6053, %v6317
    %6319 = vdwg.mxu0
    %6320 = vmatprep.subr.bf16.mxu0 0
    %6321 = vmatpush1.bf16.msra.mxu0 %v6212
    %6322 = vmatprep.subr.bf16.mxu0 0
    %6323 = vmatpush1.bf16.msra.mxu0 %v6209
    %6324 = vmatprep.subr.bf16.mxu0 0
    %6325 = vmatpush1.bf16.msra.mxu0 %v6206
    %6326 = vmatprep.subr.bf16.mxu0 0
    %6327 = vmatpush1.bf16.msra.mxu0 %v6203
    %6328 = vmatprep.subr.bf16.mxu0 0
    %6329 = vmatpush1.bf16.msra.mxu0 %v6200
    %6330 = vmatprep.subr.bf16.mxu0 0
    %6331 = vmatpush1.bf16.msra.mxu0 %v6197
    %6332 = vmatprep.subr.bf16.mxu0 0
    %6333 = vmatpush1.bf16.msra.mxu0 %v6194
    %6334 = vmatprep.subr.bf16.mxu0 0
    %6335 = vmatpush1.bf16.msra.mxu0 %v6191
    %6336 = vmatprep.subr.bf16.mxu0 0
    %6337 = vmatpush2.bf16.msra.mxu0 0
    %6338 = vmatprep.subr.bf16.mxu0 0
    %6339 = vmatpush2.bf16.msra.mxu0 0
    %6340 = vmatprep.subr.bf16.mxu0 0
    %6341 = vmatpush2.bf16.msra.mxu0 0
    %6342 = vmatprep.subr.bf16.mxu0 0
    %6343 = vmatpush2.bf16.msra.mxu0 %v6275
    %6344 = vmatprep.subr.bf16.mxu0 0
    %6345 = vmatpush2.bf16.msra.mxu0 %v6224
    %6346 = vmatprep.subr.bf16.mxu0 0
    %6347 = vmatpush2.bf16.msra.mxu0 %v6221
    %6348 = vmatprep.subr.bf16.mxu0 0
    %6349 = vmatpush2.bf16.msra.mxu0 %v6218
    %6350 = vmatprep.subr.bf16.mxu0 0
    %6351 = vmatpush2.bf16.msra.mxu0 %v6215
    %6352 = vmatprep.mubr.bf16.mxu0 %v6266
    %6353 = vmatmul.mubr.bf16.gmra.mxu0 %v6061
    %v6354 = vpop.f32.mrf.mxu0
    %v6355 = vadd.f32 %v6048, %v6354
    %v6356 = vpop.f32.mrf.mxu0
    %v6357 = vpop.f32.mrf.mxu0
    %v6358 = vadd.f32 %v6053, %v6357
    %v6359 = vpop.f32.mrf.mxu0
    %6360 = vdwg.mxu0
    %v6361 = vmax.f32 %v6312, 0.0
    %v6362 = vmax.f32 %v6314, 0.0
    %v6363 = vmax.f32 %v6355, 0.0
    %v6364 = vmax.f32 %v6316, 0.0
    %v6365 = vmax.f32 %v6318, 0.0
    %v6366 = vmax.f32 %v6358, 0.0
    %6367 = vst [vmem:[#allocation6] sm:$0xff] %v6361
    %6368 = vst [vmem:[#allocation6 + $0x8] sm:$0xff] %v6362
    %vm6369 = vcmask 621568
    %6370 = vst.msk [vmem:[#allocation6 + $0x10] sm:$0xff] %vm6369, %v6363
    %6371 = vst [vmem:[#allocation6 + $0x18] sm:$0xff] %v6364
    %6372 = vst [vmem:[#allocation6 + $0x20] sm:$0xff] %v6365
    %6373 = vst.msk [vmem:[#allocation6 + $0x28] sm:$0xff] %vm6369, %v6366
    %v6374 = vld [vmem:[%s6] sm:$0xff]
    %v6375 = vld [vmem:[%s6 + $0x8] sm:$0xff]
    %v6376 = vld [vmem:[%s6 + $0x10] sm:$0xff]
    %v6377 = vld [vmem:[%s6 + $0x18] sm:$0xff]
    %v6378 = vld [vmem:[%s6 + $0x20] sm:$0xff]
    %v6379 = vld [vmem:[%s6 + $0x28] sm:$0xff]
    %v6380 = vld [vmem:[%s6 + $0x30] sm:$0xff]
    %v6381 = vld [vmem:[%s6 + $0x38] sm:$0xff]
    %v6382 = vld [vmem:[%s6 + $0x40] sm:$0xff]
    %v6383 = vld [vmem:[%s6 + $0x48] sm:$0xff]
    %v6384 = vld [vmem:[%s6 + $0x50] sm:$0xff]
    %v6385 = vld [vmem:[%s6 + $0x58] sm:$0xff]
    %v6386 = vld [vmem:[%s6 + $0x60] sm:$0xff]
    %v6387 = vld [vmem:[%s6 + $0x68] sm:$0xff]
    %v6388 = vld [vmem:[%s6 + $0x70] sm:$0xff]
    %v6389 = vld [vmem:[%s6 + $0x78] sm:$0xff]
    %v6390 = vld [vmem:[%s6 + $0x80] sm:$0xff]
    %v6391 = vld [vmem:[%s6 + $0x88] sm:$0xff]
    %v6392 = vld [vmem:[%s6 + $0x90] sm:$0xff]
    %v6393 = vld [vmem:[%s6 + $0x98] sm:$0xff]
    %v6394 = vld [vmem:[%s6 + $0xa0] sm:$0xff]
    %v6395 = vld [vmem:[%s6 + $0xa8] sm:$0xff]
    %v6396 = vld [vmem:[%s6 + $0xb0] sm:$0xff]
    %v6397 = vld [vmem:[%s6 + $0xb8] sm:$0xff]
    %v6398 = vld [vmem:[%s6 + $0xc0] sm:$0xff]
    %v6399 = vld [vmem:[%s6 + $0xc8] sm:$0xff]
    %v6400 = vld [vmem:[%s6 + $0xd0] sm:$0xff]
    %v6401 = vld [vmem:[%s6 + $0xd8] sm:$0xff]
    %v6402 = vld [vmem:[%s6 + $0xe0] sm:$0xff]
    %v6403 = vld [vmem:[%s6 + $0xe8] sm:$0xff]
    %v6404 = vld [vmem:[%s6 + $0xf0] sm:$0x11]
    %v6405 = vld [vmem:[%s6 + $0xf8] sm:$0x11]
    %v6406 = vld [vmem:[%s7] sm:$0xff]
    %v6407 = vld [vmem:[%s7 + $0x8] sm:$0xff]
    %v6408 = vld [vmem:[%s7 + $0x10] sm:$0xff]
    %v6409 = vld [vmem:[%s7 + $0x18] sm:$0xff]
    %v6410 = vld [vmem:[%s7 + $0x20] sm:$0xff]
    %v6411 = vld [vmem:[%s7 + $0x28] sm:$0xff]
    %v6412 = vld [vmem:[%s7 + $0x30] sm:$0xff]
    %v6413 = vld [vmem:[%s7 + $0x38] sm:$0xff]
    %v6414 = vld [vmem:[#allocation6] sm:$0xff]
    %v6415 = vld [vmem:[#allocation6 + $0x18] sm:$0xff]
    %6418 = vrot.lane.b32.xlu0 %v6414, 127
    %v6419 = vpop.permute.xlu0 %6418
    %6420 = vrot.lane.b32.xlu0 %v6415, 127
    %v6421 = vpop.permute.xlu0 %6420
    %v6424 = vmax.f32 %v6414, %v6419
    %v6425 = vmax.f32 %v6415, %v6421
    %v6426 = vld [vmem:[#allocation6 + $0x8] sm:$0xff]
    %v6427 = vld [vmem:[#allocation6 + $0x20] sm:$0xff]
    %6430 = vrot.lane.b32.xlu0 %v6426, 127
    %v6431 = vpop.permute.xlu0 %6430
    %6432 = vrot.lane.b32.xlu0 %v6427, 127
    %v6433 = vpop.permute.xlu0 %6432
    %v6434 = vsel %vm4502, %v6419, %v6431
    %v6435 = vsel %vm4502, %v6421, %v6433
    %v6440 = vmax.f32 %v6414, %v6434
    %v6441 = vmax.f32 %v6426, %v6431
    %v6442 = vmax.f32 %v6415, %v6435
    %v6443 = vmax.f32 %v6427, %v6433
    %6448 = vrot.lane.b32.xlu0 %v6440, 114
    %v6449 = vpop.permute.xlu0 %6448
    %6450 = vrot.lane.b32.xlu0 %v6441, 114
    %v6451 = vpop.permute.xlu0 %6450
    %6452 = vrot.lane.b32.xlu0 %v6442, 114
    %v6453 = vpop.permute.xlu0 %6452
    %6454 = vrot.lane.b32.xlu0 %v6443, 114
    %v6455 = vpop.permute.xlu0 %6454
    %vm6456 = vcmask 932864
    %v6457 = vsel %vm6456, %v6449, %v6451
    %v6458 = vsel %vm6456, %v6453, %v6455
    %v6461 = vmax.f32 %v6424, %v6457
    %v6462 = vmax.f32 %v6425, %v6458
    %v6463 = vpack.c.bf16 %v6462, %v6461
    %v6496 = vunpack.c.l.b16 %v6374
    %v6497 = vunpack.c.h.b16 %v6374
    %v6498 = vunpack.c.l.b16 %v6375
    %v6499 = vunpack.c.h.b16 %v6375
    %v6500 = vunpack.c.l.b16 %v6376
    %v6501 = vunpack.c.h.b16 %v6376
    %v6502 = vunpack.c.l.b16 %v6377
    %v6503 = vunpack.c.h.b16 %v6377
    %v6504 = vunpack.c.l.b16 %v6378
    %v6505 = vunpack.c.h.b16 %v6378
    %v6506 = vunpack.c.l.b16 %v6379
    %v6507 = vunpack.c.h.b16 %v6379
    %v6508 = vunpack.c.l.b16 %v6380
    %v6509 = vunpack.c.h.b16 %v6380
    %v6510 = vunpack.c.l.b16 %v6381
    %v6511 = vunpack.c.h.b16 %v6381
    %v6512 = vunpack.c.l.b16 %v6382
    %v6513 = vunpack.c.h.b16 %v6382
    %v6514 = vunpack.c.l.b16 %v6383
    %v6515 = vunpack.c.h.b16 %v6383
    %v6516 = vunpack.c.l.b16 %v6384
    %v6517 = vunpack.c.h.b16 %v6384
    %v6518 = vunpack.c.l.b16 %v6385
    %v6519 = vunpack.c.h.b16 %v6385
    %v6520 = vunpack.c.l.b16 %v6386
    %v6521 = vunpack.c.h.b16 %v6386
    %v6522 = vunpack.c.l.b16 %v6387
    %v6523 = vunpack.c.h.b16 %v6387
    %v6524 = vunpack.c.l.b16 %v6388
    %v6525 = vunpack.c.h.b16 %v6388
    %v6526 = vunpack.c.l.b16 %v6389
    %v6527 = vunpack.c.h.b16 %v6389
    %v6528 = vunpack.c.l.b16 %v6390
    %v6529 = vunpack.c.h.b16 %v6390
    %v6530 = vunpack.c.l.b16 %v6391
    %v6531 = vunpack.c.h.b16 %v6391
    %v6532 = vunpack.c.l.b16 %v6392
    %v6533 = vunpack.c.h.b16 %v6392
    %v6534 = vunpack.c.l.b16 %v6393
    %v6535 = vunpack.c.h.b16 %v6393
    %v6536 = vunpack.c.l.b16 %v6394
    %v6537 = vunpack.c.h.b16 %v6394
    %v6538 = vunpack.c.l.b16 %v6395
    %v6539 = vunpack.c.h.b16 %v6395
    %v6540 = vunpack.c.l.b16 %v6396
    %v6541 = vunpack.c.h.b16 %v6396
    %v6542 = vunpack.c.l.b16 %v6397
    %v6543 = vunpack.c.h.b16 %v6397
    %v6544 = vunpack.c.l.b16 %v6398
    %v6545 = vunpack.c.h.b16 %v6398
    %v6546 = vunpack.c.l.b16 %v6399
    %v6547 = vunpack.c.h.b16 %v6399
    %v6548 = vunpack.c.l.b16 %v6400
    %v6549 = vunpack.c.h.b16 %v6400
    %v6550 = vunpack.c.l.b16 %v6401
    %v6551 = vunpack.c.h.b16 %v6401
    %v6552 = vunpack.c.l.b16 %v6402
    %v6553 = vunpack.c.h.b16 %v6402
    %v6554 = vunpack.c.l.b16 %v6403
    %v6555 = vunpack.c.h.b16 %v6403
    %v6556 = vunpack.c.l.b16 %v6404
    %v6557 = vunpack.c.h.b16 %v6404
    %v6558 = vunpack.c.l.b16 %v6405
    %v6559 = vunpack.c.h.b16 %v6405
    %v6560 = vpack.c.b16 %v6500, %v6496
    %v6561 = vpack.c.b16 %v6501, %v6497
    %v6562 = vpack.c.b16 %v6502, %v6498
    %v6563 = vpack.c.b16 %v6503, %v6499
    %v6564 = vpack.c.b16 %v6508, %v6504
    %v6565 = vpack.c.b16 %v6509, %v6505
    %v6566 = vpack.c.b16 %v6510, %v6506
    %v6567 = vpack.c.b16 %v6511, %v6507
    %v6568 = vpack.c.b16 %v6516, %v6512
    %v6569 = vpack.c.b16 %v6517, %v6513
    %v6570 = vpack.c.b16 %v6518, %v6514
    %v6571 = vpack.c.b16 %v6519, %v6515
    %v6572 = vpack.c.b16 %v6524, %v6520
    %v6573 = vpack.c.b16 %v6525, %v6521
    %v6574 = vpack.c.b16 %v6526, %v6522
    %v6575 = vpack.c.b16 %v6527, %v6523
    %v6576 = vpack.c.b16 %v6532, %v6528
    %v6577 = vpack.c.b16 %v6533, %v6529
    %v6578 = vpack.c.b16 %v6534, %v6530
    %v6579 = vpack.c.b16 %v6535, %v6531
    %v6580 = vpack.c.b16 %v6540, %v6536
    %v6581 = vpack.c.b16 %v6541, %v6537
    %v6582 = vpack.c.b16 %v6542, %v6538
    %v6583 = vpack.c.b16 %v6543, %v6539
    %v6584 = vpack.c.b16 %v6548, %v6544
    %v6585 = vpack.c.b16 %v6549, %v6545
    %v6586 = vpack.c.b16 %v6550, %v6546
    %v6587 = vpack.c.b16 %v6551, %v6547
    %v6588 = vpack.c.b16 %v6556, %v6552
    %v6589 = vpack.c.b16 %v6557, %v6553
    %v6590 = vpack.c.b16 %v6558, %v6554
    %v6591 = vpack.c.b16 %v6559, %v6555
    %vm6620 = vcmask 990208
    %v6622 = vsel %vm6620, %v6463, 0
    %v6624 = vsel %vm5296, 4294967295, 65535
    %v6625 = vsel %vm5114, %v6624, 0
    %v6627 = vand.u32 %v6588, %v6625
    %v6630 = vand.u32 %v6589, %v6625
    %v6633 = vand.u32 %v6590, %v6625
    %v6636 = vand.u32 %v6591, %v6625
    %6638 = vmatprep.subr.bf16.mxu0 %v6630
    %6639 = vmatpush1.bf16.msra.mxu0 %v6627
    %6640 = vmatprep.subr.bf16.mxu0 %v6585
    %6641 = vmatpush1.bf16.msra.mxu0 %v6584
    %6642 = vmatprep.subr.bf16.mxu0 %v6581
    %6643 = vmatpush1.bf16.msra.mxu0 %v6580
    %6644 = vmatprep.subr.bf16.mxu0 %v6577
    %6645 = vmatpush1.bf16.msra.mxu0 %v6576
    %6646 = vmatprep.subr.bf16.mxu0 %v6573
    %6647 = vmatpush1.bf16.msra.mxu0 %v6572
    %6648 = vmatprep.subr.bf16.mxu0 %v6569
    %6649 = vmatpush1.bf16.msra.mxu0 %v6568
    %6650 = vmatprep.subr.bf16.mxu0 %v6565
    %6651 = vmatpush1.bf16.msra.mxu0 %v6564
    %6652 = vmatprep.subr.bf16.mxu0 %v6561
    %6653 = vmatpush1.bf16.msra.mxu0 %v6560
    %6654 = vmatprep.subr.bf16.mxu0 0
    %6655 = vmatpush2.bf16.msra.mxu0 0
    %6656 = vmatprep.subr.bf16.mxu0 0
    %6657 = vmatpush2.bf16.msra.mxu0 0
    %6658 = vmatprep.subr.bf16.mxu0 0
    %6659 = vmatpush2.bf16.msra.mxu0 0
    %6660 = vmatprep.subr.bf16.mxu0 0
    %6661 = vmatpush2.bf16.msra.mxu0 0
    %6662 = vmatprep.subr.bf16.mxu0 0
    %6663 = vmatpush2.bf16.msra.mxu0 0
    %6664 = vmatprep.subr.bf16.mxu0 0
    %6665 = vmatpush2.bf16.msra.mxu0 0
    %6666 = vmatprep.subr.bf16.mxu0 0
    %6667 = vmatpush2.bf16.msra.mxu0 0
    %6668 = vmatprep.subr.bf16.mxu0 0
    %6669 = vmatpush2.bf16.msra.mxu0 0
    %6670 = vmatprep.mubr.bf16.mxu0 0
    %6671 = vmatmul.mubr.bf16.gmra.mxu0 %v6622
    %v6672 = vpop.f32.mrf.mxu0
    %v6673 = vadd.f32 0.0, %v6672
    %v6674 = vpop.f32.mrf.mxu0
    %v6675 = vadd.f32 0.0, %v6674
    %v6676 = vpop.f32.mrf.mxu0
    %v6677 = vadd.f32 0.0, %v6676
    %v6678 = vpop.f32.mrf.mxu0
    %v6679 = vadd.f32 0.0, %v6678
    %6680 = vdwg.mxu0
    %6681 = vmatprep.subr.bf16.mxu0 %v6636
    %6682 = vmatpush1.bf16.msra.mxu0 %v6633
    %6683 = vmatprep.subr.bf16.mxu0 %v6587
    %6684 = vmatpush1.bf16.msra.mxu0 %v6586
    %6685 = vmatprep.subr.bf16.mxu0 %v6583
    %6686 = vmatpush1.bf16.msra.mxu0 %v6582
    %6687 = vmatprep.subr.bf16.mxu0 %v6579
    %6688 = vmatpush1.bf16.msra.mxu0 %v6578
    %6689 = vmatprep.subr.bf16.mxu0 %v6575
    %6690 = vmatpush1.bf16.msra.mxu0 %v6574
    %6691 = vmatprep.subr.bf16.mxu0 %v6571
    %6692 = vmatpush1.bf16.msra.mxu0 %v6570
    %6693 = vmatprep.subr.bf16.mxu0 %v6567
    %6694 = vmatpush1.bf16.msra.mxu0 %v6566
    %6695 = vmatprep.subr.bf16.mxu0 %v6563
    %6696 = vmatpush1.bf16.msra.mxu0 %v6562
    %6697 = vmatprep.subr.bf16.mxu0 0
    %6698 = vmatpush2.bf16.msra.mxu0 0
    %6699 = vmatprep.subr.bf16.mxu0 0
    %6700 = vmatpush2.bf16.msra.mxu0 0
    %6701 = vmatprep.subr.bf16.mxu0 0
    %6702 = vmatpush2.bf16.msra.mxu0 0
    %6703 = vmatprep.subr.bf16.mxu0 0
    %6704 = vmatpush2.bf16.msra.mxu0 0
    %6705 = vmatprep.subr.bf16.mxu0 0
    %6706 = vmatpush2.bf16.msra.mxu0 0
    %6707 = vmatprep.subr.bf16.mxu0 0
    %6708 = vmatpush2.bf16.msra.mxu0 0
    %6709 = vmatprep.subr.bf16.mxu0 0
    %6710 = vmatpush2.bf16.msra.mxu0 0
    %6711 = vmatprep.subr.bf16.mxu0 0
    %6712 = vmatpush2.bf16.msra.mxu0 0
    %6713 = vmatprep.mubr.bf16.mxu0 0
    %6714 = vmatmul.mubr.bf16.gmra.mxu0 %v6622
    %v6715 = vpop.f32.mrf.mxu0
    %v6716 = vadd.f32 0.0, %v6715
    %v6717 = vpop.f32.mrf.mxu0
    %v6718 = vadd.f32 0.0, %v6717
    %v6719 = vpop.f32.mrf.mxu0
    %v6720 = vadd.f32 0.0, %v6719
    %v6721 = vpop.f32.mrf.mxu0
    %v6722 = vadd.f32 0.0, %v6721
    %6723 = vdwg.mxu0
    %v6724 = vmul.f32 %v6673, %v6406
    %v6725 = vmul.f32 %v6675, %v6407
    %v6726 = vmul.f32 %v6716, %v6408
    %v6727 = vmul.f32 %v6718, %v6409
    %v6728 = vmul.f32 %v6677, %v6410
    %v6729 = vmul.f32 %v6679, %v6411
    %v6730 = vmul.f32 %v6720, %v6412
    %v6731 = vmul.f32 %v6722, %v6413
    %v6732 = vpack.c.bf16 %v6728, %v6724
    %v6733 = vpack.c.bf16 %v6729, %v6725
    %v6734 = vpack.c.bf16 %v6730, %v6726
    %v6735 = vpack.c.bf16 %v6731, %v6727
    %vm6736 = vcmask 130048
    %v6738 = vsel %vm6736, 1065369472, 0
    %6740 = vmatprep.subr.bf16.mxu0 0
    %6741 = vmatpush1.bf16.msra.mxu0 0
    %6742 = vmatprep.subr.bf16.mxu0 0
    %6743 = vmatpush1.bf16.msra.mxu0 0
    %6744 = vmatprep.subr.bf16.mxu0 0
    %6745 = vmatpush1.bf16.msra.mxu0 0
    %6746 = vmatprep.subr.bf16.mxu0 0
    %6747 = vmatpush1.bf16.msra.mxu0 0
    %6748 = vmatprep.subr.bf16.mxu0 0
    %6749 = vmatpush1.bf16.msra.mxu0 0
    %6750 = vmatprep.subr.bf16.mxu0 0
    %6751 = vmatpush1.bf16.msra.mxu0 0
    %6752 = vmatprep.subr.bf16.mxu0 0
    %6753 = vmatpush1.bf16.msra.mxu0 0
    %6754 = vmatprep.subr.bf16.mxu0 %v6733
    %6755 = vmatpush1.bf16.msra.mxu0 %v6732
    %6756 = vmatprep.subr.bf16.mxu0 0
    %6757 = vmatpush2.bf16.msra.mxu0 0
    %6758 = vmatprep.subr.bf16.mxu0 0
    %6759 = vmatpush2.bf16.msra.mxu0 0
    %6760 = vmatprep.subr.bf16.mxu0 0
    %6761 = vmatpush2.bf16.msra.mxu0 0
    %6762 = vmatprep.subr.bf16.mxu0 0
    %6763 = vmatpush2.bf16.msra.mxu0 0
    %6764 = vmatprep.subr.bf16.mxu0 0
    %6765 = vmatpush2.bf16.msra.mxu0 0
    %6766 = vmatprep.subr.bf16.mxu0 0
    %6767 = vmatpush2.bf16.msra.mxu0 0
    %6768 = vmatprep.subr.bf16.mxu0 0
    %6769 = vmatpush2.bf16.msra.mxu0 0
    %6770 = vmatprep.subr.bf16.mxu0 0
    %6771 = vmatpush2.bf16.msra.mxu0 0
    %6772 = vmatprep.mubr.bf16.mxu0 0
    %6773 = vmatmul.mubr.bf16.gmra.mxu0 %v6738
    %v6774 = vpop.f32.mrf.mxu0
    %v6775 = vadd.f32 0.0, %v6774
    %v6776 = vpop.f32.mrf.mxu0
    %v6777 = vadd.f32 0.0, %v6776
    %v6778 = vpop.f32.mrf.mxu0
    %v6779 = vpop.f32.mrf.mxu0
    %6780 = vdwg.mxu0
    %6781 = vmatprep.subr.bf16.mxu0 0
    %6782 = vmatpush1.bf16.msra.mxu0 0
    %6783 = vmatprep.subr.bf16.mxu0 0
    %6784 = vmatpush1.bf16.msra.mxu0 0
    %6785 = vmatprep.subr.bf16.mxu0 0
    %6786 = vmatpush1.bf16.msra.mxu0 0
    %6787 = vmatprep.subr.bf16.mxu0 0
    %6788 = vmatpush1.bf16.msra.mxu0 0
    %6789 = vmatprep.subr.bf16.mxu0 0
    %6790 = vmatpush1.bf16.msra.mxu0 0
    %6791 = vmatprep.subr.bf16.mxu0 0
    %6792 = vmatpush1.bf16.msra.mxu0 0
    %6793 = vmatprep.subr.bf16.mxu0 0
    %6794 = vmatpush1.bf16.msra.mxu0 0
    %6795 = vmatprep.subr.bf16.mxu0 %v6735
    %6796 = vmatpush1.bf16.msra.mxu0 %v6734
    %6797 = vmatprep.subr.bf16.mxu0 0
    %6798 = vmatpush2.bf16.msra.mxu0 0
    %6799 = vmatprep.subr.bf16.mxu0 0
    %6800 = vmatpush2.bf16.msra.mxu0 0
    %6801 = vmatprep.subr.bf16.mxu0 0
    %6802 = vmatpush2.bf16.msra.mxu0 0
    %6803 = vmatprep.subr.bf16.mxu0 0
    %6804 = vmatpush2.bf16.msra.mxu0 0
    %6805 = vmatprep.subr.bf16.mxu0 0
    %6806 = vmatpush2.bf16.msra.mxu0 0
    %6807 = vmatprep.subr.bf16.mxu0 0
    %6808 = vmatpush2.bf16.msra.mxu0 0
    %6809 = vmatprep.subr.bf16.mxu0 0
    %6810 = vmatpush2.bf16.msra.mxu0 0
    %6811 = vmatprep.subr.bf16.mxu0 0
    %6812 = vmatpush2.bf16.msra.mxu0 0
    %6813 = vmatprep.mubr.bf16.mxu0 0
    %6814 = vmatmul.mubr.bf16.gmra.mxu0 %v6738
    %v6815 = vpop.f32.mrf.mxu0
    %v6816 = vadd.f32 0.0, %v6815
    %v6817 = vpop.f32.mrf.mxu0
    %v6818 = vadd.f32 0.0, %v6817
    %v6819 = vpop.f32.mrf.mxu0
    %v6820 = vpop.f32.mrf.mxu0
    %6821 = vdwg.mxu0
    %v6826 = vcombine.low %v6775, %v6777
    %v6827 = vcombine.low %v6816, %v6818
    %v6829 = vunpack.c.l.s4 1966171168
    %v6830 = vunpack.c.0.s8 %v6829
    %v6831 = vlaneseq
    %v6832 = vshrl.u32 %v6831, 7
    %v6833 = vsub.s32 %v6830, %v6832
    %v6834 = vrot.slane %v6826, %v6833
    %v6836 = vunpack.c.l.s4 1966171168
    %v6837 = vunpack.c.0.s8 %v6836
    %v6838 = vlaneseq
    %v6839 = vshrl.u32 %v6838, 7
    %v6840 = vsub.s32 %v6837, %v6839
    %v6841 = vrot.slane %v6827, %v6840
    %v6842 = vcombine.low %v6834, %v6841
    %v6844 = vunpack.c.l.s4 1966171168
    %v6845 = vunpack.c.0.s8 %v6844
    %v6846 = vlaneseq
    %v6847 = vshrl.u32 %v6846, 7
    %v6848 = vsub.s32 %v6845, %v6847
    %v6849 = vrot.slane %v6842, %v6848
    %v6851 = vlaneseq
    %vm6852 = vcmp.ge.s32.totalorder %v6851, 0
    %vm6853 = vcmp.lt.s32.totalorder %v6851, 400
    %vm6854 = vmand %vm6852, %vm6853
    %6855 = vst.msk [vmem:[#allocation7] ss:$2 sm:$0xf] %vm6854, %v6849
    %v6856 = vld [vmem:[#allocation6 + $0x8] sm:$0xff]
    %v6857 = vld [vmem:[#allocation6 + $0x10] sm:$0xff]
    %v6858 = vld [vmem:[#allocation6 + $0x20] sm:$0xff]
    %v6859 = vld [vmem:[#allocation6 + $0x28] sm:$0xff]
    %6864 = vrot.lane.b32.xlu0 %v6856, 127
    %v6865 = vpop.permute.xlu0 %6864
    %6866 = vrot.lane.b32.xlu0 %v6857, 127
    %v6867 = vpop.permute.xlu0 %6866
    %6868 = vrot.lane.b32.xlu0 %v6858, 127
    %v6869 = vpop.permute.xlu0 %6868
    %6870 = vrot.lane.b32.xlu0 %v6859, 127
    %v6871 = vpop.permute.xlu0 %6870
    %v6872 = vsel %vm4502, %v6865, %v6867
    %v6873 = vsel %vm4502, %v6869, %v6871
    %v6878 = vmax.f32 %v6856, %v6872
    %v6879 = vmax.f32 %v6857, %v6867
    %v6880 = vmax.f32 %v6858, %v6873
    %v6881 = vmax.f32 %v6859, %v6871
    %6886 = vrot.lane.b32.xlu0 %v6878, 114
    %v6887 = vpop.permute.xlu0 %6886
    %6888 = vrot.lane.b32.xlu0 %v6879, 114
    %v6889 = vpop.permute.xlu0 %6888
    %6890 = vrot.lane.b32.xlu0 %v6880, 114
    %v6891 = vpop.permute.xlu0 %6890
    %6892 = vrot.lane.b32.xlu0 %v6881, 114
    %v6893 = vpop.permute.xlu0 %6892
    %v6894 = vsel %vm6456, %v6887, %v6889
    %v6895 = vsel %vm6456, %v6891, %v6893
    %v6900 = vmax.f32 %v6878, %v6894
    %v6901 = vmax.f32 %v6879, %v6889
    %v6902 = vmax.f32 %v6880, %v6895
    %v6903 = vmax.f32 %v6881, %v6893
    %v6904 = vpack.c.bf16 %v6902, %v6900
    %v6905 = vpack.c.bf16 %v6903, %v6901
    %6908 = vrot.lane.b32.xlu0 %v6904, 60
    %v6909 = vpop.permute.xlu0 %6908
    %6910 = vrot.lane.b32.xlu0 %v6905, 60
    %v6911 = vpop.permute.xlu0 %6910
    %v6912 = vsel %vm1140, %v6909, %v6911
    %v6914 = vsel %vm6620, %v6912, 0
    %6916 = vmatprep.subr.bf16.mxu0 %v6630
    %6917 = vmatpush1.bf16.msra.mxu0 %v6627
    %6918 = vmatprep.subr.bf16.mxu0 %v6585
    %6919 = vmatpush1.bf16.msra.mxu0 %v6584
    %6920 = vmatprep.subr.bf16.mxu0 %v6581
    %6921 = vmatpush1.bf16.msra.mxu0 %v6580
    %6922 = vmatprep.subr.bf16.mxu0 %v6577
    %6923 = vmatpush1.bf16.msra.mxu0 %v6576
    %6924 = vmatprep.subr.bf16.mxu0 %v6573
    %6925 = vmatpush1.bf16.msra.mxu0 %v6572
    %6926 = vmatprep.subr.bf16.mxu0 %v6569
    %6927 = vmatpush1.bf16.msra.mxu0 %v6568
    %6928 = vmatprep.subr.bf16.mxu0 %v6565
    %6929 = vmatpush1.bf16.msra.mxu0 %v6564
    %6930 = vmatprep.subr.bf16.mxu0 %v6561
    %6931 = vmatpush1.bf16.msra.mxu0 %v6560
    %6932 = vmatprep.subr.bf16.mxu0 0
    %6933 = vmatpush2.bf16.msra.mxu0 0
    %6934 = vmatprep.subr.bf16.mxu0 0
    %6935 = vmatpush2.bf16.msra.mxu0 0
    %6936 = vmatprep.subr.bf16.mxu0 0
    %6937 = vmatpush2.bf16.msra.mxu0 0
    %6938 = vmatprep.subr.bf16.mxu0 0
    %6939 = vmatpush2.bf16.msra.mxu0 0
    %6940 = vmatprep.subr.bf16.mxu0 0
    %6941 = vmatpush2.bf16.msra.mxu0 0
    %6942 = vmatprep.subr.bf16.mxu0 0
    %6943 = vmatpush2.bf16.msra.mxu0 0
    %6944 = vmatprep.subr.bf16.mxu0 0
    %6945 = vmatpush2.bf16.msra.mxu0 0
    %6946 = vmatprep.subr.bf16.mxu0 0
    %6947 = vmatpush2.bf16.msra.mxu0 0
    %6948 = vmatprep.mubr.bf16.mxu0 0
    %6949 = vmatmul.mubr.bf16.gmra.mxu0 %v6914
    %v6950 = vpop.f32.mrf.mxu0
    %v6951 = vadd.f32 0.0, %v6950
    %v6952 = vpop.f32.mrf.mxu0
    %v6953 = vadd.f32 0.0, %v6952
    %v6954 = vpop.f32.mrf.mxu0
    %v6955 = vadd.f32 0.0, %v6954
    %v6956 = vpop.f32.mrf.mxu0
    %v6957 = vadd.f32 0.0, %v6956
    %6958 = vdwg.mxu0
    %6959 = vmatprep.subr.bf16.mxu0 %v6636
    %6960 = vmatpush1.bf16.msra.mxu0 %v6633
    %6961 = vmatprep.subr.bf16.mxu0 %v6587
    %6962 = vmatpush1.bf16.msra.mxu0 %v6586
    %6963 = vmatprep.subr.bf16.mxu0 %v6583
    %6964 = vmatpush1.bf16.msra.mxu0 %v6582
    %6965 = vmatprep.subr.bf16.mxu0 %v6579
    %6966 = vmatpush1.bf16.msra.mxu0 %v6578
    %6967 = vmatprep.subr.bf16.mxu0 %v6575
    %6968 = vmatpush1.bf16.msra.mxu0 %v6574
    %6969 = vmatprep.subr.bf16.mxu0 %v6571
    %6970 = vmatpush1.bf16.msra.mxu0 %v6570
    %6971 = vmatprep.subr.bf16.mxu0 %v6567
    %6972 = vmatpush1.bf16.msra.mxu0 %v6566
    %6973 = vmatprep.subr.bf16.mxu0 %v6563
    %6974 = vmatpush1.bf16.msra.mxu0 %v6562
    %6975 = vmatprep.subr.bf16.mxu0 0
    %6976 = vmatpush2.bf16.msra.mxu0 0
    %6977 = vmatprep.subr.bf16.mxu0 0
    %6978 = vmatpush2.bf16.msra.mxu0 0
    %6979 = vmatprep.subr.bf16.mxu0 0
    %6980 = vmatpush2.bf16.msra.mxu0 0
    %6981 = vmatprep.subr.bf16.mxu0 0
    %6982 = vmatpush2.bf16.msra.mxu0 0
    %6983 = vmatprep.subr.bf16.mxu0 0
    %6984 = vmatpush2.bf16.msra.mxu0 0
    %6985 = vmatprep.subr.bf16.mxu0 0
    %6986 = vmatpush2.bf16.msra.mxu0 0
    %6987 = vmatprep.subr.bf16.mxu0 0
    %6988 = vmatpush2.bf16.msra.mxu0 0
    %6989 = vmatprep.subr.bf16.mxu0 0
    %6990 = vmatpush2.bf16.msra.mxu0 0
    %6991 = vmatprep.mubr.bf16.mxu0 0
    %6992 = vmatmul.mubr.bf16.gmra.mxu0 %v6914
    %v6993 = vpop.f32.mrf.mxu0
    %v6994 = vadd.f32 0.0, %v6993
    %v6995 = vpop.f32.mrf.mxu0
    %v6996 = vadd.f32 0.0, %v6995
    %v6997 = vpop.f32.mrf.mxu0
    %v6998 = vadd.f32 0.0, %v6997
    %v6999 = vpop.f32.mrf.mxu0
    %v7000 = vadd.f32 0.0, %v6999
    %7001 = vdwg.mxu0
    %v7002 = vmul.f32 %v6951, %v6406
    %v7003 = vmul.f32 %v6953, %v6407
    %v7004 = vmul.f32 %v6994, %v6408
    %v7005 = vmul.f32 %v6996, %v6409
    %v7006 = vmul.f32 %v6955, %v6410
    %v7007 = vmul.f32 %v6957, %v6411
    %v7008 = vmul.f32 %v6998, %v6412
    %v7009 = vmul.f32 %v7000, %v6413
    %v7010 = vpack.c.bf16 %v7006, %v7002
    %v7011 = vpack.c.bf16 %v7007, %v7003
    %v7012 = vpack.c.bf16 %v7008, %v7004
    %v7013 = vpack.c.bf16 %v7009, %v7005
    %7014 = vmatprep.subr.bf16.mxu0 0
    %7015 = vmatpush1.bf16.msra.mxu0 0
    %7016 = vmatprep.subr.bf16.mxu0 0
    %7017 = vmatpush1.bf16.msra.mxu0 0
    %7018 = vmatprep.subr.bf16.mxu0 0
    %7019 = vmatpush1.bf16.msra.mxu0 0
    %7020 = vmatprep.subr.bf16.mxu0 0
    %7021 = vmatpush1.bf16.msra.mxu0 0
    %7022 = vmatprep.subr.bf16.mxu0 0
    %7023 = vmatpush1.bf16.msra.mxu0 0
    %7024 = vmatprep.subr.bf16.mxu0 0
    %7025 = vmatpush1.bf16.msra.mxu0 0
    %7026 = vmatprep.subr.bf16.mxu0 0
    %7027 = vmatpush1.bf16.msra.mxu0 0
    %7028 = vmatprep.subr.bf16.mxu0 %v7011
    %7029 = vmatpush1.bf16.msra.mxu0 %v7010
    %7030 = vmatprep.subr.bf16.mxu0 0
    %7031 = vmatpush2.bf16.msra.mxu0 0
    %7032 = vmatprep.subr.bf16.mxu0 0
    %7033 = vmatpush2.bf16.msra.mxu0 0
    %7034 = vmatprep.subr.bf16.mxu0 0
    %7035 = vmatpush2.bf16.msra.mxu0 0
    %7036 = vmatprep.subr.bf16.mxu0 0
    %7037 = vmatpush2.bf16.msra.mxu0 0
    %7038 = vmatprep.subr.bf16.mxu0 0
    %7039 = vmatpush2.bf16.msra.mxu0 0
    %7040 = vmatprep.subr.bf16.mxu0 0
    %7041 = vmatpush2.bf16.msra.mxu0 0
    %7042 = vmatprep.subr.bf16.mxu0 0
    %7043 = vmatpush2.bf16.msra.mxu0 0
    %7044 = vmatprep.subr.bf16.mxu0 0
    %7045 = vmatpush2.bf16.msra.mxu0 0
    %7046 = vmatprep.mubr.bf16.mxu0 0
    %7047 = vmatmul.mubr.bf16.gmra.mxu0 %v6738
    %v7048 = vpop.f32.mrf.mxu0
    %v7049 = vadd.f32 0.0, %v7048
    %v7050 = vpop.f32.mrf.mxu0
    %v7051 = vadd.f32 0.0, %v7050
    %v7052 = vpop.f32.mrf.mxu0
    %v7053 = vpop.f32.mrf.mxu0
    %7054 = vdwg.mxu0
    %7055 = vmatprep.subr.bf16.mxu0 0
    %7056 = vmatpush1.bf16.msra.mxu0 0
    %7057 = vmatprep.subr.bf16.mxu0 0
    %7058 = vmatpush1.bf16.msra.mxu0 0
    %7059 = vmatprep.subr.bf16.mxu0 0
    %7060 = vmatpush1.bf16.msra.mxu0 0
    %7061 = vmatprep.subr.bf16.mxu0 0
    %7062 = vmatpush1.bf16.msra.mxu0 0
    %7063 = vmatprep.subr.bf16.mxu0 0
    %7064 = vmatpush1.bf16.msra.mxu0 0
    %7065 = vmatprep.subr.bf16.mxu0 0
    %7066 = vmatpush1.bf16.msra.mxu0 0
    %7067 = vmatprep.subr.bf16.mxu0 0
    %7068 = vmatpush1.bf16.msra.mxu0 0
    %7069 = vmatprep.subr.bf16.mxu0 %v7013
    %7070 = vmatpush1.bf16.msra.mxu0 %v7012
    %7071 = vmatprep.subr.bf16.mxu0 0
    %7072 = vmatpush2.bf16.msra.mxu0 0
    %7073 = vmatprep.subr.bf16.mxu0 0
    %7074 = vmatpush2.bf16.msra.mxu0 0
    %7075 = vmatprep.subr.bf16.mxu0 0
    %7076 = vmatpush2.bf16.msra.mxu0 0
    %7077 = vmatprep.subr.bf16.mxu0 0
    %7078 = vmatpush2.bf16.msra.mxu0 0
    %7079 = vmatprep.subr.bf16.mxu0 0
    %7080 = vmatpush2.bf16.msra.mxu0 0
    %7081 = vmatprep.subr.bf16.mxu0 0
    %7082 = vmatpush2.bf16.msra.mxu0 0
    %7083 = vmatprep.subr.bf16.mxu0 0
    %7084 = vmatpush2.bf16.msra.mxu0 0
    %7085 = vmatprep.subr.bf16.mxu0 0
    %7086 = vmatpush2.bf16.msra.mxu0 0
    %7087 = vmatprep.mubr.bf16.mxu0 0
    %7088 = vmatmul.mubr.bf16.gmra.mxu0 %v6738
    %v7089 = vpop.f32.mrf.mxu0
    %v7090 = vadd.f32 0.0, %v7089
    %v7091 = vpop.f32.mrf.mxu0
    %v7092 = vadd.f32 0.0, %v7091
    %v7093 = vpop.f32.mrf.mxu0
    %v7094 = vpop.f32.mrf.mxu0
    %7095 = vdwg.mxu0
    %v7100 = vcombine.low %v7049, %v7051
    %v7101 = vcombine.low %v7090, %v7092
    %v7103 = vunpack.c.l.s4 1966171168
    %v7104 = vunpack.c.0.s8 %v7103
    %v7105 = vlaneseq
    %v7106 = vshrl.u32 %v7105, 7
    %v7107 = vsub.s32 %v7104, %v7106
    %v7108 = vrot.slane %v7100, %v7107
    %v7110 = vunpack.c.l.s4 1966171168
    %v7111 = vunpack.c.0.s8 %v7110
    %v7112 = vlaneseq
    %v7113 = vshrl.u32 %v7112, 7
    %v7114 = vsub.s32 %v7111, %v7113
    %v7115 = vrot.slane %v7101, %v7114
    %v7116 = vcombine.low %v7108, %v7115
    %v7118 = vunpack.c.l.s4 1966171168
    %v7119 = vunpack.c.0.s8 %v7118
    %v7120 = vlaneseq
    %v7121 = vshrl.u32 %v7120, 7
    %v7122 = vsub.s32 %v7119, %v7121
    %v7123 = vrot.slane %v7116, %v7122
    %s7125 = scalar_lea.vmem [#allocation7], 1
    %7126 = vst.msk [vmem:[%s7125] ss:$2 sm:$0xf] %vm6854, %v7123
    %v7127 = vld [vmem:[#allocation7] sm:$0xff]
    %v7129 = vcombine.high %v7127, %v7127
    %v7131 = vunpack.c.l.s4 1983009808
    %v7132 = vunpack.c.0.s8 %v7131
    %v7133 = vlaneseq
    %v7134 = vshrl.u32 %v7133, 7
    %v7135 = vsub.s32 %v7132, %v7134
    %v7136 = vrot.slane %v7127, %v7135
    %v7138 = vunpack.c.l.s4 1983009808
    %v7139 = vunpack.c.0.s8 %v7138
    %v7140 = vlaneseq
    %v7141 = vshrl.u32 %v7140, 7
    %v7142 = vsub.s32 %v7139, %v7141
    %v7143 = vrot.slane %v7129, %v7142
    %v7144 = vcombine.high %v7136, %v7136
    %v7145 = vcombine.high %v7143, %v7143
    %v7150 = vpack.c.bf16 %v7136, %v7136
    %v7151 = vpack.c.bf16 %v7144, %v7144
    %v7152 = vpack.c.bf16 %v7143, %v7143
    %v7153 = vpack.c.bf16 %v7145, %v7145
    %v7154 = vld [vmem:[%s8] sm:$0xf]
    %v7155 = vld [vmem:[%s8 + $0x4] sm:$0xf]
    %v7156 = vld [vmem:[%s8 + $0x8] sm:$0xf]
    %v7157 = vld [vmem:[%s8 + $0xc] sm:$0xf]
    %v7158 = vld [vmem:[%s8 + $0x10] sm:$0xf]
    %v7159 = vld [vmem:[%s8 + $0x14] sm:$0xf]
    %v7160 = vld [vmem:[%s8 + $0x18] sm:$0xf]
    %v7161 = vld [vmem:[%s8 + $0x1c] sm:$0xf]
    %v7162 = vld [vmem:[%s8 + $0x20] sm:$0xf]
    %v7163 = vld [vmem:[%s8 + $0x24] sm:$0xf]
    %v7164 = vld [vmem:[%s8 + $0x28] sm:$0xf]
    %v7165 = vld [vmem:[%s8 + $0x2c] sm:$0xf]
    %v7166 = vld [vmem:[%s8 + $0x30] sm:$0xf]
    %v7167 = vld [vmem:[%s8 + $0x34] sm:$0xf]
    %v7168 = vld [vmem:[%s8 + $0x38] sm:$0xf]
    %v7169 = vld [vmem:[%s8 + $0x3c] sm:$0xf]
    %v7170 = vld [vmem:[%s8 + $0x40] sm:$0xf]
    %v7171 = vld [vmem:[%s8 + $0x44] sm:$0xf]
    %v7172 = vld [vmem:[%s8 + $0x48] sm:$0xf]
    %v7173 = vld [vmem:[%s8 + $0x4c] sm:$0xf]
    %v7174 = vld [vmem:[%s8 + $0x50] sm:$0xf]
    %v7175 = vld [vmem:[%s8 + $0x54] sm:$0xf]
    %v7176 = vld [vmem:[%s8 + $0x58] sm:$0xf]
    %v7177 = vld [vmem:[%s8 + $0x5c] sm:$0xf]
    %v7178 = vld [vmem:[%s8 + $0x60] sm:$0xf]
    %v7179 = vld [vmem:[%s8 + $0x64] sm:$0xf]
    %v7180 = vld [vmem:[%s8 + $0x68] sm:$0xf]
    %v7181 = vld [vmem:[%s8 + $0x6c] sm:$0xf]
    %v7182 = vld [vmem:[%s8 + $0x70] sm:$0xf]
    %v7183 = vld [vmem:[%s8 + $0x74] sm:$0xf]
    %v7184 = vld [vmem:[%s8 + $0x78] sm:$0xf]
    %v7185 = vld [vmem:[%s8 + $0x7c] sm:$0xf]
    %v7186 = vld [vmem:[%s8 + $0x80] sm:$0xf]
    %v7187 = vld [vmem:[%s8 + $0x84] sm:$0xf]
    %v7188 = vld [vmem:[%s8 + $0x88] sm:$0xf]
    %v7189 = vld [vmem:[%s8 + $0x8c] sm:$0xf]
    %v7190 = vld [vmem:[%s8 + $0x90] sm:$0xf]
    %v7191 = vld [vmem:[%s8 + $0x94] sm:$0xf]
    %v7192 = vld [vmem:[%s8 + $0x98] sm:$0xf]
    %v7193 = vld [vmem:[%s8 + $0x9c] sm:$0xf]
    %v7194 = vld [vmem:[%s8 + $0xa0] sm:$0xf]
    %v7195 = vld [vmem:[%s8 + $0xa4] sm:$0xf]
    %v7196 = vld [vmem:[%s8 + $0xa8] sm:$0xf]
    %v7197 = vld [vmem:[%s8 + $0xac] sm:$0xf]
    %v7198 = vld [vmem:[%s8 + $0xb0] sm:$0xf]
    %v7199 = vld [vmem:[%s8 + $0xb4] sm:$0xf]
    %v7200 = vld [vmem:[%s8 + $0xb8] sm:$0xf]
    %v7201 = vld [vmem:[%s8 + $0xbc] sm:$0xf]
    %v7202 = vld [vmem:[%s8 + $0xc0] sm:$0xf]
    %v7203 = vld [vmem:[%s8 + $0xc4] sm:$0xf]
    %v7204 = vld [vmem:[%s9] sm:$0x1]
    %v7206 = vlaneseq
    %v7207 = vshrl.u32 %v7206, 7
    %v7208 = vsub.s32 0, %v7207
    %v7209 = vrot.slane %v7204, %v7208
    %v7261 = vunpack.c.l.b16 %v7154
    %v7262 = vunpack.c.l.b16 %v7155
    %v7263 = vunpack.c.l.b16 %v7156
    %v7264 = vunpack.c.l.b16 %v7157
    %v7265 = vunpack.c.l.b16 %v7158
    %v7266 = vunpack.c.l.b16 %v7159
    %v7267 = vunpack.c.l.b16 %v7160
    %v7268 = vunpack.c.l.b16 %v7161
    %v7269 = vunpack.c.l.b16 %v7162
    %v7270 = vunpack.c.l.b16 %v7163
    %v7271 = vunpack.c.l.b16 %v7164
    %v7272 = vunpack.c.l.b16 %v7165
    %v7273 = vunpack.c.l.b16 %v7166
    %v7274 = vunpack.c.l.b16 %v7167
    %v7275 = vunpack.c.l.b16 %v7168
    %v7276 = vunpack.c.l.b16 %v7169
    %v7277 = vunpack.c.l.b16 %v7170
    %v7278 = vunpack.c.l.b16 %v7171
    %v7279 = vunpack.c.l.b16 %v7172
    %v7280 = vunpack.c.l.b16 %v7173
    %v7281 = vunpack.c.l.b16 %v7174
    %v7282 = vunpack.c.l.b16 %v7175
    %v7283 = vunpack.c.l.b16 %v7176
    %v7284 = vunpack.c.l.b16 %v7177
    %v7285 = vunpack.c.l.b16 %v7178
    %v7286 = vunpack.c.l.b16 %v7179
    %v7287 = vunpack.c.l.b16 %v7180
    %v7288 = vunpack.c.l.b16 %v7181
    %v7289 = vunpack.c.l.b16 %v7182
    %v7290 = vunpack.c.l.b16 %v7183
    %v7291 = vunpack.c.l.b16 %v7184
    %v7292 = vunpack.c.l.b16 %v7185
    %v7293 = vunpack.c.l.b16 %v7186
    %v7294 = vunpack.c.l.b16 %v7187
    %v7295 = vunpack.c.l.b16 %v7188
    %v7296 = vunpack.c.l.b16 %v7189
    %v7297 = vunpack.c.l.b16 %v7190
    %v7298 = vunpack.c.l.b16 %v7191
    %v7299 = vunpack.c.l.b16 %v7192
    %v7300 = vunpack.c.l.b16 %v7193
    %v7301 = vunpack.c.l.b16 %v7194
    %v7302 = vunpack.c.l.b16 %v7195
    %v7303 = vunpack.c.l.b16 %v7196
    %v7304 = vunpack.c.l.b16 %v7197
    %v7305 = vunpack.c.l.b16 %v7198
    %v7306 = vunpack.c.l.b16 %v7199
    %v7307 = vunpack.c.l.b16 %v7200
    %v7308 = vunpack.c.l.b16 %v7201
    %v7309 = vunpack.c.l.b16 %v7202
    %v7310 = vunpack.c.l.b16 %v7203
    %v7311 = vpack.c.b16 %v7262, %v7261
    %v7312 = vpack.c.b16 %v7264, %v7263
    %v7313 = vpack.c.b16 %v7266, %v7265
    %v7314 = vpack.c.b16 %v7268, %v7267
    %v7315 = vpack.c.b16 %v7270, %v7269
    %v7316 = vpack.c.b16 %v7272, %v7271
    %v7317 = vpack.c.b16 %v7274, %v7273
    %v7318 = vpack.c.b16 %v7276, %v7275
    %v7319 = vpack.c.b16 %v7278, %v7277
    %v7320 = vpack.c.b16 %v7280, %v7279
    %v7321 = vpack.c.b16 %v7282, %v7281
    %v7322 = vpack.c.b16 %v7284, %v7283
    %v7323 = vpack.c.b16 %v7286, %v7285
    %v7324 = vpack.c.b16 %v7288, %v7287
    %v7325 = vpack.c.b16 %v7290, %v7289
    %v7326 = vpack.c.b16 %v7292, %v7291
    %v7327 = vpack.c.b16 %v7294, %v7293
    %v7328 = vpack.c.b16 %v7296, %v7295
    %v7329 = vpack.c.b16 %v7298, %v7297
    %v7330 = vpack.c.b16 %v7300, %v7299
    %v7331 = vpack.c.b16 %v7302, %v7301
    %v7332 = vpack.c.b16 %v7304, %v7303
    %v7333 = vpack.c.b16 %v7306, %v7305
    %v7334 = vpack.c.b16 %v7308, %v7307
    %v7335 = vpack.c.b16 %v7310, %v7309
    %v7362 = vsel %vm6736, %v7153, 0
    %7364 = vmatprep.subr.bf16.mxu0 0
    %7365 = vmatpush1.bf16.msra.mxu0 %v7318
    %7366 = vmatprep.subr.bf16.mxu0 0
    %7367 = vmatpush1.bf16.msra.mxu0 %v7317
    %7368 = vmatprep.subr.bf16.mxu0 0
    %7369 = vmatpush1.bf16.msra.mxu0 %v7316
    %7370 = vmatprep.subr.bf16.mxu0 0
    %7371 = vmatpush1.bf16.msra.mxu0 %v7315
    %7372 = vmatprep.subr.bf16.mxu0 0
    %7373 = vmatpush1.bf16.msra.mxu0 %v7314
    %7374 = vmatprep.subr.bf16.mxu0 0
    %7375 = vmatpush1.bf16.msra.mxu0 %v7313
    %7376 = vmatprep.subr.bf16.mxu0 0
    %7377 = vmatpush1.bf16.msra.mxu0 %v7312
    %7378 = vmatprep.subr.bf16.mxu0 0
    %7379 = vmatpush1.bf16.msra.mxu0 %v7311
    %7380 = vmatprep.subr.bf16.mxu0 0
    %7381 = vmatpush2.bf16.msra.mxu0 %v7326
    %7382 = vmatprep.subr.bf16.mxu0 0
    %7383 = vmatpush2.bf16.msra.mxu0 %v7325
    %7384 = vmatprep.subr.bf16.mxu0 0
    %7385 = vmatpush2.bf16.msra.mxu0 %v7324
    %7386 = vmatprep.subr.bf16.mxu0 0
    %7387 = vmatpush2.bf16.msra.mxu0 %v7323
    %7388 = vmatprep.subr.bf16.mxu0 0
    %7389 = vmatpush2.bf16.msra.mxu0 %v7322
    %7390 = vmatprep.subr.bf16.mxu0 0
    %7391 = vmatpush2.bf16.msra.mxu0 %v7321
    %7392 = vmatprep.subr.bf16.mxu0 0
    %7393 = vmatpush2.bf16.msra.mxu0 %v7320
    %7394 = vmatprep.subr.bf16.mxu0 0
    %7395 = vmatpush2.bf16.msra.mxu0 %v7319
    %7396 = vmatprep.mubr.bf16.mxu0 %v7151
    %7397 = vmatmul.mubr.bf16.gmra.mxu0 %v7150
    %v7398 = vpop.f32.mrf.mxu0
    %v7399 = vadd.f32 %v7209, %v7398
    %v7400 = vpop.f32.mrf.mxu0
    %v7401 = vpop.f32.mrf.mxu0
    %v7402 = vpop.f32.mrf.mxu0
    %7403 = vdwg.mxu0
    %7404 = vmatprep.subr.bf16.mxu0 0
    %7405 = vmatpush1.bf16.msra.mxu0 %v7334
    %7406 = vmatprep.subr.bf16.mxu0 0
    %7407 = vmatpush1.bf16.msra.mxu0 %v7333
    %7408 = vmatprep.subr.bf16.mxu0 0
    %7409 = vmatpush1.bf16.msra.mxu0 %v7332
    %7410 = vmatprep.subr.bf16.mxu0 0
    %7411 = vmatpush1.bf16.msra.mxu0 %v7331
    %7412 = vmatprep.subr.bf16.mxu0 0
    %7413 = vmatpush1.bf16.msra.mxu0 %v7330
    %7414 = vmatprep.subr.bf16.mxu0 0
    %7415 = vmatpush1.bf16.msra.mxu0 %v7329
    %7416 = vmatprep.subr.bf16.mxu0 0
    %7417 = vmatpush1.bf16.msra.mxu0 %v7328
    %7418 = vmatprep.subr.bf16.mxu0 0
    %7419 = vmatpush1.bf16.msra.mxu0 %v7327
    %7420 = vmatprep.subr.bf16.mxu0 0
    %7421 = vmatpush2.bf16.msra.mxu0 0
    %7422 = vmatprep.subr.bf16.mxu0 0
    %7423 = vmatpush2.bf16.msra.mxu0 0
    %7424 = vmatprep.subr.bf16.mxu0 0
    %7425 = vmatpush2.bf16.msra.mxu0 0
    %7426 = vmatprep.subr.bf16.mxu0 0
    %7427 = vmatpush2.bf16.msra.mxu0 0
    %7428 = vmatprep.subr.bf16.mxu0 0
    %7429 = vmatpush2.bf16.msra.mxu0 0
    %7430 = vmatprep.subr.bf16.mxu0 0
    %7431 = vmatpush2.bf16.msra.mxu0 0
    %7432 = vmatprep.subr.bf16.mxu0 0
    %7433 = vmatpush2.bf16.msra.mxu0 0
    %7434 = vmatprep.subr.bf16.mxu0 0
    %7435 = vmatpush2.bf16.msra.mxu0 %v7335
    %7436 = vmatprep.mubr.bf16.mxu0 %v7362
    %7437 = vmatmul.mubr.bf16.gmra.mxu0 %v7152
    %v7438 = vpop.f32.mrf.mxu0
    %v7439 = vadd.f32 %v7399, %v7438
    %v7440 = vpop.f32.mrf.mxu0
    %v7441 = vpop.f32.mrf.mxu0
    %v7442 = vpop.f32.mrf.mxu0
    %7443 = vdwg.mxu0
    %v7444 = vmax.f32 %v7439, 0.0
    %v7445 = vpack.c.bf16 %v7444, %v7444
    %v7446 = vld [vmem:[%s10] sm:$0xf]
    %v7447 = vld [vmem:[%s10 + $0x4] sm:$0xf]
    %v7448 = vld [vmem:[%s10 + $0x8] sm:$0xf]
    %v7449 = vld [vmem:[%s10 + $0xc] sm:$0xf]
    %v7450 = vld [vmem:[%s10 + $0x10] sm:$0xf]
    %v7451 = vld [vmem:[%s10 + $0x14] sm:$0xf]
    %v7452 = vld [vmem:[%s10 + $0x18] sm:$0xf]
    %v7453 = vld [vmem:[%s10 + $0x1c] sm:$0xf]
    %v7454 = vld [vmem:[%s10 + $0x20] sm:$0xf]
    %v7455 = vld [vmem:[%s10 + $0x24] sm:$0xf]
    %v7456 = vld [vmem:[%s10 + $0x28] sm:$0xf]
    %v7457 = vld [vmem:[%s10 + $0x2c] sm:$0xf]
    %v7458 = vld [vmem:[%s10 + $0x30] sm:$0xf]
    %v7459 = vld [vmem:[%s10 + $0x34] sm:$0xf]
    %v7460 = vld [vmem:[%s10 + $0x38] sm:$0xf]
    %v7461 = vld [vmem:[%s10 + $0x3c] sm:$0xf]
    %v7462 = vld [vmem:[%s11] sm:$0x1]
    %v7464 = vlaneseq
    %v7465 = vshrl.u32 %v7464, 7
    %v7466 = vsub.s32 0, %v7465
    %v7467 = vrot.slane %v7462, %v7466
    %v7485 = vunpack.c.l.b16 %v7446
    %v7486 = vunpack.c.l.b16 %v7447
    %v7487 = vunpack.c.l.b16 %v7448
    %v7488 = vunpack.c.l.b16 %v7449
    %v7489 = vunpack.c.l.b16 %v7450
    %v7490 = vunpack.c.l.b16 %v7451
    %v7491 = vunpack.c.l.b16 %v7452
    %v7492 = vunpack.c.l.b16 %v7453
    %v7493 = vunpack.c.l.b16 %v7454
    %v7494 = vunpack.c.l.b16 %v7455
    %v7495 = vunpack.c.l.b16 %v7456
    %v7496 = vunpack.c.l.b16 %v7457
    %v7497 = vunpack.c.l.b16 %v7458
    %v7498 = vunpack.c.l.b16 %v7459
    %v7499 = vunpack.c.l.b16 %v7460
    %v7500 = vunpack.c.l.b16 %v7461
    %v7501 = vpack.c.b16 %v7486, %v7485
    %v7502 = vpack.c.b16 %v7488, %v7487
    %v7503 = vpack.c.b16 %v7490, %v7489
    %v7504 = vpack.c.b16 %v7492, %v7491
    %v7505 = vpack.c.b16 %v7494, %v7493
    %v7506 = vpack.c.b16 %v7496, %v7495
    %v7507 = vpack.c.b16 %v7498, %v7497
    %v7508 = vpack.c.b16 %v7500, %v7499
    %7517 = vmatprep.subr.bf16.mxu0 0
    %7518 = vmatpush1.bf16.msra.mxu0 %v7508
    %7519 = vmatprep.subr.bf16.mxu0 0
    %7520 = vmatpush1.bf16.msra.mxu0 %v7507
    %7521 = vmatprep.subr.bf16.mxu0 0
    %7522 = vmatpush1.bf16.msra.mxu0 %v7506
    %7523 = vmatprep.subr.bf16.mxu0 0
    %7524 = vmatpush1.bf16.msra.mxu0 %v7505
    %7525 = vmatprep.subr.bf16.mxu0 0
    %7526 = vmatpush1.bf16.msra.mxu0 %v7504
    %7527 = vmatprep.subr.bf16.mxu0 0
    %7528 = vmatpush1.bf16.msra.mxu0 %v7503
    %7529 = vmatprep.subr.bf16.mxu0 0
    %7530 = vmatpush1.bf16.msra.mxu0 %v7502
    %7531 = vmatprep.subr.bf16.mxu0 0
    %7532 = vmatpush1.bf16.msra.mxu0 %v7501
    %7533 = vmatprep.subr.bf16.mxu0 0
    %7534 = vmatpush2.bf16.msra.mxu0 0
    %7535 = vmatprep.subr.bf16.mxu0 0
    %7536 = vmatpush2.bf16.msra.mxu0 0
    %7537 = vmatprep.subr.bf16.mxu0 0
    %7538 = vmatpush2.bf16.msra.mxu0 0
    %7539 = vmatprep.subr.bf16.mxu0 0
    %7540 = vmatpush2.bf16.msra.mxu0 0
    %7541 = vmatprep.subr.bf16.mxu0 0
    %7542 = vmatpush2.bf16.msra.mxu0 0
    %7543 = vmatprep.subr.bf16.mxu0 0
    %7544 = vmatpush2.bf16.msra.mxu0 0
    %7545 = vmatprep.subr.bf16.mxu0 0
    %7546 = vmatpush2.bf16.msra.mxu0 0
    %7547 = vmatprep.subr.bf16.mxu0 0
    %7548 = vmatpush2.bf16.msra.mxu0 0
    %7549 = vmatprep.mubr.bf16.mxu0 0
    %7550 = vmatmul.mubr.bf16.gmra.mxu0 %v7445
    %v7551 = vpop.f32.mrf.mxu0
    %v7552 = vadd.f32 %v7467, %v7551
    %v7553 = vpop.f32.mrf.mxu0
    %v7554 = vpop.f32.mrf.mxu0
    %v7555 = vpop.f32.mrf.mxu0
    %7556 = vdwg.mxu0
    %v7557 = vmax.f32 %v7552, 0.0
    %v7558 = vpack.c.bf16 %v7557, %v7557
    %v7559 = vld [vmem:[%s12] sm:$0xf]
    %v7560 = vld [vmem:[%s12 + $0x4] sm:$0xf]
    %v7561 = vld [vmem:[%s12 + $0x8] sm:$0xf]
    %v7562 = vld [vmem:[%s12 + $0xc] sm:$0xf]
    %v7563 = vld [vmem:[%s12 + $0x10] sm:$0xf]
    %v7564 = vld [vmem:[%s12 + $0x14] sm:$0xf]
    %v7565 = vld [vmem:[%s12 + $0x18] sm:$0xf]
    %v7566 = vld [vmem:[%s12 + $0x1c] sm:$0xf]
    %v7567 = vld [vmem:[%s12 + $0x20] sm:$0xf]
    %v7568 = vld [vmem:[%s12 + $0x24] sm:$0xf]
    %v7569 = vld [vmem:[%s12 + $0x28] sm:$0xf]
    %v7570 = vld [vmem:[%s12 + $0x2c] sm:$0xf]
    %v7571 = vld [vmem:[%s12 + $0x30] sm:$0xf]
    %v7572 = vld [vmem:[%s12 + $0x34] sm:$0xf]
    %v7573 = vld [vmem:[%s12 + $0x38] sm:$0xf]
    %v7574 = vld [vmem:[%s12 + $0x3c] sm:$0xf]
    %v7575 = vld [vmem:[%s13] sm:$0x1]
    %v7577 = vlaneseq
    %v7578 = vshrl.u32 %v7577, 7
    %v7579 = vsub.s32 0, %v7578
    %v7580 = vrot.slane %v7575, %v7579
    %v7598 = vunpack.c.l.b16 %v7559
    %v7599 = vunpack.c.l.b16 %v7560
    %v7600 = vunpack.c.l.b16 %v7561
    %v7601 = vunpack.c.l.b16 %v7562
    %v7602 = vunpack.c.l.b16 %v7563
    %v7603 = vunpack.c.l.b16 %v7564
    %v7604 = vunpack.c.l.b16 %v7565
    %v7605 = vunpack.c.l.b16 %v7566
    %v7606 = vunpack.c.l.b16 %v7567
    %v7607 = vunpack.c.l.b16 %v7568
    %v7608 = vunpack.c.l.b16 %v7569
    %v7609 = vunpack.c.l.b16 %v7570
    %v7610 = vunpack.c.l.b16 %v7571
    %v7611 = vunpack.c.l.b16 %v7572
    %v7612 = vunpack.c.l.b16 %v7573
    %v7613 = vunpack.c.l.b16 %v7574
    %v7614 = vpack.c.b16 %v7599, %v7598
    %v7615 = vpack.c.b16 %v7601, %v7600
    %v7616 = vpack.c.b16 %v7603, %v7602
    %v7617 = vpack.c.b16 %v7605, %v7604
    %v7618 = vpack.c.b16 %v7607, %v7606
    %v7619 = vpack.c.b16 %v7609, %v7608
    %v7620 = vpack.c.b16 %v7611, %v7610
    %v7621 = vpack.c.b16 %v7613, %v7612
    %7630 = vmatprep.subr.bf16.mxu0 0
    %7631 = vmatpush1.bf16.msra.mxu0 %v7621
    %7632 = vmatprep.subr.bf16.mxu0 0
    %7633 = vmatpush1.bf16.msra.mxu0 %v7620
    %7634 = vmatprep.subr.bf16.mxu0 0
    %7635 = vmatpush1.bf16.msra.mxu0 %v7619
    %7636 = vmatprep.subr.bf16.mxu0 0
    %7637 = vmatpush1.bf16.msra.mxu0 %v7618
    %7638 = vmatprep.subr.bf16.mxu0 0
    %7639 = vmatpush1.bf16.msra.mxu0 %v7617
    %7640 = vmatprep.subr.bf16.mxu0 0
    %7641 = vmatpush1.bf16.msra.mxu0 %v7616
    %7642 = vmatprep.subr.bf16.mxu0 0
    %7643 = vmatpush1.bf16.msra.mxu0 %v7615
    %7644 = vmatprep.subr.bf16.mxu0 0
    %7645 = vmatpush1.bf16.msra.mxu0 %v7614
    %7646 = vmatprep.subr.bf16.mxu0 0
    %7647 = vmatpush2.bf16.msra.mxu0 0
    %7648 = vmatprep.subr.bf16.mxu0 0
    %7649 = vmatpush2.bf16.msra.mxu0 0
    %7650 = vmatprep.subr.bf16.mxu0 0
    %7651 = vmatpush2.bf16.msra.mxu0 0
    %7652 = vmatprep.subr.bf16.mxu0 0
    %7653 = vmatpush2.bf16.msra.mxu0 0
    %7654 = vmatprep.subr.bf16.mxu0 0
    %7655 = vmatpush2.bf16.msra.mxu0 0
    %7656 = vmatprep.subr.bf16.mxu0 0
    %7657 = vmatpush2.bf16.msra.mxu0 0
    %7658 = vmatprep.subr.bf16.mxu0 0
    %7659 = vmatpush2.bf16.msra.mxu0 0
    %7660 = vmatprep.subr.bf16.mxu0 0
    %7661 = vmatpush2.bf16.msra.mxu0 0
    %7662 = vmatprep.mubr.bf16.mxu0 0
    %7663 = vmatmul.mubr.bf16.gmra.mxu0 %v7558
    %v7664 = vpop.f32.mrf.mxu0
    %v7665 = vadd.f32 %v7580, %v7664
    %v7666 = vpop.f32.mrf.mxu0
    %v7667 = vpop.f32.mrf.mxu0
    %v7668 = vpop.f32.mrf.mxu0
    %7669 = vdwg.mxu0
    %7670 = vst [vmem:[#allocation8] sm:$0x3] %v7665
    // Predicated region
    $region58: #{net_forward.1} parent=1 // pred_check
      _
    $region59: #{net_forward.1} parent=1 // pred_check_branch
      %7672 = sbr.rel (0) target = $region61
    $region60: #{net_forward.1} parent=1 // pred_region
      %s7674 = ssub.s32 32, 32
      %7675 = vsyncadd [#allocation9], %s7674
      %s7677 = sshll.u32 [#allocation8], 4
      %s7678 = int_to_ptr.vmem [resolvable:$true] %s7677
      %7680 = dma.vmem_to_hbm [thread:$0]  %s7678, 32, %s14, [#allocation9]
    $region61: #{net_forward.1} parent=1 // pred_fallthru
      _
    // Predicated region
    $region62: #{net_forward.1} parent=1 // pred_check
      _
    $region63: #{net_forward.1} parent=1 // pred_check_branch
      %7682 = sbr.rel (0) target = $region65
    $region64: #{net_forward.1} parent=1 // pred_region
      %7683 = dma.done [#allocation9], 32
    $region65: #{net_forward.1} parent=1 // pred_fallthru
      _
    %7684 = vsyncpa [#allocation9], 1

</llo_original>
